<compile_context>
chip_gen: v6e
topology: v6e:2x2x1
jax: 0.10.0
libtpu: 0.0.40
codegen_flags: <defaults>
</compile_context>

<pallas_src>
import functools

import jax
import jax.numpy as jnp
from jax.experimental import pallas as pl
from jax.experimental.pallas import tpu as pltpu


_VMEM_LIMIT = 32 * 1024 * 1024  # safe on v5e/v6e (128 MiB VMEM) and v7x (64 MiB)


# ---------------------------------------------------------------------------
# small helpers
# ---------------------------------------------------------------------------
def _round_up(x, m):
    return (x + m - 1) // m * m


def _pick_m_tile(m, cap=256):
    """Row tile: multiple of 16 (native bf16 sublane packing), capped."""
    mp = _round_up(m, 16)
    if mp <= cap:
        return mp, mp
    mp = _round_up(m, cap)
    return cap, mp


def _pick_row_tile(r):
    for t in (512, 256, 128, 64, 32, 16, 8):
        if r % t == 0:
            return t
    return r


# ---------------------------------------------------------------------------
# Pallas kernel 1: single-shot batched matmul + bias + activation
#                  (+ optional fused per-channel BatchNorm sum / sum-sq)
# ---------------------------------------------------------------------------
def _fused_matmul_kernel(a_ref, w_ref, b_ref, o_ref, *stat_refs,
                         act, with_stats, needs_mask, m_valid, tm):
    # nk == 1: the whole K dimension is one VMEM block -> no accumulator
    # scratch, no pl.when init/finalize, no K grid axis.
    y = jnp.dot(a_ref[0], w_ref[0], preferred_element_type=jnp.float32)
    y = y + b_ref[...]                                    # (tm,tn) + (1,tn)
    if act == "relu":
        y = jnp.maximum(y, 0.0)
    elif act == "sigmoid":
        y = jax.nn.sigmoid(y)
    o_ref[0] = y.astype(o_ref.dtype)

    if with_stats:
        s_ref, q_ref = stat_refs
        ym = y
        if needs_mask:
            # cheap (tm,1) valid-row mask; program_id is at kernel top level
            row = pl.program_id(1) * tm + jax.lax.broadcasted_iota(
                jnp.int32, (tm, 1), 0)
            ym = jnp.where(row < m_valid, y, 0.0)
        s_ref[0, 0] = jnp.sum(ym, axis=0, keepdims=True)          # (1,tn)
        q_ref[0, 0] = jnp.sum(ym * ym, axis=0, keepdims=True)     # (1,tn)


def fused_matmul(a, w, bias, *, act="none", with_stats=False,
                 out_dtype=jnp.bfloat16):
    """y[b] = act(a[b] @ w[b] + bias), optional fused per-channel sum/sum-sq.

    a:    (B, M, K)  activations (cast to bf16)
    w:    (B, K, Np) pre-padded bf16 weights (Np multiple of 128, K mult. 16)
    bias: (1, Np)    f32
    Returns (y (B, Mp, Np), sums, sumsqs); sums/sumsqs are (B, nm, 1, Np) f32
    per-M-tile partials (None when with_stats=False).
    """
    B, M, K = a.shape
    Bw, Kw, Np = w.shape
    assert Bw == B and Np % 128 == 0

    tm, Mp = _pick_m_tile(M)
    nm = Mp // tm
    tn = Np if Np <= 512 else 512
    # make sure v7x's second TensorCore gets work on single-tile layers
    if B * nm * (Np // tn) < 2 and tn > 128:
        tn = 128
    nn = Np // tn

    a = a.astype(jnp.bfloat16)
    if K != Kw:
        a = jnp.pad(a, ((0, 0), (0, 0), (0, Kw - K)))
    if Mp != M:
        a = jnp.pad(a, ((0, 0), (0, Mp - M), (0, 0)))

    kernel = functools.partial(
        _fused_matmul_kernel, act=act, with_stats=with_stats,
        needs_mask=(Mp != M), m_valid=M, tm=tm)

    out_shape = [jax.ShapeDtypeStruct((B, Mp, Np), out_dtype)]
    out_specs = [pl.BlockSpec((1, tm, tn), lambda b, i, j: (b, i, j))]
    if with_stats:
        out_shape += [jax.ShapeDtypeStruct((B, nm, 1, Np), jnp.float32)] * 2
        out_specs += [pl.BlockSpec((1, 1, 1, tn),
                                   lambda b, i, j: (b, i, 0, j))] * 2

    outs = pl.pallas_call(
        kernel,
        grid=(B, nm, nn),
        in_specs=[
            pl.BlockSpec((1, tm, Kw), lambda b, i, j: (b, i, 0)),
            pl.BlockSpec((1, Kw, tn), lambda b, i, j: (b, 0, j)),
            pl.BlockSpec((1, tn), lambda b, i, j: (0, j)),
        ],
        out_specs=out_specs,
        out_shape=out_shape,
        compiler_params=pltpu.CompilerParams(
            dimension_semantics=("parallel", "parallel", "parallel"),
            vmem_limit_bytes=_VMEM_LIMIT,
        ),
    )(a, w, bias)

    if with_stats:
        return outs[0], outs[1], outs[2]
    return outs[0], None, None


# ---------------------------------------------------------------------------
# Pallas kernel 2: per-channel affine + ReLU (BatchNorm normalize), tiled
# ---------------------------------------------------------------------------
def _affine_relu_kernel(x_ref, s_ref, t_ref, o_ref):
    y = x_ref[...].astype(jnp.float32) * s_ref[...] + t_ref[...]
    o_ref[...] = jnp.maximum(y, 0.0).astype(o_ref.dtype)


def affine_relu(x, scale, shift, out_dtype=jnp.bfloat16):
    """relu(x * scale + shift), tiled over rows.  x:(R,C), R already 16-aligned."""
    R, C = x.shape
    tr = _pick_row_tile(R)
    return pl.pallas_call(
        _affine_relu_kernel,
        grid=(R // tr,),
        in_specs=[
            pl.BlockSpec((tr, C), lambda i: (i, 0)),
            pl.BlockSpec((1, C), lambda i: (0, 0)),
            pl.BlockSpec((1, C), lambda i: (0, 0)),
        ],
        out_specs=pl.BlockSpec((tr, C), lambda i: (i, 0)),
        out_shape=jax.ShapeDtypeStruct((R, C), out_dtype),
        compiler_params=pltpu.CompilerParams(
            dimension_semantics=("parallel",),
            vmem_limit_bytes=_VMEM_LIMIT,
        ),
    )(x, scale.reshape(1, C), shift.reshape(1, C))


# ---------------------------------------------------------------------------
# JAX glue: patch extraction / phase interleave / BN scale-shift
# ---------------------------------------------------------------------------
def _im2col(x, k, stride, pad):
    """x:(N,H,W,C) -> patches (N*Ho*Wo, k*k*C) ordered (kh, kw, c)."""
    N, H, W, C = x.shape
    xp = jnp.pad(x, ((0, 0), (pad, pad), (pad, pad), (0, 0)))
    Ho = (H + 2 * pad - k) // stride + 1
    Wo = (W + 2 * pad - k) // stride + 1
    cols = []
    for kh in range(k):
        for kw in range(k):
            cols.append(
                xp[:, kh:kh + stride * Ho:stride, kw:kw + stride * Wo:stride, :])
    patches = jnp.stack(cols, axis=3)                     # (N,Ho,Wo,k*k,C)
    return patches.reshape(N * Ho * Wo, k * k * C), Ho, Wo


def _phase_im2col(x):
    """Stride-parity patches for ConvTranspose2d(k=4, s=2, p=1).

    x:(N,H,W,C) -> (4, N*H*W, 4*C); phase order (po,pw)=(0,0),(0,1),(1,0),(1,1)."""
    N, H, W, C = x.shape
    xp = jnp.pad(x, ((0, 0), (1, 1), (1, 1), (0, 0)))
    phases = []
    for po in (0, 1):
        for pw in (0, 1):
            taps = []
            for a in (0, 1):
                for b in (0, 1):
                    taps.append(xp[:, po + a:po + a + H, pw + b:pw + b + W, :])
            p = jnp.stack(taps, axis=3)                   # (N,H,W,4,C)
            phases.append(p.reshape(N * H * W, 4 * C))
    return jnp.stack(phases, axis=0)                      # (4, M, 4C)


def _interleave_phases(yp, N, H, W, C):
    """yp:(4, N*H*W, C) phase outputs -> (N, 2H, 2W, C)."""
    # TODO(synk): could be folded into the Pallas output via a phase-strided
    # out BlockSpec / manual DMA; kept in XLA for now.
    yp = yp.reshape(2, 2, N, H, W, C)                     # (po,pw,N,H,W,C)
    yp = jnp.transpose(yp, (2, 3, 0, 4, 1, 5))            # (N,H,po,W,pw,C)
    return yp.reshape(N, 2 * H, 2 * W, C)


def _bn_scale_shift(s, q, count, gamma, beta, eps=1e-5):
    mean = s / count
    var = jnp.maximum(q / count - mean * mean, 0.0)       # biased (training) var
    scale = gamma / jnp.sqrt(var + eps)
    shift = beta - mean * scale
    return scale, shift


# ---------------------------------------------------------------------------
# Layer wrappers
# ---------------------------------------------------------------------------
def conv_act(x, wp, *, cout, act, out_dtype=jnp.bfloat16):
    """Conv2d(k=4, s=2, p=1) + activation.  NHWC -> NHWC."""
    N = x.shape[0]
    a, Ho, Wo = _im2col(x, 4, 2, 1)
    M = a.shape[0]
    y, _, _ = fused_matmul(a[None], wp["w"], wp["b"], act=act,
                           with_stats=False, out_dtype=out_dtype)
    return y[0, :M, :cout].reshape(N, Ho, Wo, cout)


def conv_bn_relu(x, wp, bn, *, cout):
    """Conv2d(k=4, s=2, p=1) + BatchNorm2d(batch stats) + ReLU."""
    N = x.shape[0]
    a, Ho, Wo = _im2col(x, 4, 2, 1)
    M = a.shape[0]
    y, s, q = fused_matmul(a[None], wp["w"], wp["b"], act="none",
                           with_stats=True, out_dtype=jnp.bfloat16)
    Np = y.shape[-1]
    s_c = s[0, :, 0, :cout].sum(axis=0)
    q_c = q[0, :, 0, :cout].sum(axis=0)
    scale, shift = _bn_scale_shift(s_c, q_c, float(M), bn["g"], bn["b"])
    scale = jnp.pad(scale, (0, Np - cout))
    shift = jnp.pad(shift, (0, Np - cout))
    z = affine_relu(y[0], scale, shift)                   # (Mp, Np) bf16
    return z[:M, :cout].reshape(N, Ho, Wo, cout)


def deconv_bn_relu(x, wp, bn, *, cout):
    """ConvTranspose2d(k=4, s=2, p=1) + BatchNorm2d(batch stats) + ReLU."""
    N, H, W, _ = x.shape
    a = _phase_im2col(x)                                  # (4, M, 4C)
    M = a.shape[1]
    y, s, q = fused_matmul(a, wp["w"], wp["b"], act="none",
                           with_stats=True, out_dtype=jnp.bfloat16)
    _, Mp, Np = y.shape
    s_c = s[:, :, 0, :cout].sum(axis=(0, 1))
    q_c = q[:, :, 0, :cout].sum(axis=(0, 1))
    scale, shift = _bn_scale_shift(s_c, q_c, 4.0 * M, bn["g"], bn["b"])
    scale = jnp.pad(scale, (0, Np - cout))
    shift = jnp.pad(shift, (0, Np - cout))
    z = affine_relu(y.reshape(4 * Mp, Np), scale, shift)  # bf16
    z = z.reshape(4, Mp, Np)[:, :M, :cout]
    return _interleave_phases(z, N, H, W, cout)


def deconv_act(x, wp, *, cout, act):
    """ConvTranspose2d(k=4, s=2, p=1) + activation (f32 out)."""
    N, H, W, _ = x.shape
    a = _phase_im2col(x)
    M = a.shape[1]
    y, _, _ = fused_matmul(a, wp["w"], wp["b"], act=act,
                           with_stats=False, out_dtype=jnp.float32)
    z = y[:, :M, :cout]
    return _interleave_phases(z, N, H, W, cout)


# ---------------------------------------------------------------------------
# Parameters: raw (PyTorch layouts) + one-time matmul-form preprocessing
# ---------------------------------------------------------------------------
def init_params(key):
    def nrm(k, shape, std=0.05):
        return std * jax.random.normal(k, shape, dtype=jnp.float32)

    ks = jax.random.split(key, 6)
    return {
        # encoder convs (PyTorch Conv2d layout: Cout, Cin, 4, 4)
        "e1_w": nrm(ks[0], (64, 3, 4, 4)),    "e1_b": jnp.zeros((64,), jnp.float32),
        "e2_w": nrm(ks[1], (128, 64, 4, 4)),  "e2_b": jnp.zeros((128,), jnp.float32),
        "e3_w": nrm(ks[2], (256, 128, 4, 4)), "e3_b": jnp.zeros((256,), jnp.float32),
        "bn_e2_g": jnp.ones((128,), jnp.float32), "bn_e2_b": jnp.zeros((128,), jnp.float32),
        "bn_e3_g": jnp.ones((256,), jnp.float32), "bn_e3_b": jnp.zeros((256,), jnp.float32),
        # decoder transposed convs (PyTorch ConvTranspose2d layout: Cin, Cout, 4, 4)
        "d1_w": nrm(ks[3], (256, 128, 4, 4)), "d1_b": jnp.zeros((128,), jnp.float32),
        "d2_w": nrm(ks[4], (128, 64, 4, 4)),  "d2_b": jnp.zeros((64,), jnp.float32),
        "d3_w": nrm(ks[5], (64, 3, 4, 4)),    "d3_b": jnp.zeros((3,), jnp.float32),
        "bn_d1_g": jnp.ones((128,), jnp.float32), "bn_d1_b": jnp.zeros((128,), jnp.float32),
        "bn_d2_g": jnp.ones((64,), jnp.float32),  "bn_d2_b": jnp.zeros((64,), jnp.float32),
    }


def _pad_matmul_weight(wf, b):
    """wf:(B,K,N) f32, b:(N,) -> bf16 (B,Kp,Np) (K mult. 16, N mult. 128) + f32 bias."""
    B, K, N = wf.shape
    Kp, Np = _round_up(K, 16), _round_up(N, 128)
    wfp = jnp.pad(wf, ((0, 0), (0, Kp - K), (0, Np - N))).astype(jnp.bfloat16)
    bp = jnp.pad(b.astype(jnp.float32), (0, Np - N)).reshape(1, Np)
    return {"w": wfp, "b": bp}


def _prep_conv(w, b):
    """Conv2d weight (Cout,Cin,4,4) -> (1, 16*Cin, Cout) matmul operand."""
    Cout, Cin, K, _ = w.shape
    wf = jnp.transpose(w, (2, 3, 1, 0)).reshape(1, K * K * Cin, Cout)
    return _pad_matmul_weight(wf, b)


def _prep_deconv(w, b):
    """ConvTranspose2d weight (Cin,Cout,4,4) -> (4, 4*Cin, Cout): one 2x2
    sub-kernel per output stride-parity phase (po,pw)."""
    Cin, Cout = w.shape[0], w.shape[1]
    phase_ws = []
    for po in (0, 1):
        for pw in (0, 1):
            taps = []
            for a in (0, 1):
                for bb in (0, 1):
                    taps.append(w[:, :, 3 - po - 2 * a, 3 - pw - 2 * bb])
            phase_ws.append(jnp.stack(taps, axis=0).reshape(4 * Cin, Cout))
    wf = jnp.stack(phase_ws, axis=0)                      # (4, 4*Cin, Cout)
    return _pad_matmul_weight(wf, b)


def prepare_params(p):
    """One-time weight preprocessing (hoisted out of the forward pass)."""
    return {
        "e1": _prep_conv(p["e1_w"], p["e1_b"]),
        "e2": _prep_conv(p["e2_w"], p["e2_b"]),
        "e3": _prep_conv(p["e3_w"], p["e3_b"]),
        "d1": _prep_deconv(p["d1_w"], p["d1_b"]),
        "d2": _prep_deconv(p["d2_w"], p["d2_b"]),
        "d3": _prep_deconv(p["d3_w"], p["d3_b"]),
        "bn_e2": {"g": p["bn_e2_g"], "b": p["bn_e2_b"]},
        "bn_e3": {"g": p["bn_e3_g"], "b": p["bn_e3_b"]},
        "bn_d1": {"g": p["bn_d1_g"], "b": p["bn_d1_b"]},
        "bn_d2": {"g": p["bn_d2_g"], "b": p["bn_d2_b"]},
    }


# ---------------------------------------------------------------------------
# Model forward
# ---------------------------------------------------------------------------
@jax.jit
def dfnet_forward(x_nchw, p):
    x = jnp.transpose(x_nchw, (0, 2, 3, 1)).astype(jnp.bfloat16)   # -> NHWC
    # ---- encoder ----
    x = conv_act(x, p["e1"], cout=64, act="relu")                  # (N,H/2,W/2,64)
    x = conv_bn_relu(x, p["e2"], p["bn_e2"], cout=128)             # (N,H/4,W/4,128)
    x = conv_bn_relu(x, p["e3"], p["bn_e3"], cout=256)             # (N,H/8,W/8,256)
    # ---- decoder ----
    x = deconv_bn_relu(x, p["d1"], p["bn_d1"], cout=128)           # (N,H/4,W/4,128)
    x = deconv_bn_relu(x, p["d2"], p["bn_d2"], cout=64)            # (N,H/2,W/2,64)
    x = deconv_act(x, p["d3"], cout=3, act="sigmoid")              # (N,H,W,3) f32
    return jnp.transpose(x, (0, 3, 1, 2)).astype(jnp.float32)      # -> NCHW


if __name__ == "__main__":
    key = jax.random.PRNGKey(0)
    k_param, k_input = jax.random.split(key)
    params = prepare_params(init_params(k_param))

    x = jax.random.uniform(k_input, (2, 3, 16, 16), dtype=jnp.float32)

    y = dfnet_forward(x, params)
    y = jax.block_until_ready(y)

    assert y.shape == (2, 3, 16, 16), y.shape
    assert bool(jnp.all(jnp.isfinite(y)))
    assert bool(jnp.all((y >= 0.0) & (y <= 1.0)))   # sigmoid output range
    print("KERNEL_OK")
</pallas_src>

<mosaic_0001>
module attributes {stable_mosaic.version = 11 : i64} {
  func.func @_fused_matmul_kernel(%arg0: i32, %arg1: i32, %arg2: i32, %arg3: memref<1x128x48xbf16, #tpu.memory_space<vmem>>, %arg4: memref<1x48x128xbf16, #tpu.memory_space<vmem>>, %arg5: memref<1x128xf32, #tpu.memory_space<vmem>>, %arg6: memref<1x128x128xbf16, #tpu.memory_space<vmem>>) attributes {dimension_semantics = [#tpu.dimension_semantics<parallel>, #tpu.dimension_semantics<parallel>, #tpu.dimension_semantics<parallel>], iteration_bounds = array<i64: 1, 1, 1>, scalar_prefetch = 0 : i64, scratch_operands = 0 : i64, tpu.core_type = #tpu.core_type<tc>, window_params = [{transform_indices = @transform_0, window_bounds = array<i64: 1, 128, 48>}, {transform_indices = @transform_1, window_bounds = array<i64: 1, 48, 128>}, {transform_indices = @transform_2, window_bounds = array<i64: 1, 128>}, {transform_indices = @transform_3, window_bounds = array<i64: 1, 128, 128>}]} {
    %c0 = arith.constant 0 : index
    %c0_0 = arith.constant 0 : index
    %c0_1 = arith.constant 0 : index
    %0 = vector.load %arg3[%c0, %c0_0, %c0_1] : memref<1x128x48xbf16, #tpu.memory_space<vmem>>, vector<1x128x48xbf16>
    %1 = vector.shape_cast %0 : vector<1x128x48xbf16> to vector<128x48xbf16>
    %c0_2 = arith.constant 0 : index
    %c0_3 = arith.constant 0 : index
    %c0_4 = arith.constant 0 : index
    %2 = vector.load %arg4[%c0_2, %c0_3, %c0_4] : memref<1x48x128xbf16, #tpu.memory_space<vmem>>, vector<1x48x128xbf16>
    %3 = vector.shape_cast %2 : vector<1x48x128xbf16> to vector<48x128xbf16>
    %cst = arith.constant dense<0.000000e+00> : vector<128x128xf32>
    %4 = tpu.matmul %1, %3, %cst {dimension_numbers = #tpu.dot_dimension_numbers<[1], [0], [0], [1], [0, 0, 1, 1], [], []>} : vector<128x48xbf16>, vector<48x128xbf16>, vector<128x128xf32> -> vector<128x128xf32>
    %c0_5 = arith.constant 0 : index
    %c0_6 = arith.constant 0 : index
    %5 = vector.load %arg5[%c0_5, %c0_6] : memref<1x128xf32, #tpu.memory_space<vmem>>, vector<1x128xf32>
    %6 = vector.broadcast %5 : vector<1x128xf32> to vector<128x128xf32>
    %7 = arith.addf %4, %6 : vector<128x128xf32>
    %cst_7 = arith.constant 0.000000e+00 : f32
    %8 = vector.broadcast %cst_7 : f32 to vector<128x128xf32>
    %9 = arith.maximumf %7, %8 : vector<128x128xf32>
    %10 = arith.truncf %9 : vector<128x128xf32> to vector<128x128xbf16>
    %c0_8 = arith.constant 0 : index
    %c0_9 = arith.constant 0 : index
    %c0_10 = arith.constant 0 : index
    %11 = vector.load %arg6[%c0_8, %c0_9, %c0_10] : memref<1x128x128xbf16, #tpu.memory_space<vmem>>, vector<1x128x128xbf16>
    %12 = vector.shape_cast %11 : vector<1x128x128xbf16> to vector<128x128xbf16>
    %13 = vector.shape_cast %10 : vector<128x128xbf16> to vector<1x128x128xbf16>
    tpu.vector_store %arg6[%c0_8, %c0_9, %c0_10], %13 {strides = array<i32>} : memref<1x128x128xbf16, #tpu.memory_space<vmem>>, vector<1x128x128xbf16>,
    return
  }
  func.func @transform_0(%arg0: i32, %arg1: i32, %arg2: i32) -> (i32, i32, i32) {
    %c0_i32 = arith.constant 0 : i32
    %c0_i32_0 = arith.constant 0 : i32
    return %arg0, %arg1, %c0_i32 : i32, i32, i32
  }
  func.func @transform_1(%arg0: i32, %arg1: i32, %arg2: i32) -> (i32, i32, i32) {
    %c0_i32 = arith.constant 0 : i32
    %c0_i32_0 = arith.constant 0 : i32
    return %arg0, %c0_i32, %arg2 : i32, i32, i32
  }
  func.func @transform_2(%arg0: i32, %arg1: i32, %arg2: i32) -> (i32, i32) {
    %c0_i32 = arith.constant 0 : i32
    %c0_i32_0 = arith.constant 0 : i32
    return %c0_i32, %arg2 : i32, i32
  }
  func.func @transform_3(%arg0: i32, %arg1: i32, %arg2: i32) -> (i32, i32, i32) {
    %c0_i32 = arith.constant 0 : i32
    return %arg0, %arg1, %arg2 : i32, i32, i32
  }
}

module attributes {stable_mosaic.version = 11 : i64} {
  func.func @_fused_matmul_kernel(%arg0: i32, %arg1: i32, %arg2: i32, %arg3: memref<1x32x1024xbf16, #tpu.memory_space<vmem>>, %arg4: memref<1x1024x128xbf16, #tpu.memory_space<vmem>>, %arg5: memref<1x128xf32, #tpu.memory_space<vmem>>, %arg6: memref<1x32x128xbf16, #tpu.memory_space<vmem>>, %arg7: memref<1x1x1x128xf32, #tpu.memory_space<vmem>>, %arg8: memref<1x1x1x128xf32, #tpu.memory_space<vmem>>) attributes {dimension_semantics = [#tpu.dimension_semantics<parallel>, #tpu.dimension_semantics<parallel>, #tpu.dimension_semantics<parallel>], iteration_bounds = array<i64: 1, 1, 1>, scalar_prefetch = 0 : i64, scratch_operands = 0 : i64, tpu.core_type = #tpu.core_type<tc>, window_params = [{transform_indices = @transform_0, window_bounds = array<i64: 1, 32, 1024>}, {transform_indices = @transform_1, window_bounds = array<i64: 1, 1024, 128>}, {transform_indices = @transform_2, window_bounds = array<i64: 1, 128>}, {transform_indices = @transform_3, window_bounds = array<i64: 1, 32, 128>}, {transform_indices = @transform_4, window_bounds = array<i64: 1, 1, 1, 128>}, {transform_indices = @transform_5, window_bounds = array<i64: 1, 1, 1, 128>}]} {
    %c0 = arith.constant 0 : index
    %c0_0 = arith.constant 0 : index
    %c0_1 = arith.constant 0 : index
    %0 = vector.load %arg3[%c0, %c0_0, %c0_1] : memref<1x32x1024xbf16, #tpu.memory_space<vmem>>, vector<1x32x1024xbf16>
    %1 = vector.shape_cast %0 : vector<1x32x1024xbf16> to vector<32x1024xbf16>
    %c0_2 = arith.constant 0 : index
    %c0_3 = arith.constant 0 : index
    %c0_4 = arith.constant 0 : index
    %2 = vector.load %arg4[%c0_2, %c0_3, %c0_4] : memref<1x1024x128xbf16, #tpu.memory_space<vmem>>, vector<1x1024x128xbf16>
    %3 = vector.shape_cast %2 : vector<1x1024x128xbf16> to vector<1024x128xbf16>
    %cst = arith.constant dense<0.000000e+00> : vector<32x128xf32>
    %4 = tpu.matmul %1, %3, %cst {dimension_numbers = #tpu.dot_dimension_numbers<[1], [0], [0], [1], [0, 0, 1, 1], [], []>} : vector<32x1024xbf16>, vector<1024x128xbf16>, vector<32x128xf32> -> vector<32x128xf32>
    %c0_5 = arith.constant 0 : index
    %c0_6 = arith.constant 0 : index
    %5 = vector.load %arg5[%c0_5, %c0_6] : memref<1x128xf32, #tpu.memory_space<vmem>>, vector<1x128xf32>
    %6 = vector.broadcast %5 : vector<1x128xf32> to vector<32x128xf32>
    %7 = arith.addf %4, %6 : vector<32x128xf32>
    %8 = arith.truncf %7 : vector<32x128xf32> to vector<32x128xbf16>
    %c0_7 = arith.constant 0 : index
    %c0_8 = arith.constant 0 : index
    %c0_9 = arith.constant 0 : index
    %9 = vector.load %arg6[%c0_7, %c0_8, %c0_9] : memref<1x32x128xbf16, #tpu.memory_space<vmem>>, vector<1x32x128xbf16>
    %10 = vector.shape_cast %9 : vector<1x32x128xbf16> to vector<32x128xbf16>
    %11 = vector.shape_cast %8 : vector<32x128xbf16> to vector<1x32x128xbf16>
    tpu.vector_store %arg6[%c0_7, %c0_8, %c0_9], %11 {strides = array<i32>} : memref<1x32x128xbf16, #tpu.memory_space<vmem>>, vector<1x32x128xbf16>,
    %cst_10 = arith.constant dense<0.000000e+00> : vector<128xf32>
    %12 = vector.multi_reduction <add>, %7, %cst_10 [0] : vector<32x128xf32> to vector<128xf32>
    %13 = vector.shape_cast %12 : vector<128xf32> to vector<1x128xf32>
    %c0_11 = arith.constant 0 : index
    %c0_12 = arith.constant 0 : index
    %c0_13 = arith.constant 0 : index
    %c0_14 = arith.constant 0 : index
    %14 = vector.load %arg7[%c0_11, %c0_12, %c0_13, %c0_14] : memref<1x1x1x128xf32, #tpu.memory_space<vmem>>, vector<1x1x1x128xf32>
    %15 = vector.shape_cast %14 : vector<1x1x1x128xf32> to vector<1x128xf32>
    %16 = vector.shape_cast %13 : vector<1x128xf32> to vector<1x1x1x128xf32>
    tpu.vector_store %arg7[%c0_11, %c0_12, %c0_13, %c0_14], %16 {strides = array<i32>} : memref<1x1x1x128xf32, #tpu.memory_space<vmem>>, vector<1x1x1x128xf32>,
    %17 = arith.mulf %7, %7 : vector<32x128xf32>
    %cst_15 = arith.constant dense<0.000000e+00> : vector<128xf32>
    %18 = vector.multi_reduction <add>, %17, %cst_15 [0] : vector<32x128xf32> to vector<128xf32>
    %19 = vector.shape_cast %18 : vector<128xf32> to vector<1x128xf32>
    %c0_16 = arith.constant 0 : index
    %c0_17 = arith.constant 0 : index
    %c0_18 = arith.constant 0 : index
    %c0_19 = arith.constant 0 : index
    %20 = vector.load %arg8[%c0_16, %c0_17, %c0_18, %c0_19] : memref<1x1x1x128xf32, #tpu.memory_space<vmem>>, vector<1x1x1x128xf32>
    %21 = vector.shape_cast %20 : vector<1x1x1x128xf32> to vector<1x128xf32>
    %22 = vector.shape_cast %19 : vector<1x128xf32> to vector<1x1x1x128xf32>
    tpu.vector_store %arg8[%c0_16, %c0_17, %c0_18, %c0_19], %22 {strides = array<i32>} : memref<1x1x1x128xf32, #tpu.memory_space<vmem>>, vector<1x1x1x128xf32>,
    return
  }
  func.func @transform_0(%arg0: i32, %arg1: i32, %arg2: i32) -> (i32, i32, i32) {
    %c0_i32 = arith.constant 0 : i32
    %c0_i32_0 = arith.constant 0 : i32
    return %arg0, %arg1, %c0_i32 : i32, i32, i32
  }
  func.func @transform_1(%arg0: i32, %arg1: i32, %arg2: i32) -> (i32, i32, i32) {
    %c0_i32 = arith.constant 0 : i32
    %c0_i32_0 = arith.constant 0 : i32
    return %arg0, %c0_i32, %arg2 : i32, i32, i32
  }
  func.func @transform_2(%arg0: i32, %arg1: i32, %arg2: i32) -> (i32, i32) {
    %c0_i32 = arith.constant 0 : i32
    %c0_i32_0 = arith.constant 0 : i32
    return %c0_i32, %arg2 : i32, i32
  }
  func.func @transform_3(%arg0: i32, %arg1: i32, %arg2: i32) -> (i32, i32, i32) {
    %c0_i32 = arith.constant 0 : i32
    return %arg0, %arg1, %arg2 : i32, i32, i32
  }
  func.func @transform_4(%arg0: i32, %arg1: i32, %arg2: i32) -> (i32, i32, i32, i32) {
    %c0_i32 = arith.constant 0 : i32
    %c0_i32_0 = arith.constant 0 : i32
    return %arg0, %arg1, %c0_i32, %arg2 : i32, i32, i32, i32
  }
  func.func @transform_5(%arg0: i32, %arg1: i32, %arg2: i32) -> (i32, i32, i32, i32) {
    %c0_i32 = arith.constant 0 : i32
    %c0_i32_0 = arith.constant 0 : i32
    return %arg0, %arg1, %c0_i32, %arg2 : i32, i32, i32, i32
  }
}

module attributes {stable_mosaic.version = 11 : i64} {
  func.func @_affine_relu_kernel(%arg0: i32, %arg1: memref<32x128xbf16, #tpu.memory_space<vmem>>, %arg2: memref<1x128xf32, #tpu.memory_space<vmem>>, %arg3: memref<1x128xf32, #tpu.memory_space<vmem>>, %arg4: memref<32x128xbf16, #tpu.memory_space<vmem>>) attributes {dimension_semantics = [#tpu.dimension_semantics<parallel>], iteration_bounds = array<i64: 1>, scalar_prefetch = 0 : i64, scratch_operands = 0 : i64, tpu.core_type = #tpu.core_type<tc>, window_params = [{transform_indices = @transform_0, window_bounds = array<i64: 32, 128>}, {pipeline_mode = #tpu.pipeline_mode<synchronous>, transform_indices = @transform_1, window_bounds = array<i64: 1, 128>}, {pipeline_mode = #tpu.pipeline_mode<synchronous>, transform_indices = @transform_2, window_bounds = array<i64: 1, 128>}, {transform_indices = @transform_3, window_bounds = array<i64: 32, 128>}]} {
    %c0 = arith.constant 0 : index
    %c0_0 = arith.constant 0 : index
    %0 = vector.load %arg1[%c0, %c0_0] : memref<32x128xbf16, #tpu.memory_space<vmem>>, vector<32x128xbf16>
    %1 = arith.extf %0 : vector<32x128xbf16> to vector<32x128xf32>
    %c0_1 = arith.constant 0 : index
    %c0_2 = arith.constant 0 : index
    %2 = vector.load %arg2[%c0_1, %c0_2] : memref<1x128xf32, #tpu.memory_space<vmem>>, vector<1x128xf32>
    %3 = vector.broadcast %2 : vector<1x128xf32> to vector<32x128xf32>
    %4 = arith.mulf %1, %3 : vector<32x128xf32>
    %c0_3 = arith.constant 0 : index
    %c0_4 = arith.constant 0 : index
    %5 = vector.load %arg3[%c0_3, %c0_4] : memref<1x128xf32, #tpu.memory_space<vmem>>, vector<1x128xf32>
    %6 = vector.broadcast %5 : vector<1x128xf32> to vector<32x128xf32>
    %7 = arith.addf %4, %6 : vector<32x128xf32>
    %cst = arith.constant 0.000000e+00 : f32
    %8 = vector.broadcast %cst : f32 to vector<32x128xf32>
    %9 = arith.maximumf %7, %8 : vector<32x128xf32>
    %10 = arith.truncf %9 : vector<32x128xf32> to vector<32x128xbf16>
    %c0_5 = arith.constant 0 : index
    %c0_6 = arith.constant 0 : index
    %11 = vector.load %arg4[%c0_5, %c0_6] : memref<32x128xbf16, #tpu.memory_space<vmem>>, vector<32x128xbf16>
    tpu.vector_store %arg4[%c0_5, %c0_6], %10 {strides = array<i32>} : memref<32x128xbf16, #tpu.memory_space<vmem>>, vector<32x128xbf16>,
    return
  }
  func.func @transform_0(%arg0: i32) -> (i32, i32) {
    %c0_i32 = arith.constant 0 : i32
    %c0_i32_0 = arith.constant 0 : i32
    return %arg0, %c0_i32 : i32, i32
  }
  func.func @transform_1(%arg0: i32) -> (i32, i32) {
    %c0_i32 = arith.constant 0 : i32
    %c0_i32_0 = arith.constant 0 : i32
    %c0_i32_1 = arith.constant 0 : i32
    return %c0_i32, %c0_i32_0 : i32, i32
  }
  func.func @transform_2(%arg0: i32) -> (i32, i32) {
    %c0_i32 = arith.constant 0 : i32
    %c0_i32_0 = arith.constant 0 : i32
    %c0_i32_1 = arith.constant 0 : i32
    return %c0_i32, %c0_i32_0 : i32, i32
  }
  func.func @transform_3(%arg0: i32) -> (i32, i32) {
    %c0_i32 = arith.constant 0 : i32
    %c0_i32_0 = arith.constant 0 : i32
    return %arg0, %c0_i32 : i32, i32
  }
}

module attributes {stable_mosaic.version = 11 : i64} {
  func.func @_fused_matmul_kernel(%arg0: i32, %arg1: i32, %arg2: i32, %arg3: memref<1x16x2048xbf16, #tpu.memory_space<vmem>>, %arg4: memref<1x2048x128xbf16, #tpu.memory_space<vmem>>, %arg5: memref<1x128xf32, #tpu.memory_space<vmem>>, %arg6: memref<1x16x128xbf16, #tpu.memory_space<vmem>>, %arg7: memref<1x1x1x128xf32, #tpu.memory_space<vmem>>, %arg8: memref<1x1x1x128xf32, #tpu.memory_space<vmem>>) attributes {dimension_semantics = [#tpu.dimension_semantics<parallel>, #tpu.dimension_semantics<parallel>, #tpu.dimension_semantics<parallel>], iteration_bounds = array<i64: 1, 1, 2>, scalar_prefetch = 0 : i64, scratch_operands = 0 : i64, tpu.core_type = #tpu.core_type<tc>, window_params = [{transform_indices = @transform_0, window_bounds = array<i64: 1, 16, 2048>}, {transform_indices = @transform_1, window_bounds = array<i64: 1, 2048, 128>}, {transform_indices = @transform_2, window_bounds = array<i64: 1, 128>}, {transform_indices = @transform_3, window_bounds = array<i64: 1, 16, 128>}, {transform_indices = @transform_4, window_bounds = array<i64: 1, 1, 1, 128>}, {transform_indices = @transform_5, window_bounds = array<i64: 1, 1, 1, 128>}]} {
    %c0 = arith.constant 0 : index
    %c0_0 = arith.constant 0 : index
    %c0_1 = arith.constant 0 : index
    %0 = vector.load %arg3[%c0, %c0_0, %c0_1] : memref<1x16x2048xbf16, #tpu.memory_space<vmem>>, vector<1x16x2048xbf16>
    %1 = vector.shape_cast %0 : vector<1x16x2048xbf16> to vector<16x2048xbf16>
    %c0_2 = arith.constant 0 : index
    %c0_3 = arith.constant 0 : index
    %c0_4 = arith.constant 0 : index
    %2 = vector.load %arg4[%c0_2, %c0_3, %c0_4] : memref<1x2048x128xbf16, #tpu.memory_space<vmem>>, vector<1x2048x128xbf16>
    %3 = vector.shape_cast %2 : vector<1x2048x128xbf16> to vector<2048x128xbf16>
    %cst = arith.constant dense<0.000000e+00> : vector<16x128xf32>
    %4 = tpu.matmul %1, %3, %cst {dimension_numbers = #tpu.dot_dimension_numbers<[1], [0], [0], [1], [0, 0, 1, 1], [], []>} : vector<16x2048xbf16>, vector<2048x128xbf16>, vector<16x128xf32> -> vector<16x128xf32>
    %c0_5 = arith.constant 0 : index
    %c0_6 = arith.constant 0 : index
    %5 = vector.load %arg5[%c0_5, %c0_6] : memref<1x128xf32, #tpu.memory_space<vmem>>, vector<1x128xf32>
    %6 = vector.broadcast %5 : vector<1x128xf32> to vector<16x128xf32>
    %7 = arith.addf %4, %6 : vector<16x128xf32>
    %8 = arith.truncf %7 : vector<16x128xf32> to vector<16x128xbf16>
    %c0_7 = arith.constant 0 : index
    %c0_8 = arith.constant 0 : index
    %c0_9 = arith.constant 0 : index
    %9 = vector.load %arg6[%c0_7, %c0_8, %c0_9] : memref<1x16x128xbf16, #tpu.memory_space<vmem>>, vector<1x16x128xbf16>
    %10 = vector.shape_cast %9 : vector<1x16x128xbf16> to vector<16x128xbf16>
    %11 = vector.shape_cast %8 : vector<16x128xbf16> to vector<1x16x128xbf16>
    tpu.vector_store %arg6[%c0_7, %c0_8, %c0_9], %11 {strides = array<i32>} : memref<1x16x128xbf16, #tpu.memory_space<vmem>>, vector<1x16x128xbf16>,
    %c16_i32 = arith.constant 16 : i32
    %12 = arith.muli %arg1, %c16_i32 : i32
    %13 = tpu.iota {dimensions = array<i32: 0>} : vector<16x1xi32>
    %14 = vector.broadcast %12 : i32 to vector<16x1xi32>
    %15 = arith.addi %14, %13 : vector<16x1xi32>
    %c8_i32 = arith.constant 8 : i32
    %16 = vector.broadcast %c8_i32 : i32 to vector<16x1xi32>
    %17 = arith.cmpi slt, %15, %16 : vector<16x1xi32>
    %cst_10 = arith.constant 0.000000e+00 : f32
    %18 = vector.shape_cast %17 : vector<16x1xi1> to vector<16x1xi1>
    %19 = vector.broadcast %18 : vector<16x1xi1> to vector<16x128xi1>
    %20 = vector.broadcast %cst_10 : f32 to vector<16x128xf32>
    %21 = arith.select %19, %7, %20 : vector<16x128xi1>, vector<16x128xf32>
    %cst_11 = arith.constant dense<0.000000e+00> : vector<128xf32>
    %22 = vector.multi_reduction <add>, %21, %cst_11 [0] : vector<16x128xf32> to vector<128xf32>
    %23 = vector.shape_cast %22 : vector<128xf32> to vector<1x128xf32>
    %c0_12 = arith.constant 0 : index
    %c0_13 = arith.constant 0 : index
    %c0_14 = arith.constant 0 : index
    %c0_15 = arith.constant 0 : index
    %24 = vector.load %arg7[%c0_12, %c0_13, %c0_14, %c0_15] : memref<1x1x1x128xf32, #tpu.memory_space<vmem>>, vector<1x1x1x128xf32>
    %25 = vector.shape_cast %24 : vector<1x1x1x128xf32> to vector<1x128xf32>
    %26 = vector.shape_cast %23 : vector<1x128xf32> to vector<1x1x1x128xf32>
    tpu.vector_store %arg7[%c0_12, %c0_13, %c0_14, %c0_15], %26 {strides = array<i32>} : memref<1x1x1x128xf32, #tpu.memory_space<vmem>>, vector<1x1x1x128xf32>,
    %27 = arith.mulf %21, %21 : vector<16x128xf32>
    %cst_16 = arith.constant dense<0.000000e+00> : vector<128xf32>
    %28 = vector.multi_reduction <add>, %27, %cst_16 [0] : vector<16x128xf32> to vector<128xf32>
    %29 = vector.shape_cast %28 : vector<128xf32> to vector<1x128xf32>
    %c0_17 = arith.constant 0 : index
    %c0_18 = arith.constant 0 : index
    %c0_19 = arith.constant 0 : index
    %c0_20 = arith.constant 0 : index
    %30 = vector.load %arg8[%c0_17, %c0_18, %c0_19, %c0_20] : memref<1x1x1x128xf32, #tpu.memory_space<vmem>>, vector<1x1x1x128xf32>
    %31 = vector.shape_cast %30 : vector<1x1x1x128xf32> to vector<1x128xf32>
    %32 = vector.shape_cast %29 : vector<1x128xf32> to vector<1x1x1x128xf32>
    tpu.vector_store %arg8[%c0_17, %c0_18, %c0_19, %c0_20], %32 {strides = array<i32>} : memref<1x1x1x128xf32, #tpu.memory_space<vmem>>, vector<1x1x1x128xf32>,
    return
  }
  func.func @transform_0(%arg0: i32, %arg1: i32, %arg2: i32) -> (i32, i32, i32) {
    %c0_i32 = arith.constant 0 : i32
    %c0_i32_0 = arith.constant 0 : i32
    return %arg0, %arg1, %c0_i32 : i32, i32, i32
  }
  func.func @transform_1(%arg0: i32, %arg1: i32, %arg2: i32) -> (i32, i32, i32) {
    %c0_i32 = arith.constant 0 : i32
    %c0_i32_0 = arith.constant 0 : i32
    return %arg0, %c0_i32, %arg2 : i32, i32, i32
  }
  func.func @transform_2(%arg0: i32, %arg1: i32, %arg2: i32) -> (i32, i32) {
    %c0_i32 = arith.constant 0 : i32
    %c0_i32_0 = arith.constant 0 : i32
    return %c0_i32, %arg2 : i32, i32
  }
  func.func @transform_3(%arg0: i32, %arg1: i32, %arg2: i32) -> (i32, i32, i32) {
    %c0_i32 = arith.constant 0 : i32
    return %arg0, %arg1, %arg2 : i32, i32, i32
  }
  func.func @transform_4(%arg0: i32, %arg1: i32, %arg2: i32) -> (i32, i32, i32, i32) {
    %c0_i32 = arith.constant 0 : i32
    %c0_i32_0 = arith.constant 0 : i32
    return %arg0, %arg1, %c0_i32, %arg2 : i32, i32, i32, i32
  }
  func.func @transform_5(%arg0: i32, %arg1: i32, %arg2: i32) -> (i32, i32, i32, i32) {
    %c0_i32 = arith.constant 0 : i32
    %c0_i32_0 = arith.constant 0 : i32
    return %arg0, %arg1, %c0_i32, %arg2 : i32, i32, i32, i32
  }
}

module attributes {stable_mosaic.version = 11 : i64} {
  func.func @_affine_relu_kernel(%arg0: i32, %arg1: memref<16x256xbf16, #tpu.memory_space<vmem>>, %arg2: memref<1x256xf32, #tpu.memory_space<vmem>>, %arg3: memref<1x256xf32, #tpu.memory_space<vmem>>, %arg4: memref<16x256xbf16, #tpu.memory_space<vmem>>) attributes {dimension_semantics = [#tpu.dimension_semantics<parallel>], iteration_bounds = array<i64: 1>, scalar_prefetch = 0 : i64, scratch_operands = 0 : i64, tpu.core_type = #tpu.core_type<tc>, window_params = [{transform_indices = @transform_0, window_bounds = array<i64: 16, 256>}, {pipeline_mode = #tpu.pipeline_mode<synchronous>, transform_indices = @transform_1, window_bounds = array<i64: 1, 256>}, {pipeline_mode = #tpu.pipeline_mode<synchronous>, transform_indices = @transform_2, window_bounds = array<i64: 1, 256>}, {transform_indices = @transform_3, window_bounds = array<i64: 16, 256>}]} {
    %c0 = arith.constant 0 : index
    %c0_0 = arith.constant 0 : index
    %0 = vector.load %arg1[%c0, %c0_0] : memref<16x256xbf16, #tpu.memory_space<vmem>>, vector<16x256xbf16>
    %1 = arith.extf %0 : vector<16x256xbf16> to vector<16x256xf32>
    %c0_1 = arith.constant 0 : index
    %c0_2 = arith.constant 0 : index
    %2 = vector.load %arg2[%c0_1, %c0_2] : memref<1x256xf32, #tpu.memory_space<vmem>>, vector<1x256xf32>
    %3 = vector.broadcast %2 : vector<1x256xf32> to vector<16x256xf32>
    %4 = arith.mulf %1, %3 : vector<16x256xf32>
    %c0_3 = arith.constant 0 : index
    %c0_4 = arith.constant 0 : index
    %5 = vector.load %arg3[%c0_3, %c0_4] : memref<1x256xf32, #tpu.memory_space<vmem>>, vector<1x256xf32>
    %6 = vector.broadcast %5 : vector<1x256xf32> to vector<16x256xf32>
    %7 = arith.addf %4, %6 : vector<16x256xf32>
    %cst = arith.constant 0.000000e+00 : f32
    %8 = vector.broadcast %cst : f32 to vector<16x256xf32>
    %9 = arith.maximumf %7, %8 : vector<16x256xf32>
    %10 = arith.truncf %9 : vector<16x256xf32> to vector<16x256xbf16>
    %c0_5 = arith.constant 0 : index
    %c0_6 = arith.constant 0 : index
    %11 = vector.load %arg4[%c0_5, %c0_6] : memref<16x256xbf16, #tpu.memory_space<vmem>>, vector<16x256xbf16>
    tpu.vector_store %arg4[%c0_5, %c0_6], %10 {strides = array<i32>} : memref<16x256xbf16, #tpu.memory_space<vmem>>, vector<16x256xbf16>,
    return
  }
  func.func @transform_0(%arg0: i32) -> (i32, i32) {
    %c0_i32 = arith.constant 0 : i32
    %c0_i32_0 = arith.constant 0 : i32
    return %arg0, %c0_i32 : i32, i32
  }
  func.func @transform_1(%arg0: i32) -> (i32, i32) {
    %c0_i32 = arith.constant 0 : i32
    %c0_i32_0 = arith.constant 0 : i32
    %c0_i32_1 = arith.constant 0 : i32
    return %c0_i32, %c0_i32_0 : i32, i32
  }
  func.func @transform_2(%arg0: i32) -> (i32, i32) {
    %c0_i32 = arith.constant 0 : i32
    %c0_i32_0 = arith.constant 0 : i32
    %c0_i32_1 = arith.constant 0 : i32
    return %c0_i32, %c0_i32_0 : i32, i32
  }
  func.func @transform_3(%arg0: i32) -> (i32, i32) {
    %c0_i32 = arith.constant 0 : i32
    %c0_i32_0 = arith.constant 0 : i32
    return %arg0, %c0_i32 : i32, i32
  }
}

module attributes {stable_mosaic.version = 11 : i64} {
  func.func @_fused_matmul_kernel(%arg0: i32, %arg1: i32, %arg2: i32, %arg3: memref<1x16x1024xbf16, #tpu.memory_space<vmem>>, %arg4: memref<1x1024x128xbf16, #tpu.memory_space<vmem>>, %arg5: memref<1x128xf32, #tpu.memory_space<vmem>>, %arg6: memref<1x16x128xbf16, #tpu.memory_space<vmem>>, %arg7: memref<1x1x1x128xf32, #tpu.memory_space<vmem>>, %arg8: memref<1x1x1x128xf32, #tpu.memory_space<vmem>>) attributes {dimension_semantics = [#tpu.dimension_semantics<parallel>, #tpu.dimension_semantics<parallel>, #tpu.dimension_semantics<parallel>], iteration_bounds = array<i64: 4, 1, 1>, scalar_prefetch = 0 : i64, scratch_operands = 0 : i64, tpu.core_type = #tpu.core_type<tc>, window_params = [{transform_indices = @transform_0, window_bounds = array<i64: 1, 16, 1024>}, {transform_indices = @transform_1, window_bounds = array<i64: 1, 1024, 128>}, {transform_indices = @transform_2, window_bounds = array<i64: 1, 128>}, {transform_indices = @transform_3, window_bounds = array<i64: 1, 16, 128>}, {transform_indices = @transform_4, window_bounds = array<i64: 1, 1, 1, 128>}, {transform_indices = @transform_5, window_bounds = array<i64: 1, 1, 1, 128>}]} {
    %c0 = arith.constant 0 : index
    %c0_0 = arith.constant 0 : index
    %c0_1 = arith.constant 0 : index
    %0 = vector.load %arg3[%c0, %c0_0, %c0_1] : memref<1x16x1024xbf16, #tpu.memory_space<vmem>>, vector<1x16x1024xbf16>
    %1 = vector.shape_cast %0 : vector<1x16x1024xbf16> to vector<16x1024xbf16>
    %c0_2 = arith.constant 0 : index
    %c0_3 = arith.constant 0 : index
    %c0_4 = arith.constant 0 : index
    %2 = vector.load %arg4[%c0_2, %c0_3, %c0_4] : memref<1x1024x128xbf16, #tpu.memory_space<vmem>>, vector<1x1024x128xbf16>
    %3 = vector.shape_cast %2 : vector<1x1024x128xbf16> to vector<1024x128xbf16>
    %cst = arith.constant dense<0.000000e+00> : vector<16x128xf32>
    %4 = tpu.matmul %1, %3, %cst {dimension_numbers = #tpu.dot_dimension_numbers<[1], [0], [0], [1], [0, 0, 1, 1], [], []>} : vector<16x1024xbf16>, vector<1024x128xbf16>, vector<16x128xf32> -> vector<16x128xf32>
    %c0_5 = arith.constant 0 : index
    %c0_6 = arith.constant 0 : index
    %5 = vector.load %arg5[%c0_5, %c0_6] : memref<1x128xf32, #tpu.memory_space<vmem>>, vector<1x128xf32>
    %6 = vector.broadcast %5 : vector<1x128xf32> to vector<16x128xf32>
    %7 = arith.addf %4, %6 : vector<16x128xf32>
    %8 = arith.truncf %7 : vector<16x128xf32> to vector<16x128xbf16>
    %c0_7 = arith.constant 0 : index
    %c0_8 = arith.constant 0 : index
    %c0_9 = arith.constant 0 : index
    %9 = vector.load %arg6[%c0_7, %c0_8, %c0_9] : memref<1x16x128xbf16, #tpu.memory_space<vmem>>, vector<1x16x128xbf16>
    %10 = vector.shape_cast %9 : vector<1x16x128xbf16> to vector<16x128xbf16>
    %11 = vector.shape_cast %8 : vector<16x128xbf16> to vector<1x16x128xbf16>
    tpu.vector_store %arg6[%c0_7, %c0_8, %c0_9], %11 {strides = array<i32>} : memref<1x16x128xbf16, #tpu.memory_space<vmem>>, vector<1x16x128xbf16>,
    %c16_i32 = arith.constant 16 : i32
    %12 = arith.muli %arg1, %c16_i32 : i32
    %13 = tpu.iota {dimensions = array<i32: 0>} : vector<16x1xi32>
    %14 = vector.broadcast %12 : i32 to vector<16x1xi32>
    %15 = arith.addi %14, %13 : vector<16x1xi32>
    %c8_i32 = arith.constant 8 : i32
    %16 = vector.broadcast %c8_i32 : i32 to vector<16x1xi32>
    %17 = arith.cmpi slt, %15, %16 : vector<16x1xi32>
    %cst_10 = arith.constant 0.000000e+00 : f32
    %18 = vector.shape_cast %17 : vector<16x1xi1> to vector<16x1xi1>
    %19 = vector.broadcast %18 : vector<16x1xi1> to vector<16x128xi1>
    %20 = vector.broadcast %cst_10 : f32 to vector<16x128xf32>
    %21 = arith.select %19, %7, %20 : vector<16x128xi1>, vector<16x128xf32>
    %cst_11 = arith.constant dense<0.000000e+00> : vector<128xf32>
    %22 = vector.multi_reduction <add>, %21, %cst_11 [0] : vector<16x128xf32> to vector<128xf32>
    %23 = vector.shape_cast %22 : vector<128xf32> to vector<1x128xf32>
    %c0_12 = arith.constant 0 : index
    %c0_13 = arith.constant 0 : index
    %c0_14 = arith.constant 0 : index
    %c0_15 = arith.constant 0 : index
    %24 = vector.load %arg7[%c0_12, %c0_13, %c0_14, %c0_15] : memref<1x1x1x128xf32, #tpu.memory_space<vmem>>, vector<1x1x1x128xf32>
    %25 = vector.shape_cast %24 : vector<1x1x1x128xf32> to vector<1x128xf32>
    %26 = vector.shape_cast %23 : vector<1x128xf32> to vector<1x1x1x128xf32>
    tpu.vector_store %arg7[%c0_12, %c0_13, %c0_14, %c0_15], %26 {strides = array<i32>} : memref<1x1x1x128xf32, #tpu.memory_space<vmem>>, vector<1x1x1x128xf32>,
    %27 = arith.mulf %21, %21 : vector<16x128xf32>
    %cst_16 = arith.constant dense<0.000000e+00> : vector<128xf32>
    %28 = vector.multi_reduction <add>, %27, %cst_16 [0] : vector<16x128xf32> to vector<128xf32>
    %29 = vector.shape_cast %28 : vector<128xf32> to vector<1x128xf32>
    %c0_17 = arith.constant 0 : index
    %c0_18 = arith.constant 0 : index
    %c0_19 = arith.constant 0 : index
    %c0_20 = arith.constant 0 : index
    %30 = vector.load %arg8[%c0_17, %c0_18, %c0_19, %c0_20] : memref<1x1x1x128xf32, #tpu.memory_space<vmem>>, vector<1x1x1x128xf32>
    %31 = vector.shape_cast %30 : vector<1x1x1x128xf32> to vector<1x128xf32>
    %32 = vector.shape_cast %29 : vector<1x128xf32> to vector<1x1x1x128xf32>
    tpu.vector_store %arg8[%c0_17, %c0_18, %c0_19, %c0_20], %32 {strides = array<i32>} : memref<1x1x1x128xf32, #tpu.memory_space<vmem>>, vector<1x1x1x128xf32>,
    return
  }
  func.func @transform_0(%arg0: i32, %arg1: i32, %arg2: i32) -> (i32, i32, i32) {
    %c0_i32 = arith.constant 0 : i32
    %c0_i32_0 = arith.constant 0 : i32
    return %arg0, %arg1, %c0_i32 : i32, i32, i32
  }
  func.func @transform_1(%arg0: i32, %arg1: i32, %arg2: i32) -> (i32, i32, i32) {
    %c0_i32 = arith.constant 0 : i32
    %c0_i32_0 = arith.constant 0 : i32
    return %arg0, %c0_i32, %arg2 : i32, i32, i32
  }
  func.func @transform_2(%arg0: i32, %arg1: i32, %arg2: i32) -> (i32, i32) {
    %c0_i32 = arith.constant 0 : i32
    %c0_i32_0 = arith.constant 0 : i32
    return %c0_i32, %arg2 : i32, i32
  }
  func.func @transform_3(%arg0: i32, %arg1: i32, %arg2: i32) -> (i32, i32, i32) {
    %c0_i32 = arith.constant 0 : i32
    return %arg0, %arg1, %arg2 : i32, i32, i32
  }
  func.func @transform_4(%arg0: i32, %arg1: i32, %arg2: i32) -> (i32, i32, i32, i32) {
    %c0_i32 = arith.constant 0 : i32
    %c0_i32_0 = arith.constant 0 : i32
    return %arg0, %arg1, %c0_i32, %arg2 : i32, i32, i32, i32
  }
  func.func @transform_5(%arg0: i32, %arg1: i32, %arg2: i32) -> (i32, i32, i32, i32) {
    %c0_i32 = arith.constant 0 : i32
    %c0_i32_0 = arith.constant 0 : i32
    return %arg0, %arg1, %c0_i32, %arg2 : i32, i32, i32, i32
  }
}

module attributes {stable_mosaic.version = 11 : i64} {
  func.func @_affine_relu_kernel(%arg0: i32, %arg1: memref<64x128xbf16, #tpu.memory_space<vmem>>, %arg2: memref<1x128xf32, #tpu.memory_space<vmem>>, %arg3: memref<1x128xf32, #tpu.memory_space<vmem>>, %arg4: memref<64x128xbf16, #tpu.memory_space<vmem>>) attributes {dimension_semantics = [#tpu.dimension_semantics<parallel>], iteration_bounds = array<i64: 1>, scalar_prefetch = 0 : i64, scratch_operands = 0 : i64, tpu.core_type = #tpu.core_type<tc>, window_params = [{transform_indices = @transform_0, window_bounds = array<i64: 64, 128>}, {pipeline_mode = #tpu.pipeline_mode<synchronous>, transform_indices = @transform_1, window_bounds = array<i64: 1, 128>}, {pipeline_mode = #tpu.pipeline_mode<synchronous>, transform_indices = @transform_2, window_bounds = array<i64: 1, 128>}, {transform_indices = @transform_3, window_bounds = array<i64: 64, 128>}]} {
    %c0 = arith.constant 0 : index
    %c0_0 = arith.constant 0 : index
    %0 = vector.load %arg1[%c0, %c0_0] : memref<64x128xbf16, #tpu.memory_space<vmem>>, vector<64x128xbf16>
    %1 = arith.extf %0 : vector<64x128xbf16> to vector<64x128xf32>
    %c0_1 = arith.constant 0 : index
    %c0_2 = arith.constant 0 : index
    %2 = vector.load %arg2[%c0_1, %c0_2] : memref<1x128xf32, #tpu.memory_space<vmem>>, vector<1x128xf32>
    %3 = vector.broadcast %2 : vector<1x128xf32> to vector<64x128xf32>
    %4 = arith.mulf %1, %3 : vector<64x128xf32>
    %c0_3 = arith.constant 0 : index
    %c0_4 = arith.constant 0 : index
    %5 = vector.load %arg3[%c0_3, %c0_4] : memref<1x128xf32, #tpu.memory_space<vmem>>, vector<1x128xf32>
    %6 = vector.broadcast %5 : vector<1x128xf32> to vector<64x128xf32>
    %7 = arith.addf %4, %6 : vector<64x128xf32>
    %cst = arith.constant 0.000000e+00 : f32
    %8 = vector.broadcast %cst : f32 to vector<64x128xf32>
    %9 = arith.maximumf %7, %8 : vector<64x128xf32>
    %10 = arith.truncf %9 : vector<64x128xf32> to vector<64x128xbf16>
    %c0_5 = arith.constant 0 : index
    %c0_6 = arith.constant 0 : index
    %11 = vector.load %arg4[%c0_5, %c0_6] : memref<64x128xbf16, #tpu.memory_space<vmem>>, vector<64x128xbf16>
    tpu.vector_store %arg4[%c0_5, %c0_6], %10 {strides = array<i32>} : memref<64x128xbf16, #tpu.memory_space<vmem>>, vector<64x128xbf16>,
    return
  }
  func.func @transform_0(%arg0: i32) -> (i32, i32) {
    %c0_i32 = arith.constant 0 : i32
    %c0_i32_0 = arith.constant 0 : i32
    return %arg0, %c0_i32 : i32, i32
  }
  func.func @transform_1(%arg0: i32) -> (i32, i32) {
    %c0_i32 = arith.constant 0 : i32
    %c0_i32_0 = arith.constant 0 : i32
    %c0_i32_1 = arith.constant 0 : i32
    return %c0_i32, %c0_i32_0 : i32, i32
  }
  func.func @transform_2(%arg0: i32) -> (i32, i32) {
    %c0_i32 = arith.constant 0 : i32
    %c0_i32_0 = arith.constant 0 : i32
    %c0_i32_1 = arith.constant 0 : i32
    return %c0_i32, %c0_i32_0 : i32, i32
  }
  func.func @transform_3(%arg0: i32) -> (i32, i32) {
    %c0_i32 = arith.constant 0 : i32
    %c0_i32_0 = arith.constant 0 : i32
    return %arg0, %c0_i32 : i32, i32
  }
}

module attributes {stable_mosaic.version = 11 : i64} {
  func.func @_fused_matmul_kernel(%arg0: i32, %arg1: i32, %arg2: i32, %arg3: memref<1x32x512xbf16, #tpu.memory_space<vmem>>, %arg4: memref<1x512x128xbf16, #tpu.memory_space<vmem>>, %arg5: memref<1x128xf32, #tpu.memory_space<vmem>>, %arg6: memref<1x32x128xbf16, #tpu.memory_space<vmem>>, %arg7: memref<1x1x1x128xf32, #tpu.memory_space<vmem>>, %arg8: memref<1x1x1x128xf32, #tpu.memory_space<vmem>>) attributes {dimension_semantics = [#tpu.dimension_semantics<parallel>, #tpu.dimension_semantics<parallel>, #tpu.dimension_semantics<parallel>], iteration_bounds = array<i64: 4, 1, 1>, scalar_prefetch = 0 : i64, scratch_operands = 0 : i64, tpu.core_type = #tpu.core_type<tc>, window_params = [{transform_indices = @transform_0, window_bounds = array<i64: 1, 32, 512>}, {transform_indices = @transform_1, window_bounds = array<i64: 1, 512, 128>}, {transform_indices = @transform_2, window_bounds = array<i64: 1, 128>}, {transform_indices = @transform_3, window_bounds = array<i64: 1, 32, 128>}, {transform_indices = @transform_4, window_bounds = array<i64: 1, 1, 1, 128>}, {transform_indices = @transform_5, window_bounds = array<i64: 1, 1, 1, 128>}]} {
    %c0 = arith.constant 0 : index
    %c0_0 = arith.constant 0 : index
    %c0_1 = arith.constant 0 : index
    %0 = vector.load %arg3[%c0, %c0_0, %c0_1] : memref<1x32x512xbf16, #tpu.memory_space<vmem>>, vector<1x32x512xbf16>
    %1 = vector.shape_cast %0 : vector<1x32x512xbf16> to vector<32x512xbf16>
    %c0_2 = arith.constant 0 : index
    %c0_3 = arith.constant 0 : index
    %c0_4 = arith.constant 0 : index
    %2 = vector.load %arg4[%c0_2, %c0_3, %c0_4] : memref<1x512x128xbf16, #tpu.memory_space<vmem>>, vector<1x512x128xbf16>
    %3 = vector.shape_cast %2 : vector<1x512x128xbf16> to vector<512x128xbf16>
    %cst = arith.constant dense<0.000000e+00> : vector<32x128xf32>
    %4 = tpu.matmul %1, %3, %cst {dimension_numbers = #tpu.dot_dimension_numbers<[1], [0], [0], [1], [0, 0, 1, 1], [], []>} : vector<32x512xbf16>, vector<512x128xbf16>, vector<32x128xf32> -> vector<32x128xf32>
    %c0_5 = arith.constant 0 : index
    %c0_6 = arith.constant 0 : index
    %5 = vector.load %arg5[%c0_5, %c0_6] : memref<1x128xf32, #tpu.memory_space<vmem>>, vector<1x128xf32>
    %6 = vector.broadcast %5 : vector<1x128xf32> to vector<32x128xf32>
    %7 = arith.addf %4, %6 : vector<32x128xf32>
    %8 = arith.truncf %7 : vector<32x128xf32> to vector<32x128xbf16>
    %c0_7 = arith.constant 0 : index
    %c0_8 = arith.constant 0 : index
    %c0_9 = arith.constant 0 : index
    %9 = vector.load %arg6[%c0_7, %c0_8, %c0_9] : memref<1x32x128xbf16, #tpu.memory_space<vmem>>, vector<1x32x128xbf16>
    %10 = vector.shape_cast %9 : vector<1x32x128xbf16> to vector<32x128xbf16>
    %11 = vector.shape_cast %8 : vector<32x128xbf16> to vector<1x32x128xbf16>
    tpu.vector_store %arg6[%c0_7, %c0_8, %c0_9], %11 {strides = array<i32>} : memref<1x32x128xbf16, #tpu.memory_space<vmem>>, vector<1x32x128xbf16>,
    %cst_10 = arith.constant dense<0.000000e+00> : vector<128xf32>
    %12 = vector.multi_reduction <add>, %7, %cst_10 [0] : vector<32x128xf32> to vector<128xf32>
    %13 = vector.shape_cast %12 : vector<128xf32> to vector<1x128xf32>
    %c0_11 = arith.constant 0 : index
    %c0_12 = arith.constant 0 : index
    %c0_13 = arith.constant 0 : index
    %c0_14 = arith.constant 0 : index
    %14 = vector.load %arg7[%c0_11, %c0_12, %c0_13, %c0_14] : memref<1x1x1x128xf32, #tpu.memory_space<vmem>>, vector<1x1x1x128xf32>
    %15 = vector.shape_cast %14 : vector<1x1x1x128xf32> to vector<1x128xf32>
    %16 = vector.shape_cast %13 : vector<1x128xf32> to vector<1x1x1x128xf32>
    tpu.vector_store %arg7[%c0_11, %c0_12, %c0_13, %c0_14], %16 {strides = array<i32>} : memref<1x1x1x128xf32, #tpu.memory_space<vmem>>, vector<1x1x1x128xf32>,
    %17 = arith.mulf %7, %7 : vector<32x128xf32>
    %cst_15 = arith.constant dense<0.000000e+00> : vector<128xf32>
    %18 = vector.multi_reduction <add>, %17, %cst_15 [0] : vector<32x128xf32> to vector<128xf32>
    %19 = vector.shape_cast %18 : vector<128xf32> to vector<1x128xf32>
    %c0_16 = arith.constant 0 : index
    %c0_17 = arith.constant 0 : index
    %c0_18 = arith.constant 0 : index
    %c0_19 = arith.constant 0 : index
    %20 = vector.load %arg8[%c0_16, %c0_17, %c0_18, %c0_19] : memref<1x1x1x128xf32, #tpu.memory_space<vmem>>, vector<1x1x1x128xf32>
    %21 = vector.shape_cast %20 : vector<1x1x1x128xf32> to vector<1x128xf32>
    %22 = vector.shape_cast %19 : vector<1x128xf32> to vector<1x1x1x128xf32>
    tpu.vector_store %arg8[%c0_16, %c0_17, %c0_18, %c0_19], %22 {strides = array<i32>} : memref<1x1x1x128xf32, #tpu.memory_space<vmem>>, vector<1x1x1x128xf32>,
    return
  }
  func.func @transform_0(%arg0: i32, %arg1: i32, %arg2: i32) -> (i32, i32, i32) {
    %c0_i32 = arith.constant 0 : i32
    %c0_i32_0 = arith.constant 0 : i32
    return %arg0, %arg1, %c0_i32 : i32, i32, i32
  }
  func.func @transform_1(%arg0: i32, %arg1: i32, %arg2: i32) -> (i32, i32, i32) {
    %c0_i32 = arith.constant 0 : i32
    %c0_i32_0 = arith.constant 0 : i32
    return %arg0, %c0_i32, %arg2 : i32, i32, i32
  }
  func.func @transform_2(%arg0: i32, %arg1: i32, %arg2: i32) -> (i32, i32) {
    %c0_i32 = arith.constant 0 : i32
    %c0_i32_0 = arith.constant 0 : i32
    return %c0_i32, %arg2 : i32, i32
  }
  func.func @transform_3(%arg0: i32, %arg1: i32, %arg2: i32) -> (i32, i32, i32) {
    %c0_i32 = arith.constant 0 : i32
    return %arg0, %arg1, %arg2 : i32, i32, i32
  }
  func.func @transform_4(%arg0: i32, %arg1: i32, %arg2: i32) -> (i32, i32, i32, i32) {
    %c0_i32 = arith.constant 0 : i32
    %c0_i32_0 = arith.constant 0 : i32
    return %arg0, %arg1, %c0_i32, %arg2 : i32, i32, i32, i32
  }
  func.func @transform_5(%arg0: i32, %arg1: i32, %arg2: i32) -> (i32, i32, i32, i32) {
    %c0_i32 = arith.constant 0 : i32
    %c0_i32_0 = arith.constant 0 : i32
    return %arg0, %arg1, %c0_i32, %arg2 : i32, i32, i32, i32
  }
}

module attributes {stable_mosaic.version = 11 : i64} {
  func.func @_affine_relu_kernel(%arg0: i32, %arg1: memref<128x128xbf16, #tpu.memory_space<vmem>>, %arg2: memref<1x128xf32, #tpu.memory_space<vmem>>, %arg3: memref<1x128xf32, #tpu.memory_space<vmem>>, %arg4: memref<128x128xbf16, #tpu.memory_space<vmem>>) attributes {dimension_semantics = [#tpu.dimension_semantics<parallel>], iteration_bounds = array<i64: 1>, scalar_prefetch = 0 : i64, scratch_operands = 0 : i64, tpu.core_type = #tpu.core_type<tc>, window_params = [{transform_indices = @transform_0, window_bounds = array<i64: 128, 128>}, {pipeline_mode = #tpu.pipeline_mode<synchronous>, transform_indices = @transform_1, window_bounds = array<i64: 1, 128>}, {pipeline_mode = #tpu.pipeline_mode<synchronous>, transform_indices = @transform_2, window_bounds = array<i64: 1, 128>}, {transform_indices = @transform_3, window_bounds = array<i64: 128, 128>}]} {
    %c0 = arith.constant 0 : index
    %c0_0 = arith.constant 0 : index
    %0 = vector.load %arg1[%c0, %c0_0] : memref<128x128xbf16, #tpu.memory_space<vmem>>, vector<128x128xbf16>
    %1 = arith.extf %0 : vector<128x128xbf16> to vector<128x128xf32>
    %c0_1 = arith.constant 0 : index
    %c0_2 = arith.constant 0 : index
    %2 = vector.load %arg2[%c0_1, %c0_2] : memref<1x128xf32, #tpu.memory_space<vmem>>, vector<1x128xf32>
    %3 = vector.broadcast %2 : vector<1x128xf32> to vector<128x128xf32>
    %4 = arith.mulf %1, %3 : vector<128x128xf32>
    %c0_3 = arith.constant 0 : index
    %c0_4 = arith.constant 0 : index
    %5 = vector.load %arg3[%c0_3, %c0_4] : memref<1x128xf32, #tpu.memory_space<vmem>>, vector<1x128xf32>
    %6 = vector.broadcast %5 : vector<1x128xf32> to vector<128x128xf32>
    %7 = arith.addf %4, %6 : vector<128x128xf32>
    %cst = arith.constant 0.000000e+00 : f32
    %8 = vector.broadcast %cst : f32 to vector<128x128xf32>
    %9 = arith.maximumf %7, %8 : vector<128x128xf32>
    %10 = arith.truncf %9 : vector<128x128xf32> to vector<128x128xbf16>
    %c0_5 = arith.constant 0 : index
    %c0_6 = arith.constant 0 : index
    %11 = vector.load %arg4[%c0_5, %c0_6] : memref<128x128xbf16, #tpu.memory_space<vmem>>, vector<128x128xbf16>
    tpu.vector_store %arg4[%c0_5, %c0_6], %10 {strides = array<i32>} : memref<128x128xbf16, #tpu.memory_space<vmem>>, vector<128x128xbf16>,
    return
  }
  func.func @transform_0(%arg0: i32) -> (i32, i32) {
    %c0_i32 = arith.constant 0 : i32
    %c0_i32_0 = arith.constant 0 : i32
    return %arg0, %c0_i32 : i32, i32
  }
  func.func @transform_1(%arg0: i32) -> (i32, i32) {
    %c0_i32 = arith.constant 0 : i32
    %c0_i32_0 = arith.constant 0 : i32
    %c0_i32_1 = arith.constant 0 : i32
    return %c0_i32, %c0_i32_0 : i32, i32
  }
  func.func @transform_2(%arg0: i32) -> (i32, i32) {
    %c0_i32 = arith.constant 0 : i32
    %c0_i32_0 = arith.constant 0 : i32
    %c0_i32_1 = arith.constant 0 : i32
    return %c0_i32, %c0_i32_0 : i32, i32
  }
  func.func @transform_3(%arg0: i32) -> (i32, i32) {
    %c0_i32 = arith.constant 0 : i32
    %c0_i32_0 = arith.constant 0 : i32
    return %arg0, %c0_i32 : i32, i32
  }
}

module attributes {stable_mosaic.version = 11 : i64} {
  func.func @_fused_matmul_kernel(%arg0: i32, %arg1: i32, %arg2: i32, %arg3: memref<1x128x256xbf16, #tpu.memory_space<vmem>>, %arg4: memref<1x256x128xbf16, #tpu.memory_space<vmem>>, %arg5: memref<1x128xf32, #tpu.memory_space<vmem>>, %arg6: memref<1x128x128xf32, #tpu.memory_space<vmem>>) attributes {dimension_semantics = [#tpu.dimension_semantics<parallel>, #tpu.dimension_semantics<parallel>, #tpu.dimension_semantics<parallel>], iteration_bounds = array<i64: 4, 1, 1>, scalar_prefetch = 0 : i64, scratch_operands = 0 : i64, tpu.core_type = #tpu.core_type<tc>, window_params = [{transform_indices = @transform_0, window_bounds = array<i64: 1, 128, 256>}, {transform_indices = @transform_1, window_bounds = array<i64: 1, 256, 128>}, {transform_indices = @transform_2, window_bounds = array<i64: 1, 128>}, {transform_indices = @transform_3, window_bounds = array<i64: 1, 128, 128>}]} {
    %c0 = arith.constant 0 : index
    %c0_0 = arith.constant 0 : index
    %c0_1 = arith.constant 0 : index
    %0 = vector.load %arg3[%c0, %c0_0, %c0_1] : memref<1x128x256xbf16, #tpu.memory_space<vmem>>, vector<1x128x256xbf16>
    %1 = vector.shape_cast %0 : vector<1x128x256xbf16> to vector<128x256xbf16>
    %c0_2 = arith.constant 0 : index
    %c0_3 = arith.constant 0 : index
    %c0_4 = arith.constant 0 : index
    %2 = vector.load %arg4[%c0_2, %c0_3, %c0_4] : memref<1x256x128xbf16, #tpu.memory_space<vmem>>, vector<1x256x128xbf16>
    %3 = vector.shape_cast %2 : vector<1x256x128xbf16> to vector<256x128xbf16>
    %cst = arith.constant dense<0.000000e+00> : vector<128x128xf32>
    %4 = tpu.matmul %1, %3, %cst {dimension_numbers = #tpu.dot_dimension_numbers<[1], [0], [0], [1], [0, 0, 1, 1], [], []>} : vector<128x256xbf16>, vector<256x128xbf16>, vector<128x128xf32> -> vector<128x128xf32>
    %c0_5 = arith.constant 0 : index
    %c0_6 = arith.constant 0 : index
    %5 = vector.load %arg5[%c0_5, %c0_6] : memref<1x128xf32, #tpu.memory_space<vmem>>, vector<1x128xf32>
    %6 = vector.broadcast %5 : vector<1x128xf32> to vector<128x128xf32>
    %7 = arith.addf %4, %6 : vector<128x128xf32>
    %8 = arith.negf %7 : vector<128x128xf32>
    %9 = math.exp %8 : vector<128x128xf32>
    %cst_7 = arith.constant 1.000000e+00 : f32
    %10 = vector.broadcast %cst_7 : f32 to vector<128x128xf32>
    %11 = arith.addf %10, %9 : vector<128x128xf32>
    %12 = arith.divf %10, %11 : vector<128x128xf32>
    %c0_8 = arith.constant 0 : index
    %c0_9 = arith.constant 0 : index
    %c0_10 = arith.constant 0 : index
    %13 = vector.load %arg6[%c0_8, %c0_9, %c0_10] : memref<1x128x128xf32, #tpu.memory_space<vmem>>, vector<1x128x128xf32>
    %14 = vector.shape_cast %13 : vector<1x128x128xf32> to vector<128x128xf32>
    %15 = vector.shape_cast %12 : vector<128x128xf32> to vector<1x128x128xf32>
    tpu.vector_store %arg6[%c0_8, %c0_9, %c0_10], %15 {strides = array<i32>} : memref<1x128x128xf32, #tpu.memory_space<vmem>>, vector<1x128x128xf32>,
    return
  }
  func.func @transform_0(%arg0: i32, %arg1: i32, %arg2: i32) -> (i32, i32, i32) {
    %c0_i32 = arith.constant 0 : i32
    %c0_i32_0 = arith.constant 0 : i32
    return %arg0, %arg1, %c0_i32 : i32, i32, i32
  }
  func.func @transform_1(%arg0: i32, %arg1: i32, %arg2: i32) -> (i32, i32, i32) {
    %c0_i32 = arith.constant 0 : i32
    %c0_i32_0 = arith.constant 0 : i32
    return %arg0, %c0_i32, %arg2 : i32, i32, i32
  }
  func.func @transform_2(%arg0: i32, %arg1: i32, %arg2: i32) -> (i32, i32) {
    %c0_i32 = arith.constant 0 : i32
    %c0_i32_0 = arith.constant 0 : i32
    return %c0_i32, %arg2 : i32, i32
  }
  func.func @transform_3(%arg0: i32, %arg1: i32, %arg2: i32) -> (i32, i32, i32) {
    %c0_i32 = arith.constant 0 : i32
    return %arg0, %arg1, %arg2 : i32, i32, i32
  }
}

</mosaic_0001>

<llo_original>
// kernel: dfnet_forward.10
$region0: #{dfnet_forward.10}
  #allocation0 [shape = 'u32[]', space=smem, size = 0x4, offset = 0x4, fixed_abs, tag = 'smem constant byte address 0x4 - core index']
  #allocation1 [shape = 'u32[144,128]{1,0:T(1,128)}', space=vmem, size = 0x12000, scoped, tag = 'internal scratch']
  %s0 = inlined_call_operand.vmem [shape: bf16[1,128,48], index: 0, kind: input, shape index: {}]
  %s1 = inlined_call_operand.vmem [shape: bf16[1,48,128], index: 1, kind: input, shape index: {}]
  %s2 = inlined_call_operand.vmem [shape: f32[1,128], index: 2, kind: input, shape index: {}]
  %s3 = inlined_call_operand.vmem [shape: bf16[1,128,128], index: 3, kind: output, shape index: {}]
  %s4 = sld [smem:[#allocation0]]
  $region22: #{dfnet_forward.10} parent=0
    _
  %s6 = ssub.s32 1, %s4
  %s7 = scalar_select 0, %s6, %s4
  // Predicated region
  $region2: #{dfnet_forward.10} parent=0 // pred_check
    _
  $region3: #{dfnet_forward.10} parent=0 // pred_check_branch
    %9 = sbr.rel (0) target = $region5
  $region4: #{dfnet_forward.10} parent=0 // pred_region
    _
  $region5: #{dfnet_forward.10} parent=0 // pred_fallthru
    _
  // Predicated region
  $region6: #{dfnet_forward.10} parent=0 // pred_check
    _
  $region7: #{dfnet_forward.10} parent=0 // pred_check_branch
    %11 = sbr.rel (0) target = $region9
  $region8: #{dfnet_forward.10} parent=0 // pred_region
    _
  $region9: #{dfnet_forward.10} parent=0 // pred_fallthru
    _
  // Predicated region
  $region10: #{dfnet_forward.10} parent=0 // pred_check
    _
  $region11: #{dfnet_forward.10} parent=0 // pred_check_branch
    %13 = sbr.rel (0) target = $region13
  $region12: #{dfnet_forward.10} parent=0 // pred_region
    _
  $region13: #{dfnet_forward.10} parent=0 // pred_fallthru
    _
  %v15 = vld [vmem:[%s0] sm:$0xf]
  %v16 = vld [vmem:[%s0 + $0x4] sm:$0xf]
  %v17 = vld [vmem:[%s0 + $0x8] sm:$0xf]
  %v18 = vld [vmem:[%s0 + $0xc] sm:$0xf]
  %v19 = vld [vmem:[%s0 + $0x10] sm:$0xf]
  %v20 = vld [vmem:[%s0 + $0x14] sm:$0xf]
  %v21 = vld [vmem:[%s0 + $0x18] sm:$0xf]
  %v22 = vld [vmem:[%s0 + $0x1c] sm:$0xf]
  %v23 = vld [vmem:[%s0 + $0x20] sm:$0xf]
  %v24 = vld [vmem:[%s0 + $0x24] sm:$0xf]
  %v25 = vld [vmem:[%s0 + $0x28] sm:$0xf]
  %v26 = vld [vmem:[%s0 + $0x2c] sm:$0xf]
  %v27 = vld [vmem:[%s0 + $0x30] sm:$0xf]
  %v28 = vld [vmem:[%s0 + $0x34] sm:$0xf]
  %v29 = vld [vmem:[%s0 + $0x38] sm:$0xf]
  %v30 = vld [vmem:[%s0 + $0x3c] sm:$0xf]
  %v31 = vld [vmem:[%s1] sm:$0xf]
  %v32 = vld [vmem:[%s1 + $0x4] sm:$0xf]
  %v33 = vld [vmem:[%s1 + $0x8] sm:$0xf]
  %v34 = vld [vmem:[%s1 + $0xc] sm:$0xf]
  %v35 = vld [vmem:[%s1 + $0x10] sm:$0xf]
  %v36 = vld [vmem:[%s1 + $0x14] sm:$0xf]
  %v37 = vld [vmem:[%s2] sm:$0x1]
  %v39 = vlaneseq
  %v40 = vshrl.u32 %v39, 7
  %v41 = vsub.s32 0, %v40
  %v42 = vrot.slane %v37, %v41
  %v60 = vunpack.c.l.b16 %v15
  %v61 = vunpack.c.l.b16 %v16
  %v62 = vunpack.c.l.b16 %v17
  %v63 = vunpack.c.l.b16 %v18
  %v64 = vunpack.c.l.b16 %v19
  %v65 = vunpack.c.l.b16 %v20
  %v66 = vunpack.c.l.b16 %v21
  %v67 = vunpack.c.l.b16 %v22
  %v68 = vunpack.c.l.b16 %v23
  %v69 = vunpack.c.l.b16 %v24
  %v70 = vunpack.c.l.b16 %v25
  %v71 = vunpack.c.l.b16 %v26
  %v72 = vunpack.c.l.b16 %v27
  %v73 = vunpack.c.l.b16 %v28
  %v74 = vunpack.c.l.b16 %v29
  %v75 = vunpack.c.l.b16 %v30
  %v76 = vpack.c.b16 %v61, %v60
  %v77 = vpack.c.b16 %v63, %v62
  %v78 = vpack.c.b16 %v65, %v64
  %v79 = vpack.c.b16 %v67, %v66
  %v80 = vpack.c.b16 %v69, %v68
  %v81 = vpack.c.b16 %v71, %v70
  %v82 = vpack.c.b16 %v73, %v72
  %v83 = vpack.c.b16 %v75, %v74
  %v90 = vunpack.c.l.b16 %v31
  %v91 = vunpack.c.l.b16 %v32
  %v92 = vunpack.c.l.b16 %v33
  %v93 = vunpack.c.l.b16 %v34
  %v94 = vunpack.c.l.b16 %v35
  %v95 = vunpack.c.l.b16 %v36
  %v96 = vpack.c.b16 %v91, %v90
  %v97 = vpack.c.b16 %v93, %v92
  %v98 = vpack.c.b16 %v95, %v94
  %vm102 = vcmask 392192
  %v104 = vsel %vm102, %v76, 0
  %v107 = vsel %vm102, %v77, 0
  %v110 = vsel %vm102, %v78, 0
  %v113 = vsel %vm102, %v79, 0
  %v116 = vsel %vm102, %v80, 0
  %v119 = vsel %vm102, %v81, 0
  %v122 = vsel %vm102, %v82, 0
  %v125 = vsel %vm102, %v83, 0
  %127 = vmatprep.subr.bf16.mxu0 0
  %128 = vmatpush1.bf16.msra.mxu0 0
  %129 = vmatprep.subr.bf16.mxu0 0
  %130 = vmatpush1.bf16.msra.mxu0 0
  %131 = vmatprep.subr.bf16.mxu0 0
  %132 = vmatpush1.bf16.msra.mxu0 0
  %133 = vmatprep.subr.bf16.mxu0 0
  %134 = vmatpush1.bf16.msra.mxu0 0
  %135 = vmatprep.subr.bf16.mxu0 0
  %136 = vmatpush1.bf16.msra.mxu0 0
  %137 = vmatprep.subr.bf16.mxu0 0
  %138 = vmatpush1.bf16.msra.mxu0 %v98
  %139 = vmatprep.subr.bf16.mxu0 0
  %140 = vmatpush1.bf16.msra.mxu0 %v97
  %141 = vmatprep.subr.bf16.mxu0 0
  %142 = vmatpush1.bf16.msra.mxu0 %v96
  %143 = vmatprep.subr.bf16.mxu0 0
  %144 = vmatpush2.bf16.msra.mxu0 0
  %145 = vmatprep.subr.bf16.mxu0 0
  %146 = vmatpush2.bf16.msra.mxu0 0
  %147 = vmatprep.subr.bf16.mxu0 0
  %148 = vmatpush2.bf16.msra.mxu0 0
  %149 = vmatprep.subr.bf16.mxu0 0
  %150 = vmatpush2.bf16.msra.mxu0 0
  %151 = vmatprep.subr.bf16.mxu0 0
  %152 = vmatpush2.bf16.msra.mxu0 0
  %153 = vmatprep.subr.bf16.mxu0 0
  %154 = vmatpush2.bf16.msra.mxu0 0
  %155 = vmatprep.subr.bf16.mxu0 0
  %156 = vmatpush2.bf16.msra.mxu0 0
  %157 = vmatprep.subr.bf16.mxu0 0
  %158 = vmatpush2.bf16.msra.mxu0 0
  %159 = vmatprep.mubr.bf16.mxu0 0
  %160 = vmatmul.mubr.bf16.gmra.mxu0 %v104
  %v161 = vpop.f32.mrf.mxu0
  %v162 = vadd.f32 %v42, %v161
  %v163 = vpop.f32.mrf.mxu0
  %v164 = vpop.f32.mrf.mxu0
  %v165 = vadd.f32 %v42, %v164
  %v166 = vpop.f32.mrf.mxu0
  %167 = vmatprep.mubr.bf16.mxu0 0
  %168 = vmatmul.mubr.bf16.gmra.mxu0 %v107
  %v169 = vpop.f32.mrf.mxu0
  %v170 = vadd.f32 %v42, %v169
  %v171 = vpop.f32.mrf.mxu0
  %v172 = vpop.f32.mrf.mxu0
  %v173 = vadd.f32 %v42, %v172
  %v174 = vpop.f32.mrf.mxu0
  %175 = vmatprep.mubr.bf16.mxu0 0
  %176 = vmatmul.mubr.bf16.gmra.mxu0 %v110
  %v177 = vpop.f32.mrf.mxu0
  %v178 = vadd.f32 %v42, %v177
  %v179 = vpop.f32.mrf.mxu0
  %v180 = vpop.f32.mrf.mxu0
  %v181 = vadd.f32 %v42, %v180
  %v182 = vpop.f32.mrf.mxu0
  %183 = vmatprep.mubr.bf16.mxu0 0
  %184 = vmatmul.mubr.bf16.gmra.mxu0 %v113
  %v185 = vpop.f32.mrf.mxu0
  %v186 = vadd.f32 %v42, %v185
  %v187 = vpop.f32.mrf.mxu0
  %v188 = vpop.f32.mrf.mxu0
  %v189 = vadd.f32 %v42, %v188
  %v190 = vpop.f32.mrf.mxu0
  %191 = vmatprep.mubr.bf16.mxu0 0
  %192 = vmatmul.mubr.bf16.gmra.mxu0 %v116
  %v193 = vpop.f32.mrf.mxu0
  %v194 = vadd.f32 %v42, %v193
  %v195 = vpop.f32.mrf.mxu0
  %v196 = vpop.f32.mrf.mxu0
  %v197 = vadd.f32 %v42, %v196
  %v198 = vpop.f32.mrf.mxu0
  %199 = vmatprep.mubr.bf16.mxu0 0
  %200 = vmatmul.mubr.bf16.gmra.mxu0 %v119
  %v201 = vpop.f32.mrf.mxu0
  %v202 = vadd.f32 %v42, %v201
  %v203 = vpop.f32.mrf.mxu0
  %v204 = vpop.f32.mrf.mxu0
  %v205 = vadd.f32 %v42, %v204
  %v206 = vpop.f32.mrf.mxu0
  %207 = vmatprep.mubr.bf16.mxu0 0
  %208 = vmatmul.mubr.bf16.gmra.mxu0 %v122
  %v209 = vpop.f32.mrf.mxu0
  %v210 = vadd.f32 %v42, %v209
  %v211 = vpop.f32.mrf.mxu0
  %v212 = vpop.f32.mrf.mxu0
  %v213 = vadd.f32 %v42, %v212
  %v214 = vpop.f32.mrf.mxu0
  %215 = vmatprep.mubr.bf16.mxu0 0
  %216 = vmatmul.mubr.bf16.gmra.mxu0 %v125
  %v217 = vpop.f32.mrf.mxu0
  %v218 = vadd.f32 %v42, %v217
  %v219 = vpop.f32.mrf.mxu0
  %v220 = vpop.f32.mrf.mxu0
  %v221 = vadd.f32 %v42, %v220
  %v222 = vpop.f32.mrf.mxu0
  %223 = vdwg.mxu0
  %v224 = vmax.f32 %v162, 0.0
  %v225 = vmax.f32 %v165, 0.0
  %v226 = vmax.f32 %v170, 0.0
  %v227 = vmax.f32 %v173, 0.0
  %v228 = vmax.f32 %v178, 0.0
  %v229 = vmax.f32 %v181, 0.0
  %v230 = vmax.f32 %v186, 0.0
  %v231 = vmax.f32 %v189, 0.0
  %v232 = vmax.f32 %v194, 0.0
  %v233 = vmax.f32 %v197, 0.0
  %v234 = vmax.f32 %v202, 0.0
  %v235 = vmax.f32 %v205, 0.0
  %v236 = vmax.f32 %v210, 0.0
  %v237 = vmax.f32 %v213, 0.0
  %v238 = vmax.f32 %v218, 0.0
  %v239 = vmax.f32 %v221, 0.0
  %v240 = vpack.c.bf16 %v225, %v224
  %v241 = vpack.c.bf16 %v227, %v226
  %v242 = vpack.c.bf16 %v229, %v228
  %v243 = vpack.c.bf16 %v231, %v230
  %v244 = vpack.c.bf16 %v233, %v232
  %v245 = vpack.c.bf16 %v235, %v234
  %v246 = vpack.c.bf16 %v237, %v236
  %v247 = vpack.c.bf16 %v239, %v238
  %v256 = vunpack.c.l.b16 %v240
  %v257 = vunpack.c.h.b16 %v240
  %v258 = vunpack.c.l.b16 %v241
  %v259 = vunpack.c.h.b16 %v241
  %v260 = vunpack.c.l.b16 %v242
  %v261 = vunpack.c.h.b16 %v242
  %v262 = vunpack.c.l.b16 %v243
  %v263 = vunpack.c.h.b16 %v243
  %v264 = vunpack.c.l.b16 %v244
  %v265 = vunpack.c.h.b16 %v244
  %v266 = vunpack.c.l.b16 %v245
  %v267 = vunpack.c.h.b16 %v245
  %v268 = vunpack.c.l.b16 %v246
  %v269 = vunpack.c.h.b16 %v246
  %v270 = vunpack.c.l.b16 %v247
  %v271 = vunpack.c.h.b16 %v247
  %v272 = vpack.c.b16 %v256, %v256
  %v273 = vpack.c.b16 %v257, %v257
  %v274 = vpack.c.b16 %v258, %v258
  %v275 = vpack.c.b16 %v259, %v259
  %v276 = vpack.c.b16 %v260, %v260
  %v277 = vpack.c.b16 %v261, %v261
  %v278 = vpack.c.b16 %v262, %v262
  %v279 = vpack.c.b16 %v263, %v263
  %v280 = vpack.c.b16 %v264, %v264
  %v281 = vpack.c.b16 %v265, %v265
  %v282 = vpack.c.b16 %v266, %v266
  %v283 = vpack.c.b16 %v267, %v267
  %v284 = vpack.c.b16 %v268, %v268
  %v285 = vpack.c.b16 %v269, %v269
  %v286 = vpack.c.b16 %v270, %v270
  %v287 = vpack.c.b16 %v271, %v271
  %304 = vst [vmem:[%s3] sm:$0xf] %v272
  %305 = vst [vmem:[%s3 + $0x4] sm:$0xf] %v273
  %306 = vst [vmem:[%s3 + $0x8] sm:$0xf] %v274
  %307 = vst [vmem:[%s3 + $0xc] sm:$0xf] %v275
  %308 = vst [vmem:[%s3 + $0x10] sm:$0xf] %v276
  %309 = vst [vmem:[%s3 + $0x14] sm:$0xf] %v277
  %310 = vst [vmem:[%s3 + $0x18] sm:$0xf] %v278
  %311 = vst [vmem:[%s3 + $0x1c] sm:$0xf] %v279
  %312 = vst [vmem:[%s3 + $0x20] sm:$0xf] %v280
  %313 = vst [vmem:[%s3 + $0x24] sm:$0xf] %v281
  %314 = vst [vmem:[%s3 + $0x28] sm:$0xf] %v282
  %315 = vst [vmem:[%s3 + $0x2c] sm:$0xf] %v283
  %316 = vst [vmem:[%s3 + $0x30] sm:$0xf] %v284
  %317 = vst [vmem:[%s3 + $0x34] sm:$0xf] %v285
  %318 = vst [vmem:[%s3 + $0x38] sm:$0xf] %v286
  %319 = vst [vmem:[%s3 + $0x3c] sm:$0xf] %v287
  // Predicated region
  $region14: #{dfnet_forward.10} parent=0 // pred_check
    _
  $region15: #{dfnet_forward.10} parent=0 // pred_check_branch
    %321 = sbr.rel (0) target = $region17
  $region16: #{dfnet_forward.10} parent=0 // pred_region
    _
  $region17: #{dfnet_forward.10} parent=0 // pred_fallthru
    _
  // Predicated region
  $region18: #{dfnet_forward.10} parent=0 // pred_check
    _
  $region19: #{dfnet_forward.10} parent=0 // pred_check_branch
    %323 = sbr.rel (0) target = $region21
  $region20: #{dfnet_forward.10} parent=0 // pred_region
    _
  $region21: #{dfnet_forward.10} parent=0 // pred_fallthru
    _

// kernel: dfnet_forward.11
$region0: #{dfnet_forward.11}
  #allocation0 [shape = 'u32[]', space=smem, size = 0x4, offset = 0x4, fixed_abs, tag = 'smem constant byte address 0x4 - core index']
  #allocation1 [shape = 'u32[144,128]{1,0:T(1,128)}', space=vmem, size = 0x12000, scoped, tag = 'internal scratch']
  %s0 = inlined_call_operand.vmem [shape: bf16[1,32,1024], index: 0, kind: input, shape index: {}]
  %s1 = inlined_call_operand.vmem [shape: bf16[1,1024,128], index: 1, kind: input, shape index: {}]
  %s2 = inlined_call_operand.vmem [shape: f32[1,128], index: 2, kind: input, shape index: {}]
  %s3 = inlined_call_operand.vmem [shape: bf16[1,32,128], index: 3, kind: output, shape index: {0}]
  %s4 = inlined_call_operand.vmem [shape: f32[1,1,1,128], index: 4, kind: output, shape index: {1}]
  %s5 = inlined_call_operand.vmem [shape: f32[1,1,1,128], index: 5, kind: output, shape index: {2}]
  %6 = xla_tuple %s3, %s4, %s5
  %s7 = sld [smem:[#allocation0]]
  $region38: #{dfnet_forward.11} parent=0
    _
  %s9 = ssub.s32 1, %s7
  %s10 = scalar_select 0, %s9, %s7
  // Predicated region
  $region2: #{dfnet_forward.11} parent=0 // pred_check
    _
  $region3: #{dfnet_forward.11} parent=0 // pred_check_branch
    %12 = sbr.rel (0) target = $region5
  $region4: #{dfnet_forward.11} parent=0 // pred_region
    _
  $region5: #{dfnet_forward.11} parent=0 // pred_fallthru
    _
  // Predicated region
  $region6: #{dfnet_forward.11} parent=0 // pred_check
    _
  $region7: #{dfnet_forward.11} parent=0 // pred_check_branch
    %14 = sbr.rel (0) target = $region9
  $region8: #{dfnet_forward.11} parent=0 // pred_region
    _
  $region9: #{dfnet_forward.11} parent=0 // pred_fallthru
    _
  // Predicated region
  $region10: #{dfnet_forward.11} parent=0 // pred_check
    _
  $region11: #{dfnet_forward.11} parent=0 // pred_check_branch
    %16 = sbr.rel (0) target = $region13
  $region12: #{dfnet_forward.11} parent=0 // pred_region
    _
  $region13: #{dfnet_forward.11} parent=0 // pred_fallthru
    _
  %v18 = vld [vmem:[%s0] sm:$0xff]
  %v19 = vld [vmem:[%s0 + $0x8] sm:$0xff]
  %v20 = vld [vmem:[%s0 + $0x10] sm:$0xff]
  %v21 = vld [vmem:[%s0 + $0x18] sm:$0xff]
  %v22 = vld [vmem:[%s0 + $0x20] sm:$0xff]
  %v23 = vld [vmem:[%s0 + $0x28] sm:$0xff]
  %v24 = vld [vmem:[%s0 + $0x30] sm:$0xff]
  %v25 = vld [vmem:[%s0 + $0x38] sm:$0xff]
  %v26 = vld [vmem:[%s0 + $0x40] sm:$0xff]
  %v27 = vld [vmem:[%s0 + $0x48] sm:$0xff]
  %v28 = vld [vmem:[%s0 + $0x50] sm:$0xff]
  %v29 = vld [vmem:[%s0 + $0x58] sm:$0xff]
  %v30 = vld [vmem:[%s0 + $0x60] sm:$0xff]
  %v31 = vld [vmem:[%s0 + $0x68] sm:$0xff]
  %v32 = vld [vmem:[%s0 + $0x70] sm:$0xff]
  %v33 = vld [vmem:[%s0 + $0x78] sm:$0xff]
  %v34 = vld [vmem:[%s1] sm:$0xf]
  %v35 = vld [vmem:[%s1 + $0x4] sm:$0xf]
  %v36 = vld [vmem:[%s1 + $0x8] sm:$0xf]
  %v37 = vld [vmem:[%s1 + $0xc] sm:$0xf]
  %v38 = vld [vmem:[%s1 + $0x10] sm:$0xf]
  %v39 = vld [vmem:[%s1 + $0x14] sm:$0xf]
  %v40 = vld [vmem:[%s1 + $0x18] sm:$0xf]
  %v41 = vld [vmem:[%s1 + $0x1c] sm:$0xf]
  %v42 = vld [vmem:[%s1 + $0x20] sm:$0xf]
  %v43 = vld [vmem:[%s1 + $0x24] sm:$0xf]
  %v44 = vld [vmem:[%s1 + $0x28] sm:$0xf]
  %v45 = vld [vmem:[%s1 + $0x2c] sm:$0xf]
  %v46 = vld [vmem:[%s1 + $0x30] sm:$0xf]
  %v47 = vld [vmem:[%s1 + $0x34] sm:$0xf]
  %v48 = vld [vmem:[%s1 + $0x38] sm:$0xf]
  %v49 = vld [vmem:[%s1 + $0x3c] sm:$0xf]
  %v50 = vld [vmem:[%s1 + $0x40] sm:$0xf]
  %v51 = vld [vmem:[%s1 + $0x44] sm:$0xf]
  %v52 = vld [vmem:[%s1 + $0x48] sm:$0xf]
  %v53 = vld [vmem:[%s1 + $0x4c] sm:$0xf]
  %v54 = vld [vmem:[%s1 + $0x50] sm:$0xf]
  %v55 = vld [vmem:[%s1 + $0x54] sm:$0xf]
  %v56 = vld [vmem:[%s1 + $0x58] sm:$0xf]
  %v57 = vld [vmem:[%s1 + $0x5c] sm:$0xf]
  %v58 = vld [vmem:[%s1 + $0x60] sm:$0xf]
  %v59 = vld [vmem:[%s1 + $0x64] sm:$0xf]
  %v60 = vld [vmem:[%s1 + $0x68] sm:$0xf]
  %v61 = vld [vmem:[%s1 + $0x6c] sm:$0xf]
  %v62 = vld [vmem:[%s1 + $0x70] sm:$0xf]
  %v63 = vld [vmem:[%s1 + $0x74] sm:$0xf]
  %v64 = vld [vmem:[%s1 + $0x78] sm:$0xf]
  %v65 = vld [vmem:[%s1 + $0x7c] sm:$0xf]
  %v66 = vld [vmem:[%s1 + $0x80] sm:$0xf]
  %v67 = vld [vmem:[%s1 + $0x84] sm:$0xf]
  %v68 = vld [vmem:[%s1 + $0x88] sm:$0xf]
  %v69 = vld [vmem:[%s1 + $0x8c] sm:$0xf]
  %v70 = vld [vmem:[%s1 + $0x90] sm:$0xf]
  %v71 = vld [vmem:[%s1 + $0x94] sm:$0xf]
  %v72 = vld [vmem:[%s1 + $0x98] sm:$0xf]
  %v73 = vld [vmem:[%s1 + $0x9c] sm:$0xf]
  %v74 = vld [vmem:[%s1 + $0xa0] sm:$0xf]
  %v75 = vld [vmem:[%s1 + $0xa4] sm:$0xf]
  %v76 = vld [vmem:[%s1 + $0xa8] sm:$0xf]
  %v77 = vld [vmem:[%s1 + $0xac] sm:$0xf]
  %v78 = vld [vmem:[%s1 + $0xb0] sm:$0xf]
  %v79 = vld [vmem:[%s1 + $0xb4] sm:$0xf]
  %v80 = vld [vmem:[%s1 + $0xb8] sm:$0xf]
  %v81 = vld [vmem:[%s1 + $0xbc] sm:$0xf]
  %v82 = vld [vmem:[%s1 + $0xc0] sm:$0xf]
  %v83 = vld [vmem:[%s1 + $0xc4] sm:$0xf]
  %v84 = vld [vmem:[%s1 + $0xc8] sm:$0xf]
  %v85 = vld [vmem:[%s1 + $0xcc] sm:$0xf]
  %v86 = vld [vmem:[%s1 + $0xd0] sm:$0xf]
  %v87 = vld [vmem:[%s1 + $0xd4] sm:$0xf]
  %v88 = vld [vmem:[%s1 + $0xd8] sm:$0xf]
  %v89 = vld [vmem:[%s1 + $0xdc] sm:$0xf]
  %v90 = vld [vmem:[%s1 + $0xe0] sm:$0xf]
  %v91 = vld [vmem:[%s1 + $0xe4] sm:$0xf]
  %v92 = vld [vmem:[%s1 + $0xe8] sm:$0xf]
  %v93 = vld [vmem:[%s1 + $0xec] sm:$0xf]
  %v94 = vld [vmem:[%s1 + $0xf0] sm:$0xf]
  %v95 = vld [vmem:[%s1 + $0xf4] sm:$0xf]
  %v96 = vld [vmem:[%s1 + $0xf8] sm:$0xf]
  %v97 = vld [vmem:[%s1 + $0xfc] sm:$0xf]
  %v98 = vld [vmem:[%s1 + $0x100] sm:$0xf]
  %v99 = vld [vmem:[%s1 + $0x104] sm:$0xf]
  %v100 = vld [vmem:[%s1 + $0x108] sm:$0xf]
  %v101 = vld [vmem:[%s1 + $0x10c] sm:$0xf]
  %v102 = vld [vmem:[%s1 + $0x110] sm:$0xf]
  %v103 = vld [vmem:[%s1 + $0x114] sm:$0xf]
  %v104 = vld [vmem:[%s1 + $0x118] sm:$0xf]
  %v105 = vld [vmem:[%s1 + $0x11c] sm:$0xf]
  %v106 = vld [vmem:[%s1 + $0x120] sm:$0xf]
  %v107 = vld [vmem:[%s1 + $0x124] sm:$0xf]
  %v108 = vld [vmem:[%s1 + $0x128] sm:$0xf]
  %v109 = vld [vmem:[%s1 + $0x12c] sm:$0xf]
  %v110 = vld [vmem:[%s1 + $0x130] sm:$0xf]
  %v111 = vld [vmem:[%s1 + $0x134] sm:$0xf]
  %v112 = vld [vmem:[%s1 + $0x138] sm:$0xf]
  %v113 = vld [vmem:[%s1 + $0x13c] sm:$0xf]
  %v114 = vld [vmem:[%s1 + $0x140] sm:$0xf]
  %v115 = vld [vmem:[%s1 + $0x144] sm:$0xf]
  %v116 = vld [vmem:[%s1 + $0x148] sm:$0xf]
  %v117 = vld [vmem:[%s1 + $0x14c] sm:$0xf]
  %v118 = vld [vmem:[%s1 + $0x150] sm:$0xf]
  %v119 = vld [vmem:[%s1 + $0x154] sm:$0xf]
  %v120 = vld [vmem:[%s1 + $0x158] sm:$0xf]
  %v121 = vld [vmem:[%s1 + $0x15c] sm:$0xf]
  %v122 = vld [vmem:[%s1 + $0x160] sm:$0xf]
  %v123 = vld [vmem:[%s1 + $0x164] sm:$0xf]
  %v124 = vld [vmem:[%s1 + $0x168] sm:$0xf]
  %v125 = vld [vmem:[%s1 + $0x16c] sm:$0xf]
  %v126 = vld [vmem:[%s1 + $0x170] sm:$0xf]
  %v127 = vld [vmem:[%s1 + $0x174] sm:$0xf]
  %v128 = vld [vmem:[%s1 + $0x178] sm:$0xf]
  %v129 = vld [vmem:[%s1 + $0x17c] sm:$0xf]
  %v130 = vld [vmem:[%s1 + $0x180] sm:$0xf]
  %v131 = vld [vmem:[%s1 + $0x184] sm:$0xf]
  %v132 = vld [vmem:[%s1 + $0x188] sm:$0xf]
  %v133 = vld [vmem:[%s1 + $0x18c] sm:$0xf]
  %v134 = vld [vmem:[%s1 + $0x190] sm:$0xf]
  %v135 = vld [vmem:[%s1 + $0x194] sm:$0xf]
  %v136 = vld [vmem:[%s1 + $0x198] sm:$0xf]
  %v137 = vld [vmem:[%s1 + $0x19c] sm:$0xf]
  %v138 = vld [vmem:[%s1 + $0x1a0] sm:$0xf]
  %v139 = vld [vmem:[%s1 + $0x1a4] sm:$0xf]
  %v140 = vld [vmem:[%s1 + $0x1a8] sm:$0xf]
  %v141 = vld [vmem:[%s1 + $0x1ac] sm:$0xf]
  %v142 = vld [vmem:[%s1 + $0x1b0] sm:$0xf]
  %v143 = vld [vmem:[%s1 + $0x1b4] sm:$0xf]
  %v144 = vld [vmem:[%s1 + $0x1b8] sm:$0xf]
  %v145 = vld [vmem:[%s1 + $0x1bc] sm:$0xf]
  %v146 = vld [vmem:[%s1 + $0x1c0] sm:$0xf]
  %v147 = vld [vmem:[%s1 + $0x1c4] sm:$0xf]
  %v148 = vld [vmem:[%s1 + $0x1c8] sm:$0xf]
  %v149 = vld [vmem:[%s1 + $0x1cc] sm:$0xf]
  %v150 = vld [vmem:[%s1 + $0x1d0] sm:$0xf]
  %v151 = vld [vmem:[%s1 + $0x1d4] sm:$0xf]
  %v152 = vld [vmem:[%s1 + $0x1d8] sm:$0xf]
  %v153 = vld [vmem:[%s1 + $0x1dc] sm:$0xf]
  %v154 = vld [vmem:[%s1 + $0x1e0] sm:$0xf]
  %v155 = vld [vmem:[%s1 + $0x1e4] sm:$0xf]
  %v156 = vld [vmem:[%s1 + $0x1e8] sm:$0xf]
  %v157 = vld [vmem:[%s1 + $0x1ec] sm:$0xf]
  %v158 = vld [vmem:[%s1 + $0x1f0] sm:$0xf]
  %v159 = vld [vmem:[%s1 + $0x1f4] sm:$0xf]
  %v160 = vld [vmem:[%s1 + $0x1f8] sm:$0xf]
  %v161 = vld [vmem:[%s1 + $0x1fc] sm:$0xf]
  %v162 = vld [vmem:[%s2] sm:$0x1]
  %v164 = vlaneseq
  %v165 = vshrl.u32 %v164, 7
  %v166 = vsub.s32 0, %v165
  %v167 = vrot.slane %v162, %v166
  %v185 = vunpack.c.l.b16 %v18
  %v186 = vunpack.c.h.b16 %v18
  %v187 = vunpack.c.l.b16 %v19
  %v188 = vunpack.c.h.b16 %v19
  %v189 = vunpack.c.l.b16 %v20
  %v190 = vunpack.c.h.b16 %v20
  %v191 = vunpack.c.l.b16 %v21
  %v192 = vunpack.c.h.b16 %v21
  %v193 = vunpack.c.l.b16 %v22
  %v194 = vunpack.c.h.b16 %v22
  %v195 = vunpack.c.l.b16 %v23
  %v196 = vunpack.c.h.b16 %v23
  %v197 = vunpack.c.l.b16 %v24
  %v198 = vunpack.c.h.b16 %v24
  %v199 = vunpack.c.l.b16 %v25
  %v200 = vunpack.c.h.b16 %v25
  %v201 = vunpack.c.l.b16 %v26
  %v202 = vunpack.c.h.b16 %v26
  %v203 = vunpack.c.l.b16 %v27
  %v204 = vunpack.c.h.b16 %v27
  %v205 = vunpack.c.l.b16 %v28
  %v206 = vunpack.c.h.b16 %v28
  %v207 = vunpack.c.l.b16 %v29
  %v208 = vunpack.c.h.b16 %v29
  %v209 = vunpack.c.l.b16 %v30
  %v210 = vunpack.c.h.b16 %v30
  %v211 = vunpack.c.l.b16 %v31
  %v212 = vunpack.c.h.b16 %v31
  %v213 = vunpack.c.l.b16 %v32
  %v214 = vunpack.c.h.b16 %v32
  %v215 = vunpack.c.l.b16 %v33
  %v216 = vunpack.c.h.b16 %v33
  %v217 = vpack.c.b16 %v193, %v185
  %v218 = vpack.c.b16 %v194, %v186
  %v219 = vpack.c.b16 %v195, %v187
  %v220 = vpack.c.b16 %v196, %v188
  %v221 = vpack.c.b16 %v197, %v189
  %v222 = vpack.c.b16 %v198, %v190
  %v223 = vpack.c.b16 %v199, %v191
  %v224 = vpack.c.b16 %v200, %v192
  %v225 = vpack.c.b16 %v209, %v201
  %v226 = vpack.c.b16 %v210, %v202
  %v227 = vpack.c.b16 %v211, %v203
  %v228 = vpack.c.b16 %v212, %v204
  %v229 = vpack.c.b16 %v213, %v205
  %v230 = vpack.c.b16 %v214, %v206
  %v231 = vpack.c.b16 %v215, %v207
  %v232 = vpack.c.b16 %v216, %v208
  %v377 = vunpack.c.l.b16 %v34
  %v378 = vunpack.c.l.b16 %v35
  %v379 = vunpack.c.l.b16 %v36
  %v380 = vunpack.c.l.b16 %v37
  %v381 = vunpack.c.l.b16 %v38
  %v382 = vunpack.c.l.b16 %v39
  %v383 = vunpack.c.l.b16 %v40
  %v384 = vunpack.c.l.b16 %v41
  %v385 = vunpack.c.l.b16 %v42
  %v386 = vunpack.c.l.b16 %v43
  %v387 = vunpack.c.l.b16 %v44
  %v388 = vunpack.c.l.b16 %v45
  %v389 = vunpack.c.l.b16 %v46
  %v390 = vunpack.c.l.b16 %v47
  %v391 = vunpack.c.l.b16 %v48
  %v392 = vunpack.c.l.b16 %v49
  %v393 = vunpack.c.l.b16 %v50
  %v394 = vunpack.c.l.b16 %v51
  %v395 = vunpack.c.l.b16 %v52
  %v396 = vunpack.c.l.b16 %v53
  %v397 = vunpack.c.l.b16 %v54
  %v398 = vunpack.c.l.b16 %v55
  %v399 = vunpack.c.l.b16 %v56
  %v400 = vunpack.c.l.b16 %v57
  %v401 = vunpack.c.l.b16 %v58
  %v402 = vunpack.c.l.b16 %v59
  %v403 = vunpack.c.l.b16 %v60
  %v404 = vunpack.c.l.b16 %v61
  %v405 = vunpack.c.l.b16 %v62
  %v406 = vunpack.c.l.b16 %v63
  %v407 = vunpack.c.l.b16 %v64
  %v408 = vunpack.c.l.b16 %v65
  %v409 = vunpack.c.l.b16 %v66
  %v410 = vunpack.c.l.b16 %v67
  %v411 = vunpack.c.l.b16 %v68
  %v412 = vunpack.c.l.b16 %v69
  %v413 = vunpack.c.l.b16 %v70
  %v414 = vunpack.c.l.b16 %v71
  %v415 = vunpack.c.l.b16 %v72
  %v416 = vunpack.c.l.b16 %v73
  %v417 = vunpack.c.l.b16 %v74
  %v418 = vunpack.c.l.b16 %v75
  %v419 = vunpack.c.l.b16 %v76
  %v420 = vunpack.c.l.b16 %v77
  %v421 = vunpack.c.l.b16 %v78
  %v422 = vunpack.c.l.b16 %v79
  %v423 = vunpack.c.l.b16 %v80
  %v424 = vunpack.c.l.b16 %v81
  %v425 = vunpack.c.l.b16 %v82
  %v426 = vunpack.c.l.b16 %v83
  %v427 = vunpack.c.l.b16 %v84
  %v428 = vunpack.c.l.b16 %v85
  %v429 = vunpack.c.l.b16 %v86
  %v430 = vunpack.c.l.b16 %v87
  %v431 = vunpack.c.l.b16 %v88
  %v432 = vunpack.c.l.b16 %v89
  %v433 = vunpack.c.l.b16 %v90
  %v434 = vunpack.c.l.b16 %v91
  %v435 = vunpack.c.l.b16 %v92
  %v436 = vunpack.c.l.b16 %v93
  %v437 = vunpack.c.l.b16 %v94
  %v438 = vunpack.c.l.b16 %v95
  %v439 = vunpack.c.l.b16 %v96
  %v440 = vunpack.c.l.b16 %v97
  %v441 = vunpack.c.l.b16 %v98
  %v442 = vunpack.c.l.b16 %v99
  %v443 = vunpack.c.l.b16 %v100
  %v444 = vunpack.c.l.b16 %v101
  %v445 = vunpack.c.l.b16 %v102
  %v446 = vunpack.c.l.b16 %v103
  %v447 = vunpack.c.l.b16 %v104
  %v448 = vunpack.c.l.b16 %v105
  %v449 = vunpack.c.l.b16 %v106
  %v450 = vunpack.c.l.b16 %v107
  %v451 = vunpack.c.l.b16 %v108
  %v452 = vunpack.c.l.b16 %v109
  %v453 = vunpack.c.l.b16 %v110
  %v454 = vunpack.c.l.b16 %v111
  %v455 = vunpack.c.l.b16 %v112
  %v456 = vunpack.c.l.b16 %v113
  %v457 = vunpack.c.l.b16 %v114
  %v458 = vunpack.c.l.b16 %v115
  %v459 = vunpack.c.l.b16 %v116
  %v460 = vunpack.c.l.b16 %v117
  %v461 = vunpack.c.l.b16 %v118
  %v462 = vunpack.c.l.b16 %v119
  %v463 = vunpack.c.l.b16 %v120
  %v464 = vunpack.c.l.b16 %v121
  %v465 = vunpack.c.l.b16 %v122
  %v466 = vunpack.c.l.b16 %v123
  %v467 = vunpack.c.l.b16 %v124
  %v468 = vunpack.c.l.b16 %v125
  %v469 = vunpack.c.l.b16 %v126
  %v470 = vunpack.c.l.b16 %v127
  %v471 = vunpack.c.l.b16 %v128
  %v472 = vunpack.c.l.b16 %v129
  %v473 = vunpack.c.l.b16 %v130
  %v474 = vunpack.c.l.b16 %v131
  %v475 = vunpack.c.l.b16 %v132
  %v476 = vunpack.c.l.b16 %v133
  %v477 = vunpack.c.l.b16 %v134
  %v478 = vunpack.c.l.b16 %v135
  %v479 = vunpack.c.l.b16 %v136
  %v480 = vunpack.c.l.b16 %v137
  %v481 = vunpack.c.l.b16 %v138
  %v482 = vunpack.c.l.b16 %v139
  %v483 = vunpack.c.l.b16 %v140
  %v484 = vunpack.c.l.b16 %v141
  %v485 = vunpack.c.l.b16 %v142
  %v486 = vunpack.c.l.b16 %v143
  %v487 = vunpack.c.l.b16 %v144
  %v488 = vunpack.c.l.b16 %v145
  %v489 = vunpack.c.l.b16 %v146
  %v490 = vunpack.c.l.b16 %v147
  %v491 = vunpack.c.l.b16 %v148
  %v492 = vunpack.c.l.b16 %v149
  %v493 = vunpack.c.l.b16 %v150
  %v494 = vunpack.c.l.b16 %v151
  %v495 = vunpack.c.l.b16 %v152
  %v496 = vunpack.c.l.b16 %v153
  %v497 = vunpack.c.l.b16 %v154
  %v498 = vunpack.c.l.b16 %v155
  %v499 = vunpack.c.l.b16 %v156
  %v500 = vunpack.c.l.b16 %v157
  %v501 = vunpack.c.l.b16 %v158
  %v502 = vunpack.c.l.b16 %v159
  %v503 = vunpack.c.l.b16 %v160
  %v504 = vunpack.c.l.b16 %v161
  %v505 = vpack.c.b16 %v378, %v377
  %v506 = vpack.c.b16 %v380, %v379
  %v507 = vpack.c.b16 %v382, %v381
  %v508 = vpack.c.b16 %v384, %v383
  %v509 = vpack.c.b16 %v386, %v385
  %v510 = vpack.c.b16 %v388, %v387
  %v511 = vpack.c.b16 %v390, %v389
  %v512 = vpack.c.b16 %v392, %v391
  %v513 = vpack.c.b16 %v394, %v393
  %v514 = vpack.c.b16 %v396, %v395
  %v515 = vpack.c.b16 %v398, %v397
  %v516 = vpack.c.b16 %v400, %v399
  %v517 = vpack.c.b16 %v402, %v401
  %v518 = vpack.c.b16 %v404, %v403
  %v519 = vpack.c.b16 %v406, %v405
  %v520 = vpack.c.b16 %v408, %v407
  %v521 = vpack.c.b16 %v410, %v409
  %v522 = vpack.c.b16 %v412, %v411
  %v523 = vpack.c.b16 %v414, %v413
  %v524 = vpack.c.b16 %v416, %v415
  %v525 = vpack.c.b16 %v418, %v417
  %v526 = vpack.c.b16 %v420, %v419
  %v527 = vpack.c.b16 %v422, %v421
  %v528 = vpack.c.b16 %v424, %v423
  %v529 = vpack.c.b16 %v426, %v425
  %v530 = vpack.c.b16 %v428, %v427
  %v531 = vpack.c.b16 %v430, %v429
  %v532 = vpack.c.b16 %v432, %v431
  %v533 = vpack.c.b16 %v434, %v433
  %v534 = vpack.c.b16 %v436, %v435
  %v535 = vpack.c.b16 %v438, %v437
  %v536 = vpack.c.b16 %v440, %v439
  %v537 = vpack.c.b16 %v442, %v441
  %v538 = vpack.c.b16 %v444, %v443
  %v539 = vpack.c.b16 %v446, %v445
  %v540 = vpack.c.b16 %v448, %v447
  %v541 = vpack.c.b16 %v450, %v449
  %v542 = vpack.c.b16 %v452, %v451
  %v543 = vpack.c.b16 %v454, %v453
  %v544 = vpack.c.b16 %v456, %v455
  %v545 = vpack.c.b16 %v458, %v457
  %v546 = vpack.c.b16 %v460, %v459
  %v547 = vpack.c.b16 %v462, %v461
  %v548 = vpack.c.b16 %v464, %v463
  %v549 = vpack.c.b16 %v466, %v465
  %v550 = vpack.c.b16 %v468, %v467
  %v551 = vpack.c.b16 %v470, %v469
  %v552 = vpack.c.b16 %v472, %v471
  %v553 = vpack.c.b16 %v474, %v473
  %v554 = vpack.c.b16 %v476, %v475
  %v555 = vpack.c.b16 %v478, %v477
  %v556 = vpack.c.b16 %v480, %v479
  %v557 = vpack.c.b16 %v482, %v481
  %v558 = vpack.c.b16 %v484, %v483
  %v559 = vpack.c.b16 %v486, %v485
  %v560 = vpack.c.b16 %v488, %v487
  %v561 = vpack.c.b16 %v490, %v489
  %v562 = vpack.c.b16 %v492, %v491
  %v563 = vpack.c.b16 %v494, %v493
  %v564 = vpack.c.b16 %v496, %v495
  %v565 = vpack.c.b16 %v498, %v497
  %v566 = vpack.c.b16 %v500, %v499
  %v567 = vpack.c.b16 %v502, %v501
  %v568 = vpack.c.b16 %v504, %v503
  %633 = vmatprep.subr.bf16.mxu0 0
  %634 = vmatpush1.bf16.msra.mxu0 %v512
  %635 = vmatprep.subr.bf16.mxu0 0
  %636 = vmatpush1.bf16.msra.mxu0 %v511
  %637 = vmatprep.subr.bf16.mxu0 0
  %638 = vmatpush1.bf16.msra.mxu0 %v510
  %639 = vmatprep.subr.bf16.mxu0 0
  %640 = vmatpush1.bf16.msra.mxu0 %v509
  %641 = vmatprep.subr.bf16.mxu0 0
  %642 = vmatpush1.bf16.msra.mxu0 %v508
  %643 = vmatprep.subr.bf16.mxu0 0
  %644 = vmatpush1.bf16.msra.mxu0 %v507
  %645 = vmatprep.subr.bf16.mxu0 0
  %646 = vmatpush1.bf16.msra.mxu0 %v506
  %647 = vmatprep.subr.bf16.mxu0 0
  %648 = vmatpush1.bf16.msra.mxu0 %v505
  %649 = vmatprep.subr.bf16.mxu0 0
  %650 = vmatpush2.bf16.msra.mxu0 %v520
  %651 = vmatprep.subr.bf16.mxu0 0
  %652 = vmatpush2.bf16.msra.mxu0 %v519
  %653 = vmatprep.subr.bf16.mxu0 0
  %654 = vmatpush2.bf16.msra.mxu0 %v518
  %655 = vmatprep.subr.bf16.mxu0 0
  %656 = vmatpush2.bf16.msra.mxu0 %v517
  %657 = vmatprep.subr.bf16.mxu0 0
  %658 = vmatpush2.bf16.msra.mxu0 %v516
  %659 = vmatprep.subr.bf16.mxu0 0
  %660 = vmatpush2.bf16.msra.mxu0 %v515
  %661 = vmatprep.subr.bf16.mxu0 0
  %662 = vmatpush2.bf16.msra.mxu0 %v514
  %663 = vmatprep.subr.bf16.mxu0 0
  %664 = vmatpush2.bf16.msra.mxu0 %v513
  %665 = vmatprep.mubr.bf16.mxu0 %v218
  %666 = vmatmul.mubr.bf16.gmra.mxu0 %v217
  %v667 = vpop.f32.mrf.mxu0
  %v668 = vadd.f32 %v167, %v667
  %v669 = vpop.f32.mrf.mxu0
  %v670 = vpop.f32.mrf.mxu0
  %v671 = vadd.f32 %v167, %v670
  %v672 = vpop.f32.mrf.mxu0
  %673 = vmatprep.mubr.bf16.mxu0 %v226
  %674 = vmatmul.mubr.bf16.gmra.mxu0 %v225
  %v675 = vpop.f32.mrf.mxu0
  %v676 = vadd.f32 %v167, %v675
  %v677 = vpop.f32.mrf.mxu0
  %v678 = vpop.f32.mrf.mxu0
  %v679 = vadd.f32 %v167, %v678
  %v680 = vpop.f32.mrf.mxu0
  %681 = vdwg.mxu0
  %682 = vmatprep.subr.bf16.mxu0 0
  %683 = vmatpush1.bf16.msra.mxu0 %v528
  %684 = vmatprep.subr.bf16.mxu0 0
  %685 = vmatpush1.bf16.msra.mxu0 %v527
  %686 = vmatprep.subr.bf16.mxu0 0
  %687 = vmatpush1.bf16.msra.mxu0 %v526
  %688 = vmatprep.subr.bf16.mxu0 0
  %689 = vmatpush1.bf16.msra.mxu0 %v525
  %690 = vmatprep.subr.bf16.mxu0 0
  %691 = vmatpush1.bf16.msra.mxu0 %v524
  %692 = vmatprep.subr.bf16.mxu0 0
  %693 = vmatpush1.bf16.msra.mxu0 %v523
  %694 = vmatprep.subr.bf16.mxu0 0
  %695 = vmatpush1.bf16.msra.mxu0 %v522
  %696 = vmatprep.subr.bf16.mxu0 0
  %697 = vmatpush1.bf16.msra.mxu0 %v521
  %698 = vmatprep.subr.bf16.mxu0 0
  %699 = vmatpush2.bf16.msra.mxu0 %v536
  %700 = vmatprep.subr.bf16.mxu0 0
  %701 = vmatpush2.bf16.msra.mxu0 %v535
  %702 = vmatprep.subr.bf16.mxu0 0
  %703 = vmatpush2.bf16.msra.mxu0 %v534
  %704 = vmatprep.subr.bf16.mxu0 0
  %705 = vmatpush2.bf16.msra.mxu0 %v533
  %706 = vmatprep.subr.bf16.mxu0 0
  %707 = vmatpush2.bf16.msra.mxu0 %v532
  %708 = vmatprep.subr.bf16.mxu0 0
  %709 = vmatpush2.bf16.msra.mxu0 %v531
  %710 = vmatprep.subr.bf16.mxu0 0
  %711 = vmatpush2.bf16.msra.mxu0 %v530
  %712 = vmatprep.subr.bf16.mxu0 0
  %713 = vmatpush2.bf16.msra.mxu0 %v529
  %714 = vmatprep.mubr.bf16.mxu0 %v220
  %715 = vmatmul.mubr.bf16.gmra.mxu0 %v219
  %v716 = vpop.f32.mrf.mxu0
  %v717 = vadd.f32 %v668, %v716
  %v718 = vpop.f32.mrf.mxu0
  %v719 = vpop.f32.mrf.mxu0
  %v720 = vadd.f32 %v671, %v719
  %v721 = vpop.f32.mrf.mxu0
  %722 = vmatprep.mubr.bf16.mxu0 %v228
  %723 = vmatmul.mubr.bf16.gmra.mxu0 %v227
  %v724 = vpop.f32.mrf.mxu0
  %v725 = vadd.f32 %v676, %v724
  %v726 = vpop.f32.mrf.mxu0
  %v727 = vpop.f32.mrf.mxu0
  %v728 = vadd.f32 %v679, %v727
  %v729 = vpop.f32.mrf.mxu0
  %730 = vdwg.mxu0
  %731 = vmatprep.subr.bf16.mxu0 0
  %732 = vmatpush1.bf16.msra.mxu0 %v544
  %733 = vmatprep.subr.bf16.mxu0 0
  %734 = vmatpush1.bf16.msra.mxu0 %v543
  %735 = vmatprep.subr.bf16.mxu0 0
  %736 = vmatpush1.bf16.msra.mxu0 %v542
  %737 = vmatprep.subr.bf16.mxu0 0
  %738 = vmatpush1.bf16.msra.mxu0 %v541
  %739 = vmatprep.subr.bf16.mxu0 0
  %740 = vmatpush1.bf16.msra.mxu0 %v540
  %741 = vmatprep.subr.bf16.mxu0 0
  %742 = vmatpush1.bf16.msra.mxu0 %v539
  %743 = vmatprep.subr.bf16.mxu0 0
  %744 = vmatpush1.bf16.msra.mxu0 %v538
  %745 = vmatprep.subr.bf16.mxu0 0
  %746 = vmatpush1.bf16.msra.mxu0 %v537
  %747 = vmatprep.subr.bf16.mxu0 0
  %748 = vmatpush2.bf16.msra.mxu0 %v552
  %749 = vmatprep.subr.bf16.mxu0 0
  %750 = vmatpush2.bf16.msra.mxu0 %v551
  %751 = vmatprep.subr.bf16.mxu0 0
  %752 = vmatpush2.bf16.msra.mxu0 %v550
  %753 = vmatprep.subr.bf16.mxu0 0
  %754 = vmatpush2.bf16.msra.mxu0 %v549
  %755 = vmatprep.subr.bf16.mxu0 0
  %756 = vmatpush2.bf16.msra.mxu0 %v548
  %757 = vmatprep.subr.bf16.mxu0 0
  %758 = vmatpush2.bf16.msra.mxu0 %v547
  %759 = vmatprep.subr.bf16.mxu0 0
  %760 = vmatpush2.bf16.msra.mxu0 %v546
  %761 = vmatprep.subr.bf16.mxu0 0
  %762 = vmatpush2.bf16.msra.mxu0 %v545
  %763 = vmatprep.mubr.bf16.mxu0 %v222
  %764 = vmatmul.mubr.bf16.gmra.mxu0 %v221
  %v765 = vpop.f32.mrf.mxu0
  %v766 = vadd.f32 %v717, %v765
  %v767 = vpop.f32.mrf.mxu0
  %v768 = vpop.f32.mrf.mxu0
  %v769 = vadd.f32 %v720, %v768
  %v770 = vpop.f32.mrf.mxu0
  %771 = vmatprep.mubr.bf16.mxu0 %v230
  %772 = vmatmul.mubr.bf16.gmra.mxu0 %v229
  %v773 = vpop.f32.mrf.mxu0
  %v774 = vadd.f32 %v725, %v773
  %v775 = vpop.f32.mrf.mxu0
  %v776 = vpop.f32.mrf.mxu0
  %v777 = vadd.f32 %v728, %v776
  %v778 = vpop.f32.mrf.mxu0
  %779 = vdwg.mxu0
  %780 = vmatprep.subr.bf16.mxu0 0
  %781 = vmatpush1.bf16.msra.mxu0 %v560
  %782 = vmatprep.subr.bf16.mxu0 0
  %783 = vmatpush1.bf16.msra.mxu0 %v559
  %784 = vmatprep.subr.bf16.mxu0 0
  %785 = vmatpush1.bf16.msra.mxu0 %v558
  %786 = vmatprep.subr.bf16.mxu0 0
  %787 = vmatpush1.bf16.msra.mxu0 %v557
  %788 = vmatprep.subr.bf16.mxu0 0
  %789 = vmatpush1.bf16.msra.mxu0 %v556
  %790 = vmatprep.subr.bf16.mxu0 0
  %791 = vmatpush1.bf16.msra.mxu0 %v555
  %792 = vmatprep.subr.bf16.mxu0 0
  %793 = vmatpush1.bf16.msra.mxu0 %v554
  %794 = vmatprep.subr.bf16.mxu0 0
  %795 = vmatpush1.bf16.msra.mxu0 %v553
  %796 = vmatprep.subr.bf16.mxu0 0
  %797 = vmatpush2.bf16.msra.mxu0 %v568
  %798 = vmatprep.subr.bf16.mxu0 0
  %799 = vmatpush2.bf16.msra.mxu0 %v567
  %800 = vmatprep.subr.bf16.mxu0 0
  %801 = vmatpush2.bf16.msra.mxu0 %v566
  %802 = vmatprep.subr.bf16.mxu0 0
  %803 = vmatpush2.bf16.msra.mxu0 %v565
  %804 = vmatprep.subr.bf16.mxu0 0
  %805 = vmatpush2.bf16.msra.mxu0 %v564
  %806 = vmatprep.subr.bf16.mxu0 0
  %807 = vmatpush2.bf16.msra.mxu0 %v563
  %808 = vmatprep.subr.bf16.mxu0 0
  %809 = vmatpush2.bf16.msra.mxu0 %v562
  %810 = vmatprep.subr.bf16.mxu0 0
  %811 = vmatpush2.bf16.msra.mxu0 %v561
  %812 = vmatprep.mubr.bf16.mxu0 %v224
  %813 = vmatmul.mubr.bf16.gmra.mxu0 %v223
  %v814 = vpop.f32.mrf.mxu0
  %v815 = vadd.f32 %v766, %v814
  %v816 = vpop.f32.mrf.mxu0
  %v817 = vpop.f32.mrf.mxu0
  %v818 = vadd.f32 %v769, %v817
  %v819 = vpop.f32.mrf.mxu0
  %820 = vmatprep.mubr.bf16.mxu0 %v232
  %821 = vmatmul.mubr.bf16.gmra.mxu0 %v231
  %v822 = vpop.f32.mrf.mxu0
  %v823 = vadd.f32 %v774, %v822
  %v824 = vpop.f32.mrf.mxu0
  %v825 = vpop.f32.mrf.mxu0
  %v826 = vadd.f32 %v777, %v825
  %v827 = vpop.f32.mrf.mxu0
  %828 = vdwg.mxu0
  %v829 = vpack.c.bf16 %v818, %v815
  %v830 = vpack.c.bf16 %v826, %v823
  %v833 = vunpack.c.l.b16 %v829
  %v834 = vunpack.c.h.b16 %v829
  %v835 = vunpack.c.l.b16 %v830
  %v836 = vunpack.c.h.b16 %v830
  %v837 = vpack.c.b16 %v833, %v833
  %v838 = vpack.c.b16 %v834, %v834
  %v839 = vpack.c.b16 %v835, %v835
  %v840 = vpack.c.b16 %v836, %v836
  %845 = vst [vmem:[%s3] sm:$0xf] %v837
  %846 = vst [vmem:[%s3 + $0x4] sm:$0xf] %v838
  %847 = vst [vmem:[%s3 + $0x8] sm:$0xf] %v839
  %848 = vst [vmem:[%s3 + $0xc] sm:$0xf] %v840
  %v849 = vadd.f32 %v815, %v818
  %v850 = vadd.f32 %v849, %v823
  %v851 = vadd.f32 %v850, %v826
  %v852 = vrot.slane %v851, 4
  %v853 = vadd.f32 %v851, %v852
  %v854 = vrot.slane %v853, 2
  %v855 = vadd.f32 %v853, %v854
  %v856 = vrot.slane %v855, 1
  %v857 = vadd.f32 %v855, %v856
  %858 = vst [vmem:[%s4] sm:$0x1] %v857
  %v859 = vmul.f32 %v815, %v815
  %v860 = vmul.f32 %v818, %v818
  %v861 = vmul.f32 %v823, %v823
  %v862 = vmul.f32 %v826, %v826
  %v863 = vadd.f32 %v859, %v860
  %v864 = vadd.f32 %v863, %v861
  %v865 = vadd.f32 %v864, %v862
  %v866 = vrot.slane %v865, 4
  %v867 = vadd.f32 %v865, %v866
  %v868 = vrot.slane %v867, 2
  %v869 = vadd.f32 %v867, %v868
  %v870 = vrot.slane %v869, 1
  %v871 = vadd.f32 %v869, %v870
  %872 = vst [vmem:[%s5] sm:$0x1] %v871
  // Predicated region
  $region14: #{dfnet_forward.11} parent=0 // pred_check
    _
  $region15: #{dfnet_forward.11} parent=0 // pred_check_branch
    %874 = sbr.rel (0) target = $region17
  $region16: #{dfnet_forward.11} parent=0 // pred_region
    _
  $region17: #{dfnet_forward.11} parent=0 // pred_fallthru
    _
  // Predicated region
  $region18: #{dfnet_forward.11} parent=0 // pred_check
    _
  $region19: #{dfnet_forward.11} parent=0 // pred_check_branch
    %876 = sbr.rel (0) target = $region21
  $region20: #{dfnet_forward.11} parent=0 // pred_region
    _
  $region21: #{dfnet_forward.11} parent=0 // pred_fallthru
    _
  // Predicated region
  $region22: #{dfnet_forward.11} parent=0 // pred_check
    _
  $region23: #{dfnet_forward.11} parent=0 // pred_check_branch
    %878 = sbr.rel (0) target = $region25
  $region24: #{dfnet_forward.11} parent=0 // pred_region
    _
  $region25: #{dfnet_forward.11} parent=0 // pred_fallthru
    _
  // Predicated region
  $region26: #{dfnet_forward.11} parent=0 // pred_check
    _
  $region27: #{dfnet_forward.11} parent=0 // pred_check_branch
    %880 = sbr.rel (0) target = $region29
  $region28: #{dfnet_forward.11} parent=0 // pred_region
    _
  $region29: #{dfnet_forward.11} parent=0 // pred_fallthru
    _
  // Predicated region
  $region30: #{dfnet_forward.11} parent=0 // pred_check
    _
  $region31: #{dfnet_forward.11} parent=0 // pred_check_branch
    %882 = sbr.rel (0) target = $region33
  $region32: #{dfnet_forward.11} parent=0 // pred_region
    _
  $region33: #{dfnet_forward.11} parent=0 // pred_fallthru
    _
  // Predicated region
  $region34: #{dfnet_forward.11} parent=0 // pred_check
    _
  $region35: #{dfnet_forward.11} parent=0 // pred_check_branch
    %884 = sbr.rel (0) target = $region37
  $region36: #{dfnet_forward.11} parent=0 // pred_region
    _
  $region37: #{dfnet_forward.11} parent=0 // pred_fallthru
    _

// kernel: dfnet_forward.12
$region0: #{dfnet_forward.12}
  #allocation0 [shape = 'u32[]', space=smem, size = 0x4, offset = 0x4, fixed_abs, tag = 'smem constant byte address 0x4 - core index']
  #allocation1 [shape = 'u32[144,128]{1,0:T(1,128)}', space=vmem, size = 0x12000, scoped, tag = 'internal scratch']
  %s0 = inlined_call_operand.vmem [shape: bf16[32,128], index: 0, kind: input, shape index: {}]
  %s1 = inlined_call_operand.vmem [shape: f32[1,128], index: 1, kind: input, shape index: {}]
  %s2 = inlined_call_operand.vmem [shape: f32[1,128], index: 2, kind: input, shape index: {}]
  %s3 = inlined_call_operand.vmem [shape: bf16[32,128], index: 3, kind: output, shape index: {}]
  %s4 = sld [smem:[#allocation0]]
  $region22: #{dfnet_forward.12} parent=0
    _
  %s6 = ssub.s32 1, %s4
  %s7 = scalar_select 0, %s6, %s4
  // Predicated region
  $region2: #{dfnet_forward.12} parent=0 // pred_check
    _
  $region3: #{dfnet_forward.12} parent=0 // pred_check_branch
    %9 = sbr.rel (0) target = $region5
  $region4: #{dfnet_forward.12} parent=0 // pred_region
    _
  $region5: #{dfnet_forward.12} parent=0 // pred_fallthru
    _
  // Predicated region
  $region6: #{dfnet_forward.12} parent=0 // pred_check
    _
  $region7: #{dfnet_forward.12} parent=0 // pred_check_branch
    %11 = sbr.rel (0) target = $region9
  $region8: #{dfnet_forward.12} parent=0 // pred_region
    _
  $region9: #{dfnet_forward.12} parent=0 // pred_fallthru
    _
  // Predicated region
  $region10: #{dfnet_forward.12} parent=0 // pred_check
    _
  $region11: #{dfnet_forward.12} parent=0 // pred_check_branch
    %13 = sbr.rel (0) target = $region13
  $region12: #{dfnet_forward.12} parent=0 // pred_region
    _
  $region13: #{dfnet_forward.12} parent=0 // pred_fallthru
    _
  %v14 = vld [vmem:[%s0] sm:$0xf]
  %v15 = vld [vmem:[%s0 + $0x4] sm:$0xf]
  %v16 = vld [vmem:[%s0 + $0x8] sm:$0xf]
  %v17 = vld [vmem:[%s0 + $0xc] sm:$0xf]
  %v18 = vunpack.c.l.bf16 %v14
  %v19 = vunpack.c.l.bf16 %v15
  %v20 = vunpack.c.l.bf16 %v16
  %v21 = vunpack.c.l.bf16 %v17
  %v22 = vld [vmem:[%s1] sm:$0x1]
  %v24 = vlaneseq
  %v25 = vshrl.u32 %v24, 7
  %v26 = vsub.s32 0, %v25
  %v27 = vrot.slane %v22, %v26
  %v29 = vmul.f32 %v18, %v27
  %v30 = vmul.f32 %v19, %v27
  %v31 = vmul.f32 %v20, %v27
  %v32 = vmul.f32 %v21, %v27
  %v33 = vld [vmem:[%s2] sm:$0x1]
  %v35 = vlaneseq
  %v36 = vshrl.u32 %v35, 7
  %v37 = vsub.s32 0, %v36
  %v38 = vrot.slane %v33, %v37
  %v40 = vadd.f32 %v29, %v38
  %v41 = vadd.f32 %v30, %v38
  %v42 = vadd.f32 %v31, %v38
  %v43 = vadd.f32 %v32, %v38
  %v44 = vmax.f32 %v40, 0.0
  %v45 = vmax.f32 %v41, 0.0
  %v46 = vmax.f32 %v42, 0.0
  %v47 = vmax.f32 %v43, 0.0
  %v48 = vpack.c.bf16 %v45, %v44
  %v49 = vpack.c.bf16 %v47, %v46
  %v52 = vunpack.c.l.b16 %v48
  %v53 = vunpack.c.h.b16 %v48
  %v54 = vunpack.c.l.b16 %v49
  %v55 = vunpack.c.h.b16 %v49
  %v56 = vpack.c.b16 %v52, %v52
  %v57 = vpack.c.b16 %v53, %v53
  %v58 = vpack.c.b16 %v54, %v54
  %v59 = vpack.c.b16 %v55, %v55
  %64 = vst [vmem:[%s3] sm:$0xf] %v56
  %65 = vst [vmem:[%s3 + $0x4] sm:$0xf] %v57
  %66 = vst [vmem:[%s3 + $0x8] sm:$0xf] %v58
  %67 = vst [vmem:[%s3 + $0xc] sm:$0xf] %v59
  // Predicated region
  $region14: #{dfnet_forward.12} parent=0 // pred_check
    _
  $region15: #{dfnet_forward.12} parent=0 // pred_check_branch
    %69 = sbr.rel (0) target = $region17
  $region16: #{dfnet_forward.12} parent=0 // pred_region
    _
  $region17: #{dfnet_forward.12} parent=0 // pred_fallthru
    _
  // Predicated region
  $region18: #{dfnet_forward.12} parent=0 // pred_check
    _
  $region19: #{dfnet_forward.12} parent=0 // pred_check_branch
    %71 = sbr.rel (0) target = $region21
  $region20: #{dfnet_forward.12} parent=0 // pred_region
    _
  $region21: #{dfnet_forward.12} parent=0 // pred_fallthru
    _

// kernel: dfnet_forward.14
$region0: #{dfnet_forward.14}
  #allocation0 [shape = 'u32[]', space=smem, size = 0x4, offset = 0x4, fixed_abs, tag = 'smem constant byte address 0x4 - core index']
  #allocation1 [shape = 'u32[144,128]{1,0:T(1,128)}', space=vmem, size = 0x12000, scoped, tag = 'internal scratch']
  %s0 = inlined_call_operand.vmem [shape: bf16[16,256], index: 0, kind: input, shape index: {}]
  %s1 = inlined_call_operand.vmem [shape: f32[1,256], index: 1, kind: input, shape index: {}]
  %s2 = inlined_call_operand.vmem [shape: f32[1,256], index: 2, kind: input, shape index: {}]
  %s3 = inlined_call_operand.vmem [shape: bf16[16,256], index: 3, kind: output, shape index: {}]
  %s4 = sld [smem:[#allocation0]]
  $region22: #{dfnet_forward.14} parent=0
    _
  %s6 = ssub.s32 1, %s4
  %s7 = scalar_select 0, %s6, %s4
  // Predicated region
  $region2: #{dfnet_forward.14} parent=0 // pred_check
    _
  $region3: #{dfnet_forward.14} parent=0 // pred_check_branch
    %9 = sbr.rel (0) target = $region5
  $region4: #{dfnet_forward.14} parent=0 // pred_region
    _
  $region5: #{dfnet_forward.14} parent=0 // pred_fallthru
    _
  // Predicated region
  $region6: #{dfnet_forward.14} parent=0 // pred_check
    _
  $region7: #{dfnet_forward.14} parent=0 // pred_check_branch
    %11 = sbr.rel (0) target = $region9
  $region8: #{dfnet_forward.14} parent=0 // pred_region
    _
  $region9: #{dfnet_forward.14} parent=0 // pred_fallthru
    _
  // Predicated region
  $region10: #{dfnet_forward.14} parent=0 // pred_check
    _
  $region11: #{dfnet_forward.14} parent=0 // pred_check_branch
    %13 = sbr.rel (0) target = $region13
  $region12: #{dfnet_forward.14} parent=0 // pred_region
    _
  $region13: #{dfnet_forward.14} parent=0 // pred_fallthru
    _
  %v14 = vld [vmem:[%s0] sm:$0xff]
  %v15 = vld [vmem:[%s0 + $0x8] sm:$0xff]
  %v16 = vunpack.c.l.bf16 %v14
  %v17 = vunpack.c.h.bf16 %v14
  %v18 = vunpack.c.l.bf16 %v15
  %v19 = vunpack.c.h.bf16 %v15
  %v20 = vld [vmem:[%s1] sm:$0x3]
  %v22 = vlaneseq
  %v23 = vshrl.u32 %v22, 7
  %v24 = vsub.s32 0, %v23
  %v25 = vrot.slane %v20, %v24
  %v26 = vlaneseq
  %v27 = vshrl.u32 %v26, 7
  %v28 = vsub.s32 1, %v27
  %v29 = vrot.slane %v20, %v28
  %v32 = vmul.f32 %v16, %v25
  %v33 = vmul.f32 %v17, %v29
  %v34 = vmul.f32 %v18, %v25
  %v35 = vmul.f32 %v19, %v29
  %v36 = vld [vmem:[%s2] sm:$0x3]
  %v38 = vlaneseq
  %v39 = vshrl.u32 %v38, 7
  %v40 = vsub.s32 0, %v39
  %v41 = vrot.slane %v36, %v40
  %v42 = vlaneseq
  %v43 = vshrl.u32 %v42, 7
  %v44 = vsub.s32 1, %v43
  %v45 = vrot.slane %v36, %v44
  %v48 = vadd.f32 %v32, %v41
  %v49 = vadd.f32 %v33, %v45
  %v50 = vadd.f32 %v34, %v41
  %v51 = vadd.f32 %v35, %v45
  %v52 = vmax.f32 %v48, 0.0
  %v53 = vmax.f32 %v49, 0.0
  %v54 = vmax.f32 %v50, 0.0
  %v55 = vmax.f32 %v51, 0.0
  %v56 = vpack.c.bf16 %v54, %v52
  %v57 = vpack.c.bf16 %v55, %v53
  %v60 = vunpack.c.l.b16 %v56
  %v61 = vunpack.c.l.b16 %v57
  %v62 = vunpack.c.h.b16 %v56
  %v63 = vunpack.c.h.b16 %v57
  %v64 = vpack.c.b16 %v61, %v60
  %v65 = vpack.c.b16 %v63, %v62
  %68 = vst [vmem:[%s3] sm:$0xff] %v64
  %69 = vst [vmem:[%s3 + $0x8] sm:$0xff] %v65
  // Predicated region
  $region14: #{dfnet_forward.14} parent=0 // pred_check
    _
  $region15: #{dfnet_forward.14} parent=0 // pred_check_branch
    %71 = sbr.rel (0) target = $region17
  $region16: #{dfnet_forward.14} parent=0 // pred_region
    _
  $region17: #{dfnet_forward.14} parent=0 // pred_fallthru
    _
  // Predicated region
  $region18: #{dfnet_forward.14} parent=0 // pred_check
    _
  $region19: #{dfnet_forward.14} parent=0 // pred_check_branch
    %73 = sbr.rel (0) target = $region21
  $region20: #{dfnet_forward.14} parent=0 // pred_region
    _
  $region21: #{dfnet_forward.14} parent=0 // pred_fallthru
    _

// kernel: dfnet_forward.15
$region0: #{dfnet_forward.15}
  #allocation0 [shape = 'u32[]', space=smem, size = 0x4, offset = 0x4, fixed_abs, tag = 'smem constant byte address 0x4 - core index']
  #allocation1 [shape = 'u32[144,128]{1,0:T(1,128)}', space=vmem, size = 0x12000, scoped, tag = 'internal scratch']
  %s0 = inlined_call_operand.vmem [shape: bf16[4,16,1024], index: 0, kind: input, shape index: {}]
  %s1 = inlined_call_operand.vmem [shape: bf16[4,1024,128], index: 1, kind: input, shape index: {}]
  %s2 = inlined_call_operand.vmem [shape: f32[1,128], index: 2, kind: input, shape index: {}]
  %s3 = inlined_call_operand.vmem [shape: bf16[4,16,128], index: 3, kind: output, shape index: {0}]
  %s4 = inlined_call_operand.vmem [shape: f32[4,1,1,128], index: 4, kind: output, shape index: {1}]
  %s5 = inlined_call_operand.vmem [shape: f32[4,1,1,128], index: 5, kind: output, shape index: {2}]
  %6 = xla_tuple %s3, %s4, %s5
  %s7 = sld [smem:[#allocation0]]
  $region61: #{dfnet_forward.15} parent=0
    _
  %s9 = ssub.s32 1, %s7
  %s10 = scalar_select 0, %s9, %s7
  loop: start=0, step=1, limit=6
  $region2: #{dfnet_forward.15} parent=0 // loop_pre_header
    _
  $region3: #{dfnet_forward.15} parent=0 // loop_header
    %s12 = sphi 0, %s16
    %p13 = scmp.ge.s32.totalorder %s12, 6
    %s19 = sphi 0, %s38
    %s20 = sphi 0, %s34
    %s21 = sphi 0, %s30
    %s22 = sphi 0, %s19
    %s23 = sphi 0, %s20
    %s24 = sphi 0, %s21
    %s25 = sphi 0, %s22
    %s26 = sphi 0, %s23
    %s27 = sphi 0, %s24
    %s43 = sphi 0, %s45
    %s46 = sphi 0, %s43
    %s47 = sphi 0, %s46
    %s63 = sphi 0, %s47
    %s71 = sphi 0, %s73
    %s74 = sphi 0, %s71
    %s75 = sphi 0, %s74
    %s91 = sphi 0, %s75
    %s97 = sphi 0, %s99
    %s100 = sphi 0, %s97
    %s101 = sphi 0, %s100
    %s117 = sphi 0, %s101
    %s127 = sphi 0, %s129
    %s130 = sphi 0, %s127
    %s131 = sphi 0, %s130
    %s147 = sphi 0, %s131
    %s157 = sphi 0, %s159
    %s160 = sphi 0, %s157
    %s161 = sphi 0, %s160
    %s177 = sphi 0, %s161
    %s187 = sphi 0, %s189
    %s190 = sphi 0, %s187
    %s191 = sphi 0, %s190
    %s207 = sphi 0, %s191
  $region4: #{dfnet_forward.15} parent=0 // loop_header_branch
    %15 = sbr.rel (%p13) target = $region8
  $region5: #{dfnet_forward.15} parent=0 // loop_body
    %s17 = ssub.s32 %s12, 1
    %s18 = ssub.s32 %s12, 2
    %s28 = sadd.s32 1, %s21
    %p29 = scmp.ge.s32.totalorder %s28, 1
    %s30 = scalar_select %p29, 0, %s28
    %s31 = sadd.s32 1, %s20
    %s32 = scalar_select %p29, %s31, %s20
    %p33 = scmp.ge.s32.totalorder %s32, 1
    %s34 = scalar_select %p33, 0, %s32
    %s35 = sadd.s32 1, %s19
    %s36 = scalar_select %p33, %s35, %s19
    %p37 = scmp.ge.s32.totalorder %s36, 4
    %s38 = scalar_select %p37, 0, %s36
    %s39 = ssub.s32 %s19, %s38
    %s40 = ssub.s32 %s20, %s34
    %s41 = sor.u32 %s39, %s40
    %p42 = scmp.eq.s32.totalorder %s41, 0
    %s44 = sadd.s32 %s43, 1
    %s45 = scalar_select %p42, %s43, %s44
    %p48 = pneg %p42
    %p49 = scmp.eq.s32.totalorder %s12, 3
    %p50 = por %p48, %p49
    %p51 = scmp.ne.s32.totalorder %s43, %s46
    %p52 = scmp.eq.s32.totalorder %s12, 0
    %p53 = por %p51, %p52
    %p54 = scmp.ne.s32.totalorder %s43, %s46
    %p55 = scmp.eq.s32.totalorder %s17, 3
    %p56 = por %p54, %p55
    %p57 = scmp.ne.s32.totalorder %s46, %s47
    %p58 = scmp.eq.s32.totalorder %s17, 0
    %p59 = por %p57, %p58
    %p60 = scmp.ne.s32.totalorder %s46, %s47
    %p61 = scmp.eq.s32.totalorder %s18, 3
    %p62 = por %p60, %p61
    %p64 = scmp.ne.s32.totalorder %s47, %s63
    %p65 = scmp.eq.s32.totalorder %s18, 0
    %p66 = por %p64, %p65
    %s67 = ssub.s32 %s19, %s38
    %s68 = ssub.s32 %s21, %s30
    %s69 = sor.u32 %s67, %s68
    %p70 = scmp.eq.s32.totalorder %s69, 0
    %s72 = sadd.s32 %s71, 1
    %s73 = scalar_select %p70, %s71, %s72
    %p76 = pneg %p70
    %p77 = scmp.eq.s32.totalorder %s12, 3
    %p78 = por %p76, %p77
    %p79 = scmp.ne.s32.totalorder %s71, %s74
    %p80 = scmp.eq.s32.totalorder %s12, 0
    %p81 = por %p79, %p80
    %p82 = scmp.ne.s32.totalorder %s71, %s74
    %p83 = scmp.eq.s32.totalorder %s17, 3
    %p84 = por %p82, %p83
    %p85 = scmp.ne.s32.totalorder %s74, %s75
    %p86 = scmp.eq.s32.totalorder %s17, 0
    %p87 = por %p85, %p86
    %p88 = scmp.ne.s32.totalorder %s74, %s75
    %p89 = scmp.eq.s32.totalorder %s18, 3
    %p90 = por %p88, %p89
    %p92 = scmp.ne.s32.totalorder %s75, %s91
    %p93 = scmp.eq.s32.totalorder %s18, 0
    %p94 = por %p92, %p93
    %s95 = ssub.s32 %s21, %s30
    %p96 = scmp.eq.s32.totalorder %s95, 0
    %s98 = sadd.s32 %s97, 1
    %s99 = scalar_select %p96, %s97, %s98
    %p102 = pneg %p96
    %p103 = scmp.eq.s32.totalorder %s12, 3
    %p104 = por %p102, %p103
    %p105 = scmp.ne.s32.totalorder %s97, %s100
    %p106 = scmp.eq.s32.totalorder %s12, 0
    %p107 = por %p105, %p106
    %p108 = scmp.ne.s32.totalorder %s97, %s100
    %p109 = scmp.eq.s32.totalorder %s17, 3
    %p110 = por %p108, %p109
    %p111 = scmp.ne.s32.totalorder %s100, %s101
    %p112 = scmp.eq.s32.totalorder %s17, 0
    %p113 = por %p111, %p112
    %p114 = scmp.ne.s32.totalorder %s100, %s101
    %p115 = scmp.eq.s32.totalorder %s18, 3
    %p116 = por %p114, %p115
    %p118 = scmp.ne.s32.totalorder %s101, %s117
    %p119 = scmp.eq.s32.totalorder %s18, 0
    %p120 = por %p118, %p119
    %s121 = ssub.s32 %s19, %s38
    %s122 = ssub.s32 %s20, %s34
    %s123 = sor.u32 %s121, %s122
    %s124 = ssub.s32 %s21, %s30
    %s125 = sor.u32 %s123, %s124
    %p126 = scmp.eq.s32.totalorder %s125, 0
    %s128 = sadd.s32 %s127, 1
    %s129 = scalar_select %p126, %s127, %s128
    %p132 = pneg %p126
    %p133 = scmp.eq.s32.totalorder %s12, 3
    %p134 = por %p132, %p133
    %p135 = scmp.ne.s32.totalorder %s127, %s130
    %p136 = scmp.eq.s32.totalorder %s12, 0
    %p137 = por %p135, %p136
    %p138 = scmp.ne.s32.totalorder %s127, %s130
    %p139 = scmp.eq.s32.totalorder %s17, 3
    %p140 = por %p138, %p139
    %p141 = scmp.ne.s32.totalorder %s130, %s131
    %p142 = scmp.eq.s32.totalorder %s17, 0
    %p143 = por %p141, %p142
    %p144 = scmp.ne.s32.totalorder %s130, %s131
    %p145 = scmp.eq.s32.totalorder %s18, 3
    %p146 = por %p144, %p145
    %p148 = scmp.ne.s32.totalorder %s131, %s147
    %p149 = scmp.eq.s32.totalorder %s18, 0
    %p150 = por %p148, %p149
    %s151 = ssub.s32 %s19, %s38
    %s152 = ssub.s32 %s20, %s34
    %s153 = sor.u32 %s151, %s152
    %s154 = ssub.s32 %s21, %s30
    %s155 = sor.u32 %s153, %s154
    %p156 = scmp.eq.s32.totalorder %s155, 0
    %s158 = sadd.s32 %s157, 1
    %s159 = scalar_select %p156, %s157, %s158
    %p162 = pneg %p156
    %p163 = scmp.eq.s32.totalorder %s12, 3
    %p164 = por %p162, %p163
    %p165 = scmp.ne.s32.totalorder %s157, %s160
    %p166 = scmp.eq.s32.totalorder %s12, 0
    %p167 = por %p165, %p166
    %p168 = scmp.ne.s32.totalorder %s157, %s160
    %p169 = scmp.eq.s32.totalorder %s17, 3
    %p170 = por %p168, %p169
    %p171 = scmp.ne.s32.totalorder %s160, %s161
    %p172 = scmp.eq.s32.totalorder %s17, 0
    %p173 = por %p171, %p172
    %p174 = scmp.ne.s32.totalorder %s160, %s161
    %p175 = scmp.eq.s32.totalorder %s18, 3
    %p176 = por %p174, %p175
    %p178 = scmp.ne.s32.totalorder %s161, %s177
    %p179 = scmp.eq.s32.totalorder %s18, 0
    %p180 = por %p178, %p179
    %s181 = ssub.s32 %s19, %s38
    %s182 = ssub.s32 %s20, %s34
    %s183 = sor.u32 %s181, %s182
    %s184 = ssub.s32 %s21, %s30
    %s185 = sor.u32 %s183, %s184
    %p186 = scmp.eq.s32.totalorder %s185, 0
    %s188 = sadd.s32 %s187, 1
    %s189 = scalar_select %p186, %s187, %s188
    %p192 = pneg %p186
    %p193 = scmp.eq.s32.totalorder %s12, 3
    %p194 = por %p192, %p193
    %p195 = scmp.ne.s32.totalorder %s187, %s190
    %p196 = scmp.eq.s32.totalorder %s12, 0
    %p197 = por %p195, %p196
    %p198 = scmp.ne.s32.totalorder %s187, %s190
    %p199 = scmp.eq.s32.totalorder %s17, 3
    %p200 = por %p198, %p199
    %p201 = scmp.ne.s32.totalorder %s190, %s191
    %p202 = scmp.eq.s32.totalorder %s17, 0
    %p203 = por %p201, %p202
    %p204 = scmp.ne.s32.totalorder %s190, %s191
    %p205 = scmp.eq.s32.totalorder %s18, 3
    %p206 = por %p204, %p205
    %p208 = scmp.ne.s32.totalorder %s191, %s207
    %p209 = scmp.eq.s32.totalorder %s18, 0
    %p210 = por %p208, %p209
    %p211 = scmp.le.s32.totalorder 1, %s12
    %p212 = scmp.lt.s32.totalorder %s12, 5
    %p213 = pnand %p211, %p212
    %p214 = pneg %p213
    // Predicated region
    $region9: #{dfnet_forward.15} parent=5 // pred_check
      _
    $region10: #{dfnet_forward.15} parent=5 // pred_check_branch
      %216 = sbr.rel (%p213) target = $region12
    $region11: #{dfnet_forward.15} parent=5 // pred_region
      %s217 = ssub.s32 %s12, 1
      // Predicated region
      $region13: #{dfnet_forward.15} parent=11 // pred_check
        %p218 = pneg %p113
      $region14: #{dfnet_forward.15} parent=11 // pred_check_branch
        %220 = sbr.rel (%p218) target = $region16
      $region15: #{dfnet_forward.15} parent=11 // pred_region
        %p221 = scmp.lt.s32.totalorder %s24, 0
        %s222 = scalar_select %p221, %s24, 0
        %s223 = scalar_lea.vmem %s2, %s222
      $region16: #{dfnet_forward.15} parent=11 // pred_fallthru
        _
    $region12: #{dfnet_forward.15} parent=5 // pred_fallthru
      _
    %p224 = scmp.lt.s32.totalorder %s12, 4
    // Predicated region
    $region17: #{dfnet_forward.15} parent=5 // pred_check
      %p225 = pneg %p224
    $region18: #{dfnet_forward.15} parent=5 // pred_check_branch
      %227 = sbr.rel (%p225) target = $region20
    $region19: #{dfnet_forward.15} parent=5 // pred_region
      // Predicated region
      $region21: #{dfnet_forward.15} parent=19 // pred_check
        %p228 = pneg %p53
      $region22: #{dfnet_forward.15} parent=19 // pred_check_branch
        %230 = sbr.rel (%p228) target = $region24
      $region23: #{dfnet_forward.15} parent=19 // pred_region
        %s231 = smul.u32 2, %s20
        %p232 = scmp.lt.s32.totalorder %s19, 3
        %s233 = scalar_select %p232, %s19, 3
        %p234 = scmp.lt.s32.totalorder %s231, 1
        %s235 = scalar_select %p234, %s231, 1
        %s236 = smul.addr %s235, 8
        %s237 = smul.addr %s233, 16
        %s238 = sadd.s32 %s236, %s237
        %s239 = smul.addr %s238, 4
        %s240 = scalar_lea.vmem %s0, %s239
        %s241 = smul.u32 2, %s20
      $region24: #{dfnet_forward.15} parent=19 // pred_fallthru
        _
      // Predicated region
      $region25: #{dfnet_forward.15} parent=19 // pred_check
        %p242 = pneg %p81
      $region26: #{dfnet_forward.15} parent=19 // pred_check_branch
        %244 = sbr.rel (%p242) target = $region28
      $region27: #{dfnet_forward.15} parent=19 // pred_region
        %p245 = scmp.lt.s32.totalorder %s19, 3
        %s246 = scalar_select %p245, %s19, 3
        %p247 = scmp.lt.s32.totalorder %s21, 0
        %s248 = scalar_select %p247, %s21, 0
        %s249 = smul.addr %s246, 128
        %s250 = sadd.s32 %s248, %s249
        %s251 = smul.addr %s250, 4
        %s252 = scalar_lea.vmem %s1, %s251
      $region28: #{dfnet_forward.15} parent=19 // pred_fallthru
        _
    $region20: #{dfnet_forward.15} parent=5 // pred_fallthru
      _
    %p253 = scmp.le.s32.totalorder 1, %s12
    %p254 = scmp.lt.s32.totalorder %s12, 5
    %p255 = pnand %p253, %p254
    %p256 = pneg %p255
    // Predicated region
    $region29: #{dfnet_forward.15} parent=5 // pred_check
      _
    $region30: #{dfnet_forward.15} parent=5 // pred_check_branch
      %258 = sbr.rel (%p255) target = $region32
    $region31: #{dfnet_forward.15} parent=5 // pred_region
      %s259 = ssub.s32 %s12, 1
      %s260 = smul.u32 2, %s23
      %p261 = scmp.lt.s32.totalorder %s22, 3
      %s262 = scalar_select %p261, %s22, 3
      %p263 = scmp.lt.s32.totalorder %s260, 1
      %s264 = scalar_select %p263, %s260, 1
      %s265 = smul.addr %s264, 8
      %s266 = smul.addr %s262, 16
      %s267 = sadd.s32 %s265, %s266
      %s268 = smul.addr %s267, 4
      %s269 = scalar_lea.vmem %s0, %s268
      %p270 = pneg %p59
      %p271 = pneg %p56
      %p272 = scmp.lt.s32.totalorder %s22, 3
      %s273 = scalar_select %p272, %s22, 3
      %p274 = scmp.lt.s32.totalorder %s24, 0
      %s275 = scalar_select %p274, %s24, 0
      %s276 = smul.addr %s273, 128
      %s277 = sadd.s32 %s275, %s276
      %s278 = smul.addr %s277, 4
      %s279 = scalar_lea.vmem %s1, %s278
      %p280 = pneg %p87
      %p281 = pneg %p84
      %p282 = scmp.lt.s32.totalorder %s24, 0
      %s283 = scalar_select %p282, %s24, 0
      %s284 = scalar_lea.vmem %s2, %s283
      %p285 = pneg %p113
      %p286 = pneg %p110
      %p287 = pneg %p143
      %p288 = pneg %p140
      %s289 = smul.u32 2, %s23
      %p290 = scmp.lt.s32.totalorder %s22, 3
      %s291 = scalar_select %p290, %s22, 3
      %p292 = scmp.lt.s32.totalorder %s289, 1
      %s293 = scalar_select %p292, %s289, 1
      %p294 = scmp.lt.s32.totalorder %s24, 0
      %s295 = scalar_select %p294, %s24, 0
      %s296 = sadd.s32 %s295, %s293
      %s297 = smul.addr %s291, 2
      %s298 = sadd.s32 %s296, %s297
      %s299 = smul.addr %s298, 4
      %s300 = scalar_lea.vmem %s3, %s299
      %p301 = pneg %p173
      %p302 = pneg %p170
      %p303 = scmp.lt.s32.totalorder %s22, 3
      %s304 = scalar_select %p303, %s22, 3
      %p305 = scmp.lt.s32.totalorder %s23, 0
      %s306 = scalar_select %p305, %s23, 0
      %p307 = scmp.lt.s32.totalorder %s24, 0
      %s308 = scalar_select %p307, %s24, 0
      %s309 = sadd.s32 %s308, %s306
      %s310 = sadd.s32 %s309, %s304
      %s311 = scalar_lea.vmem %s4, %s310
      %p312 = pneg %p203
      %p313 = pneg %p200
      %p314 = scmp.lt.s32.totalorder %s22, 3
      %s315 = scalar_select %p314, %s22, 3
      %p316 = scmp.lt.s32.totalorder %s23, 0
      %s317 = scalar_select %p316, %s23, 0
      %p318 = scmp.lt.s32.totalorder %s24, 0
      %s319 = scalar_select %p318, %s24, 0
      %s320 = sadd.s32 %s319, %s317
      %s321 = sadd.s32 %s320, %s315
      %s322 = scalar_lea.vmem %s5, %s321
      %s323 = smul.u32 2, %s23
      %p324 = scmp.lt.s32.totalorder %s22, 3
      %s325 = scalar_select %p324, %s22, 3
      %p326 = scmp.lt.s32.totalorder %s323, 1
      %s327 = scalar_select %p326, %s323, 1
      %s328 = smul.addr %s327, 8
      %s329 = smul.addr %s325, 16
      %s330 = sadd.s32 %s328, %s329
      %s331 = smul.addr %s330, 4
      %s332 = scalar_lea.vmem %s0, %s331
      %s333 = smul.u32 2, %s23
      %p334 = scmp.lt.s32.totalorder %s22, 3
      %s335 = scalar_select %p334, %s22, 3
      %p336 = scmp.lt.s32.totalorder %s24, 0
      %s337 = scalar_select %p336, %s24, 0
      %s338 = smul.addr %s335, 128
      %s339 = sadd.s32 %s337, %s338
      %s340 = smul.addr %s339, 4
      %s341 = scalar_lea.vmem %s1, %s340
      %p342 = scmp.lt.s32.totalorder %s24, 0
      %s343 = scalar_select %p342, %s24, 0
      %s344 = scalar_lea.vmem %s2, %s343
      %s345 = smul.u32 2, %s23
      %p346 = scmp.lt.s32.totalorder %s22, 3
      %s347 = scalar_select %p346, %s22, 3
      %p348 = scmp.lt.s32.totalorder %s345, 1
      %s349 = scalar_select %p348, %s345, 1
      %p350 = scmp.lt.s32.totalorder %s24, 0
      %s351 = scalar_select %p350, %s24, 0
      %s352 = sadd.s32 %s351, %s349
      %s353 = smul.addr %s347, 2
      %s354 = sadd.s32 %s352, %s353
      %s355 = smul.addr %s354, 4
      %s356 = scalar_lea.vmem %s3, %s355
      %s357 = smul.u32 2, %s23
      %p358 = scmp.lt.s32.totalorder %s22, 3
      %s359 = scalar_select %p358, %s22, 3
      %p360 = scmp.lt.s32.totalorder %s23, 0
      %s361 = scalar_select %p360, %s23, 0
      %p362 = scmp.lt.s32.totalorder %s24, 0
      %s363 = scalar_select %p362, %s24, 0
      %s364 = sadd.s32 %s363, %s361
      %s365 = sadd.s32 %s364, %s359
      %s366 = scalar_lea.vmem %s4, %s365
      %p367 = scmp.lt.s32.totalorder %s22, 3
      %s368 = scalar_select %p367, %s22, 3
      %p369 = scmp.lt.s32.totalorder %s23, 0
      %s370 = scalar_select %p369, %s23, 0
      %p371 = scmp.lt.s32.totalorder %s24, 0
      %s372 = scalar_select %p371, %s24, 0
      %s373 = sadd.s32 %s372, %s370
      %s374 = sadd.s32 %s373, %s368
      %s375 = scalar_lea.vmem %s5, %s374
      %v377 = vld [vmem:[%s332] sm:$0xff]
      %v378 = vld [vmem:[%s332 + $0x8] sm:$0xff]
      %v379 = vld [vmem:[%s332 + $0x10] sm:$0xff]
      %v380 = vld [vmem:[%s332 + $0x18] sm:$0xff]
      %v381 = vld [vmem:[%s332 + $0x20] sm:$0xff]
      %v382 = vld [vmem:[%s332 + $0x28] sm:$0xff]
      %v383 = vld [vmem:[%s332 + $0x30] sm:$0xff]
      %v384 = vld [vmem:[%s332 + $0x38] sm:$0xff]
      %v385 = vld [vmem:[%s341] sm:$0xf]
      %v386 = vld [vmem:[%s341 + $0x4] sm:$0xf]
      %v387 = vld [vmem:[%s341 + $0x8] sm:$0xf]
      %v388 = vld [vmem:[%s341 + $0xc] sm:$0xf]
      %v389 = vld [vmem:[%s341 + $0x10] sm:$0xf]
      %v390 = vld [vmem:[%s341 + $0x14] sm:$0xf]
      %v391 = vld [vmem:[%s341 + $0x18] sm:$0xf]
      %v392 = vld [vmem:[%s341 + $0x1c] sm:$0xf]
      %v393 = vld [vmem:[%s341 + $0x20] sm:$0xf]
      %v394 = vld [vmem:[%s341 + $0x24] sm:$0xf]
      %v395 = vld [vmem:[%s341 + $0x28] sm:$0xf]
      %v396 = vld [vmem:[%s341 + $0x2c] sm:$0xf]
      %v397 = vld [vmem:[%s341 + $0x30] sm:$0xf]
      %v398 = vld [vmem:[%s341 + $0x34] sm:$0xf]
      %v399 = vld [vmem:[%s341 + $0x38] sm:$0xf]
      %v400 = vld [vmem:[%s341 + $0x3c] sm:$0xf]
      %v401 = vld [vmem:[%s341 + $0x40] sm:$0xf]
      %v402 = vld [vmem:[%s341 + $0x44] sm:$0xf]
      %v403 = vld [vmem:[%s341 + $0x48] sm:$0xf]
      %v404 = vld [vmem:[%s341 + $0x4c] sm:$0xf]
      %v405 = vld [vmem:[%s341 + $0x50] sm:$0xf]
      %v406 = vld [vmem:[%s341 + $0x54] sm:$0xf]
      %v407 = vld [vmem:[%s341 + $0x58] sm:$0xf]
      %v408 = vld [vmem:[%s341 + $0x5c] sm:$0xf]
      %v409 = vld [vmem:[%s341 + $0x60] sm:$0xf]
      %v410 = vld [vmem:[%s341 + $0x64] sm:$0xf]
      %v411 = vld [vmem:[%s341 + $0x68] sm:$0xf]
      %v412 = vld [vmem:[%s341 + $0x6c] sm:$0xf]
      %v413 = vld [vmem:[%s341 + $0x70] sm:$0xf]
      %v414 = vld [vmem:[%s341 + $0x74] sm:$0xf]
      %v415 = vld [vmem:[%s341 + $0x78] sm:$0xf]
      %v416 = vld [vmem:[%s341 + $0x7c] sm:$0xf]
      %v417 = vld [vmem:[%s341 + $0x80] sm:$0xf]
      %v418 = vld [vmem:[%s341 + $0x84] sm:$0xf]
      %v419 = vld [vmem:[%s341 + $0x88] sm:$0xf]
      %v420 = vld [vmem:[%s341 + $0x8c] sm:$0xf]
      %v421 = vld [vmem:[%s341 + $0x90] sm:$0xf]
      %v422 = vld [vmem:[%s341 + $0x94] sm:$0xf]
      %v423 = vld [vmem:[%s341 + $0x98] sm:$0xf]
      %v424 = vld [vmem:[%s341 + $0x9c] sm:$0xf]
      %v425 = vld [vmem:[%s341 + $0xa0] sm:$0xf]
      %v426 = vld [vmem:[%s341 + $0xa4] sm:$0xf]
      %v427 = vld [vmem:[%s341 + $0xa8] sm:$0xf]
      %v428 = vld [vmem:[%s341 + $0xac] sm:$0xf]
      %v429 = vld [vmem:[%s341 + $0xb0] sm:$0xf]
      %v430 = vld [vmem:[%s341 + $0xb4] sm:$0xf]
      %v431 = vld [vmem:[%s341 + $0xb8] sm:$0xf]
      %v432 = vld [vmem:[%s341 + $0xbc] sm:$0xf]
      %v433 = vld [vmem:[%s341 + $0xc0] sm:$0xf]
      %v434 = vld [vmem:[%s341 + $0xc4] sm:$0xf]
      %v435 = vld [vmem:[%s341 + $0xc8] sm:$0xf]
      %v436 = vld [vmem:[%s341 + $0xcc] sm:$0xf]
      %v437 = vld [vmem:[%s341 + $0xd0] sm:$0xf]
      %v438 = vld [vmem:[%s341 + $0xd4] sm:$0xf]
      %v439 = vld [vmem:[%s341 + $0xd8] sm:$0xf]
      %v440 = vld [vmem:[%s341 + $0xdc] sm:$0xf]
      %v441 = vld [vmem:[%s341 + $0xe0] sm:$0xf]
      %v442 = vld [vmem:[%s341 + $0xe4] sm:$0xf]
      %v443 = vld [vmem:[%s341 + $0xe8] sm:$0xf]
      %v444 = vld [vmem:[%s341 + $0xec] sm:$0xf]
      %v445 = vld [vmem:[%s341 + $0xf0] sm:$0xf]
      %v446 = vld [vmem:[%s341 + $0xf4] sm:$0xf]
      %v447 = vld [vmem:[%s341 + $0xf8] sm:$0xf]
      %v448 = vld [vmem:[%s341 + $0xfc] sm:$0xf]
      %v449 = vld [vmem:[%s341 + $0x100] sm:$0xf]
      %v450 = vld [vmem:[%s341 + $0x104] sm:$0xf]
      %v451 = vld [vmem:[%s341 + $0x108] sm:$0xf]
      %v452 = vld [vmem:[%s341 + $0x10c] sm:$0xf]
      %v453 = vld [vmem:[%s341 + $0x110] sm:$0xf]
      %v454 = vld [vmem:[%s341 + $0x114] sm:$0xf]
      %v455 = vld [vmem:[%s341 + $0x118] sm:$0xf]
      %v456 = vld [vmem:[%s341 + $0x11c] sm:$0xf]
      %v457 = vld [vmem:[%s341 + $0x120] sm:$0xf]
      %v458 = vld [vmem:[%s341 + $0x124] sm:$0xf]
      %v459 = vld [vmem:[%s341 + $0x128] sm:$0xf]
      %v460 = vld [vmem:[%s341 + $0x12c] sm:$0xf]
      %v461 = vld [vmem:[%s341 + $0x130] sm:$0xf]
      %v462 = vld [vmem:[%s341 + $0x134] sm:$0xf]
      %v463 = vld [vmem:[%s341 + $0x138] sm:$0xf]
      %v464 = vld [vmem:[%s341 + $0x13c] sm:$0xf]
      %v465 = vld [vmem:[%s341 + $0x140] sm:$0xf]
      %v466 = vld [vmem:[%s341 + $0x144] sm:$0xf]
      %v467 = vld [vmem:[%s341 + $0x148] sm:$0xf]
      %v468 = vld [vmem:[%s341 + $0x14c] sm:$0xf]
      %v469 = vld [vmem:[%s341 + $0x150] sm:$0xf]
      %v470 = vld [vmem:[%s341 + $0x154] sm:$0xf]
      %v471 = vld [vmem:[%s341 + $0x158] sm:$0xf]
      %v472 = vld [vmem:[%s341 + $0x15c] sm:$0xf]
      %v473 = vld [vmem:[%s341 + $0x160] sm:$0xf]
      %v474 = vld [vmem:[%s341 + $0x164] sm:$0xf]
      %v475 = vld [vmem:[%s341 + $0x168] sm:$0xf]
      %v476 = vld [vmem:[%s341 + $0x16c] sm:$0xf]
      %v477 = vld [vmem:[%s341 + $0x170] sm:$0xf]
      %v478 = vld [vmem:[%s341 + $0x174] sm:$0xf]
      %v479 = vld [vmem:[%s341 + $0x178] sm:$0xf]
      %v480 = vld [vmem:[%s341 + $0x17c] sm:$0xf]
      %v481 = vld [vmem:[%s341 + $0x180] sm:$0xf]
      %v482 = vld [vmem:[%s341 + $0x184] sm:$0xf]
      %v483 = vld [vmem:[%s341 + $0x188] sm:$0xf]
      %v484 = vld [vmem:[%s341 + $0x18c] sm:$0xf]
      %v485 = vld [vmem:[%s341 + $0x190] sm:$0xf]
      %v486 = vld [vmem:[%s341 + $0x194] sm:$0xf]
      %v487 = vld [vmem:[%s341 + $0x198] sm:$0xf]
      %v488 = vld [vmem:[%s341 + $0x19c] sm:$0xf]
      %v489 = vld [vmem:[%s341 + $0x1a0] sm:$0xf]
      %v490 = vld [vmem:[%s341 + $0x1a4] sm:$0xf]
      %v491 = vld [vmem:[%s341 + $0x1a8] sm:$0xf]
      %v492 = vld [vmem:[%s341 + $0x1ac] sm:$0xf]
      %v493 = vld [vmem:[%s341 + $0x1b0] sm:$0xf]
      %v494 = vld [vmem:[%s341 + $0x1b4] sm:$0xf]
      %v495 = vld [vmem:[%s341 + $0x1b8] sm:$0xf]
      %v496 = vld [vmem:[%s341 + $0x1bc] sm:$0xf]
      %v497 = vld [vmem:[%s341 + $0x1c0] sm:$0xf]
      %v498 = vld [vmem:[%s341 + $0x1c4] sm:$0xf]
      %v499 = vld [vmem:[%s341 + $0x1c8] sm:$0xf]
      %v500 = vld [vmem:[%s341 + $0x1cc] sm:$0xf]
      %v501 = vld [vmem:[%s341 + $0x1d0] sm:$0xf]
      %v502 = vld [vmem:[%s341 + $0x1d4] sm:$0xf]
      %v503 = vld [vmem:[%s341 + $0x1d8] sm:$0xf]
      %v504 = vld [vmem:[%s341 + $0x1dc] sm:$0xf]
      %v505 = vld [vmem:[%s341 + $0x1e0] sm:$0xf]
      %v506 = vld [vmem:[%s341 + $0x1e4] sm:$0xf]
      %v507 = vld [vmem:[%s341 + $0x1e8] sm:$0xf]
      %v508 = vld [vmem:[%s341 + $0x1ec] sm:$0xf]
      %v509 = vld [vmem:[%s341 + $0x1f0] sm:$0xf]
      %v510 = vld [vmem:[%s341 + $0x1f4] sm:$0xf]
      %v511 = vld [vmem:[%s341 + $0x1f8] sm:$0xf]
      %v512 = vld [vmem:[%s341 + $0x1fc] sm:$0xf]
      %v513 = vld [vmem:[%s344] sm:$0x1]
      %v515 = vlaneseq
      %v516 = vshrl.u32 %v515, 7
      %v517 = vsub.s32 0, %v516
      %v518 = vrot.slane %v513, %v517
      %v528 = vunpack.c.l.b16 %v377
      %v529 = vunpack.c.h.b16 %v377
      %v530 = vunpack.c.l.b16 %v378
      %v531 = vunpack.c.h.b16 %v378
      %v532 = vunpack.c.l.b16 %v379
      %v533 = vunpack.c.h.b16 %v379
      %v534 = vunpack.c.l.b16 %v380
      %v535 = vunpack.c.h.b16 %v380
      %v536 = vunpack.c.l.b16 %v381
      %v537 = vunpack.c.h.b16 %v381
      %v538 = vunpack.c.l.b16 %v382
      %v539 = vunpack.c.h.b16 %v382
      %v540 = vunpack.c.l.b16 %v383
      %v541 = vunpack.c.h.b16 %v383
      %v542 = vunpack.c.l.b16 %v384
      %v543 = vunpack.c.h.b16 %v384
      %v544 = vpack.c.b16 %v536, %v528
      %v545 = vpack.c.b16 %v537, %v529
      %v546 = vpack.c.b16 %v538, %v530
      %v547 = vpack.c.b16 %v539, %v531
      %v548 = vpack.c.b16 %v540, %v532
      %v549 = vpack.c.b16 %v541, %v533
      %v550 = vpack.c.b16 %v542, %v534
      %v551 = vpack.c.b16 %v543, %v535
      %v688 = vunpack.c.l.b16 %v385
      %v689 = vunpack.c.l.b16 %v386
      %v690 = vunpack.c.l.b16 %v387
      %v691 = vunpack.c.l.b16 %v388
      %v692 = vunpack.c.l.b16 %v389
      %v693 = vunpack.c.l.b16 %v390
      %v694 = vunpack.c.l.b16 %v391
      %v695 = vunpack.c.l.b16 %v392
      %v696 = vunpack.c.l.b16 %v393
      %v697 = vunpack.c.l.b16 %v394
      %v698 = vunpack.c.l.b16 %v395
      %v699 = vunpack.c.l.b16 %v396
      %v700 = vunpack.c.l.b16 %v397
      %v701 = vunpack.c.l.b16 %v398
      %v702 = vunpack.c.l.b16 %v399
      %v703 = vunpack.c.l.b16 %v400
      %v704 = vunpack.c.l.b16 %v401
      %v705 = vunpack.c.l.b16 %v402
      %v706 = vunpack.c.l.b16 %v403
      %v707 = vunpack.c.l.b16 %v404
      %v708 = vunpack.c.l.b16 %v405
      %v709 = vunpack.c.l.b16 %v406
      %v710 = vunpack.c.l.b16 %v407
      %v711 = vunpack.c.l.b16 %v408
      %v712 = vunpack.c.l.b16 %v409
      %v713 = vunpack.c.l.b16 %v410
      %v714 = vunpack.c.l.b16 %v411
      %v715 = vunpack.c.l.b16 %v412
      %v716 = vunpack.c.l.b16 %v413
      %v717 = vunpack.c.l.b16 %v414
      %v718 = vunpack.c.l.b16 %v415
      %v719 = vunpack.c.l.b16 %v416
      %v720 = vunpack.c.l.b16 %v417
      %v721 = vunpack.c.l.b16 %v418
      %v722 = vunpack.c.l.b16 %v419
      %v723 = vunpack.c.l.b16 %v420
      %v724 = vunpack.c.l.b16 %v421
      %v725 = vunpack.c.l.b16 %v422
      %v726 = vunpack.c.l.b16 %v423
      %v727 = vunpack.c.l.b16 %v424
      %v728 = vunpack.c.l.b16 %v425
      %v729 = vunpack.c.l.b16 %v426
      %v730 = vunpack.c.l.b16 %v427
      %v731 = vunpack.c.l.b16 %v428
      %v732 = vunpack.c.l.b16 %v429
      %v733 = vunpack.c.l.b16 %v430
      %v734 = vunpack.c.l.b16 %v431
      %v735 = vunpack.c.l.b16 %v432
      %v736 = vunpack.c.l.b16 %v433
      %v737 = vunpack.c.l.b16 %v434
      %v738 = vunpack.c.l.b16 %v435
      %v739 = vunpack.c.l.b16 %v436
      %v740 = vunpack.c.l.b16 %v437
      %v741 = vunpack.c.l.b16 %v438
      %v742 = vunpack.c.l.b16 %v439
      %v743 = vunpack.c.l.b16 %v440
      %v744 = vunpack.c.l.b16 %v441
      %v745 = vunpack.c.l.b16 %v442
      %v746 = vunpack.c.l.b16 %v443
      %v747 = vunpack.c.l.b16 %v444
      %v748 = vunpack.c.l.b16 %v445
      %v749 = vunpack.c.l.b16 %v446
      %v750 = vunpack.c.l.b16 %v447
      %v751 = vunpack.c.l.b16 %v448
      %v752 = vunpack.c.l.b16 %v449
      %v753 = vunpack.c.l.b16 %v450
      %v754 = vunpack.c.l.b16 %v451
      %v755 = vunpack.c.l.b16 %v452
      %v756 = vunpack.c.l.b16 %v453
      %v757 = vunpack.c.l.b16 %v454
      %v758 = vunpack.c.l.b16 %v455
      %v759 = vunpack.c.l.b16 %v456
      %v760 = vunpack.c.l.b16 %v457
      %v761 = vunpack.c.l.b16 %v458
      %v762 = vunpack.c.l.b16 %v459
      %v763 = vunpack.c.l.b16 %v460
      %v764 = vunpack.c.l.b16 %v461
      %v765 = vunpack.c.l.b16 %v462
      %v766 = vunpack.c.l.b16 %v463
      %v767 = vunpack.c.l.b16 %v464
      %v768 = vunpack.c.l.b16 %v465
      %v769 = vunpack.c.l.b16 %v466
      %v770 = vunpack.c.l.b16 %v467
      %v771 = vunpack.c.l.b16 %v468
      %v772 = vunpack.c.l.b16 %v469
      %v773 = vunpack.c.l.b16 %v470
      %v774 = vunpack.c.l.b16 %v471
      %v775 = vunpack.c.l.b16 %v472
      %v776 = vunpack.c.l.b16 %v473
      %v777 = vunpack.c.l.b16 %v474
      %v778 = vunpack.c.l.b16 %v475
      %v779 = vunpack.c.l.b16 %v476
      %v780 = vunpack.c.l.b16 %v477
      %v781 = vunpack.c.l.b16 %v478
      %v782 = vunpack.c.l.b16 %v479
      %v783 = vunpack.c.l.b16 %v480
      %v784 = vunpack.c.l.b16 %v481
      %v785 = vunpack.c.l.b16 %v482
      %v786 = vunpack.c.l.b16 %v483
      %v787 = vunpack.c.l.b16 %v484
      %v788 = vunpack.c.l.b16 %v485
      %v789 = vunpack.c.l.b16 %v486
      %v790 = vunpack.c.l.b16 %v487
      %v791 = vunpack.c.l.b16 %v488
      %v792 = vunpack.c.l.b16 %v489
      %v793 = vunpack.c.l.b16 %v490
      %v794 = vunpack.c.l.b16 %v491
      %v795 = vunpack.c.l.b16 %v492
      %v796 = vunpack.c.l.b16 %v493
      %v797 = vunpack.c.l.b16 %v494
      %v798 = vunpack.c.l.b16 %v495
      %v799 = vunpack.c.l.b16 %v496
      %v800 = vunpack.c.l.b16 %v497
      %v801 = vunpack.c.l.b16 %v498
      %v802 = vunpack.c.l.b16 %v499
      %v803 = vunpack.c.l.b16 %v500
      %v804 = vunpack.c.l.b16 %v501
      %v805 = vunpack.c.l.b16 %v502
      %v806 = vunpack.c.l.b16 %v503
      %v807 = vunpack.c.l.b16 %v504
      %v808 = vunpack.c.l.b16 %v505
      %v809 = vunpack.c.l.b16 %v506
      %v810 = vunpack.c.l.b16 %v507
      %v811 = vunpack.c.l.b16 %v508
      %v812 = vunpack.c.l.b16 %v509
      %v813 = vunpack.c.l.b16 %v510
      %v814 = vunpack.c.l.b16 %v511
      %v815 = vunpack.c.l.b16 %v512
      %v816 = vpack.c.b16 %v689, %v688
      %v817 = vpack.c.b16 %v691, %v690
      %v818 = vpack.c.b16 %v693, %v692
      %v819 = vpack.c.b16 %v695, %v694
      %v820 = vpack.c.b16 %v697, %v696
      %v821 = vpack.c.b16 %v699, %v698
      %v822 = vpack.c.b16 %v701, %v700
      %v823 = vpack.c.b16 %v703, %v702
      %v824 = vpack.c.b16 %v705, %v704
      %v825 = vpack.c.b16 %v707, %v706
      %v826 = vpack.c.b16 %v709, %v708
      %v827 = vpack.c.b16 %v711, %v710
      %v828 = vpack.c.b16 %v713, %v712
      %v829 = vpack.c.b16 %v715, %v714
      %v830 = vpack.c.b16 %v717, %v716
      %v831 = vpack.c.b16 %v719, %v718
      %v832 = vpack.c.b16 %v721, %v720
      %v833 = vpack.c.b16 %v723, %v722
      %v834 = vpack.c.b16 %v725, %v724
      %v835 = vpack.c.b16 %v727, %v726
      %v836 = vpack.c.b16 %v729, %v728
      %v837 = vpack.c.b16 %v731, %v730
      %v838 = vpack.c.b16 %v733, %v732
      %v839 = vpack.c.b16 %v735, %v734
      %v840 = vpack.c.b16 %v737, %v736
      %v841 = vpack.c.b16 %v739, %v738
      %v842 = vpack.c.b16 %v741, %v740
      %v843 = vpack.c.b16 %v743, %v742
      %v844 = vpack.c.b16 %v745, %v744
      %v845 = vpack.c.b16 %v747, %v746
      %v846 = vpack.c.b16 %v749, %v748
      %v847 = vpack.c.b16 %v751, %v750
      %v848 = vpack.c.b16 %v753, %v752
      %v849 = vpack.c.b16 %v755, %v754
      %v850 = vpack.c.b16 %v757, %v756
      %v851 = vpack.c.b16 %v759, %v758
      %v852 = vpack.c.b16 %v761, %v760
      %v853 = vpack.c.b16 %v763, %v762
      %v854 = vpack.c.b16 %v765, %v764
      %v855 = vpack.c.b16 %v767, %v766
      %v856 = vpack.c.b16 %v769, %v768
      %v857 = vpack.c.b16 %v771, %v770
      %v858 = vpack.c.b16 %v773, %v772
      %v859 = vpack.c.b16 %v775, %v774
      %v860 = vpack.c.b16 %v777, %v776
      %v861 = vpack.c.b16 %v779, %v778
      %v862 = vpack.c.b16 %v781, %v780
      %v863 = vpack.c.b16 %v783, %v782
      %v864 = vpack.c.b16 %v785, %v784
      %v865 = vpack.c.b16 %v787, %v786
      %v866 = vpack.c.b16 %v789, %v788
      %v867 = vpack.c.b16 %v791, %v790
      %v868 = vpack.c.b16 %v793, %v792
      %v869 = vpack.c.b16 %v795, %v794
      %v870 = vpack.c.b16 %v797, %v796
      %v871 = vpack.c.b16 %v799, %v798
      %v872 = vpack.c.b16 %v801, %v800
      %v873 = vpack.c.b16 %v803, %v802
      %v874 = vpack.c.b16 %v805, %v804
      %v875 = vpack.c.b16 %v807, %v806
      %v876 = vpack.c.b16 %v809, %v808
      %v877 = vpack.c.b16 %v811, %v810
      %v878 = vpack.c.b16 %v813, %v812
      %v879 = vpack.c.b16 %v815, %v814
      %944 = vmatprep.subr.bf16.mxu0 0
      %945 = vmatpush1.bf16.msra.mxu0 %v823
      %946 = vmatprep.subr.bf16.mxu0 0
      %947 = vmatpush1.bf16.msra.mxu0 %v822
      %948 = vmatprep.subr.bf16.mxu0 0
      %949 = vmatpush1.bf16.msra.mxu0 %v821
      %950 = vmatprep.subr.bf16.mxu0 0
      %951 = vmatpush1.bf16.msra.mxu0 %v820
      %952 = vmatprep.subr.bf16.mxu0 0
      %953 = vmatpush1.bf16.msra.mxu0 %v819
      %954 = vmatprep.subr.bf16.mxu0 0
      %955 = vmatpush1.bf16.msra.mxu0 %v818
      %956 = vmatprep.subr.bf16.mxu0 0
      %957 = vmatpush1.bf16.msra.mxu0 %v817
      %958 = vmatprep.subr.bf16.mxu0 0
      %959 = vmatpush1.bf16.msra.mxu0 %v816
      %960 = vmatprep.subr.bf16.mxu0 0
      %961 = vmatpush2.bf16.msra.mxu0 %v831
      %962 = vmatprep.subr.bf16.mxu0 0
      %963 = vmatpush2.bf16.msra.mxu0 %v830
      %964 = vmatprep.subr.bf16.mxu0 0
      %965 = vmatpush2.bf16.msra.mxu0 %v829
      %966 = vmatprep.subr.bf16.mxu0 0
      %967 = vmatpush2.bf16.msra.mxu0 %v828
      %968 = vmatprep.subr.bf16.mxu0 0
      %969 = vmatpush2.bf16.msra.mxu0 %v827
      %970 = vmatprep.subr.bf16.mxu0 0
      %971 = vmatpush2.bf16.msra.mxu0 %v826
      %972 = vmatprep.subr.bf16.mxu0 0
      %973 = vmatpush2.bf16.msra.mxu0 %v825
      %974 = vmatprep.subr.bf16.mxu0 0
      %975 = vmatpush2.bf16.msra.mxu0 %v824
      %976 = vmatprep.mubr.bf16.mxu0 %v545
      %977 = vmatmul.mubr.bf16.gmra.mxu0 %v544
      %v978 = vpop.f32.mrf.mxu0
      %v979 = vadd.f32 %v518, %v978
      %v980 = vpop.f32.mrf.mxu0
      %v981 = vpop.f32.mrf.mxu0
      %v982 = vadd.f32 %v518, %v981
      %v983 = vpop.f32.mrf.mxu0
      %984 = vdwg.mxu0
      %985 = vmatprep.subr.bf16.mxu0 0
      %986 = vmatpush1.bf16.msra.mxu0 %v839
      %987 = vmatprep.subr.bf16.mxu0 0
      %988 = vmatpush1.bf16.msra.mxu0 %v838
      %989 = vmatprep.subr.bf16.mxu0 0
      %990 = vmatpush1.bf16.msra.mxu0 %v837
      %991 = vmatprep.subr.bf16.mxu0 0
      %992 = vmatpush1.bf16.msra.mxu0 %v836
      %993 = vmatprep.subr.bf16.mxu0 0
      %994 = vmatpush1.bf16.msra.mxu0 %v835
      %995 = vmatprep.subr.bf16.mxu0 0
      %996 = vmatpush1.bf16.msra.mxu0 %v834
      %997 = vmatprep.subr.bf16.mxu0 0
      %998 = vmatpush1.bf16.msra.mxu0 %v833
      %999 = vmatprep.subr.bf16.mxu0 0
      %1000 = vmatpush1.bf16.msra.mxu0 %v832
      %1001 = vmatprep.subr.bf16.mxu0 0
      %1002 = vmatpush2.bf16.msra.mxu0 %v847
      %1003 = vmatprep.subr.bf16.mxu0 0
      %1004 = vmatpush2.bf16.msra.mxu0 %v846
      %1005 = vmatprep.subr.bf16.mxu0 0
      %1006 = vmatpush2.bf16.msra.mxu0 %v845
      %1007 = vmatprep.subr.bf16.mxu0 0
      %1008 = vmatpush2.bf16.msra.mxu0 %v844
      %1009 = vmatprep.subr.bf16.mxu0 0
      %1010 = vmatpush2.bf16.msra.mxu0 %v843
      %1011 = vmatprep.subr.bf16.mxu0 0
      %1012 = vmatpush2.bf16.msra.mxu0 %v842
      %1013 = vmatprep.subr.bf16.mxu0 0
      %1014 = vmatpush2.bf16.msra.mxu0 %v841
      %1015 = vmatprep.subr.bf16.mxu0 0
      %1016 = vmatpush2.bf16.msra.mxu0 %v840
      %1017 = vmatprep.mubr.bf16.mxu0 %v547
      %1018 = vmatmul.mubr.bf16.gmra.mxu0 %v546
      %v1019 = vpop.f32.mrf.mxu0
      %v1020 = vadd.f32 %v979, %v1019
      %v1021 = vpop.f32.mrf.mxu0
      %v1022 = vpop.f32.mrf.mxu0
      %v1023 = vadd.f32 %v982, %v1022
      %v1024 = vpop.f32.mrf.mxu0
      %1025 = vdwg.mxu0
      %1026 = vmatprep.subr.bf16.mxu0 0
      %1027 = vmatpush1.bf16.msra.mxu0 %v855
      %1028 = vmatprep.subr.bf16.mxu0 0
      %1029 = vmatpush1.bf16.msra.mxu0 %v854
      %1030 = vmatprep.subr.bf16.mxu0 0
      %1031 = vmatpush1.bf16.msra.mxu0 %v853
      %1032 = vmatprep.subr.bf16.mxu0 0
      %1033 = vmatpush1.bf16.msra.mxu0 %v852
      %1034 = vmatprep.subr.bf16.mxu0 0
      %1035 = vmatpush1.bf16.msra.mxu0 %v851
      %1036 = vmatprep.subr.bf16.mxu0 0
      %1037 = vmatpush1.bf16.msra.mxu0 %v850
      %1038 = vmatprep.subr.bf16.mxu0 0
      %1039 = vmatpush1.bf16.msra.mxu0 %v849
      %1040 = vmatprep.subr.bf16.mxu0 0
      %1041 = vmatpush1.bf16.msra.mxu0 %v848
      %1042 = vmatprep.subr.bf16.mxu0 0
      %1043 = vmatpush2.bf16.msra.mxu0 %v863
      %1044 = vmatprep.subr.bf16.mxu0 0
      %1045 = vmatpush2.bf16.msra.mxu0 %v862
      %1046 = vmatprep.subr.bf16.mxu0 0
      %1047 = vmatpush2.bf16.msra.mxu0 %v861
      %1048 = vmatprep.subr.bf16.mxu0 0
      %1049 = vmatpush2.bf16.msra.mxu0 %v860
      %1050 = vmatprep.subr.bf16.mxu0 0
      %1051 = vmatpush2.bf16.msra.mxu0 %v859
      %1052 = vmatprep.subr.bf16.mxu0 0
      %1053 = vmatpush2.bf16.msra.mxu0 %v858
      %1054 = vmatprep.subr.bf16.mxu0 0
      %1055 = vmatpush2.bf16.msra.mxu0 %v857
      %1056 = vmatprep.subr.bf16.mxu0 0
      %1057 = vmatpush2.bf16.msra.mxu0 %v856
      %1058 = vmatprep.mubr.bf16.mxu0 %v549
      %1059 = vmatmul.mubr.bf16.gmra.mxu0 %v548
      %v1060 = vpop.f32.mrf.mxu0
      %v1061 = vadd.f32 %v1020, %v1060
      %v1062 = vpop.f32.mrf.mxu0
      %v1063 = vpop.f32.mrf.mxu0
      %v1064 = vadd.f32 %v1023, %v1063
      %v1065 = vpop.f32.mrf.mxu0
      %1066 = vdwg.mxu0
      %1067 = vmatprep.subr.bf16.mxu0 0
      %1068 = vmatpush1.bf16.msra.mxu0 %v871
      %1069 = vmatprep.subr.bf16.mxu0 0
      %1070 = vmatpush1.bf16.msra.mxu0 %v870
      %1071 = vmatprep.subr.bf16.mxu0 0
      %1072 = vmatpush1.bf16.msra.mxu0 %v869
      %1073 = vmatprep.subr.bf16.mxu0 0
      %1074 = vmatpush1.bf16.msra.mxu0 %v868
      %1075 = vmatprep.subr.bf16.mxu0 0
      %1076 = vmatpush1.bf16.msra.mxu0 %v867
      %1077 = vmatprep.subr.bf16.mxu0 0
      %1078 = vmatpush1.bf16.msra.mxu0 %v866
      %1079 = vmatprep.subr.bf16.mxu0 0
      %1080 = vmatpush1.bf16.msra.mxu0 %v865
      %1081 = vmatprep.subr.bf16.mxu0 0
      %1082 = vmatpush1.bf16.msra.mxu0 %v864
      %1083 = vmatprep.subr.bf16.mxu0 0
      %1084 = vmatpush2.bf16.msra.mxu0 %v879
      %1085 = vmatprep.subr.bf16.mxu0 0
      %1086 = vmatpush2.bf16.msra.mxu0 %v878
      %1087 = vmatprep.subr.bf16.mxu0 0
      %1088 = vmatpush2.bf16.msra.mxu0 %v877
      %1089 = vmatprep.subr.bf16.mxu0 0
      %1090 = vmatpush2.bf16.msra.mxu0 %v876
      %1091 = vmatprep.subr.bf16.mxu0 0
      %1092 = vmatpush2.bf16.msra.mxu0 %v875
      %1093 = vmatprep.subr.bf16.mxu0 0
      %1094 = vmatpush2.bf16.msra.mxu0 %v874
      %1095 = vmatprep.subr.bf16.mxu0 0
      %1096 = vmatpush2.bf16.msra.mxu0 %v873
      %1097 = vmatprep.subr.bf16.mxu0 0
      %1098 = vmatpush2.bf16.msra.mxu0 %v872
      %1099 = vmatprep.mubr.bf16.mxu0 %v551
      %1100 = vmatmul.mubr.bf16.gmra.mxu0 %v550
      %v1101 = vpop.f32.mrf.mxu0
      %v1102 = vadd.f32 %v1061, %v1101
      %v1103 = vpop.f32.mrf.mxu0
      %v1104 = vpop.f32.mrf.mxu0
      %v1105 = vadd.f32 %v1064, %v1104
      %v1106 = vpop.f32.mrf.mxu0
      %1107 = vdwg.mxu0
      %v1108 = vpack.c.bf16 %v1105, %v1102
      %v1110 = vunpack.c.l.b16 %v1108
      %v1111 = vunpack.c.h.b16 %v1108
      %v1112 = vpack.c.b16 %v1110, %v1110
      %v1113 = vpack.c.b16 %v1111, %v1111
      %1116 = vst [vmem:[%s356] sm:$0xf] %v1112
      %1117 = vst [vmem:[%s356 + $0x4] sm:$0xf] %v1113
      %s1118 = smul.u32 %s23, 16
      %v1119 = vlaneseq
      %v1120 = vshrl.u32 %v1119, 7
      %v1121 = vadd.s32 %v1120, 8
      %v1122 = vstv %s1118
      %v1123 = vadd.s32 %v1122, %v1120
      %v1124 = vadd.s32 %v1122, %v1121
      %vm1125 = vcmp.lt.s32.totalorder %v1123, 8
      %vm1126 = vcmp.lt.s32.totalorder %v1124, 8
      %v1127 = vsel %vm1125, 1, 0
      %v1128 = vsel %vm1126, 1, 0
      %vm1129 = vcmp.eq.s32.totalorder %v1127, 1
      %vm1130 = vcmp.eq.s32.totalorder %v1128, 1
      %v1131 = vsel %vm1129, %v1102, 0.0
      %v1132 = vsel %vm1130, %v1105, 0.0
      %v1133 = vadd.f32 %v1131, %v1132
      %v1134 = vrot.slane %v1133, 4
      %v1135 = vadd.f32 %v1133, %v1134
      %v1136 = vrot.slane %v1135, 2
      %v1137 = vadd.f32 %v1135, %v1136
      %v1138 = vrot.slane %v1137, 1
      %v1139 = vadd.f32 %v1137, %v1138
      %1140 = vst [vmem:[%s366] sm:$0x1] %v1139
      %v1141 = vmul.f32 %v1131, %v1131
      %v1142 = vmul.f32 %v1132, %v1132
      %v1143 = vadd.f32 %v1141, %v1142
      %v1144 = vrot.slane %v1143, 4
      %v1145 = vadd.f32 %v1143, %v1144
      %v1146 = vrot.slane %v1145, 2
      %v1147 = vadd.f32 %v1145, %v1146
      %v1148 = vrot.slane %v1147, 1
      %v1149 = vadd.f32 %v1147, %v1148
      %1150 = vst [vmem:[%s375] sm:$0x1] %v1149
      %s1151 = smul.u32 2, %s23
      %p1152 = scmp.lt.s32.totalorder %s22, 3
      %s1153 = scalar_select %p1152, %s22, 3
      %p1154 = scmp.lt.s32.totalorder %s1151, 1
      %s1155 = scalar_select %p1154, %s1151, 1
      %p1156 = scmp.lt.s32.totalorder %s24, 0
      %s1157 = scalar_select %p1156, %s24, 0
      %s1158 = sadd.s32 %s1157, %s1155
      %s1159 = smul.addr %s1153, 2
      %s1160 = sadd.s32 %s1158, %s1159
      %s1161 = smul.addr %s1160, 4
      %s1162 = scalar_lea.vmem %s3, %s1161
      %p1163 = scmp.lt.s32.totalorder %s22, 3
      %s1164 = scalar_select %p1163, %s22, 3
      %p1165 = scmp.lt.s32.totalorder %s23, 0
      %s1166 = scalar_select %p1165, %s23, 0
      %p1167 = scmp.lt.s32.totalorder %s24, 0
      %s1168 = scalar_select %p1167, %s24, 0
      %s1169 = sadd.s32 %s1168, %s1166
      %s1170 = sadd.s32 %s1169, %s1164
      %s1171 = scalar_lea.vmem %s4, %s1170
      %p1172 = scmp.lt.s32.totalorder %s22, 3
      %s1173 = scalar_select %p1172, %s22, 3
      %p1174 = scmp.lt.s32.totalorder %s23, 0
      %s1175 = scalar_select %p1174, %s23, 0
      %p1176 = scmp.lt.s32.totalorder %s24, 0
      %s1177 = scalar_select %p1176, %s24, 0
      %s1178 = sadd.s32 %s1177, %s1175
      %s1179 = sadd.s32 %s1178, %s1173
      %s1180 = scalar_lea.vmem %s5, %s1179
      // Predicated region
      $region33: #{dfnet_forward.15} parent=31 // pred_check
        %p1181 = pneg %p140
      $region34: #{dfnet_forward.15} parent=31 // pred_check_branch
        %1183 = sbr.rel (%p1181) target = $region36
      $region35: #{dfnet_forward.15} parent=31 // pred_region
        %s1184 = smul.u32 2, %s23
      $region36: #{dfnet_forward.15} parent=31 // pred_fallthru
        _
      // Predicated region
      $region37: #{dfnet_forward.15} parent=31 // pred_check
        %p1185 = pneg %p170
      $region38: #{dfnet_forward.15} parent=31 // pred_check_branch
        %1187 = sbr.rel (%p1185) target = $region40
      $region39: #{dfnet_forward.15} parent=31 // pred_region
        _
      $region40: #{dfnet_forward.15} parent=31 // pred_fallthru
        _
      // Predicated region
      $region41: #{dfnet_forward.15} parent=31 // pred_check
        %p1188 = pneg %p200
      $region42: #{dfnet_forward.15} parent=31 // pred_check_branch
        %1190 = sbr.rel (%p1188) target = $region44
      $region43: #{dfnet_forward.15} parent=31 // pred_region
        _
      $region44: #{dfnet_forward.15} parent=31 // pred_fallthru
        _
    $region32: #{dfnet_forward.15} parent=5 // pred_fallthru
      _
    %p1191 = scmp.le.s32.totalorder 2, %s12
    // Predicated region
    $region45: #{dfnet_forward.15} parent=5 // pred_check
      %p1192 = pneg %p1191
    $region46: #{dfnet_forward.15} parent=5 // pred_check_branch
      %1194 = sbr.rel (%p1192) target = $region48
    $region47: #{dfnet_forward.15} parent=5 // pred_region
      %s1195 = ssub.s32 %s12, 2
      // Predicated region
      $region49: #{dfnet_forward.15} parent=47 // pred_check
        %p1196 = pneg %p146
      $region50: #{dfnet_forward.15} parent=47 // pred_check_branch
        %1198 = sbr.rel (%p1196) target = $region52
      $region51: #{dfnet_forward.15} parent=47 // pred_region
        %s1199 = smul.u32 2, %s26
        %p1200 = scmp.lt.s32.totalorder %s25, 3
        %s1201 = scalar_select %p1200, %s25, 3
        %p1202 = scmp.lt.s32.totalorder %s1199, 1
        %s1203 = scalar_select %p1202, %s1199, 1
        %p1204 = scmp.lt.s32.totalorder %s27, 0
        %s1205 = scalar_select %p1204, %s27, 0
        %s1206 = sadd.s32 %s1205, %s1203
        %s1207 = smul.addr %s1201, 2
        %s1208 = sadd.s32 %s1206, %s1207
        %s1209 = smul.addr %s1208, 4
        %s1210 = scalar_lea.vmem %s3, %s1209
      $region52: #{dfnet_forward.15} parent=47 // pred_fallthru
        _
      // Predicated region
      $region53: #{dfnet_forward.15} parent=47 // pred_check
        %p1211 = pneg %p176
      $region54: #{dfnet_forward.15} parent=47 // pred_check_branch
        %1213 = sbr.rel (%p1211) target = $region56
      $region55: #{dfnet_forward.15} parent=47 // pred_region
        %p1214 = scmp.lt.s32.totalorder %s25, 3
        %s1215 = scalar_select %p1214, %s25, 3
        %p1216 = scmp.lt.s32.totalorder %s26, 0
        %s1217 = scalar_select %p1216, %s26, 0
        %p1218 = scmp.lt.s32.totalorder %s27, 0
        %s1219 = scalar_select %p1218, %s27, 0
        %s1220 = sadd.s32 %s1219, %s1217
        %s1221 = sadd.s32 %s1220, %s1215
        %s1222 = scalar_lea.vmem %s4, %s1221
      $region56: #{dfnet_forward.15} parent=47 // pred_fallthru
        _
      // Predicated region
      $region57: #{dfnet_forward.15} parent=47 // pred_check
        %p1223 = pneg %p206
      $region58: #{dfnet_forward.15} parent=47 // pred_check_branch
        %1225 = sbr.rel (%p1223) target = $region60
      $region59: #{dfnet_forward.15} parent=47 // pred_region
        %p1226 = scmp.lt.s32.totalorder %s25, 3
        %s1227 = scalar_select %p1226, %s25, 3
        %p1228 = scmp.lt.s32.totalorder %s26, 0
        %s1229 = scalar_select %p1228, %s26, 0
        %p1230 = scmp.lt.s32.totalorder %s27, 0
        %s1231 = scalar_select %p1230, %s27, 0
        %s1232 = sadd.s32 %s1231, %s1229
        %s1233 = sadd.s32 %s1232, %s1227
        %s1234 = scalar_lea.vmem %s5, %s1233
      $region60: #{dfnet_forward.15} parent=47 // pred_fallthru
        _
    $region48: #{dfnet_forward.15} parent=5 // pred_fallthru
      _
  $region6: #{dfnet_forward.15} parent=0 // loop_footer
    %s16 = sadd.s32 1, %s12
  $region7: #{dfnet_forward.15} parent=0 // loop_footer_branch
    %11 = sbr.rel target = $region3
  $region8: #{dfnet_forward.15} parent=0 // loop_exit
    _

// kernel: dfnet_forward.16
$region0: #{dfnet_forward.16}
  #allocation0 [shape = 'u32[]', space=smem, size = 0x4, offset = 0x4, fixed_abs, tag = 'smem constant byte address 0x4 - core index']
  #allocation1 [shape = 'u32[144,128]{1,0:T(1,128)}', space=vmem, size = 0x12000, scoped, tag = 'internal scratch']
  %s0 = inlined_call_operand.vmem [shape: bf16[64,128], index: 0, kind: input, shape index: {}]
  %s1 = inlined_call_operand.vmem [shape: f32[1,128], index: 1, kind: input, shape index: {}]
  %s2 = inlined_call_operand.vmem [shape: f32[1,128], index: 2, kind: input, shape index: {}]
  %s3 = inlined_call_operand.vmem [shape: bf16[64,128], index: 3, kind: output, shape index: {}]
  %s4 = sld [smem:[#allocation0]]
  $region22: #{dfnet_forward.16} parent=0
    _
  %s6 = ssub.s32 1, %s4
  %s7 = scalar_select 0, %s6, %s4
  // Predicated region
  $region2: #{dfnet_forward.16} parent=0 // pred_check
    _
  $region3: #{dfnet_forward.16} parent=0 // pred_check_branch
    %9 = sbr.rel (0) target = $region5
  $region4: #{dfnet_forward.16} parent=0 // pred_region
    _
  $region5: #{dfnet_forward.16} parent=0 // pred_fallthru
    _
  // Predicated region
  $region6: #{dfnet_forward.16} parent=0 // pred_check
    _
  $region7: #{dfnet_forward.16} parent=0 // pred_check_branch
    %11 = sbr.rel (0) target = $region9
  $region8: #{dfnet_forward.16} parent=0 // pred_region
    _
  $region9: #{dfnet_forward.16} parent=0 // pred_fallthru
    _
  // Predicated region
  $region10: #{dfnet_forward.16} parent=0 // pred_check
    _
  $region11: #{dfnet_forward.16} parent=0 // pred_check_branch
    %13 = sbr.rel (0) target = $region13
  $region12: #{dfnet_forward.16} parent=0 // pred_region
    _
  $region13: #{dfnet_forward.16} parent=0 // pred_fallthru
    _
  %v14 = vld [vmem:[%s0] sm:$0xf]
  %v15 = vld [vmem:[%s0 + $0x4] sm:$0xf]
  %v16 = vld [vmem:[%s0 + $0x8] sm:$0xf]
  %v17 = vld [vmem:[%s0 + $0xc] sm:$0xf]
  %v18 = vld [vmem:[%s0 + $0x10] sm:$0xf]
  %v19 = vld [vmem:[%s0 + $0x14] sm:$0xf]
  %v20 = vld [vmem:[%s0 + $0x18] sm:$0xf]
  %v21 = vld [vmem:[%s0 + $0x1c] sm:$0xf]
  %v22 = vunpack.c.l.bf16 %v14
  %v23 = vunpack.c.l.bf16 %v15
  %v24 = vunpack.c.l.bf16 %v16
  %v25 = vunpack.c.l.bf16 %v17
  %v26 = vunpack.c.l.bf16 %v18
  %v27 = vunpack.c.l.bf16 %v19
  %v28 = vunpack.c.l.bf16 %v20
  %v29 = vunpack.c.l.bf16 %v21
  %v30 = vld [vmem:[%s1] sm:$0x1]
  %v32 = vlaneseq
  %v33 = vshrl.u32 %v32, 7
  %v34 = vsub.s32 0, %v33
  %v35 = vrot.slane %v30, %v34
  %v37 = vmul.f32 %v22, %v35
  %v38 = vmul.f32 %v23, %v35
  %v39 = vmul.f32 %v24, %v35
  %v40 = vmul.f32 %v25, %v35
  %v41 = vmul.f32 %v26, %v35
  %v42 = vmul.f32 %v27, %v35
  %v43 = vmul.f32 %v28, %v35
  %v44 = vmul.f32 %v29, %v35
  %v45 = vld [vmem:[%s2] sm:$0x1]
  %v47 = vlaneseq
  %v48 = vshrl.u32 %v47, 7
  %v49 = vsub.s32 0, %v48
  %v50 = vrot.slane %v45, %v49
  %v52 = vadd.f32 %v37, %v50
  %v53 = vadd.f32 %v38, %v50
  %v54 = vadd.f32 %v39, %v50
  %v55 = vadd.f32 %v40, %v50
  %v56 = vadd.f32 %v41, %v50
  %v57 = vadd.f32 %v42, %v50
  %v58 = vadd.f32 %v43, %v50
  %v59 = vadd.f32 %v44, %v50
  %v60 = vmax.f32 %v52, 0.0
  %v61 = vmax.f32 %v53, 0.0
  %v62 = vmax.f32 %v54, 0.0
  %v63 = vmax.f32 %v55, 0.0
  %v64 = vmax.f32 %v56, 0.0
  %v65 = vmax.f32 %v57, 0.0
  %v66 = vmax.f32 %v58, 0.0
  %v67 = vmax.f32 %v59, 0.0
  %v68 = vpack.c.bf16 %v61, %v60
  %v69 = vpack.c.bf16 %v63, %v62
  %v70 = vpack.c.bf16 %v65, %v64
  %v71 = vpack.c.bf16 %v67, %v66
  %v76 = vunpack.c.l.b16 %v68
  %v77 = vunpack.c.h.b16 %v68
  %v78 = vunpack.c.l.b16 %v69
  %v79 = vunpack.c.h.b16 %v69
  %v80 = vunpack.c.l.b16 %v70
  %v81 = vunpack.c.h.b16 %v70
  %v82 = vunpack.c.l.b16 %v71
  %v83 = vunpack.c.h.b16 %v71
  %v84 = vpack.c.b16 %v76, %v76
  %v85 = vpack.c.b16 %v77, %v77
  %v86 = vpack.c.b16 %v78, %v78
  %v87 = vpack.c.b16 %v79, %v79
  %v88 = vpack.c.b16 %v80, %v80
  %v89 = vpack.c.b16 %v81, %v81
  %v90 = vpack.c.b16 %v82, %v82
  %v91 = vpack.c.b16 %v83, %v83
  %100 = vst [vmem:[%s3] sm:$0xf] %v84
  %101 = vst [vmem:[%s3 + $0x4] sm:$0xf] %v85
  %102 = vst [vmem:[%s3 + $0x8] sm:$0xf] %v86
  %103 = vst [vmem:[%s3 + $0xc] sm:$0xf] %v87
  %104 = vst [vmem:[%s3 + $0x10] sm:$0xf] %v88
  %105 = vst [vmem:[%s3 + $0x14] sm:$0xf] %v89
  %106 = vst [vmem:[%s3 + $0x18] sm:$0xf] %v90
  %107 = vst [vmem:[%s3 + $0x1c] sm:$0xf] %v91
  // Predicated region
  $region14: #{dfnet_forward.16} parent=0 // pred_check
    _
  $region15: #{dfnet_forward.16} parent=0 // pred_check_branch
    %109 = sbr.rel (0) target = $region17
  $region16: #{dfnet_forward.16} parent=0 // pred_region
    _
  $region17: #{dfnet_forward.16} parent=0 // pred_fallthru
    _
  // Predicated region
  $region18: #{dfnet_forward.16} parent=0 // pred_check
    _
  $region19: #{dfnet_forward.16} parent=0 // pred_check_branch
    %111 = sbr.rel (0) target = $region21
  $region20: #{dfnet_forward.16} parent=0 // pred_region
    _
  $region21: #{dfnet_forward.16} parent=0 // pred_fallthru
    _

// kernel: dfnet_forward.13
$region0: #{dfnet_forward.13}
  #allocation0 [shape = 'u32[]', space=smem, size = 0x4, offset = 0x4, fixed_abs, tag = 'smem constant byte address 0x4 - core index']
  #allocation1 [shape = 'u32[144,128]{1,0:T(1,128)}', space=vmem, size = 0x12000, scoped, tag = 'internal scratch']
  %s0 = inlined_call_operand.vmem [shape: bf16[1,16,2048], index: 0, kind: input, shape index: {}]
  %s1 = inlined_call_operand.vmem [shape: bf16[1,2048,256], index: 1, kind: input, shape index: {}]
  %s2 = inlined_call_operand.vmem [shape: f32[1,256], index: 2, kind: input, shape index: {}]
  %s3 = inlined_call_operand.vmem [shape: bf16[1,16,256], index: 3, kind: output, shape index: {0}]
  %s4 = inlined_call_operand.vmem [shape: f32[1,1,1,256], index: 4, kind: output, shape index: {1}]
  %s5 = inlined_call_operand.vmem [shape: f32[1,1,1,256], index: 5, kind: output, shape index: {2}]
  %6 = xla_tuple %s3, %s4, %s5
  %s7 = sld [smem:[#allocation0]]
  $region139: #{dfnet_forward.13} parent=0
    _
  %s9 = ssub.s32 1, %s7
  %s10 = scalar_select 0, %s9, %s7
  $region1: #{dfnet_forward.13} parent=0
    #allocation2 [shape = 'u8[1048576]{0}', space=vmem, size = 0x100000, scoped, tag = 'input window, operand 1']
    #allocation3 [shape = 'u8[8192]{0}', space=vmem, size = 0x2000, scoped, tag = 'output window, operand 0']
    loop: start=0, step=1, limit=4
    $region2: #{dfnet_forward.13} parent=1 // loop_pre_header
      _
    $region3: #{dfnet_forward.13} parent=1 // loop_header
      %s12 = sphi 0, %s16
      %p13 = scmp.ge.s32.totalorder %s12, 4
      %s19 = sphi 0, %s38
      %s20 = sphi 0, %s34
      %s21 = sphi 0, %s30
      %s22 = sphi 0, %s19
      %s23 = sphi 0, %s20
      %s24 = sphi 0, %s21
      %s25 = sphi 0, %s22
      %s26 = sphi 0, %s23
      %s27 = sphi 0, %s24
      %s43 = sphi 0, %s45
      %s46 = sphi 0, %s43
      %s47 = sphi 0, %s46
      %s63 = sphi 0, %s47
      %s71 = sphi 0, %s73
      %s74 = sphi 0, %s71
      %s75 = sphi 0, %s74
      %s91 = sphi 0, %s75
      %s97 = sphi 0, %s99
      %s100 = sphi 0, %s97
      %s101 = sphi 0, %s100
      %s117 = sphi 0, %s101
      %s127 = sphi 0, %s129
      %s130 = sphi 0, %s127
      %s131 = sphi 0, %s130
      %s147 = sphi 0, %s131
      %s157 = sphi 0, %s159
      %s160 = sphi 0, %s157
      %s161 = sphi 0, %s160
      %s177 = sphi 0, %s161
      %s187 = sphi 0, %s189
      %s190 = sphi 0, %s187
      %s191 = sphi 0, %s190
      %s207 = sphi 0, %s191
    $region4: #{dfnet_forward.13} parent=1 // loop_header_branch
      %15 = sbr.rel (%p13) target = $region8
    $region5: #{dfnet_forward.13} parent=1 // loop_body
      %s17 = ssub.s32 %s12, 1
      %s18 = ssub.s32 %s12, 2
      %s28 = sadd.s32 1, %s21
      %p29 = scmp.ge.s32.totalorder %s28, 2
      %s30 = scalar_select %p29, 0, %s28
      %s31 = sadd.s32 1, %s20
      %s32 = scalar_select %p29, %s31, %s20
      %p33 = scmp.ge.s32.totalorder %s32, 1
      %s34 = scalar_select %p33, 0, %s32
      %s35 = sadd.s32 1, %s19
      %s36 = scalar_select %p33, %s35, %s19
      %p37 = scmp.ge.s32.totalorder %s36, 1
      %s38 = scalar_select %p37, 0, %s36
      %s39 = ssub.s32 %s19, %s38
      %s40 = ssub.s32 %s20, %s34
      %s41 = sor.u32 %s39, %s40
      %p42 = scmp.eq.s32.totalorder %s41, 0
      %s44 = sadd.s32 %s43, 1
      %s45 = scalar_select %p42, %s43, %s44
      %p48 = pneg %p42
      %p49 = scmp.eq.s32.totalorder %s12, 1
      %p50 = por %p48, %p49
      %p51 = scmp.ne.s32.totalorder %s43, %s46
      %p52 = scmp.eq.s32.totalorder %s12, 0
      %p53 = por %p51, %p52
      %p54 = scmp.ne.s32.totalorder %s43, %s46
      %p55 = scmp.eq.s32.totalorder %s17, 1
      %p56 = por %p54, %p55
      %p57 = scmp.ne.s32.totalorder %s46, %s47
      %p58 = scmp.eq.s32.totalorder %s17, 0
      %p59 = por %p57, %p58
      %p60 = scmp.ne.s32.totalorder %s46, %s47
      %p61 = scmp.eq.s32.totalorder %s18, 1
      %p62 = por %p60, %p61
      %p64 = scmp.ne.s32.totalorder %s47, %s63
      %p65 = scmp.eq.s32.totalorder %s18, 0
      %p66 = por %p64, %p65
      %s67 = ssub.s32 %s19, %s38
      %s68 = ssub.s32 %s21, %s30
      %s69 = sor.u32 %s67, %s68
      %p70 = scmp.eq.s32.totalorder %s69, 0
      %s72 = sadd.s32 %s71, 1
      %s73 = scalar_select %p70, %s71, %s72
      %p76 = pneg %p70
      %p77 = scmp.eq.s32.totalorder %s12, 1
      %p78 = por %p76, %p77
      %p79 = scmp.ne.s32.totalorder %s71, %s74
      %p80 = scmp.eq.s32.totalorder %s12, 0
      %p81 = por %p79, %p80
      %p82 = scmp.ne.s32.totalorder %s71, %s74
      %p83 = scmp.eq.s32.totalorder %s17, 1
      %p84 = por %p82, %p83
      %p85 = scmp.ne.s32.totalorder %s74, %s75
      %p86 = scmp.eq.s32.totalorder %s17, 0
      %p87 = por %p85, %p86
      %p88 = scmp.ne.s32.totalorder %s74, %s75
      %p89 = scmp.eq.s32.totalorder %s18, 1
      %p90 = por %p88, %p89
      %p92 = scmp.ne.s32.totalorder %s75, %s91
      %p93 = scmp.eq.s32.totalorder %s18, 0
      %p94 = por %p92, %p93
      %s95 = ssub.s32 %s21, %s30
      %p96 = scmp.eq.s32.totalorder %s95, 0
      %s98 = sadd.s32 %s97, 1
      %s99 = scalar_select %p96, %s97, %s98
      %p102 = pneg %p96
      %p103 = scmp.eq.s32.totalorder %s12, 1
      %p104 = por %p102, %p103
      %p105 = scmp.ne.s32.totalorder %s97, %s100
      %p106 = scmp.eq.s32.totalorder %s12, 0
      %p107 = por %p105, %p106
      %p108 = scmp.ne.s32.totalorder %s97, %s100
      %p109 = scmp.eq.s32.totalorder %s17, 1
      %p110 = por %p108, %p109
      %p111 = scmp.ne.s32.totalorder %s100, %s101
      %p112 = scmp.eq.s32.totalorder %s17, 0
      %p113 = por %p111, %p112
      %p114 = scmp.ne.s32.totalorder %s100, %s101
      %p115 = scmp.eq.s32.totalorder %s18, 1
      %p116 = por %p114, %p115
      %p118 = scmp.ne.s32.totalorder %s101, %s117
      %p119 = scmp.eq.s32.totalorder %s18, 0
      %p120 = por %p118, %p119
      %s121 = ssub.s32 %s19, %s38
      %s122 = ssub.s32 %s20, %s34
      %s123 = sor.u32 %s121, %s122
      %s124 = ssub.s32 %s21, %s30
      %s125 = sor.u32 %s123, %s124
      %p126 = scmp.eq.s32.totalorder %s125, 0
      %s128 = sadd.s32 %s127, 1
      %s129 = scalar_select %p126, %s127, %s128
      %p132 = pneg %p126
      %p133 = scmp.eq.s32.totalorder %s12, 1
      %p134 = por %p132, %p133
      %p135 = scmp.ne.s32.totalorder %s127, %s130
      %p136 = scmp.eq.s32.totalorder %s12, 0
      %p137 = por %p135, %p136
      %p138 = scmp.ne.s32.totalorder %s127, %s130
      %p139 = scmp.eq.s32.totalorder %s17, 1
      %p140 = por %p138, %p139
      %p141 = scmp.ne.s32.totalorder %s130, %s131
      %p142 = scmp.eq.s32.totalorder %s17, 0
      %p143 = por %p141, %p142
      %p144 = scmp.ne.s32.totalorder %s130, %s131
      %p145 = scmp.eq.s32.totalorder %s18, 1
      %p146 = por %p144, %p145
      %p148 = scmp.ne.s32.totalorder %s131, %s147
      %p149 = scmp.eq.s32.totalorder %s18, 0
      %p150 = por %p148, %p149
      %s151 = ssub.s32 %s19, %s38
      %s152 = ssub.s32 %s20, %s34
      %s153 = sor.u32 %s151, %s152
      %s154 = ssub.s32 %s21, %s30
      %s155 = sor.u32 %s153, %s154
      %p156 = scmp.eq.s32.totalorder %s155, 0
      %s158 = sadd.s32 %s157, 1
      %s159 = scalar_select %p156, %s157, %s158
      %p162 = pneg %p156
      %p163 = scmp.eq.s32.totalorder %s12, 1
      %p164 = por %p162, %p163
      %p165 = scmp.ne.s32.totalorder %s157, %s160
      %p166 = scmp.eq.s32.totalorder %s12, 0
      %p167 = por %p165, %p166
      %p168 = scmp.ne.s32.totalorder %s157, %s160
      %p169 = scmp.eq.s32.totalorder %s17, 1
      %p170 = por %p168, %p169
      %p171 = scmp.ne.s32.totalorder %s160, %s161
      %p172 = scmp.eq.s32.totalorder %s17, 0
      %p173 = por %p171, %p172
      %p174 = scmp.ne.s32.totalorder %s160, %s161
      %p175 = scmp.eq.s32.totalorder %s18, 1
      %p176 = por %p174, %p175
      %p178 = scmp.ne.s32.totalorder %s161, %s177
      %p179 = scmp.eq.s32.totalorder %s18, 0
      %p180 = por %p178, %p179
      %s181 = ssub.s32 %s19, %s38
      %s182 = ssub.s32 %s20, %s34
      %s183 = sor.u32 %s181, %s182
      %s184 = ssub.s32 %s21, %s30
      %s185 = sor.u32 %s183, %s184
      %p186 = scmp.eq.s32.totalorder %s185, 0
      %s188 = sadd.s32 %s187, 1
      %s189 = scalar_select %p186, %s187, %s188
      %p192 = pneg %p186
      %p193 = scmp.eq.s32.totalorder %s12, 1
      %p194 = por %p192, %p193
      %p195 = scmp.ne.s32.totalorder %s187, %s190
      %p196 = scmp.eq.s32.totalorder %s12, 0
      %p197 = por %p195, %p196
      %p198 = scmp.ne.s32.totalorder %s187, %s190
      %p199 = scmp.eq.s32.totalorder %s17, 1
      %p200 = por %p198, %p199
      %p201 = scmp.ne.s32.totalorder %s190, %s191
      %p202 = scmp.eq.s32.totalorder %s17, 0
      %p203 = por %p201, %p202
      %p204 = scmp.ne.s32.totalorder %s190, %s191
      %p205 = scmp.eq.s32.totalorder %s18, 1
      %p206 = por %p204, %p205
      %p208 = scmp.ne.s32.totalorder %s191, %s207
      %p209 = scmp.eq.s32.totalorder %s18, 0
      %p210 = por %p208, %p209
      %p211 = scmp.le.s32.totalorder 1, %s12
      %p212 = scmp.lt.s32.totalorder %s12, 3
      %p213 = pnand %p211, %p212
      %p214 = pneg %p213
      // Predicated region
      $region9: #{dfnet_forward.13} parent=5 // pred_check
        _
      $region10: #{dfnet_forward.13} parent=5 // pred_check_branch
        %216 = sbr.rel (%p213) target = $region12
      $region11: #{dfnet_forward.13} parent=5 // pred_region
        %s217 = ssub.s32 %s12, 1
        // Predicated region
        $region13: #{dfnet_forward.13} parent=11 // pred_check
          %p218 = pneg %p59
        $region14: #{dfnet_forward.13} parent=11 // pred_check_branch
          %220 = sbr.rel (%p218) target = $region16
        $region15: #{dfnet_forward.13} parent=11 // pred_region
          %s221 = smul.u32 2, %s23
          %p222 = scmp.lt.s32.totalorder %s22, 0
          %s223 = scalar_select %p222, %s22, 0
          %p224 = scmp.lt.s32.totalorder %s221, 1
          %s225 = scalar_select %p224, %s221, 1
          %s226 = smul.addr %s225, 16
          %s227 = smul.addr %s223, 32
          %s228 = sadd.s32 %s226, %s227
          %s229 = smul.addr %s228, 4
          %s230 = scalar_lea.vmem %s0, %s229
          %s231 = smul.u32 2, %s23
        $region16: #{dfnet_forward.13} parent=11 // pred_fallthru
          _
      $region12: #{dfnet_forward.13} parent=5 // pred_fallthru
        _
      %p232 = scmp.lt.s32.totalorder %s12, 2
      // Predicated region
      $region17: #{dfnet_forward.13} parent=5 // pred_check
        %p233 = pneg %p232
      $region18: #{dfnet_forward.13} parent=5 // pred_check_branch
        %235 = sbr.rel (%p233) target = $region20
      $region19: #{dfnet_forward.13} parent=5 // pred_region
        // Predicated region
        $region21: #{dfnet_forward.13} parent=19 // pred_check
          %p236 = pneg %p81
        $region22: #{dfnet_forward.13} parent=19 // pred_check_branch
          %238 = sbr.rel (%p236) target = $region24
        $region23: #{dfnet_forward.13} parent=19 // pred_region
          %s239 = sand.u32 %s71, 1
          %s240 = sand.u32 %s71, 1
          %s241 = smul.addr %s240, 1024
          %s242 = scalar_lea.vmem [#allocation2], %s241
          %s243 = smul.addr %s19, 512
          %s244 = sadd.s32 %s21, %s243
          %s245 = smul.addr %s244, 4
          %s246 = scalar_lea.vmem %s1, %s245
          // Predicated region
          $region25: #{dfnet_forward.13} parent=23 // pred_check
            _
          $region26: #{dfnet_forward.13} parent=23 // pred_check_branch
            %248 = sbr.rel (0) target = $region28
          $region27: #{dfnet_forward.13} parent=23 // pred_region
            // Predicated region
            $region29: #{dfnet_forward.13} parent=27 // pred_check
              _
            $region30: #{dfnet_forward.13} parent=27 // pred_check_branch
              %250 = sbr.rel target = $region32
            $region31: #{dfnet_forward.13} parent=27 // pred_region
              // Predicated region
              $region44: #{dfnet_forward.13} parent=31 // pred_check
                _
              $region45: #{dfnet_forward.13} parent=31 // pred_check_branch
                %776 = sbr.rel (0) target = $region47
              $region46: #{dfnet_forward.13} parent=31 // pred_region
                loop: start=0, step=1, limit=1
                $region48: #{dfnet_forward.13} parent=46 // loop_pre_header
                  _
                $region49: #{dfnet_forward.13} parent=46 // loop_header
                  %s778 = sphi 0, %s782
                  %p779 = scmp.ge.s32.totalorder %s778, 1
                  %s783 = sphi %s246, %s246
                  %s784 = sphi %s242, %s242
                $region50: #{dfnet_forward.13} parent=46 // loop_header_branch
                  %781 = sbr.rel (%p779) target = $region54
                $region51: #{dfnet_forward.13} parent=46 // loop_body
                  _
                $region52: #{dfnet_forward.13} parent=46 // loop_footer
                  %s782 = sadd.s32 1, %s778
                $region53: #{dfnet_forward.13} parent=46 // loop_footer_branch
                  %777 = sbr.rel target = $region49
                $region54: #{dfnet_forward.13} parent=46 // loop_exit
                  _
                %s786 = ssub.s32 16, 1
                loop: start=0, step=1, limit=1
                $region55: #{dfnet_forward.13} parent=46 // loop_pre_header
                  _
                $region56: #{dfnet_forward.13} parent=46 // loop_header
                  %s788 = sphi 0, %s792
                  %p789 = scmp.ge.s32.totalorder %s788, 1
                  %s793 = sphi %s246, %s246
                  %s794 = sphi %s242, %s242
                $region57: #{dfnet_forward.13} parent=46 // loop_header_branch
                  %791 = sbr.rel (%p789) target = $region61
                $region58: #{dfnet_forward.13} parent=46 // loop_body
                  %v795 = vld [vmem:[%s793] sm:%s786]
                  %796 = vst [vmem:[%s794] sm:%s786] %v795
                  %v797 = vld [vmem:[%s793 + $0x8] sm:%s786]
                  %798 = vst [vmem:[%s794 + $0x4] sm:%s786] %v797
                  %v799 = vld [vmem:[%s793 + $0x10] sm:%s786]
                  %800 = vst [vmem:[%s794 + $0x8] sm:%s786] %v799
                  %v801 = vld [vmem:[%s793 + $0x18] sm:%s786]
                  %802 = vst [vmem:[%s794 + $0xc] sm:%s786] %v801
                  %v803 = vld [vmem:[%s793 + $0x20] sm:%s786]
                  %804 = vst [vmem:[%s794 + $0x10] sm:%s786] %v803
                  %v805 = vld [vmem:[%s793 + $0x28] sm:%s786]
                  %806 = vst [vmem:[%s794 + $0x14] sm:%s786] %v805
                  %v807 = vld [vmem:[%s793 + $0x30] sm:%s786]
                  %808 = vst [vmem:[%s794 + $0x18] sm:%s786] %v807
                  %v809 = vld [vmem:[%s793 + $0x38] sm:%s786]
                  %810 = vst [vmem:[%s794 + $0x1c] sm:%s786] %v809
                  %v811 = vld [vmem:[%s793 + $0x40] sm:%s786]
                  %812 = vst [vmem:[%s794 + $0x20] sm:%s786] %v811
                  %v813 = vld [vmem:[%s793 + $0x48] sm:%s786]
                  %814 = vst [vmem:[%s794 + $0x24] sm:%s786] %v813
                  %v815 = vld [vmem:[%s793 + $0x50] sm:%s786]
                  %816 = vst [vmem:[%s794 + $0x28] sm:%s786] %v815
                  %v817 = vld [vmem:[%s793 + $0x58] sm:%s786]
                  %818 = vst [vmem:[%s794 + $0x2c] sm:%s786] %v817
                  %v819 = vld [vmem:[%s793 + $0x60] sm:%s786]
                  %820 = vst [vmem:[%s794 + $0x30] sm:%s786] %v819
                  %v821 = vld [vmem:[%s793 + $0x68] sm:%s786]
                  %822 = vst [vmem:[%s794 + $0x34] sm:%s786] %v821
                  %v823 = vld [vmem:[%s793 + $0x70] sm:%s786]
                  %824 = vst [vmem:[%s794 + $0x38] sm:%s786] %v823
                  %v825 = vld [vmem:[%s793 + $0x78] sm:%s786]
                  %826 = vst [vmem:[%s794 + $0x3c] sm:%s786] %v825
                  %v827 = vld [vmem:[%s793 + $0x80] sm:%s786]
                  %828 = vst [vmem:[%s794 + $0x40] sm:%s786] %v827
                  %v829 = vld [vmem:[%s793 + $0x88] sm:%s786]
                  %830 = vst [vmem:[%s794 + $0x44] sm:%s786] %v829
                  %v831 = vld [vmem:[%s793 + $0x90] sm:%s786]
                  %832 = vst [vmem:[%s794 + $0x48] sm:%s786] %v831
                  %v833 = vld [vmem:[%s793 + $0x98] sm:%s786]
                  %834 = vst [vmem:[%s794 + $0x4c] sm:%s786] %v833
                  %v835 = vld [vmem:[%s793 + $0xa0] sm:%s786]
                  %836 = vst [vmem:[%s794 + $0x50] sm:%s786] %v835
                  %v837 = vld [vmem:[%s793 + $0xa8] sm:%s786]
                  %838 = vst [vmem:[%s794 + $0x54] sm:%s786] %v837
                  %v839 = vld [vmem:[%s793 + $0xb0] sm:%s786]
                  %840 = vst [vmem:[%s794 + $0x58] sm:%s786] %v839
                  %v841 = vld [vmem:[%s793 + $0xb8] sm:%s786]
                  %842 = vst [vmem:[%s794 + $0x5c] sm:%s786] %v841
                  %v843 = vld [vmem:[%s793 + $0xc0] sm:%s786]
                  %844 = vst [vmem:[%s794 + $0x60] sm:%s786] %v843
                  %v845 = vld [vmem:[%s793 + $0xc8] sm:%s786]
                  %846 = vst [vmem:[%s794 + $0x64] sm:%s786] %v845
                  %v847 = vld [vmem:[%s793 + $0xd0] sm:%s786]
                  %848 = vst [vmem:[%s794 + $0x68] sm:%s786] %v847
                  %v849 = vld [vmem:[%s793 + $0xd8] sm:%s786]
                  %850 = vst [vmem:[%s794 + $0x6c] sm:%s786] %v849
                  %v851 = vld [vmem:[%s793 + $0xe0] sm:%s786]
                  %852 = vst [vmem:[%s794 + $0x70] sm:%s786] %v851
                  %v853 = vld [vmem:[%s793 + $0xe8] sm:%s786]
                  %854 = vst [vmem:[%s794 + $0x74] sm:%s786] %v853
                  %v855 = vld [vmem:[%s793 + $0xf0] sm:%s786]
                  %856 = vst [vmem:[%s794 + $0x78] sm:%s786] %v855
                  %v857 = vld [vmem:[%s793 + $0xf8] sm:%s786]
                  %858 = vst [vmem:[%s794 + $0x7c] sm:%s786] %v857
                  %v859 = vld [vmem:[%s793 + $0x100] sm:%s786]
                  %860 = vst [vmem:[%s794 + $0x80] sm:%s786] %v859
                  %v861 = vld [vmem:[%s793 + $0x108] sm:%s786]
                  %862 = vst [vmem:[%s794 + $0x84] sm:%s786] %v861
                  %v863 = vld [vmem:[%s793 + $0x110] sm:%s786]
                  %864 = vst [vmem:[%s794 + $0x88] sm:%s786] %v863
                  %v865 = vld [vmem:[%s793 + $0x118] sm:%s786]
                  %866 = vst [vmem:[%s794 + $0x8c] sm:%s786] %v865
                  %v867 = vld [vmem:[%s793 + $0x120] sm:%s786]
                  %868 = vst [vmem:[%s794 + $0x90] sm:%s786] %v867
                  %v869 = vld [vmem:[%s793 + $0x128] sm:%s786]
                  %870 = vst [vmem:[%s794 + $0x94] sm:%s786] %v869
                  %v871 = vld [vmem:[%s793 + $0x130] sm:%s786]
                  %872 = vst [vmem:[%s794 + $0x98] sm:%s786] %v871
                  %v873 = vld [vmem:[%s793 + $0x138] sm:%s786]
                  %874 = vst [vmem:[%s794 + $0x9c] sm:%s786] %v873
                  %v875 = vld [vmem:[%s793 + $0x140] sm:%s786]
                  %876 = vst [vmem:[%s794 + $0xa0] sm:%s786] %v875
                  %v877 = vld [vmem:[%s793 + $0x148] sm:%s786]
                  %878 = vst [vmem:[%s794 + $0xa4] sm:%s786] %v877
                  %v879 = vld [vmem:[%s793 + $0x150] sm:%s786]
                  %880 = vst [vmem:[%s794 + $0xa8] sm:%s786] %v879
                  %v881 = vld [vmem:[%s793 + $0x158] sm:%s786]
                  %882 = vst [vmem:[%s794 + $0xac] sm:%s786] %v881
                  %v883 = vld [vmem:[%s793 + $0x160] sm:%s786]
                  %884 = vst [vmem:[%s794 + $0xb0] sm:%s786] %v883
                  %v885 = vld [vmem:[%s793 + $0x168] sm:%s786]
                  %886 = vst [vmem:[%s794 + $0xb4] sm:%s786] %v885
                  %v887 = vld [vmem:[%s793 + $0x170] sm:%s786]
                  %888 = vst [vmem:[%s794 + $0xb8] sm:%s786] %v887
                  %v889 = vld [vmem:[%s793 + $0x178] sm:%s786]
                  %890 = vst [vmem:[%s794 + $0xbc] sm:%s786] %v889
                  %v891 = vld [vmem:[%s793 + $0x180] sm:%s786]
                  %892 = vst [vmem:[%s794 + $0xc0] sm:%s786] %v891
                  %v893 = vld [vmem:[%s793 + $0x188] sm:%s786]
                  %894 = vst [vmem:[%s794 + $0xc4] sm:%s786] %v893
                  %v895 = vld [vmem:[%s793 + $0x190] sm:%s786]
                  %896 = vst [vmem:[%s794 + $0xc8] sm:%s786] %v895
                  %v897 = vld [vmem:[%s793 + $0x198] sm:%s786]
                  %898 = vst [vmem:[%s794 + $0xcc] sm:%s786] %v897
                  %v899 = vld [vmem:[%s793 + $0x1a0] sm:%s786]
                  %900 = vst [vmem:[%s794 + $0xd0] sm:%s786] %v899
                  %v901 = vld [vmem:[%s793 + $0x1a8] sm:%s786]
                  %902 = vst [vmem:[%s794 + $0xd4] sm:%s786] %v901
                  %v903 = vld [vmem:[%s793 + $0x1b0] sm:%s786]
                  %904 = vst [vmem:[%s794 + $0xd8] sm:%s786] %v903
                  %v905 = vld [vmem:[%s793 + $0x1b8] sm:%s786]
                  %906 = vst [vmem:[%s794 + $0xdc] sm:%s786] %v905
                  %v907 = vld [vmem:[%s793 + $0x1c0] sm:%s786]
                  %908 = vst [vmem:[%s794 + $0xe0] sm:%s786] %v907
                  %v909 = vld [vmem:[%s793 + $0x1c8] sm:%s786]
                  %910 = vst [vmem:[%s794 + $0xe4] sm:%s786] %v909
                  %v911 = vld [vmem:[%s793 + $0x1d0] sm:%s786]
                  %912 = vst [vmem:[%s794 + $0xe8] sm:%s786] %v911
                  %v913 = vld [vmem:[%s793 + $0x1d8] sm:%s786]
                  %914 = vst [vmem:[%s794 + $0xec] sm:%s786] %v913
                  %v915 = vld [vmem:[%s793 + $0x1e0] sm:%s786]
                  %916 = vst [vmem:[%s794 + $0xf0] sm:%s786] %v915
                  %v917 = vld [vmem:[%s793 + $0x1e8] sm:%s786]
                  %918 = vst [vmem:[%s794 + $0xf4] sm:%s786] %v917
                  %v919 = vld [vmem:[%s793 + $0x1f0] sm:%s786]
                  %920 = vst [vmem:[%s794 + $0xf8] sm:%s786] %v919
                  %v921 = vld [vmem:[%s793 + $0x1f8] sm:%s786]
                  %922 = vst [vmem:[%s794 + $0xfc] sm:%s786] %v921
                  %v923 = vld [vmem:[%s793 + $0x200] sm:%s786]
                  %924 = vst [vmem:[%s794 + $0x100] sm:%s786] %v923
                  %v925 = vld [vmem:[%s793 + $0x208] sm:%s786]
                  %926 = vst [vmem:[%s794 + $0x104] sm:%s786] %v925
                  %v927 = vld [vmem:[%s793 + $0x210] sm:%s786]
                  %928 = vst [vmem:[%s794 + $0x108] sm:%s786] %v927
                  %v929 = vld [vmem:[%s793 + $0x218] sm:%s786]
                  %930 = vst [vmem:[%s794 + $0x10c] sm:%s786] %v929
                  %v931 = vld [vmem:[%s793 + $0x220] sm:%s786]
                  %932 = vst [vmem:[%s794 + $0x110] sm:%s786] %v931
                  %v933 = vld [vmem:[%s793 + $0x228] sm:%s786]
                  %934 = vst [vmem:[%s794 + $0x114] sm:%s786] %v933
                  %v935 = vld [vmem:[%s793 + $0x230] sm:%s786]
                  %936 = vst [vmem:[%s794 + $0x118] sm:%s786] %v935
                  %v937 = vld [vmem:[%s793 + $0x238] sm:%s786]
                  %938 = vst [vmem:[%s794 + $0x11c] sm:%s786] %v937
                  %v939 = vld [vmem:[%s793 + $0x240] sm:%s786]
                  %940 = vst [vmem:[%s794 + $0x120] sm:%s786] %v939
                  %v941 = vld [vmem:[%s793 + $0x248] sm:%s786]
                  %942 = vst [vmem:[%s794 + $0x124] sm:%s786] %v941
                  %v943 = vld [vmem:[%s793 + $0x250] sm:%s786]
                  %944 = vst [vmem:[%s794 + $0x128] sm:%s786] %v943
                  %v945 = vld [vmem:[%s793 + $0x258] sm:%s786]
                  %946 = vst [vmem:[%s794 + $0x12c] sm:%s786] %v945
                  %v947 = vld [vmem:[%s793 + $0x260] sm:%s786]
                  %948 = vst [vmem:[%s794 + $0x130] sm:%s786] %v947
                  %v949 = vld [vmem:[%s793 + $0x268] sm:%s786]
                  %950 = vst [vmem:[%s794 + $0x134] sm:%s786] %v949
                  %v951 = vld [vmem:[%s793 + $0x270] sm:%s786]
                  %952 = vst [vmem:[%s794 + $0x138] sm:%s786] %v951
                  %v953 = vld [vmem:[%s793 + $0x278] sm:%s786]
                  %954 = vst [vmem:[%s794 + $0x13c] sm:%s786] %v953
                  %v955 = vld [vmem:[%s793 + $0x280] sm:%s786]
                  %956 = vst [vmem:[%s794 + $0x140] sm:%s786] %v955
                  %v957 = vld [vmem:[%s793 + $0x288] sm:%s786]
                  %958 = vst [vmem:[%s794 + $0x144] sm:%s786] %v957
                  %v959 = vld [vmem:[%s793 + $0x290] sm:%s786]
                  %960 = vst [vmem:[%s794 + $0x148] sm:%s786] %v959
                  %v961 = vld [vmem:[%s793 + $0x298] sm:%s786]
                  %962 = vst [vmem:[%s794 + $0x14c] sm:%s786] %v961
                  %v963 = vld [vmem:[%s793 + $0x2a0] sm:%s786]
                  %964 = vst [vmem:[%s794 + $0x150] sm:%s786] %v963
                  %v965 = vld [vmem:[%s793 + $0x2a8] sm:%s786]
                  %966 = vst [vmem:[%s794 + $0x154] sm:%s786] %v965
                  %v967 = vld [vmem:[%s793 + $0x2b0] sm:%s786]
                  %968 = vst [vmem:[%s794 + $0x158] sm:%s786] %v967
                  %v969 = vld [vmem:[%s793 + $0x2b8] sm:%s786]
                  %970 = vst [vmem:[%s794 + $0x15c] sm:%s786] %v969
                  %v971 = vld [vmem:[%s793 + $0x2c0] sm:%s786]
                  %972 = vst [vmem:[%s794 + $0x160] sm:%s786] %v971
                  %v973 = vld [vmem:[%s793 + $0x2c8] sm:%s786]
                  %974 = vst [vmem:[%s794 + $0x164] sm:%s786] %v973
                  %v975 = vld [vmem:[%s793 + $0x2d0] sm:%s786]
                  %976 = vst [vmem:[%s794 + $0x168] sm:%s786] %v975
                  %v977 = vld [vmem:[%s793 + $0x2d8] sm:%s786]
                  %978 = vst [vmem:[%s794 + $0x16c] sm:%s786] %v977
                  %v979 = vld [vmem:[%s793 + $0x2e0] sm:%s786]
                  %980 = vst [vmem:[%s794 + $0x170] sm:%s786] %v979
                  %v981 = vld [vmem:[%s793 + $0x2e8] sm:%s786]
                  %982 = vst [vmem:[%s794 + $0x174] sm:%s786] %v981
                  %v983 = vld [vmem:[%s793 + $0x2f0] sm:%s786]
                  %984 = vst [vmem:[%s794 + $0x178] sm:%s786] %v983
                  %v985 = vld [vmem:[%s793 + $0x2f8] sm:%s786]
                  %986 = vst [vmem:[%s794 + $0x17c] sm:%s786] %v985
                  %v987 = vld [vmem:[%s793 + $0x300] sm:%s786]
                  %988 = vst [vmem:[%s794 + $0x180] sm:%s786] %v987
                  %v989 = vld [vmem:[%s793 + $0x308] sm:%s786]
                  %990 = vst [vmem:[%s794 + $0x184] sm:%s786] %v989
                  %v991 = vld [vmem:[%s793 + $0x310] sm:%s786]
                  %992 = vst [vmem:[%s794 + $0x188] sm:%s786] %v991
                  %v993 = vld [vmem:[%s793 + $0x318] sm:%s786]
                  %994 = vst [vmem:[%s794 + $0x18c] sm:%s786] %v993
                  %v995 = vld [vmem:[%s793 + $0x320] sm:%s786]
                  %996 = vst [vmem:[%s794 + $0x190] sm:%s786] %v995
                  %v997 = vld [vmem:[%s793 + $0x328] sm:%s786]
                  %998 = vst [vmem:[%s794 + $0x194] sm:%s786] %v997
                  %v999 = vld [vmem:[%s793 + $0x330] sm:%s786]
                  %1000 = vst [vmem:[%s794 + $0x198] sm:%s786] %v999
                  %v1001 = vld [vmem:[%s793 + $0x338] sm:%s786]
                  %1002 = vst [vmem:[%s794 + $0x19c] sm:%s786] %v1001
                  %v1003 = vld [vmem:[%s793 + $0x340] sm:%s786]
                  %1004 = vst [vmem:[%s794 + $0x1a0] sm:%s786] %v1003
                  %v1005 = vld [vmem:[%s793 + $0x348] sm:%s786]
                  %1006 = vst [vmem:[%s794 + $0x1a4] sm:%s786] %v1005
                  %v1007 = vld [vmem:[%s793 + $0x350] sm:%s786]
                  %1008 = vst [vmem:[%s794 + $0x1a8] sm:%s786] %v1007
                  %v1009 = vld [vmem:[%s793 + $0x358] sm:%s786]
                  %1010 = vst [vmem:[%s794 + $0x1ac] sm:%s786] %v1009
                  %v1011 = vld [vmem:[%s793 + $0x360] sm:%s786]
                  %1012 = vst [vmem:[%s794 + $0x1b0] sm:%s786] %v1011
                  %v1013 = vld [vmem:[%s793 + $0x368] sm:%s786]
                  %1014 = vst [vmem:[%s794 + $0x1b4] sm:%s786] %v1013
                  %v1015 = vld [vmem:[%s793 + $0x370] sm:%s786]
                  %1016 = vst [vmem:[%s794 + $0x1b8] sm:%s786] %v1015
                  %v1017 = vld [vmem:[%s793 + $0x378] sm:%s786]
                  %1018 = vst [vmem:[%s794 + $0x1bc] sm:%s786] %v1017
                  %v1019 = vld [vmem:[%s793 + $0x380] sm:%s786]
                  %1020 = vst [vmem:[%s794 + $0x1c0] sm:%s786] %v1019
                  %v1021 = vld [vmem:[%s793 + $0x388] sm:%s786]
                  %1022 = vst [vmem:[%s794 + $0x1c4] sm:%s786] %v1021
                  %v1023 = vld [vmem:[%s793 + $0x390] sm:%s786]
                  %1024 = vst [vmem:[%s794 + $0x1c8] sm:%s786] %v1023
                  %v1025 = vld [vmem:[%s793 + $0x398] sm:%s786]
                  %1026 = vst [vmem:[%s794 + $0x1cc] sm:%s786] %v1025
                  %v1027 = vld [vmem:[%s793 + $0x3a0] sm:%s786]
                  %1028 = vst [vmem:[%s794 + $0x1d0] sm:%s786] %v1027
                  %v1029 = vld [vmem:[%s793 + $0x3a8] sm:%s786]
                  %1030 = vst [vmem:[%s794 + $0x1d4] sm:%s786] %v1029
                  %v1031 = vld [vmem:[%s793 + $0x3b0] sm:%s786]
                  %1032 = vst [vmem:[%s794 + $0x1d8] sm:%s786] %v1031
                  %v1033 = vld [vmem:[%s793 + $0x3b8] sm:%s786]
                  %1034 = vst [vmem:[%s794 + $0x1dc] sm:%s786] %v1033
                  %v1035 = vld [vmem:[%s793 + $0x3c0] sm:%s786]
                  %1036 = vst [vmem:[%s794 + $0x1e0] sm:%s786] %v1035
                  %v1037 = vld [vmem:[%s793 + $0x3c8] sm:%s786]
                  %1038 = vst [vmem:[%s794 + $0x1e4] sm:%s786] %v1037
                  %v1039 = vld [vmem:[%s793 + $0x3d0] sm:%s786]
                  %1040 = vst [vmem:[%s794 + $0x1e8] sm:%s786] %v1039
                  %v1041 = vld [vmem:[%s793 + $0x3d8] sm:%s786]
                  %1042 = vst [vmem:[%s794 + $0x1ec] sm:%s786] %v1041
                  %v1043 = vld [vmem:[%s793 + $0x3e0] sm:%s786]
                  %1044 = vst [vmem:[%s794 + $0x1f0] sm:%s786] %v1043
                  %v1045 = vld [vmem:[%s793 + $0x3e8] sm:%s786]
                  %1046 = vst [vmem:[%s794 + $0x1f4] sm:%s786] %v1045
                  %v1047 = vld [vmem:[%s793 + $0x3f0] sm:%s786]
                  %1048 = vst [vmem:[%s794 + $0x1f8] sm:%s786] %v1047
                  %v1049 = vld [vmem:[%s793 + $0x3f8] sm:%s786]
                  %1050 = vst [vmem:[%s794 + $0x1fc] sm:%s786] %v1049
                  %v1051 = vld [vmem:[%s793 + $0x400] sm:%s786]
                  %1052 = vst [vmem:[%s794 + $0x200] sm:%s786] %v1051
                  %v1053 = vld [vmem:[%s793 + $0x408] sm:%s786]
                  %1054 = vst [vmem:[%s794 + $0x204] sm:%s786] %v1053
                  %v1055 = vld [vmem:[%s793 + $0x410] sm:%s786]
                  %1056 = vst [vmem:[%s794 + $0x208] sm:%s786] %v1055
                  %v1057 = vld [vmem:[%s793 + $0x418] sm:%s786]
                  %1058 = vst [vmem:[%s794 + $0x20c] sm:%s786] %v1057
                  %v1059 = vld [vmem:[%s793 + $0x420] sm:%s786]
                  %1060 = vst [vmem:[%s794 + $0x210] sm:%s786] %v1059
                  %v1061 = vld [vmem:[%s793 + $0x428] sm:%s786]
                  %1062 = vst [vmem:[%s794 + $0x214] sm:%s786] %v1061
                  %v1063 = vld [vmem:[%s793 + $0x430] sm:%s786]
                  %1064 = vst [vmem:[%s794 + $0x218] sm:%s786] %v1063
                  %v1065 = vld [vmem:[%s793 + $0x438] sm:%s786]
                  %1066 = vst [vmem:[%s794 + $0x21c] sm:%s786] %v1065
                  %v1067 = vld [vmem:[%s793 + $0x440] sm:%s786]
                  %1068 = vst [vmem:[%s794 + $0x220] sm:%s786] %v1067
                  %v1069 = vld [vmem:[%s793 + $0x448] sm:%s786]
                  %1070 = vst [vmem:[%s794 + $0x224] sm:%s786] %v1069
                  %v1071 = vld [vmem:[%s793 + $0x450] sm:%s786]
                  %1072 = vst [vmem:[%s794 + $0x228] sm:%s786] %v1071
                  %v1073 = vld [vmem:[%s793 + $0x458] sm:%s786]
                  %1074 = vst [vmem:[%s794 + $0x22c] sm:%s786] %v1073
                  %v1075 = vld [vmem:[%s793 + $0x460] sm:%s786]
                  %1076 = vst [vmem:[%s794 + $0x230] sm:%s786] %v1075
                  %v1077 = vld [vmem:[%s793 + $0x468] sm:%s786]
                  %1078 = vst [vmem:[%s794 + $0x234] sm:%s786] %v1077
                  %v1079 = vld [vmem:[%s793 + $0x470] sm:%s786]
                  %1080 = vst [vmem:[%s794 + $0x238] sm:%s786] %v1079
                  %v1081 = vld [vmem:[%s793 + $0x478] sm:%s786]
                  %1082 = vst [vmem:[%s794 + $0x23c] sm:%s786] %v1081
                  %v1083 = vld [vmem:[%s793 + $0x480] sm:%s786]
                  %1084 = vst [vmem:[%s794 + $0x240] sm:%s786] %v1083
                  %v1085 = vld [vmem:[%s793 + $0x488] sm:%s786]
                  %1086 = vst [vmem:[%s794 + $0x244] sm:%s786] %v1085
                  %v1087 = vld [vmem:[%s793 + $0x490] sm:%s786]
                  %1088 = vst [vmem:[%s794 + $0x248] sm:%s786] %v1087
                  %v1089 = vld [vmem:[%s793 + $0x498] sm:%s786]
                  %1090 = vst [vmem:[%s794 + $0x24c] sm:%s786] %v1089
                  %v1091 = vld [vmem:[%s793 + $0x4a0] sm:%s786]
                  %1092 = vst [vmem:[%s794 + $0x250] sm:%s786] %v1091
                  %v1093 = vld [vmem:[%s793 + $0x4a8] sm:%s786]
                  %1094 = vst [vmem:[%s794 + $0x254] sm:%s786] %v1093
                  %v1095 = vld [vmem:[%s793 + $0x4b0] sm:%s786]
                  %1096 = vst [vmem:[%s794 + $0x258] sm:%s786] %v1095
                  %v1097 = vld [vmem:[%s793 + $0x4b8] sm:%s786]
                  %1098 = vst [vmem:[%s794 + $0x25c] sm:%s786] %v1097
                  %v1099 = vld [vmem:[%s793 + $0x4c0] sm:%s786]
                  %1100 = vst [vmem:[%s794 + $0x260] sm:%s786] %v1099
                  %v1101 = vld [vmem:[%s793 + $0x4c8] sm:%s786]
                  %1102 = vst [vmem:[%s794 + $0x264] sm:%s786] %v1101
                  %v1103 = vld [vmem:[%s793 + $0x4d0] sm:%s786]
                  %1104 = vst [vmem:[%s794 + $0x268] sm:%s786] %v1103
                  %v1105 = vld [vmem:[%s793 + $0x4d8] sm:%s786]
                  %1106 = vst [vmem:[%s794 + $0x26c] sm:%s786] %v1105
                  %v1107 = vld [vmem:[%s793 + $0x4e0] sm:%s786]
                  %1108 = vst [vmem:[%s794 + $0x270] sm:%s786] %v1107
                  %v1109 = vld [vmem:[%s793 + $0x4e8] sm:%s786]
                  %1110 = vst [vmem:[%s794 + $0x274] sm:%s786] %v1109
                  %v1111 = vld [vmem:[%s793 + $0x4f0] sm:%s786]
                  %1112 = vst [vmem:[%s794 + $0x278] sm:%s786] %v1111
                  %v1113 = vld [vmem:[%s793 + $0x4f8] sm:%s786]
                  %1114 = vst [vmem:[%s794 + $0x27c] sm:%s786] %v1113
                  %v1115 = vld [vmem:[%s793 + $0x500] sm:%s786]
                  %1116 = vst [vmem:[%s794 + $0x280] sm:%s786] %v1115
                  %v1117 = vld [vmem:[%s793 + $0x508] sm:%s786]
                  %1118 = vst [vmem:[%s794 + $0x284] sm:%s786] %v1117
                  %v1119 = vld [vmem:[%s793 + $0x510] sm:%s786]
                  %1120 = vst [vmem:[%s794 + $0x288] sm:%s786] %v1119
                  %v1121 = vld [vmem:[%s793 + $0x518] sm:%s786]
                  %1122 = vst [vmem:[%s794 + $0x28c] sm:%s786] %v1121
                  %v1123 = vld [vmem:[%s793 + $0x520] sm:%s786]
                  %1124 = vst [vmem:[%s794 + $0x290] sm:%s786] %v1123
                  %v1125 = vld [vmem:[%s793 + $0x528] sm:%s786]
                  %1126 = vst [vmem:[%s794 + $0x294] sm:%s786] %v1125
                  %v1127 = vld [vmem:[%s793 + $0x530] sm:%s786]
                  %1128 = vst [vmem:[%s794 + $0x298] sm:%s786] %v1127
                  %v1129 = vld [vmem:[%s793 + $0x538] sm:%s786]
                  %1130 = vst [vmem:[%s794 + $0x29c] sm:%s786] %v1129
                  %v1131 = vld [vmem:[%s793 + $0x540] sm:%s786]
                  %1132 = vst [vmem:[%s794 + $0x2a0] sm:%s786] %v1131
                  %v1133 = vld [vmem:[%s793 + $0x548] sm:%s786]
                  %1134 = vst [vmem:[%s794 + $0x2a4] sm:%s786] %v1133
                  %v1135 = vld [vmem:[%s793 + $0x550] sm:%s786]
                  %1136 = vst [vmem:[%s794 + $0x2a8] sm:%s786] %v1135
                  %v1137 = vld [vmem:[%s793 + $0x558] sm:%s786]
                  %1138 = vst [vmem:[%s794 + $0x2ac] sm:%s786] %v1137
                  %v1139 = vld [vmem:[%s793 + $0x560] sm:%s786]
                  %1140 = vst [vmem:[%s794 + $0x2b0] sm:%s786] %v1139
                  %v1141 = vld [vmem:[%s793 + $0x568] sm:%s786]
                  %1142 = vst [vmem:[%s794 + $0x2b4] sm:%s786] %v1141
                  %v1143 = vld [vmem:[%s793 + $0x570] sm:%s786]
                  %1144 = vst [vmem:[%s794 + $0x2b8] sm:%s786] %v1143
                  %v1145 = vld [vmem:[%s793 + $0x578] sm:%s786]
                  %1146 = vst [vmem:[%s794 + $0x2bc] sm:%s786] %v1145
                  %v1147 = vld [vmem:[%s793 + $0x580] sm:%s786]
                  %1148 = vst [vmem:[%s794 + $0x2c0] sm:%s786] %v1147
                  %v1149 = vld [vmem:[%s793 + $0x588] sm:%s786]
                  %1150 = vst [vmem:[%s794 + $0x2c4] sm:%s786] %v1149
                  %v1151 = vld [vmem:[%s793 + $0x590] sm:%s786]
                  %1152 = vst [vmem:[%s794 + $0x2c8] sm:%s786] %v1151
                  %v1153 = vld [vmem:[%s793 + $0x598] sm:%s786]
                  %1154 = vst [vmem:[%s794 + $0x2cc] sm:%s786] %v1153
                  %v1155 = vld [vmem:[%s793 + $0x5a0] sm:%s786]
                  %1156 = vst [vmem:[%s794 + $0x2d0] sm:%s786] %v1155
                  %v1157 = vld [vmem:[%s793 + $0x5a8] sm:%s786]
                  %1158 = vst [vmem:[%s794 + $0x2d4] sm:%s786] %v1157
                  %v1159 = vld [vmem:[%s793 + $0x5b0] sm:%s786]
                  %1160 = vst [vmem:[%s794 + $0x2d8] sm:%s786] %v1159
                  %v1161 = vld [vmem:[%s793 + $0x5b8] sm:%s786]
                  %1162 = vst [vmem:[%s794 + $0x2dc] sm:%s786] %v1161
                  %v1163 = vld [vmem:[%s793 + $0x5c0] sm:%s786]
                  %1164 = vst [vmem:[%s794 + $0x2e0] sm:%s786] %v1163
                  %v1165 = vld [vmem:[%s793 + $0x5c8] sm:%s786]
                  %1166 = vst [vmem:[%s794 + $0x2e4] sm:%s786] %v1165
                  %v1167 = vld [vmem:[%s793 + $0x5d0] sm:%s786]
                  %1168 = vst [vmem:[%s794 + $0x2e8] sm:%s786] %v1167
                  %v1169 = vld [vmem:[%s793 + $0x5d8] sm:%s786]
                  %1170 = vst [vmem:[%s794 + $0x2ec] sm:%s786] %v1169
                  %v1171 = vld [vmem:[%s793 + $0x5e0] sm:%s786]
                  %1172 = vst [vmem:[%s794 + $0x2f0] sm:%s786] %v1171
                  %v1173 = vld [vmem:[%s793 + $0x5e8] sm:%s786]
                  %1174 = vst [vmem:[%s794 + $0x2f4] sm:%s786] %v1173
                  %v1175 = vld [vmem:[%s793 + $0x5f0] sm:%s786]
                  %1176 = vst [vmem:[%s794 + $0x2f8] sm:%s786] %v1175
                  %v1177 = vld [vmem:[%s793 + $0x5f8] sm:%s786]
                  %1178 = vst [vmem:[%s794 + $0x2fc] sm:%s786] %v1177
                  %v1179 = vld [vmem:[%s793 + $0x600] sm:%s786]
                  %1180 = vst [vmem:[%s794 + $0x300] sm:%s786] %v1179
                  %v1181 = vld [vmem:[%s793 + $0x608] sm:%s786]
                  %1182 = vst [vmem:[%s794 + $0x304] sm:%s786] %v1181
                  %v1183 = vld [vmem:[%s793 + $0x610] sm:%s786]
                  %1184 = vst [vmem:[%s794 + $0x308] sm:%s786] %v1183
                  %v1185 = vld [vmem:[%s793 + $0x618] sm:%s786]
                  %1186 = vst [vmem:[%s794 + $0x30c] sm:%s786] %v1185
                  %v1187 = vld [vmem:[%s793 + $0x620] sm:%s786]
                  %1188 = vst [vmem:[%s794 + $0x310] sm:%s786] %v1187
                  %v1189 = vld [vmem:[%s793 + $0x628] sm:%s786]
                  %1190 = vst [vmem:[%s794 + $0x314] sm:%s786] %v1189
                  %v1191 = vld [vmem:[%s793 + $0x630] sm:%s786]
                  %1192 = vst [vmem:[%s794 + $0x318] sm:%s786] %v1191
                  %v1193 = vld [vmem:[%s793 + $0x638] sm:%s786]
                  %1194 = vst [vmem:[%s794 + $0x31c] sm:%s786] %v1193
                  %v1195 = vld [vmem:[%s793 + $0x640] sm:%s786]
                  %1196 = vst [vmem:[%s794 + $0x320] sm:%s786] %v1195
                  %v1197 = vld [vmem:[%s793 + $0x648] sm:%s786]
                  %1198 = vst [vmem:[%s794 + $0x324] sm:%s786] %v1197
                  %v1199 = vld [vmem:[%s793 + $0x650] sm:%s786]
                  %1200 = vst [vmem:[%s794 + $0x328] sm:%s786] %v1199
                  %v1201 = vld [vmem:[%s793 + $0x658] sm:%s786]
                  %1202 = vst [vmem:[%s794 + $0x32c] sm:%s786] %v1201
                  %v1203 = vld [vmem:[%s793 + $0x660] sm:%s786]
                  %1204 = vst [vmem:[%s794 + $0x330] sm:%s786] %v1203
                  %v1205 = vld [vmem:[%s793 + $0x668] sm:%s786]
                  %1206 = vst [vmem:[%s794 + $0x334] sm:%s786] %v1205
                  %v1207 = vld [vmem:[%s793 + $0x670] sm:%s786]
                  %1208 = vst [vmem:[%s794 + $0x338] sm:%s786] %v1207
                  %v1209 = vld [vmem:[%s793 + $0x678] sm:%s786]
                  %1210 = vst [vmem:[%s794 + $0x33c] sm:%s786] %v1209
                  %v1211 = vld [vmem:[%s793 + $0x680] sm:%s786]
                  %1212 = vst [vmem:[%s794 + $0x340] sm:%s786] %v1211
                  %v1213 = vld [vmem:[%s793 + $0x688] sm:%s786]
                  %1214 = vst [vmem:[%s794 + $0x344] sm:%s786] %v1213
                  %v1215 = vld [vmem:[%s793 + $0x690] sm:%s786]
                  %1216 = vst [vmem:[%s794 + $0x348] sm:%s786] %v1215
                  %v1217 = vld [vmem:[%s793 + $0x698] sm:%s786]
                  %1218 = vst [vmem:[%s794 + $0x34c] sm:%s786] %v1217
                  %v1219 = vld [vmem:[%s793 + $0x6a0] sm:%s786]
                  %1220 = vst [vmem:[%s794 + $0x350] sm:%s786] %v1219
                  %v1221 = vld [vmem:[%s793 + $0x6a8] sm:%s786]
                  %1222 = vst [vmem:[%s794 + $0x354] sm:%s786] %v1221
                  %v1223 = vld [vmem:[%s793 + $0x6b0] sm:%s786]
                  %1224 = vst [vmem:[%s794 + $0x358] sm:%s786] %v1223
                  %v1225 = vld [vmem:[%s793 + $0x6b8] sm:%s786]
                  %1226 = vst [vmem:[%s794 + $0x35c] sm:%s786] %v1225
                  %v1227 = vld [vmem:[%s793 + $0x6c0] sm:%s786]
                  %1228 = vst [vmem:[%s794 + $0x360] sm:%s786] %v1227
                  %v1229 = vld [vmem:[%s793 + $0x6c8] sm:%s786]
                  %1230 = vst [vmem:[%s794 + $0x364] sm:%s786] %v1229
                  %v1231 = vld [vmem:[%s793 + $0x6d0] sm:%s786]
                  %1232 = vst [vmem:[%s794 + $0x368] sm:%s786] %v1231
                  %v1233 = vld [vmem:[%s793 + $0x6d8] sm:%s786]
                  %1234 = vst [vmem:[%s794 + $0x36c] sm:%s786] %v1233
                  %v1235 = vld [vmem:[%s793 + $0x6e0] sm:%s786]
                  %1236 = vst [vmem:[%s794 + $0x370] sm:%s786] %v1235
                  %v1237 = vld [vmem:[%s793 + $0x6e8] sm:%s786]
                  %1238 = vst [vmem:[%s794 + $0x374] sm:%s786] %v1237
                  %v1239 = vld [vmem:[%s793 + $0x6f0] sm:%s786]
                  %1240 = vst [vmem:[%s794 + $0x378] sm:%s786] %v1239
                  %v1241 = vld [vmem:[%s793 + $0x6f8] sm:%s786]
                  %1242 = vst [vmem:[%s794 + $0x37c] sm:%s786] %v1241
                  %v1243 = vld [vmem:[%s793 + $0x700] sm:%s786]
                  %1244 = vst [vmem:[%s794 + $0x380] sm:%s786] %v1243
                  %v1245 = vld [vmem:[%s793 + $0x708] sm:%s786]
                  %1246 = vst [vmem:[%s794 + $0x384] sm:%s786] %v1245
                  %v1247 = vld [vmem:[%s793 + $0x710] sm:%s786]
                  %1248 = vst [vmem:[%s794 + $0x388] sm:%s786] %v1247
                  %v1249 = vld [vmem:[%s793 + $0x718] sm:%s786]
                  %1250 = vst [vmem:[%s794 + $0x38c] sm:%s786] %v1249
                  %v1251 = vld [vmem:[%s793 + $0x720] sm:%s786]
                  %1252 = vst [vmem:[%s794 + $0x390] sm:%s786] %v1251
                  %v1253 = vld [vmem:[%s793 + $0x728] sm:%s786]
                  %1254 = vst [vmem:[%s794 + $0x394] sm:%s786] %v1253
                  %v1255 = vld [vmem:[%s793 + $0x730] sm:%s786]
                  %1256 = vst [vmem:[%s794 + $0x398] sm:%s786] %v1255
                  %v1257 = vld [vmem:[%s793 + $0x738] sm:%s786]
                  %1258 = vst [vmem:[%s794 + $0x39c] sm:%s786] %v1257
                  %v1259 = vld [vmem:[%s793 + $0x740] sm:%s786]
                  %1260 = vst [vmem:[%s794 + $0x3a0] sm:%s786] %v1259
                  %v1261 = vld [vmem:[%s793 + $0x748] sm:%s786]
                  %1262 = vst [vmem:[%s794 + $0x3a4] sm:%s786] %v1261
                  %v1263 = vld [vmem:[%s793 + $0x750] sm:%s786]
                  %1264 = vst [vmem:[%s794 + $0x3a8] sm:%s786] %v1263
                  %v1265 = vld [vmem:[%s793 + $0x758] sm:%s786]
                  %1266 = vst [vmem:[%s794 + $0x3ac] sm:%s786] %v1265
                  %v1267 = vld [vmem:[%s793 + $0x760] sm:%s786]
                  %1268 = vst [vmem:[%s794 + $0x3b0] sm:%s786] %v1267
                  %v1269 = vld [vmem:[%s793 + $0x768] sm:%s786]
                  %1270 = vst [vmem:[%s794 + $0x3b4] sm:%s786] %v1269
                  %v1271 = vld [vmem:[%s793 + $0x770] sm:%s786]
                  %1272 = vst [vmem:[%s794 + $0x3b8] sm:%s786] %v1271
                  %v1273 = vld [vmem:[%s793 + $0x778] sm:%s786]
                  %1274 = vst [vmem:[%s794 + $0x3bc] sm:%s786] %v1273
                  %v1275 = vld [vmem:[%s793 + $0x780] sm:%s786]
                  %1276 = vst [vmem:[%s794 + $0x3c0] sm:%s786] %v1275
                  %v1277 = vld [vmem:[%s793 + $0x788] sm:%s786]
                  %1278 = vst [vmem:[%s794 + $0x3c4] sm:%s786] %v1277
                  %v1279 = vld [vmem:[%s793 + $0x790] sm:%s786]
                  %1280 = vst [vmem:[%s794 + $0x3c8] sm:%s786] %v1279
                  %v1281 = vld [vmem:[%s793 + $0x798] sm:%s786]
                  %1282 = vst [vmem:[%s794 + $0x3cc] sm:%s786] %v1281
                  %v1283 = vld [vmem:[%s793 + $0x7a0] sm:%s786]
                  %1284 = vst [vmem:[%s794 + $0x3d0] sm:%s786] %v1283
                  %v1285 = vld [vmem:[%s793 + $0x7a8] sm:%s786]
                  %1286 = vst [vmem:[%s794 + $0x3d4] sm:%s786] %v1285
                  %v1287 = vld [vmem:[%s793 + $0x7b0] sm:%s786]
                  %1288 = vst [vmem:[%s794 + $0x3d8] sm:%s786] %v1287
                  %v1289 = vld [vmem:[%s793 + $0x7b8] sm:%s786]
                  %1290 = vst [vmem:[%s794 + $0x3dc] sm:%s786] %v1289
                  %v1291 = vld [vmem:[%s793 + $0x7c0] sm:%s786]
                  %1292 = vst [vmem:[%s794 + $0x3e0] sm:%s786] %v1291
                  %v1293 = vld [vmem:[%s793 + $0x7c8] sm:%s786]
                  %1294 = vst [vmem:[%s794 + $0x3e4] sm:%s786] %v1293
                  %v1295 = vld [vmem:[%s793 + $0x7d0] sm:%s786]
                  %1296 = vst [vmem:[%s794 + $0x3e8] sm:%s786] %v1295
                  %v1297 = vld [vmem:[%s793 + $0x7d8] sm:%s786]
                  %1298 = vst [vmem:[%s794 + $0x3ec] sm:%s786] %v1297
                  %v1299 = vld [vmem:[%s793 + $0x7e0] sm:%s786]
                  %1300 = vst [vmem:[%s794 + $0x3f0] sm:%s786] %v1299
                  %v1301 = vld [vmem:[%s793 + $0x7e8] sm:%s786]
                  %1302 = vst [vmem:[%s794 + $0x3f4] sm:%s786] %v1301
                  %v1303 = vld [vmem:[%s793 + $0x7f0] sm:%s786]
                  %1304 = vst [vmem:[%s794 + $0x3f8] sm:%s786] %v1303
                  %v1305 = vld [vmem:[%s793 + $0x7f8] sm:%s786]
                  %1306 = vst [vmem:[%s794 + $0x3fc] sm:%s786] %v1305
                $region59: #{dfnet_forward.13} parent=46 // loop_footer
                  %s792 = sadd.s32 1, %s788
                $region60: #{dfnet_forward.13} parent=46 // loop_footer_branch
                  %787 = sbr.rel target = $region56
                $region61: #{dfnet_forward.13} parent=46 // loop_exit
                  _
              $region47: #{dfnet_forward.13} parent=31 // pred_fallthru
                _
            $region32: #{dfnet_forward.13} parent=27 // pred_fallthru
              _
            // Predicated region
            $region33: #{dfnet_forward.13} parent=27 // pred_check
              _
            $region34: #{dfnet_forward.13} parent=27 // pred_check_branch
              %252 = sbr.rel (0) target = $region36
            $region35: #{dfnet_forward.13} parent=27 // pred_region
              %s254 = ssub.s32 16, 1
              loop: start=0, step=1, limit=1
              $region37: #{dfnet_forward.13} parent=35 // loop_pre_header
                _
              $region38: #{dfnet_forward.13} parent=35 // loop_header
                %s256 = sphi 0, %s260
                %p257 = scmp.ge.s32.totalorder %s256, 1
                %s261 = sphi %s246, %s246
                %s262 = sphi %s242, %s242
              $region39: #{dfnet_forward.13} parent=35 // loop_header_branch
                %259 = sbr.rel (%p257) target = $region43
              $region40: #{dfnet_forward.13} parent=35 // loop_body
                %v263 = vld [vmem:[%s261] sm:%s254]
                %264 = vst [vmem:[%s262] sm:%s254] %v263
                %v265 = vld [vmem:[%s261 + $0x8] sm:%s254]
                %266 = vst [vmem:[%s262 + $0x4] sm:%s254] %v265
                %v267 = vld [vmem:[%s261 + $0x10] sm:%s254]
                %268 = vst [vmem:[%s262 + $0x8] sm:%s254] %v267
                %v269 = vld [vmem:[%s261 + $0x18] sm:%s254]
                %270 = vst [vmem:[%s262 + $0xc] sm:%s254] %v269
                %v271 = vld [vmem:[%s261 + $0x20] sm:%s254]
                %272 = vst [vmem:[%s262 + $0x10] sm:%s254] %v271
                %v273 = vld [vmem:[%s261 + $0x28] sm:%s254]
                %274 = vst [vmem:[%s262 + $0x14] sm:%s254] %v273
                %v275 = vld [vmem:[%s261 + $0x30] sm:%s254]
                %276 = vst [vmem:[%s262 + $0x18] sm:%s254] %v275
                %v277 = vld [vmem:[%s261 + $0x38] sm:%s254]
                %278 = vst [vmem:[%s262 + $0x1c] sm:%s254] %v277
                %v279 = vld [vmem:[%s261 + $0x40] sm:%s254]
                %280 = vst [vmem:[%s262 + $0x20] sm:%s254] %v279
                %v281 = vld [vmem:[%s261 + $0x48] sm:%s254]
                %282 = vst [vmem:[%s262 + $0x24] sm:%s254] %v281
                %v283 = vld [vmem:[%s261 + $0x50] sm:%s254]
                %284 = vst [vmem:[%s262 + $0x28] sm:%s254] %v283
                %v285 = vld [vmem:[%s261 + $0x58] sm:%s254]
                %286 = vst [vmem:[%s262 + $0x2c] sm:%s254] %v285
                %v287 = vld [vmem:[%s261 + $0x60] sm:%s254]
                %288 = vst [vmem:[%s262 + $0x30] sm:%s254] %v287
                %v289 = vld [vmem:[%s261 + $0x68] sm:%s254]
                %290 = vst [vmem:[%s262 + $0x34] sm:%s254] %v289
                %v291 = vld [vmem:[%s261 + $0x70] sm:%s254]
                %292 = vst [vmem:[%s262 + $0x38] sm:%s254] %v291
                %v293 = vld [vmem:[%s261 + $0x78] sm:%s254]
                %294 = vst [vmem:[%s262 + $0x3c] sm:%s254] %v293
                %v295 = vld [vmem:[%s261 + $0x80] sm:%s254]
                %296 = vst [vmem:[%s262 + $0x40] sm:%s254] %v295
                %v297 = vld [vmem:[%s261 + $0x88] sm:%s254]
                %298 = vst [vmem:[%s262 + $0x44] sm:%s254] %v297
                %v299 = vld [vmem:[%s261 + $0x90] sm:%s254]
                %300 = vst [vmem:[%s262 + $0x48] sm:%s254] %v299
                %v301 = vld [vmem:[%s261 + $0x98] sm:%s254]
                %302 = vst [vmem:[%s262 + $0x4c] sm:%s254] %v301
                %v303 = vld [vmem:[%s261 + $0xa0] sm:%s254]
                %304 = vst [vmem:[%s262 + $0x50] sm:%s254] %v303
                %v305 = vld [vmem:[%s261 + $0xa8] sm:%s254]
                %306 = vst [vmem:[%s262 + $0x54] sm:%s254] %v305
                %v307 = vld [vmem:[%s261 + $0xb0] sm:%s254]
                %308 = vst [vmem:[%s262 + $0x58] sm:%s254] %v307
                %v309 = vld [vmem:[%s261 + $0xb8] sm:%s254]
                %310 = vst [vmem:[%s262 + $0x5c] sm:%s254] %v309
                %v311 = vld [vmem:[%s261 + $0xc0] sm:%s254]
                %312 = vst [vmem:[%s262 + $0x60] sm:%s254] %v311
                %v313 = vld [vmem:[%s261 + $0xc8] sm:%s254]
                %314 = vst [vmem:[%s262 + $0x64] sm:%s254] %v313
                %v315 = vld [vmem:[%s261 + $0xd0] sm:%s254]
                %316 = vst [vmem:[%s262 + $0x68] sm:%s254] %v315
                %v317 = vld [vmem:[%s261 + $0xd8] sm:%s254]
                %318 = vst [vmem:[%s262 + $0x6c] sm:%s254] %v317
                %v319 = vld [vmem:[%s261 + $0xe0] sm:%s254]
                %320 = vst [vmem:[%s262 + $0x70] sm:%s254] %v319
                %v321 = vld [vmem:[%s261 + $0xe8] sm:%s254]
                %322 = vst [vmem:[%s262 + $0x74] sm:%s254] %v321
                %v323 = vld [vmem:[%s261 + $0xf0] sm:%s254]
                %324 = vst [vmem:[%s262 + $0x78] sm:%s254] %v323
                %v325 = vld [vmem:[%s261 + $0xf8] sm:%s254]
                %326 = vst [vmem:[%s262 + $0x7c] sm:%s254] %v325
                %v327 = vld [vmem:[%s261 + $0x100] sm:%s254]
                %328 = vst [vmem:[%s262 + $0x80] sm:%s254] %v327
                %v329 = vld [vmem:[%s261 + $0x108] sm:%s254]
                %330 = vst [vmem:[%s262 + $0x84] sm:%s254] %v329
                %v331 = vld [vmem:[%s261 + $0x110] sm:%s254]
                %332 = vst [vmem:[%s262 + $0x88] sm:%s254] %v331
                %v333 = vld [vmem:[%s261 + $0x118] sm:%s254]
                %334 = vst [vmem:[%s262 + $0x8c] sm:%s254] %v333
                %v335 = vld [vmem:[%s261 + $0x120] sm:%s254]
                %336 = vst [vmem:[%s262 + $0x90] sm:%s254] %v335
                %v337 = vld [vmem:[%s261 + $0x128] sm:%s254]
                %338 = vst [vmem:[%s262 + $0x94] sm:%s254] %v337
                %v339 = vld [vmem:[%s261 + $0x130] sm:%s254]
                %340 = vst [vmem:[%s262 + $0x98] sm:%s254] %v339
                %v341 = vld [vmem:[%s261 + $0x138] sm:%s254]
                %342 = vst [vmem:[%s262 + $0x9c] sm:%s254] %v341
                %v343 = vld [vmem:[%s261 + $0x140] sm:%s254]
                %344 = vst [vmem:[%s262 + $0xa0] sm:%s254] %v343
                %v345 = vld [vmem:[%s261 + $0x148] sm:%s254]
                %346 = vst [vmem:[%s262 + $0xa4] sm:%s254] %v345
                %v347 = vld [vmem:[%s261 + $0x150] sm:%s254]
                %348 = vst [vmem:[%s262 + $0xa8] sm:%s254] %v347
                %v349 = vld [vmem:[%s261 + $0x158] sm:%s254]
                %350 = vst [vmem:[%s262 + $0xac] sm:%s254] %v349
                %v351 = vld [vmem:[%s261 + $0x160] sm:%s254]
                %352 = vst [vmem:[%s262 + $0xb0] sm:%s254] %v351
                %v353 = vld [vmem:[%s261 + $0x168] sm:%s254]
                %354 = vst [vmem:[%s262 + $0xb4] sm:%s254] %v353
                %v355 = vld [vmem:[%s261 + $0x170] sm:%s254]
                %356 = vst [vmem:[%s262 + $0xb8] sm:%s254] %v355
                %v357 = vld [vmem:[%s261 + $0x178] sm:%s254]
                %358 = vst [vmem:[%s262 + $0xbc] sm:%s254] %v357
                %v359 = vld [vmem:[%s261 + $0x180] sm:%s254]
                %360 = vst [vmem:[%s262 + $0xc0] sm:%s254] %v359
                %v361 = vld [vmem:[%s261 + $0x188] sm:%s254]
                %362 = vst [vmem:[%s262 + $0xc4] sm:%s254] %v361
                %v363 = vld [vmem:[%s261 + $0x190] sm:%s254]
                %364 = vst [vmem:[%s262 + $0xc8] sm:%s254] %v363
                %v365 = vld [vmem:[%s261 + $0x198] sm:%s254]
                %366 = vst [vmem:[%s262 + $0xcc] sm:%s254] %v365
                %v367 = vld [vmem:[%s261 + $0x1a0] sm:%s254]
                %368 = vst [vmem:[%s262 + $0xd0] sm:%s254] %v367
                %v369 = vld [vmem:[%s261 + $0x1a8] sm:%s254]
                %370 = vst [vmem:[%s262 + $0xd4] sm:%s254] %v369
                %v371 = vld [vmem:[%s261 + $0x1b0] sm:%s254]
                %372 = vst [vmem:[%s262 + $0xd8] sm:%s254] %v371
                %v373 = vld [vmem:[%s261 + $0x1b8] sm:%s254]
                %374 = vst [vmem:[%s262 + $0xdc] sm:%s254] %v373
                %v375 = vld [vmem:[%s261 + $0x1c0] sm:%s254]
                %376 = vst [vmem:[%s262 + $0xe0] sm:%s254] %v375
                %v377 = vld [vmem:[%s261 + $0x1c8] sm:%s254]
                %378 = vst [vmem:[%s262 + $0xe4] sm:%s254] %v377
                %v379 = vld [vmem:[%s261 + $0x1d0] sm:%s254]
                %380 = vst [vmem:[%s262 + $0xe8] sm:%s254] %v379
                %v381 = vld [vmem:[%s261 + $0x1d8] sm:%s254]
                %382 = vst [vmem:[%s262 + $0xec] sm:%s254] %v381
                %v383 = vld [vmem:[%s261 + $0x1e0] sm:%s254]
                %384 = vst [vmem:[%s262 + $0xf0] sm:%s254] %v383
                %v385 = vld [vmem:[%s261 + $0x1e8] sm:%s254]
                %386 = vst [vmem:[%s262 + $0xf4] sm:%s254] %v385
                %v387 = vld [vmem:[%s261 + $0x1f0] sm:%s254]
                %388 = vst [vmem:[%s262 + $0xf8] sm:%s254] %v387
                %v389 = vld [vmem:[%s261 + $0x1f8] sm:%s254]
                %390 = vst [vmem:[%s262 + $0xfc] sm:%s254] %v389
                %v391 = vld [vmem:[%s261 + $0x200] sm:%s254]
                %392 = vst [vmem:[%s262 + $0x100] sm:%s254] %v391
                %v393 = vld [vmem:[%s261 + $0x208] sm:%s254]
                %394 = vst [vmem:[%s262 + $0x104] sm:%s254] %v393
                %v395 = vld [vmem:[%s261 + $0x210] sm:%s254]
                %396 = vst [vmem:[%s262 + $0x108] sm:%s254] %v395
                %v397 = vld [vmem:[%s261 + $0x218] sm:%s254]
                %398 = vst [vmem:[%s262 + $0x10c] sm:%s254] %v397
                %v399 = vld [vmem:[%s261 + $0x220] sm:%s254]
                %400 = vst [vmem:[%s262 + $0x110] sm:%s254] %v399
                %v401 = vld [vmem:[%s261 + $0x228] sm:%s254]
                %402 = vst [vmem:[%s262 + $0x114] sm:%s254] %v401
                %v403 = vld [vmem:[%s261 + $0x230] sm:%s254]
                %404 = vst [vmem:[%s262 + $0x118] sm:%s254] %v403
                %v405 = vld [vmem:[%s261 + $0x238] sm:%s254]
                %406 = vst [vmem:[%s262 + $0x11c] sm:%s254] %v405
                %v407 = vld [vmem:[%s261 + $0x240] sm:%s254]
                %408 = vst [vmem:[%s262 + $0x120] sm:%s254] %v407
                %v409 = vld [vmem:[%s261 + $0x248] sm:%s254]
                %410 = vst [vmem:[%s262 + $0x124] sm:%s254] %v409
                %v411 = vld [vmem:[%s261 + $0x250] sm:%s254]
                %412 = vst [vmem:[%s262 + $0x128] sm:%s254] %v411
                %v413 = vld [vmem:[%s261 + $0x258] sm:%s254]
                %414 = vst [vmem:[%s262 + $0x12c] sm:%s254] %v413
                %v415 = vld [vmem:[%s261 + $0x260] sm:%s254]
                %416 = vst [vmem:[%s262 + $0x130] sm:%s254] %v415
                %v417 = vld [vmem:[%s261 + $0x268] sm:%s254]
                %418 = vst [vmem:[%s262 + $0x134] sm:%s254] %v417
                %v419 = vld [vmem:[%s261 + $0x270] sm:%s254]
                %420 = vst [vmem:[%s262 + $0x138] sm:%s254] %v419
                %v421 = vld [vmem:[%s261 + $0x278] sm:%s254]
                %422 = vst [vmem:[%s262 + $0x13c] sm:%s254] %v421
                %v423 = vld [vmem:[%s261 + $0x280] sm:%s254]
                %424 = vst [vmem:[%s262 + $0x140] sm:%s254] %v423
                %v425 = vld [vmem:[%s261 + $0x288] sm:%s254]
                %426 = vst [vmem:[%s262 + $0x144] sm:%s254] %v425
                %v427 = vld [vmem:[%s261 + $0x290] sm:%s254]
                %428 = vst [vmem:[%s262 + $0x148] sm:%s254] %v427
                %v429 = vld [vmem:[%s261 + $0x298] sm:%s254]
                %430 = vst [vmem:[%s262 + $0x14c] sm:%s254] %v429
                %v431 = vld [vmem:[%s261 + $0x2a0] sm:%s254]
                %432 = vst [vmem:[%s262 + $0x150] sm:%s254] %v431
                %v433 = vld [vmem:[%s261 + $0x2a8] sm:%s254]
                %434 = vst [vmem:[%s262 + $0x154] sm:%s254] %v433
                %v435 = vld [vmem:[%s261 + $0x2b0] sm:%s254]
                %436 = vst [vmem:[%s262 + $0x158] sm:%s254] %v435
                %v437 = vld [vmem:[%s261 + $0x2b8] sm:%s254]
                %438 = vst [vmem:[%s262 + $0x15c] sm:%s254] %v437
                %v439 = vld [vmem:[%s261 + $0x2c0] sm:%s254]
                %440 = vst [vmem:[%s262 + $0x160] sm:%s254] %v439
                %v441 = vld [vmem:[%s261 + $0x2c8] sm:%s254]
                %442 = vst [vmem:[%s262 + $0x164] sm:%s254] %v441
                %v443 = vld [vmem:[%s261 + $0x2d0] sm:%s254]
                %444 = vst [vmem:[%s262 + $0x168] sm:%s254] %v443
                %v445 = vld [vmem:[%s261 + $0x2d8] sm:%s254]
                %446 = vst [vmem:[%s262 + $0x16c] sm:%s254] %v445
                %v447 = vld [vmem:[%s261 + $0x2e0] sm:%s254]
                %448 = vst [vmem:[%s262 + $0x170] sm:%s254] %v447
                %v449 = vld [vmem:[%s261 + $0x2e8] sm:%s254]
                %450 = vst [vmem:[%s262 + $0x174] sm:%s254] %v449
                %v451 = vld [vmem:[%s261 + $0x2f0] sm:%s254]
                %452 = vst [vmem:[%s262 + $0x178] sm:%s254] %v451
                %v453 = vld [vmem:[%s261 + $0x2f8] sm:%s254]
                %454 = vst [vmem:[%s262 + $0x17c] sm:%s254] %v453
                %v455 = vld [vmem:[%s261 + $0x300] sm:%s254]
                %456 = vst [vmem:[%s262 + $0x180] sm:%s254] %v455
                %v457 = vld [vmem:[%s261 + $0x308] sm:%s254]
                %458 = vst [vmem:[%s262 + $0x184] sm:%s254] %v457
                %v459 = vld [vmem:[%s261 + $0x310] sm:%s254]
                %460 = vst [vmem:[%s262 + $0x188] sm:%s254] %v459
                %v461 = vld [vmem:[%s261 + $0x318] sm:%s254]
                %462 = vst [vmem:[%s262 + $0x18c] sm:%s254] %v461
                %v463 = vld [vmem:[%s261 + $0x320] sm:%s254]
                %464 = vst [vmem:[%s262 + $0x190] sm:%s254] %v463
                %v465 = vld [vmem:[%s261 + $0x328] sm:%s254]
                %466 = vst [vmem:[%s262 + $0x194] sm:%s254] %v465
                %v467 = vld [vmem:[%s261 + $0x330] sm:%s254]
                %468 = vst [vmem:[%s262 + $0x198] sm:%s254] %v467
                %v469 = vld [vmem:[%s261 + $0x338] sm:%s254]
                %470 = vst [vmem:[%s262 + $0x19c] sm:%s254] %v469
                %v471 = vld [vmem:[%s261 + $0x340] sm:%s254]
                %472 = vst [vmem:[%s262 + $0x1a0] sm:%s254] %v471
                %v473 = vld [vmem:[%s261 + $0x348] sm:%s254]
                %474 = vst [vmem:[%s262 + $0x1a4] sm:%s254] %v473
                %v475 = vld [vmem:[%s261 + $0x350] sm:%s254]
                %476 = vst [vmem:[%s262 + $0x1a8] sm:%s254] %v475
                %v477 = vld [vmem:[%s261 + $0x358] sm:%s254]
                %478 = vst [vmem:[%s262 + $0x1ac] sm:%s254] %v477
                %v479 = vld [vmem:[%s261 + $0x360] sm:%s254]
                %480 = vst [vmem:[%s262 + $0x1b0] sm:%s254] %v479
                %v481 = vld [vmem:[%s261 + $0x368] sm:%s254]
                %482 = vst [vmem:[%s262 + $0x1b4] sm:%s254] %v481
                %v483 = vld [vmem:[%s261 + $0x370] sm:%s254]
                %484 = vst [vmem:[%s262 + $0x1b8] sm:%s254] %v483
                %v485 = vld [vmem:[%s261 + $0x378] sm:%s254]
                %486 = vst [vmem:[%s262 + $0x1bc] sm:%s254] %v485
                %v487 = vld [vmem:[%s261 + $0x380] sm:%s254]
                %488 = vst [vmem:[%s262 + $0x1c0] sm:%s254] %v487
                %v489 = vld [vmem:[%s261 + $0x388] sm:%s254]
                %490 = vst [vmem:[%s262 + $0x1c4] sm:%s254] %v489
                %v491 = vld [vmem:[%s261 + $0x390] sm:%s254]
                %492 = vst [vmem:[%s262 + $0x1c8] sm:%s254] %v491
                %v493 = vld [vmem:[%s261 + $0x398] sm:%s254]
                %494 = vst [vmem:[%s262 + $0x1cc] sm:%s254] %v493
                %v495 = vld [vmem:[%s261 + $0x3a0] sm:%s254]
                %496 = vst [vmem:[%s262 + $0x1d0] sm:%s254] %v495
                %v497 = vld [vmem:[%s261 + $0x3a8] sm:%s254]
                %498 = vst [vmem:[%s262 + $0x1d4] sm:%s254] %v497
                %v499 = vld [vmem:[%s261 + $0x3b0] sm:%s254]
                %500 = vst [vmem:[%s262 + $0x1d8] sm:%s254] %v499
                %v501 = vld [vmem:[%s261 + $0x3b8] sm:%s254]
                %502 = vst [vmem:[%s262 + $0x1dc] sm:%s254] %v501
                %v503 = vld [vmem:[%s261 + $0x3c0] sm:%s254]
                %504 = vst [vmem:[%s262 + $0x1e0] sm:%s254] %v503
                %v505 = vld [vmem:[%s261 + $0x3c8] sm:%s254]
                %506 = vst [vmem:[%s262 + $0x1e4] sm:%s254] %v505
                %v507 = vld [vmem:[%s261 + $0x3d0] sm:%s254]
                %508 = vst [vmem:[%s262 + $0x1e8] sm:%s254] %v507
                %v509 = vld [vmem:[%s261 + $0x3d8] sm:%s254]
                %510 = vst [vmem:[%s262 + $0x1ec] sm:%s254] %v509
                %v511 = vld [vmem:[%s261 + $0x3e0] sm:%s254]
                %512 = vst [vmem:[%s262 + $0x1f0] sm:%s254] %v511
                %v513 = vld [vmem:[%s261 + $0x3e8] sm:%s254]
                %514 = vst [vmem:[%s262 + $0x1f4] sm:%s254] %v513
                %v515 = vld [vmem:[%s261 + $0x3f0] sm:%s254]
                %516 = vst [vmem:[%s262 + $0x1f8] sm:%s254] %v515
                %v517 = vld [vmem:[%s261 + $0x3f8] sm:%s254]
                %518 = vst [vmem:[%s262 + $0x1fc] sm:%s254] %v517
                %v519 = vld [vmem:[%s261 + $0x400] sm:%s254]
                %520 = vst [vmem:[%s262 + $0x200] sm:%s254] %v519
                %v521 = vld [vmem:[%s261 + $0x408] sm:%s254]
                %522 = vst [vmem:[%s262 + $0x204] sm:%s254] %v521
                %v523 = vld [vmem:[%s261 + $0x410] sm:%s254]
                %524 = vst [vmem:[%s262 + $0x208] sm:%s254] %v523
                %v525 = vld [vmem:[%s261 + $0x418] sm:%s254]
                %526 = vst [vmem:[%s262 + $0x20c] sm:%s254] %v525
                %v527 = vld [vmem:[%s261 + $0x420] sm:%s254]
                %528 = vst [vmem:[%s262 + $0x210] sm:%s254] %v527
                %v529 = vld [vmem:[%s261 + $0x428] sm:%s254]
                %530 = vst [vmem:[%s262 + $0x214] sm:%s254] %v529
                %v531 = vld [vmem:[%s261 + $0x430] sm:%s254]
                %532 = vst [vmem:[%s262 + $0x218] sm:%s254] %v531
                %v533 = vld [vmem:[%s261 + $0x438] sm:%s254]
                %534 = vst [vmem:[%s262 + $0x21c] sm:%s254] %v533
                %v535 = vld [vmem:[%s261 + $0x440] sm:%s254]
                %536 = vst [vmem:[%s262 + $0x220] sm:%s254] %v535
                %v537 = vld [vmem:[%s261 + $0x448] sm:%s254]
                %538 = vst [vmem:[%s262 + $0x224] sm:%s254] %v537
                %v539 = vld [vmem:[%s261 + $0x450] sm:%s254]
                %540 = vst [vmem:[%s262 + $0x228] sm:%s254] %v539
                %v541 = vld [vmem:[%s261 + $0x458] sm:%s254]
                %542 = vst [vmem:[%s262 + $0x22c] sm:%s254] %v541
                %v543 = vld [vmem:[%s261 + $0x460] sm:%s254]
                %544 = vst [vmem:[%s262 + $0x230] sm:%s254] %v543
                %v545 = vld [vmem:[%s261 + $0x468] sm:%s254]
                %546 = vst [vmem:[%s262 + $0x234] sm:%s254] %v545
                %v547 = vld [vmem:[%s261 + $0x470] sm:%s254]
                %548 = vst [vmem:[%s262 + $0x238] sm:%s254] %v547
                %v549 = vld [vmem:[%s261 + $0x478] sm:%s254]
                %550 = vst [vmem:[%s262 + $0x23c] sm:%s254] %v549
                %v551 = vld [vmem:[%s261 + $0x480] sm:%s254]
                %552 = vst [vmem:[%s262 + $0x240] sm:%s254] %v551
                %v553 = vld [vmem:[%s261 + $0x488] sm:%s254]
                %554 = vst [vmem:[%s262 + $0x244] sm:%s254] %v553
                %v555 = vld [vmem:[%s261 + $0x490] sm:%s254]
                %556 = vst [vmem:[%s262 + $0x248] sm:%s254] %v555
                %v557 = vld [vmem:[%s261 + $0x498] sm:%s254]
                %558 = vst [vmem:[%s262 + $0x24c] sm:%s254] %v557
                %v559 = vld [vmem:[%s261 + $0x4a0] sm:%s254]
                %560 = vst [vmem:[%s262 + $0x250] sm:%s254] %v559
                %v561 = vld [vmem:[%s261 + $0x4a8] sm:%s254]
                %562 = vst [vmem:[%s262 + $0x254] sm:%s254] %v561
                %v563 = vld [vmem:[%s261 + $0x4b0] sm:%s254]
                %564 = vst [vmem:[%s262 + $0x258] sm:%s254] %v563
                %v565 = vld [vmem:[%s261 + $0x4b8] sm:%s254]
                %566 = vst [vmem:[%s262 + $0x25c] sm:%s254] %v565
                %v567 = vld [vmem:[%s261 + $0x4c0] sm:%s254]
                %568 = vst [vmem:[%s262 + $0x260] sm:%s254] %v567
                %v569 = vld [vmem:[%s261 + $0x4c8] sm:%s254]
                %570 = vst [vmem:[%s262 + $0x264] sm:%s254] %v569
                %v571 = vld [vmem:[%s261 + $0x4d0] sm:%s254]
                %572 = vst [vmem:[%s262 + $0x268] sm:%s254] %v571
                %v573 = vld [vmem:[%s261 + $0x4d8] sm:%s254]
                %574 = vst [vmem:[%s262 + $0x26c] sm:%s254] %v573
                %v575 = vld [vmem:[%s261 + $0x4e0] sm:%s254]
                %576 = vst [vmem:[%s262 + $0x270] sm:%s254] %v575
                %v577 = vld [vmem:[%s261 + $0x4e8] sm:%s254]
                %578 = vst [vmem:[%s262 + $0x274] sm:%s254] %v577
                %v579 = vld [vmem:[%s261 + $0x4f0] sm:%s254]
                %580 = vst [vmem:[%s262 + $0x278] sm:%s254] %v579
                %v581 = vld [vmem:[%s261 + $0x4f8] sm:%s254]
                %582 = vst [vmem:[%s262 + $0x27c] sm:%s254] %v581
                %v583 = vld [vmem:[%s261 + $0x500] sm:%s254]
                %584 = vst [vmem:[%s262 + $0x280] sm:%s254] %v583
                %v585 = vld [vmem:[%s261 + $0x508] sm:%s254]
                %586 = vst [vmem:[%s262 + $0x284] sm:%s254] %v585
                %v587 = vld [vmem:[%s261 + $0x510] sm:%s254]
                %588 = vst [vmem:[%s262 + $0x288] sm:%s254] %v587
                %v589 = vld [vmem:[%s261 + $0x518] sm:%s254]
                %590 = vst [vmem:[%s262 + $0x28c] sm:%s254] %v589
                %v591 = vld [vmem:[%s261 + $0x520] sm:%s254]
                %592 = vst [vmem:[%s262 + $0x290] sm:%s254] %v591
                %v593 = vld [vmem:[%s261 + $0x528] sm:%s254]
                %594 = vst [vmem:[%s262 + $0x294] sm:%s254] %v593
                %v595 = vld [vmem:[%s261 + $0x530] sm:%s254]
                %596 = vst [vmem:[%s262 + $0x298] sm:%s254] %v595
                %v597 = vld [vmem:[%s261 + $0x538] sm:%s254]
                %598 = vst [vmem:[%s262 + $0x29c] sm:%s254] %v597
                %v599 = vld [vmem:[%s261 + $0x540] sm:%s254]
                %600 = vst [vmem:[%s262 + $0x2a0] sm:%s254] %v599
                %v601 = vld [vmem:[%s261 + $0x548] sm:%s254]
                %602 = vst [vmem:[%s262 + $0x2a4] sm:%s254] %v601
                %v603 = vld [vmem:[%s261 + $0x550] sm:%s254]
                %604 = vst [vmem:[%s262 + $0x2a8] sm:%s254] %v603
                %v605 = vld [vmem:[%s261 + $0x558] sm:%s254]
                %606 = vst [vmem:[%s262 + $0x2ac] sm:%s254] %v605
                %v607 = vld [vmem:[%s261 + $0x560] sm:%s254]
                %608 = vst [vmem:[%s262 + $0x2b0] sm:%s254] %v607
                %v609 = vld [vmem:[%s261 + $0x568] sm:%s254]
                %610 = vst [vmem:[%s262 + $0x2b4] sm:%s254] %v609
                %v611 = vld [vmem:[%s261 + $0x570] sm:%s254]
                %612 = vst [vmem:[%s262 + $0x2b8] sm:%s254] %v611
                %v613 = vld [vmem:[%s261 + $0x578] sm:%s254]
                %614 = vst [vmem:[%s262 + $0x2bc] sm:%s254] %v613
                %v615 = vld [vmem:[%s261 + $0x580] sm:%s254]
                %616 = vst [vmem:[%s262 + $0x2c0] sm:%s254] %v615
                %v617 = vld [vmem:[%s261 + $0x588] sm:%s254]
                %618 = vst [vmem:[%s262 + $0x2c4] sm:%s254] %v617
                %v619 = vld [vmem:[%s261 + $0x590] sm:%s254]
                %620 = vst [vmem:[%s262 + $0x2c8] sm:%s254] %v619
                %v621 = vld [vmem:[%s261 + $0x598] sm:%s254]
                %622 = vst [vmem:[%s262 + $0x2cc] sm:%s254] %v621
                %v623 = vld [vmem:[%s261 + $0x5a0] sm:%s254]
                %624 = vst [vmem:[%s262 + $0x2d0] sm:%s254] %v623
                %v625 = vld [vmem:[%s261 + $0x5a8] sm:%s254]
                %626 = vst [vmem:[%s262 + $0x2d4] sm:%s254] %v625
                %v627 = vld [vmem:[%s261 + $0x5b0] sm:%s254]
                %628 = vst [vmem:[%s262 + $0x2d8] sm:%s254] %v627
                %v629 = vld [vmem:[%s261 + $0x5b8] sm:%s254]
                %630 = vst [vmem:[%s262 + $0x2dc] sm:%s254] %v629
                %v631 = vld [vmem:[%s261 + $0x5c0] sm:%s254]
                %632 = vst [vmem:[%s262 + $0x2e0] sm:%s254] %v631
                %v633 = vld [vmem:[%s261 + $0x5c8] sm:%s254]
                %634 = vst [vmem:[%s262 + $0x2e4] sm:%s254] %v633
                %v635 = vld [vmem:[%s261 + $0x5d0] sm:%s254]
                %636 = vst [vmem:[%s262 + $0x2e8] sm:%s254] %v635
                %v637 = vld [vmem:[%s261 + $0x5d8] sm:%s254]
                %638 = vst [vmem:[%s262 + $0x2ec] sm:%s254] %v637
                %v639 = vld [vmem:[%s261 + $0x5e0] sm:%s254]
                %640 = vst [vmem:[%s262 + $0x2f0] sm:%s254] %v639
                %v641 = vld [vmem:[%s261 + $0x5e8] sm:%s254]
                %642 = vst [vmem:[%s262 + $0x2f4] sm:%s254] %v641
                %v643 = vld [vmem:[%s261 + $0x5f0] sm:%s254]
                %644 = vst [vmem:[%s262 + $0x2f8] sm:%s254] %v643
                %v645 = vld [vmem:[%s261 + $0x5f8] sm:%s254]
                %646 = vst [vmem:[%s262 + $0x2fc] sm:%s254] %v645
                %v647 = vld [vmem:[%s261 + $0x600] sm:%s254]
                %648 = vst [vmem:[%s262 + $0x300] sm:%s254] %v647
                %v649 = vld [vmem:[%s261 + $0x608] sm:%s254]
                %650 = vst [vmem:[%s262 + $0x304] sm:%s254] %v649
                %v651 = vld [vmem:[%s261 + $0x610] sm:%s254]
                %652 = vst [vmem:[%s262 + $0x308] sm:%s254] %v651
                %v653 = vld [vmem:[%s261 + $0x618] sm:%s254]
                %654 = vst [vmem:[%s262 + $0x30c] sm:%s254] %v653
                %v655 = vld [vmem:[%s261 + $0x620] sm:%s254]
                %656 = vst [vmem:[%s262 + $0x310] sm:%s254] %v655
                %v657 = vld [vmem:[%s261 + $0x628] sm:%s254]
                %658 = vst [vmem:[%s262 + $0x314] sm:%s254] %v657
                %v659 = vld [vmem:[%s261 + $0x630] sm:%s254]
                %660 = vst [vmem:[%s262 + $0x318] sm:%s254] %v659
                %v661 = vld [vmem:[%s261 + $0x638] sm:%s254]
                %662 = vst [vmem:[%s262 + $0x31c] sm:%s254] %v661
                %v663 = vld [vmem:[%s261 + $0x640] sm:%s254]
                %664 = vst [vmem:[%s262 + $0x320] sm:%s254] %v663
                %v665 = vld [vmem:[%s261 + $0x648] sm:%s254]
                %666 = vst [vmem:[%s262 + $0x324] sm:%s254] %v665
                %v667 = vld [vmem:[%s261 + $0x650] sm:%s254]
                %668 = vst [vmem:[%s262 + $0x328] sm:%s254] %v667
                %v669 = vld [vmem:[%s261 + $0x658] sm:%s254]
                %670 = vst [vmem:[%s262 + $0x32c] sm:%s254] %v669
                %v671 = vld [vmem:[%s261 + $0x660] sm:%s254]
                %672 = vst [vmem:[%s262 + $0x330] sm:%s254] %v671
                %v673 = vld [vmem:[%s261 + $0x668] sm:%s254]
                %674 = vst [vmem:[%s262 + $0x334] sm:%s254] %v673
                %v675 = vld [vmem:[%s261 + $0x670] sm:%s254]
                %676 = vst [vmem:[%s262 + $0x338] sm:%s254] %v675
                %v677 = vld [vmem:[%s261 + $0x678] sm:%s254]
                %678 = vst [vmem:[%s262 + $0x33c] sm:%s254] %v677
                %v679 = vld [vmem:[%s261 + $0x680] sm:%s254]
                %680 = vst [vmem:[%s262 + $0x340] sm:%s254] %v679
                %v681 = vld [vmem:[%s261 + $0x688] sm:%s254]
                %682 = vst [vmem:[%s262 + $0x344] sm:%s254] %v681
                %v683 = vld [vmem:[%s261 + $0x690] sm:%s254]
                %684 = vst [vmem:[%s262 + $0x348] sm:%s254] %v683
                %v685 = vld [vmem:[%s261 + $0x698] sm:%s254]
                %686 = vst [vmem:[%s262 + $0x34c] sm:%s254] %v685
                %v687 = vld [vmem:[%s261 + $0x6a0] sm:%s254]
                %688 = vst [vmem:[%s262 + $0x350] sm:%s254] %v687
                %v689 = vld [vmem:[%s261 + $0x6a8] sm:%s254]
                %690 = vst [vmem:[%s262 + $0x354] sm:%s254] %v689
                %v691 = vld [vmem:[%s261 + $0x6b0] sm:%s254]
                %692 = vst [vmem:[%s262 + $0x358] sm:%s254] %v691
                %v693 = vld [vmem:[%s261 + $0x6b8] sm:%s254]
                %694 = vst [vmem:[%s262 + $0x35c] sm:%s254] %v693
                %v695 = vld [vmem:[%s261 + $0x6c0] sm:%s254]
                %696 = vst [vmem:[%s262 + $0x360] sm:%s254] %v695
                %v697 = vld [vmem:[%s261 + $0x6c8] sm:%s254]
                %698 = vst [vmem:[%s262 + $0x364] sm:%s254] %v697
                %v699 = vld [vmem:[%s261 + $0x6d0] sm:%s254]
                %700 = vst [vmem:[%s262 + $0x368] sm:%s254] %v699
                %v701 = vld [vmem:[%s261 + $0x6d8] sm:%s254]
                %702 = vst [vmem:[%s262 + $0x36c] sm:%s254] %v701
                %v703 = vld [vmem:[%s261 + $0x6e0] sm:%s254]
                %704 = vst [vmem:[%s262 + $0x370] sm:%s254] %v703
                %v705 = vld [vmem:[%s261 + $0x6e8] sm:%s254]
                %706 = vst [vmem:[%s262 + $0x374] sm:%s254] %v705
                %v707 = vld [vmem:[%s261 + $0x6f0] sm:%s254]
                %708 = vst [vmem:[%s262 + $0x378] sm:%s254] %v707
                %v709 = vld [vmem:[%s261 + $0x6f8] sm:%s254]
                %710 = vst [vmem:[%s262 + $0x37c] sm:%s254] %v709
                %v711 = vld [vmem:[%s261 + $0x700] sm:%s254]
                %712 = vst [vmem:[%s262 + $0x380] sm:%s254] %v711
                %v713 = vld [vmem:[%s261 + $0x708] sm:%s254]
                %714 = vst [vmem:[%s262 + $0x384] sm:%s254] %v713
                %v715 = vld [vmem:[%s261 + $0x710] sm:%s254]
                %716 = vst [vmem:[%s262 + $0x388] sm:%s254] %v715
                %v717 = vld [vmem:[%s261 + $0x718] sm:%s254]
                %718 = vst [vmem:[%s262 + $0x38c] sm:%s254] %v717
                %v719 = vld [vmem:[%s261 + $0x720] sm:%s254]
                %720 = vst [vmem:[%s262 + $0x390] sm:%s254] %v719
                %v721 = vld [vmem:[%s261 + $0x728] sm:%s254]
                %722 = vst [vmem:[%s262 + $0x394] sm:%s254] %v721
                %v723 = vld [vmem:[%s261 + $0x730] sm:%s254]
                %724 = vst [vmem:[%s262 + $0x398] sm:%s254] %v723
                %v725 = vld [vmem:[%s261 + $0x738] sm:%s254]
                %726 = vst [vmem:[%s262 + $0x39c] sm:%s254] %v725
                %v727 = vld [vmem:[%s261 + $0x740] sm:%s254]
                %728 = vst [vmem:[%s262 + $0x3a0] sm:%s254] %v727
                %v729 = vld [vmem:[%s261 + $0x748] sm:%s254]
                %730 = vst [vmem:[%s262 + $0x3a4] sm:%s254] %v729
                %v731 = vld [vmem:[%s261 + $0x750] sm:%s254]
                %732 = vst [vmem:[%s262 + $0x3a8] sm:%s254] %v731
                %v733 = vld [vmem:[%s261 + $0x758] sm:%s254]
                %734 = vst [vmem:[%s262 + $0x3ac] sm:%s254] %v733
                %v735 = vld [vmem:[%s261 + $0x760] sm:%s254]
                %736 = vst [vmem:[%s262 + $0x3b0] sm:%s254] %v735
                %v737 = vld [vmem:[%s261 + $0x768] sm:%s254]
                %738 = vst [vmem:[%s262 + $0x3b4] sm:%s254] %v737
                %v739 = vld [vmem:[%s261 + $0x770] sm:%s254]
                %740 = vst [vmem:[%s262 + $0x3b8] sm:%s254] %v739
                %v741 = vld [vmem:[%s261 + $0x778] sm:%s254]
                %742 = vst [vmem:[%s262 + $0x3bc] sm:%s254] %v741
                %v743 = vld [vmem:[%s261 + $0x780] sm:%s254]
                %744 = vst [vmem:[%s262 + $0x3c0] sm:%s254] %v743
                %v745 = vld [vmem:[%s261 + $0x788] sm:%s254]
                %746 = vst [vmem:[%s262 + $0x3c4] sm:%s254] %v745
                %v747 = vld [vmem:[%s261 + $0x790] sm:%s254]
                %748 = vst [vmem:[%s262 + $0x3c8] sm:%s254] %v747
                %v749 = vld [vmem:[%s261 + $0x798] sm:%s254]
                %750 = vst [vmem:[%s262 + $0x3cc] sm:%s254] %v749
                %v751 = vld [vmem:[%s261 + $0x7a0] sm:%s254]
                %752 = vst [vmem:[%s262 + $0x3d0] sm:%s254] %v751
                %v753 = vld [vmem:[%s261 + $0x7a8] sm:%s254]
                %754 = vst [vmem:[%s262 + $0x3d4] sm:%s254] %v753
                %v755 = vld [vmem:[%s261 + $0x7b0] sm:%s254]
                %756 = vst [vmem:[%s262 + $0x3d8] sm:%s254] %v755
                %v757 = vld [vmem:[%s261 + $0x7b8] sm:%s254]
                %758 = vst [vmem:[%s262 + $0x3dc] sm:%s254] %v757
                %v759 = vld [vmem:[%s261 + $0x7c0] sm:%s254]
                %760 = vst [vmem:[%s262 + $0x3e0] sm:%s254] %v759
                %v761 = vld [vmem:[%s261 + $0x7c8] sm:%s254]
                %762 = vst [vmem:[%s262 + $0x3e4] sm:%s254] %v761
                %v763 = vld [vmem:[%s261 + $0x7d0] sm:%s254]
                %764 = vst [vmem:[%s262 + $0x3e8] sm:%s254] %v763
                %v765 = vld [vmem:[%s261 + $0x7d8] sm:%s254]
                %766 = vst [vmem:[%s262 + $0x3ec] sm:%s254] %v765
                %v767 = vld [vmem:[%s261 + $0x7e0] sm:%s254]
                %768 = vst [vmem:[%s262 + $0x3f0] sm:%s254] %v767
                %v769 = vld [vmem:[%s261 + $0x7e8] sm:%s254]
                %770 = vst [vmem:[%s262 + $0x3f4] sm:%s254] %v769
                %v771 = vld [vmem:[%s261 + $0x7f0] sm:%s254]
                %772 = vst [vmem:[%s262 + $0x3f8] sm:%s254] %v771
                %v773 = vld [vmem:[%s261 + $0x7f8] sm:%s254]
                %774 = vst [vmem:[%s262 + $0x3fc] sm:%s254] %v773
              $region41: #{dfnet_forward.13} parent=35 // loop_footer
                %s260 = sadd.s32 1, %s256
              $region42: #{dfnet_forward.13} parent=35 // loop_footer_branch
                %255 = sbr.rel target = $region38
              $region43: #{dfnet_forward.13} parent=35 // loop_exit
                _
            $region36: #{dfnet_forward.13} parent=27 // pred_fallthru
              _
          $region28: #{dfnet_forward.13} parent=23 // pred_fallthru
            _
          %1307 = vnop
        $region24: #{dfnet_forward.13} parent=19 // pred_fallthru
          _
        // Predicated region
        $region62: #{dfnet_forward.13} parent=19 // pred_check
          %p1308 = pneg %p107
        $region63: #{dfnet_forward.13} parent=19 // pred_check_branch
          %1310 = sbr.rel (%p1308) target = $region65
        $region64: #{dfnet_forward.13} parent=19 // pred_region
          %p1311 = scmp.lt.s32.totalorder %s21, 1
          %s1312 = scalar_select %p1311, %s21, 1
          %s1313 = scalar_lea.vmem %s2, %s1312
        $region65: #{dfnet_forward.13} parent=19 // pred_fallthru
          _
      $region20: #{dfnet_forward.13} parent=5 // pred_fallthru
        _
      %p1314 = scmp.le.s32.totalorder 1, %s12
      %p1315 = scmp.lt.s32.totalorder %s12, 3
      %p1316 = pnand %p1314, %p1315
      %p1317 = pneg %p1316
      // Predicated region
      $region66: #{dfnet_forward.13} parent=5 // pred_check
        _
      $region67: #{dfnet_forward.13} parent=5 // pred_check_branch
        %1319 = sbr.rel (%p1316) target = $region69
      $region68: #{dfnet_forward.13} parent=5 // pred_region
        %s1320 = ssub.s32 %s12, 1
        %s1321 = sand.u32 %s74, 1
        %s1322 = sand.u32 %s74, 1
        %s1323 = smul.addr %s1322, 1024
        %s1324 = scalar_lea.vmem [#allocation2], %s1323
        // Predicated region
        $region70: #{dfnet_forward.13} parent=68 // pred_check
          %p1325 = pneg %p87
        $region71: #{dfnet_forward.13} parent=68 // pred_check_branch
          %1327 = sbr.rel (%p1325) target = $region73
        $region72: #{dfnet_forward.13} parent=68 // pred_region
          _
        $region73: #{dfnet_forward.13} parent=68 // pred_fallthru
          _
        %s1328 = smul.u32 2, %s23
        %p1329 = scmp.lt.s32.totalorder %s22, 0
        %s1330 = scalar_select %p1329, %s22, 0
        %p1331 = scmp.lt.s32.totalorder %s1328, 1
        %s1332 = scalar_select %p1331, %s1328, 1
        %s1333 = smul.addr %s1332, 16
        %s1334 = smul.addr %s1330, 32
        %s1335 = sadd.s32 %s1333, %s1334
        %s1336 = smul.addr %s1335, 4
        %s1337 = scalar_lea.vmem %s0, %s1336
        %p1338 = pneg %p59
        %p1339 = pneg %p56
        %s1340 = sand.u32 %s74, 1
        %s1341 = sand.u32 %s74, 1
        %s1342 = smul.addr %s1341, 1024
        %s1343 = scalar_lea.vmem [#allocation2], %s1342
        %p1344 = pneg %p87
        %p1345 = pneg %p84
        %p1346 = scmp.lt.s32.totalorder %s24, 1
        %s1347 = scalar_select %p1346, %s24, 1
        %s1348 = scalar_lea.vmem %s2, %s1347
        %p1349 = pneg %p113
        %p1350 = pneg %p110
        %p1351 = pneg %p143
        %p1352 = pneg %p140
        %s1353 = sand.u32 %s130, 1
        %s1354 = sand.u32 %s130, 1
        %s1355 = smul.addr %s1354, 8
        %s1356 = scalar_lea.vmem [#allocation3], %s1355
        %p1357 = pneg %p173
        %p1358 = pneg %p170
        %p1359 = scmp.lt.s32.totalorder %s22, 0
        %s1360 = scalar_select %p1359, %s22, 0
        %p1361 = scmp.lt.s32.totalorder %s23, 0
        %s1362 = scalar_select %p1361, %s23, 0
        %p1363 = scmp.lt.s32.totalorder %s24, 1
        %s1364 = scalar_select %p1363, %s24, 1
        %s1365 = smul.addr %s1362, 2
        %s1366 = sadd.s32 %s1364, %s1365
        %s1367 = smul.addr %s1360, 2
        %s1368 = sadd.s32 %s1366, %s1367
        %s1369 = scalar_lea.vmem %s4, %s1368
        %p1370 = pneg %p203
        %p1371 = pneg %p200
        %p1372 = scmp.lt.s32.totalorder %s22, 0
        %s1373 = scalar_select %p1372, %s22, 0
        %p1374 = scmp.lt.s32.totalorder %s23, 0
        %s1375 = scalar_select %p1374, %s23, 0
        %p1376 = scmp.lt.s32.totalorder %s24, 1
        %s1377 = scalar_select %p1376, %s24, 1
        %s1378 = smul.addr %s1375, 2
        %s1379 = sadd.s32 %s1377, %s1378
        %s1380 = smul.addr %s1373, 2
        %s1381 = sadd.s32 %s1379, %s1380
        %s1382 = scalar_lea.vmem %s5, %s1381
        %s1383 = smul.u32 2, %s23
        %p1384 = scmp.lt.s32.totalorder %s22, 0
        %s1385 = scalar_select %p1384, %s22, 0
        %p1386 = scmp.lt.s32.totalorder %s1383, 1
        %s1387 = scalar_select %p1386, %s1383, 1
        %s1388 = smul.addr %s1387, 16
        %s1389 = smul.addr %s1385, 32
        %s1390 = sadd.s32 %s1388, %s1389
        %s1391 = smul.addr %s1390, 4
        %s1392 = scalar_lea.vmem %s0, %s1391
        %s1393 = smul.u32 2, %s23
        %p1394 = scmp.lt.s32.totalorder %s24, 1
        %s1395 = scalar_select %p1394, %s24, 1
        %s1396 = scalar_lea.vmem %s2, %s1395
        %s1397 = smul.u32 2, %s23
        %p1398 = scmp.lt.s32.totalorder %s22, 0
        %s1399 = scalar_select %p1398, %s22, 0
        %p1400 = scmp.lt.s32.totalorder %s23, 0
        %s1401 = scalar_select %p1400, %s23, 0
        %p1402 = scmp.lt.s32.totalorder %s24, 1
        %s1403 = scalar_select %p1402, %s24, 1
        %s1404 = smul.addr %s1401, 2
        %s1405 = sadd.s32 %s1403, %s1404
        %s1406 = smul.addr %s1399, 2
        %s1407 = sadd.s32 %s1405, %s1406
        %s1408 = scalar_lea.vmem %s4, %s1407
        %p1409 = scmp.lt.s32.totalorder %s22, 0
        %s1410 = scalar_select %p1409, %s22, 0
        %p1411 = scmp.lt.s32.totalorder %s23, 0
        %s1412 = scalar_select %p1411, %s23, 0
        %p1413 = scmp.lt.s32.totalorder %s24, 1
        %s1414 = scalar_select %p1413, %s24, 1
        %s1415 = smul.addr %s1412, 2
        %s1416 = sadd.s32 %s1414, %s1415
        %s1417 = smul.addr %s1410, 2
        %s1418 = sadd.s32 %s1416, %s1417
        %s1419 = scalar_lea.vmem %s5, %s1418
        %v1421 = vld [vmem:[%s1392] sm:$0xff]
        %v1422 = vld [vmem:[%s1392 + $0x8] sm:$0xff]
        %v1423 = vld [vmem:[%s1392 + $0x10] sm:$0xff]
        %v1424 = vld [vmem:[%s1392 + $0x18] sm:$0xff]
        %v1425 = vld [vmem:[%s1392 + $0x20] sm:$0xff]
        %v1426 = vld [vmem:[%s1392 + $0x28] sm:$0xff]
        %v1427 = vld [vmem:[%s1392 + $0x30] sm:$0xff]
        %v1428 = vld [vmem:[%s1392 + $0x38] sm:$0xff]
        %v1429 = vld [vmem:[%s1392 + $0x40] sm:$0xff]
        %v1430 = vld [vmem:[%s1392 + $0x48] sm:$0xff]
        %v1431 = vld [vmem:[%s1392 + $0x50] sm:$0xff]
        %v1432 = vld [vmem:[%s1392 + $0x58] sm:$0xff]
        %v1433 = vld [vmem:[%s1392 + $0x60] sm:$0xff]
        %v1434 = vld [vmem:[%s1392 + $0x68] sm:$0xff]
        %v1435 = vld [vmem:[%s1392 + $0x70] sm:$0xff]
        %v1436 = vld [vmem:[%s1392 + $0x78] sm:$0xff]
        %v1437 = vld [vmem:[%s1324] sm:$0xf]
        %v1438 = vld [vmem:[%s1324 + $0x4] sm:$0xf]
        %v1439 = vld [vmem:[%s1324 + $0x8] sm:$0xf]
        %v1440 = vld [vmem:[%s1324 + $0xc] sm:$0xf]
        %v1441 = vld [vmem:[%s1324 + $0x10] sm:$0xf]
        %v1442 = vld [vmem:[%s1324 + $0x14] sm:$0xf]
        %v1443 = vld [vmem:[%s1324 + $0x18] sm:$0xf]
        %v1444 = vld [vmem:[%s1324 + $0x1c] sm:$0xf]
        %v1445 = vld [vmem:[%s1324 + $0x20] sm:$0xf]
        %v1446 = vld [vmem:[%s1324 + $0x24] sm:$0xf]
        %v1447 = vld [vmem:[%s1324 + $0x28] sm:$0xf]
        %v1448 = vld [vmem:[%s1324 + $0x2c] sm:$0xf]
        %v1449 = vld [vmem:[%s1324 + $0x30] sm:$0xf]
        %v1450 = vld [vmem:[%s1324 + $0x34] sm:$0xf]
        %v1451 = vld [vmem:[%s1324 + $0x38] sm:$0xf]
        %v1452 = vld [vmem:[%s1324 + $0x3c] sm:$0xf]
        %v1453 = vld [vmem:[%s1324 + $0x40] sm:$0xf]
        %v1454 = vld [vmem:[%s1324 + $0x44] sm:$0xf]
        %v1455 = vld [vmem:[%s1324 + $0x48] sm:$0xf]
        %v1456 = vld [vmem:[%s1324 + $0x4c] sm:$0xf]
        %v1457 = vld [vmem:[%s1324 + $0x50] sm:$0xf]
        %v1458 = vld [vmem:[%s1324 + $0x54] sm:$0xf]
        %v1459 = vld [vmem:[%s1324 + $0x58] sm:$0xf]
        %v1460 = vld [vmem:[%s1324 + $0x5c] sm:$0xf]
        %v1461 = vld [vmem:[%s1324 + $0x60] sm:$0xf]
        %v1462 = vld [vmem:[%s1324 + $0x64] sm:$0xf]
        %v1463 = vld [vmem:[%s1324 + $0x68] sm:$0xf]
        %v1464 = vld [vmem:[%s1324 + $0x6c] sm:$0xf]
        %v1465 = vld [vmem:[%s1324 + $0x70] sm:$0xf]
        %v1466 = vld [vmem:[%s1324 + $0x74] sm:$0xf]
        %v1467 = vld [vmem:[%s1324 + $0x78] sm:$0xf]
        %v1468 = vld [vmem:[%s1324 + $0x7c] sm:$0xf]
        %v1469 = vld [vmem:[%s1324 + $0x80] sm:$0xf]
        %v1470 = vld [vmem:[%s1324 + $0x84] sm:$0xf]
        %v1471 = vld [vmem:[%s1324 + $0x88] sm:$0xf]
        %v1472 = vld [vmem:[%s1324 + $0x8c] sm:$0xf]
        %v1473 = vld [vmem:[%s1324 + $0x90] sm:$0xf]
        %v1474 = vld [vmem:[%s1324 + $0x94] sm:$0xf]
        %v1475 = vld [vmem:[%s1324 + $0x98] sm:$0xf]
        %v1476 = vld [vmem:[%s1324 + $0x9c] sm:$0xf]
        %v1477 = vld [vmem:[%s1324 + $0xa0] sm:$0xf]
        %v1478 = vld [vmem:[%s1324 + $0xa4] sm:$0xf]
        %v1479 = vld [vmem:[%s1324 + $0xa8] sm:$0xf]
        %v1480 = vld [vmem:[%s1324 + $0xac] sm:$0xf]
        %v1481 = vld [vmem:[%s1324 + $0xb0] sm:$0xf]
        %v1482 = vld [vmem:[%s1324 + $0xb4] sm:$0xf]
        %v1483 = vld [vmem:[%s1324 + $0xb8] sm:$0xf]
        %v1484 = vld [vmem:[%s1324 + $0xbc] sm:$0xf]
        %v1485 = vld [vmem:[%s1324 + $0xc0] sm:$0xf]
        %v1486 = vld [vmem:[%s1324 + $0xc4] sm:$0xf]
        %v1487 = vld [vmem:[%s1324 + $0xc8] sm:$0xf]
        %v1488 = vld [vmem:[%s1324 + $0xcc] sm:$0xf]
        %v1489 = vld [vmem:[%s1324 + $0xd0] sm:$0xf]
        %v1490 = vld [vmem:[%s1324 + $0xd4] sm:$0xf]
        %v1491 = vld [vmem:[%s1324 + $0xd8] sm:$0xf]
        %v1492 = vld [vmem:[%s1324 + $0xdc] sm:$0xf]
        %v1493 = vld [vmem:[%s1324 + $0xe0] sm:$0xf]
        %v1494 = vld [vmem:[%s1324 + $0xe4] sm:$0xf]
        %v1495 = vld [vmem:[%s1324 + $0xe8] sm:$0xf]
        %v1496 = vld [vmem:[%s1324 + $0xec] sm:$0xf]
        %v1497 = vld [vmem:[%s1324 + $0xf0] sm:$0xf]
        %v1498 = vld [vmem:[%s1324 + $0xf4] sm:$0xf]
        %v1499 = vld [vmem:[%s1324 + $0xf8] sm:$0xf]
        %v1500 = vld [vmem:[%s1324 + $0xfc] sm:$0xf]
        %v1501 = vld [vmem:[%s1324 + $0x100] sm:$0xf]
        %v1502 = vld [vmem:[%s1324 + $0x104] sm:$0xf]
        %v1503 = vld [vmem:[%s1324 + $0x108] sm:$0xf]
        %v1504 = vld [vmem:[%s1324 + $0x10c] sm:$0xf]
        %v1505 = vld [vmem:[%s1324 + $0x110] sm:$0xf]
        %v1506 = vld [vmem:[%s1324 + $0x114] sm:$0xf]
        %v1507 = vld [vmem:[%s1324 + $0x118] sm:$0xf]
        %v1508 = vld [vmem:[%s1324 + $0x11c] sm:$0xf]
        %v1509 = vld [vmem:[%s1324 + $0x120] sm:$0xf]
        %v1510 = vld [vmem:[%s1324 + $0x124] sm:$0xf]
        %v1511 = vld [vmem:[%s1324 + $0x128] sm:$0xf]
        %v1512 = vld [vmem:[%s1324 + $0x12c] sm:$0xf]
        %v1513 = vld [vmem:[%s1324 + $0x130] sm:$0xf]
        %v1514 = vld [vmem:[%s1324 + $0x134] sm:$0xf]
        %v1515 = vld [vmem:[%s1324 + $0x138] sm:$0xf]
        %v1516 = vld [vmem:[%s1324 + $0x13c] sm:$0xf]
        %v1517 = vld [vmem:[%s1324 + $0x140] sm:$0xf]
        %v1518 = vld [vmem:[%s1324 + $0x144] sm:$0xf]
        %v1519 = vld [vmem:[%s1324 + $0x148] sm:$0xf]
        %v1520 = vld [vmem:[%s1324 + $0x14c] sm:$0xf]
        %v1521 = vld [vmem:[%s1324 + $0x150] sm:$0xf]
        %v1522 = vld [vmem:[%s1324 + $0x154] sm:$0xf]
        %v1523 = vld [vmem:[%s1324 + $0x158] sm:$0xf]
        %v1524 = vld [vmem:[%s1324 + $0x15c] sm:$0xf]
        %v1525 = vld [vmem:[%s1324 + $0x160] sm:$0xf]
        %v1526 = vld [vmem:[%s1324 + $0x164] sm:$0xf]
        %v1527 = vld [vmem:[%s1324 + $0x168] sm:$0xf]
        %v1528 = vld [vmem:[%s1324 + $0x16c] sm:$0xf]
        %v1529 = vld [vmem:[%s1324 + $0x170] sm:$0xf]
        %v1530 = vld [vmem:[%s1324 + $0x174] sm:$0xf]
        %v1531 = vld [vmem:[%s1324 + $0x178] sm:$0xf]
        %v1532 = vld [vmem:[%s1324 + $0x17c] sm:$0xf]
        %v1533 = vld [vmem:[%s1324 + $0x180] sm:$0xf]
        %v1534 = vld [vmem:[%s1324 + $0x184] sm:$0xf]
        %v1535 = vld [vmem:[%s1324 + $0x188] sm:$0xf]
        %v1536 = vld [vmem:[%s1324 + $0x18c] sm:$0xf]
        %v1537 = vld [vmem:[%s1324 + $0x190] sm:$0xf]
        %v1538 = vld [vmem:[%s1324 + $0x194] sm:$0xf]
        %v1539 = vld [vmem:[%s1324 + $0x198] sm:$0xf]
        %v1540 = vld [vmem:[%s1324 + $0x19c] sm:$0xf]
        %v1541 = vld [vmem:[%s1324 + $0x1a0] sm:$0xf]
        %v1542 = vld [vmem:[%s1324 + $0x1a4] sm:$0xf]
        %v1543 = vld [vmem:[%s1324 + $0x1a8] sm:$0xf]
        %v1544 = vld [vmem:[%s1324 + $0x1ac] sm:$0xf]
        %v1545 = vld [vmem:[%s1324 + $0x1b0] sm:$0xf]
        %v1546 = vld [vmem:[%s1324 + $0x1b4] sm:$0xf]
        %v1547 = vld [vmem:[%s1324 + $0x1b8] sm:$0xf]
        %v1548 = vld [vmem:[%s1324 + $0x1bc] sm:$0xf]
        %v1549 = vld [vmem:[%s1324 + $0x1c0] sm:$0xf]
        %v1550 = vld [vmem:[%s1324 + $0x1c4] sm:$0xf]
        %v1551 = vld [vmem:[%s1324 + $0x1c8] sm:$0xf]
        %v1552 = vld [vmem:[%s1324 + $0x1cc] sm:$0xf]
        %v1553 = vld [vmem:[%s1324 + $0x1d0] sm:$0xf]
        %v1554 = vld [vmem:[%s1324 + $0x1d4] sm:$0xf]
        %v1555 = vld [vmem:[%s1324 + $0x1d8] sm:$0xf]
        %v1556 = vld [vmem:[%s1324 + $0x1dc] sm:$0xf]
        %v1557 = vld [vmem:[%s1324 + $0x1e0] sm:$0xf]
        %v1558 = vld [vmem:[%s1324 + $0x1e4] sm:$0xf]
        %v1559 = vld [vmem:[%s1324 + $0x1e8] sm:$0xf]
        %v1560 = vld [vmem:[%s1324 + $0x1ec] sm:$0xf]
        %v1561 = vld [vmem:[%s1324 + $0x1f0] sm:$0xf]
        %v1562 = vld [vmem:[%s1324 + $0x1f4] sm:$0xf]
        %v1563 = vld [vmem:[%s1324 + $0x1f8] sm:$0xf]
        %v1564 = vld [vmem:[%s1324 + $0x1fc] sm:$0xf]
        %v1565 = vld [vmem:[%s1324 + $0x200] sm:$0xf]
        %v1566 = vld [vmem:[%s1324 + $0x204] sm:$0xf]
        %v1567 = vld [vmem:[%s1324 + $0x208] sm:$0xf]
        %v1568 = vld [vmem:[%s1324 + $0x20c] sm:$0xf]
        %v1569 = vld [vmem:[%s1324 + $0x210] sm:$0xf]
        %v1570 = vld [vmem:[%s1324 + $0x214] sm:$0xf]
        %v1571 = vld [vmem:[%s1324 + $0x218] sm:$0xf]
        %v1572 = vld [vmem:[%s1324 + $0x21c] sm:$0xf]
        %v1573 = vld [vmem:[%s1324 + $0x220] sm:$0xf]
        %v1574 = vld [vmem:[%s1324 + $0x224] sm:$0xf]
        %v1575 = vld [vmem:[%s1324 + $0x228] sm:$0xf]
        %v1576 = vld [vmem:[%s1324 + $0x22c] sm:$0xf]
        %v1577 = vld [vmem:[%s1324 + $0x230] sm:$0xf]
        %v1578 = vld [vmem:[%s1324 + $0x234] sm:$0xf]
        %v1579 = vld [vmem:[%s1324 + $0x238] sm:$0xf]
        %v1580 = vld [vmem:[%s1324 + $0x23c] sm:$0xf]
        %v1581 = vld [vmem:[%s1324 + $0x240] sm:$0xf]
        %v1582 = vld [vmem:[%s1324 + $0x244] sm:$0xf]
        %v1583 = vld [vmem:[%s1324 + $0x248] sm:$0xf]
        %v1584 = vld [vmem:[%s1324 + $0x24c] sm:$0xf]
        %v1585 = vld [vmem:[%s1324 + $0x250] sm:$0xf]
        %v1586 = vld [vmem:[%s1324 + $0x254] sm:$0xf]
        %v1587 = vld [vmem:[%s1324 + $0x258] sm:$0xf]
        %v1588 = vld [vmem:[%s1324 + $0x25c] sm:$0xf]
        %v1589 = vld [vmem:[%s1324 + $0x260] sm:$0xf]
        %v1590 = vld [vmem:[%s1324 + $0x264] sm:$0xf]
        %v1591 = vld [vmem:[%s1324 + $0x268] sm:$0xf]
        %v1592 = vld [vmem:[%s1324 + $0x26c] sm:$0xf]
        %v1593 = vld [vmem:[%s1324 + $0x270] sm:$0xf]
        %v1594 = vld [vmem:[%s1324 + $0x274] sm:$0xf]
        %v1595 = vld [vmem:[%s1324 + $0x278] sm:$0xf]
        %v1596 = vld [vmem:[%s1324 + $0x27c] sm:$0xf]
        %v1597 = vld [vmem:[%s1324 + $0x280] sm:$0xf]
        %v1598 = vld [vmem:[%s1324 + $0x284] sm:$0xf]
        %v1599 = vld [vmem:[%s1324 + $0x288] sm:$0xf]
        %v1600 = vld [vmem:[%s1324 + $0x28c] sm:$0xf]
        %v1601 = vld [vmem:[%s1324 + $0x290] sm:$0xf]
        %v1602 = vld [vmem:[%s1324 + $0x294] sm:$0xf]
        %v1603 = vld [vmem:[%s1324 + $0x298] sm:$0xf]
        %v1604 = vld [vmem:[%s1324 + $0x29c] sm:$0xf]
        %v1605 = vld [vmem:[%s1324 + $0x2a0] sm:$0xf]
        %v1606 = vld [vmem:[%s1324 + $0x2a4] sm:$0xf]
        %v1607 = vld [vmem:[%s1324 + $0x2a8] sm:$0xf]
        %v1608 = vld [vmem:[%s1324 + $0x2ac] sm:$0xf]
        %v1609 = vld [vmem:[%s1324 + $0x2b0] sm:$0xf]
        %v1610 = vld [vmem:[%s1324 + $0x2b4] sm:$0xf]
        %v1611 = vld [vmem:[%s1324 + $0x2b8] sm:$0xf]
        %v1612 = vld [vmem:[%s1324 + $0x2bc] sm:$0xf]
        %v1613 = vld [vmem:[%s1324 + $0x2c0] sm:$0xf]
        %v1614 = vld [vmem:[%s1324 + $0x2c4] sm:$0xf]
        %v1615 = vld [vmem:[%s1324 + $0x2c8] sm:$0xf]
        %v1616 = vld [vmem:[%s1324 + $0x2cc] sm:$0xf]
        %v1617 = vld [vmem:[%s1324 + $0x2d0] sm:$0xf]
        %v1618 = vld [vmem:[%s1324 + $0x2d4] sm:$0xf]
        %v1619 = vld [vmem:[%s1324 + $0x2d8] sm:$0xf]
        %v1620 = vld [vmem:[%s1324 + $0x2dc] sm:$0xf]
        %v1621 = vld [vmem:[%s1324 + $0x2e0] sm:$0xf]
        %v1622 = vld [vmem:[%s1324 + $0x2e4] sm:$0xf]
        %v1623 = vld [vmem:[%s1324 + $0x2e8] sm:$0xf]
        %v1624 = vld [vmem:[%s1324 + $0x2ec] sm:$0xf]
        %v1625 = vld [vmem:[%s1324 + $0x2f0] sm:$0xf]
        %v1626 = vld [vmem:[%s1324 + $0x2f4] sm:$0xf]
        %v1627 = vld [vmem:[%s1324 + $0x2f8] sm:$0xf]
        %v1628 = vld [vmem:[%s1324 + $0x2fc] sm:$0xf]
        %v1629 = vld [vmem:[%s1324 + $0x300] sm:$0xf]
        %v1630 = vld [vmem:[%s1324 + $0x304] sm:$0xf]
        %v1631 = vld [vmem:[%s1324 + $0x308] sm:$0xf]
        %v1632 = vld [vmem:[%s1324 + $0x30c] sm:$0xf]
        %v1633 = vld [vmem:[%s1324 + $0x310] sm:$0xf]
        %v1634 = vld [vmem:[%s1324 + $0x314] sm:$0xf]
        %v1635 = vld [vmem:[%s1324 + $0x318] sm:$0xf]
        %v1636 = vld [vmem:[%s1324 + $0x31c] sm:$0xf]
        %v1637 = vld [vmem:[%s1324 + $0x320] sm:$0xf]
        %v1638 = vld [vmem:[%s1324 + $0x324] sm:$0xf]
        %v1639 = vld [vmem:[%s1324 + $0x328] sm:$0xf]
        %v1640 = vld [vmem:[%s1324 + $0x32c] sm:$0xf]
        %v1641 = vld [vmem:[%s1324 + $0x330] sm:$0xf]
        %v1642 = vld [vmem:[%s1324 + $0x334] sm:$0xf]
        %v1643 = vld [vmem:[%s1324 + $0x338] sm:$0xf]
        %v1644 = vld [vmem:[%s1324 + $0x33c] sm:$0xf]
        %v1645 = vld [vmem:[%s1324 + $0x340] sm:$0xf]
        %v1646 = vld [vmem:[%s1324 + $0x344] sm:$0xf]
        %v1647 = vld [vmem:[%s1324 + $0x348] sm:$0xf]
        %v1648 = vld [vmem:[%s1324 + $0x34c] sm:$0xf]
        %v1649 = vld [vmem:[%s1324 + $0x350] sm:$0xf]
        %v1650 = vld [vmem:[%s1324 + $0x354] sm:$0xf]
        %v1651 = vld [vmem:[%s1324 + $0x358] sm:$0xf]
        %v1652 = vld [vmem:[%s1324 + $0x35c] sm:$0xf]
        %v1653 = vld [vmem:[%s1324 + $0x360] sm:$0xf]
        %v1654 = vld [vmem:[%s1324 + $0x364] sm:$0xf]
        %v1655 = vld [vmem:[%s1324 + $0x368] sm:$0xf]
        %v1656 = vld [vmem:[%s1324 + $0x36c] sm:$0xf]
        %v1657 = vld [vmem:[%s1324 + $0x370] sm:$0xf]
        %v1658 = vld [vmem:[%s1324 + $0x374] sm:$0xf]
        %v1659 = vld [vmem:[%s1324 + $0x378] sm:$0xf]
        %v1660 = vld [vmem:[%s1324 + $0x37c] sm:$0xf]
        %v1661 = vld [vmem:[%s1324 + $0x380] sm:$0xf]
        %v1662 = vld [vmem:[%s1324 + $0x384] sm:$0xf]
        %v1663 = vld [vmem:[%s1324 + $0x388] sm:$0xf]
        %v1664 = vld [vmem:[%s1324 + $0x38c] sm:$0xf]
        %v1665 = vld [vmem:[%s1324 + $0x390] sm:$0xf]
        %v1666 = vld [vmem:[%s1324 + $0x394] sm:$0xf]
        %v1667 = vld [vmem:[%s1324 + $0x398] sm:$0xf]
        %v1668 = vld [vmem:[%s1324 + $0x39c] sm:$0xf]
        %v1669 = vld [vmem:[%s1324 + $0x3a0] sm:$0xf]
        %v1670 = vld [vmem:[%s1324 + $0x3a4] sm:$0xf]
        %v1671 = vld [vmem:[%s1324 + $0x3a8] sm:$0xf]
        %v1672 = vld [vmem:[%s1324 + $0x3ac] sm:$0xf]
        %v1673 = vld [vmem:[%s1324 + $0x3b0] sm:$0xf]
        %v1674 = vld [vmem:[%s1324 + $0x3b4] sm:$0xf]
        %v1675 = vld [vmem:[%s1324 + $0x3b8] sm:$0xf]
        %v1676 = vld [vmem:[%s1324 + $0x3bc] sm:$0xf]
        %v1677 = vld [vmem:[%s1324 + $0x3c0] sm:$0xf]
        %v1678 = vld [vmem:[%s1324 + $0x3c4] sm:$0xf]
        %v1679 = vld [vmem:[%s1324 + $0x3c8] sm:$0xf]
        %v1680 = vld [vmem:[%s1324 + $0x3cc] sm:$0xf]
        %v1681 = vld [vmem:[%s1324 + $0x3d0] sm:$0xf]
        %v1682 = vld [vmem:[%s1324 + $0x3d4] sm:$0xf]
        %v1683 = vld [vmem:[%s1324 + $0x3d8] sm:$0xf]
        %v1684 = vld [vmem:[%s1324 + $0x3dc] sm:$0xf]
        %v1685 = vld [vmem:[%s1324 + $0x3e0] sm:$0xf]
        %v1686 = vld [vmem:[%s1324 + $0x3e4] sm:$0xf]
        %v1687 = vld [vmem:[%s1324 + $0x3e8] sm:$0xf]
        %v1688 = vld [vmem:[%s1324 + $0x3ec] sm:$0xf]
        %v1689 = vld [vmem:[%s1324 + $0x3f0] sm:$0xf]
        %v1690 = vld [vmem:[%s1324 + $0x3f4] sm:$0xf]
        %v1691 = vld [vmem:[%s1324 + $0x3f8] sm:$0xf]
        %v1692 = vld [vmem:[%s1324 + $0x3fc] sm:$0xf]
        %v1693 = vld [vmem:[%s1396] sm:$0x1]
        %v1695 = vlaneseq
        %v1696 = vshrl.u32 %v1695, 7
        %v1697 = vsub.s32 0, %v1696
        %v1698 = vrot.slane %v1693, %v1697
        %v1716 = vunpack.c.l.b16 %v1421
        %v1717 = vunpack.c.h.b16 %v1421
        %v1718 = vunpack.c.l.b16 %v1422
        %v1719 = vunpack.c.h.b16 %v1422
        %v1720 = vunpack.c.l.b16 %v1423
        %v1721 = vunpack.c.h.b16 %v1423
        %v1722 = vunpack.c.l.b16 %v1424
        %v1723 = vunpack.c.h.b16 %v1424
        %v1724 = vunpack.c.l.b16 %v1425
        %v1725 = vunpack.c.h.b16 %v1425
        %v1726 = vunpack.c.l.b16 %v1426
        %v1727 = vunpack.c.h.b16 %v1426
        %v1728 = vunpack.c.l.b16 %v1427
        %v1729 = vunpack.c.h.b16 %v1427
        %v1730 = vunpack.c.l.b16 %v1428
        %v1731 = vunpack.c.h.b16 %v1428
        %v1732 = vunpack.c.l.b16 %v1429
        %v1733 = vunpack.c.h.b16 %v1429
        %v1734 = vunpack.c.l.b16 %v1430
        %v1735 = vunpack.c.h.b16 %v1430
        %v1736 = vunpack.c.l.b16 %v1431
        %v1737 = vunpack.c.h.b16 %v1431
        %v1738 = vunpack.c.l.b16 %v1432
        %v1739 = vunpack.c.h.b16 %v1432
        %v1740 = vunpack.c.l.b16 %v1433
        %v1741 = vunpack.c.h.b16 %v1433
        %v1742 = vunpack.c.l.b16 %v1434
        %v1743 = vunpack.c.h.b16 %v1434
        %v1744 = vunpack.c.l.b16 %v1435
        %v1745 = vunpack.c.h.b16 %v1435
        %v1746 = vunpack.c.l.b16 %v1436
        %v1747 = vunpack.c.h.b16 %v1436
        %v1748 = vpack.c.b16 %v1732, %v1716
        %v1749 = vpack.c.b16 %v1733, %v1717
        %v1750 = vpack.c.b16 %v1734, %v1718
        %v1751 = vpack.c.b16 %v1735, %v1719
        %v1752 = vpack.c.b16 %v1736, %v1720
        %v1753 = vpack.c.b16 %v1737, %v1721
        %v1754 = vpack.c.b16 %v1738, %v1722
        %v1755 = vpack.c.b16 %v1739, %v1723
        %v1756 = vpack.c.b16 %v1740, %v1724
        %v1757 = vpack.c.b16 %v1741, %v1725
        %v1758 = vpack.c.b16 %v1742, %v1726
        %v1759 = vpack.c.b16 %v1743, %v1727
        %v1760 = vpack.c.b16 %v1744, %v1728
        %v1761 = vpack.c.b16 %v1745, %v1729
        %v1762 = vpack.c.b16 %v1746, %v1730
        %v1763 = vpack.c.b16 %v1747, %v1731
        %v2036 = vunpack.c.l.b16 %v1437
        %v2037 = vunpack.c.l.b16 %v1438
        %v2038 = vunpack.c.l.b16 %v1439
        %v2039 = vunpack.c.l.b16 %v1440
        %v2040 = vunpack.c.l.b16 %v1441
        %v2041 = vunpack.c.l.b16 %v1442
        %v2042 = vunpack.c.l.b16 %v1443
        %v2043 = vunpack.c.l.b16 %v1444
        %v2044 = vunpack.c.l.b16 %v1445
        %v2045 = vunpack.c.l.b16 %v1446
        %v2046 = vunpack.c.l.b16 %v1447
        %v2047 = vunpack.c.l.b16 %v1448
        %v2048 = vunpack.c.l.b16 %v1449
        %v2049 = vunpack.c.l.b16 %v1450
        %v2050 = vunpack.c.l.b16 %v1451
        %v2051 = vunpack.c.l.b16 %v1452
        %v2052 = vunpack.c.l.b16 %v1453
        %v2053 = vunpack.c.l.b16 %v1454
        %v2054 = vunpack.c.l.b16 %v1455
        %v2055 = vunpack.c.l.b16 %v1456
        %v2056 = vunpack.c.l.b16 %v1457
        %v2057 = vunpack.c.l.b16 %v1458
        %v2058 = vunpack.c.l.b16 %v1459
        %v2059 = vunpack.c.l.b16 %v1460
        %v2060 = vunpack.c.l.b16 %v1461
        %v2061 = vunpack.c.l.b16 %v1462
        %v2062 = vunpack.c.l.b16 %v1463
        %v2063 = vunpack.c.l.b16 %v1464
        %v2064 = vunpack.c.l.b16 %v1465
        %v2065 = vunpack.c.l.b16 %v1466
        %v2066 = vunpack.c.l.b16 %v1467
        %v2067 = vunpack.c.l.b16 %v1468
        %v2068 = vunpack.c.l.b16 %v1469
        %v2069 = vunpack.c.l.b16 %v1470
        %v2070 = vunpack.c.l.b16 %v1471
        %v2071 = vunpack.c.l.b16 %v1472
        %v2072 = vunpack.c.l.b16 %v1473
        %v2073 = vunpack.c.l.b16 %v1474
        %v2074 = vunpack.c.l.b16 %v1475
        %v2075 = vunpack.c.l.b16 %v1476
        %v2076 = vunpack.c.l.b16 %v1477
        %v2077 = vunpack.c.l.b16 %v1478
        %v2078 = vunpack.c.l.b16 %v1479
        %v2079 = vunpack.c.l.b16 %v1480
        %v2080 = vunpack.c.l.b16 %v1481
        %v2081 = vunpack.c.l.b16 %v1482
        %v2082 = vunpack.c.l.b16 %v1483
        %v2083 = vunpack.c.l.b16 %v1484
        %v2084 = vunpack.c.l.b16 %v1485
        %v2085 = vunpack.c.l.b16 %v1486
        %v2086 = vunpack.c.l.b16 %v1487
        %v2087 = vunpack.c.l.b16 %v1488
        %v2088 = vunpack.c.l.b16 %v1489
        %v2089 = vunpack.c.l.b16 %v1490
        %v2090 = vunpack.c.l.b16 %v1491
        %v2091 = vunpack.c.l.b16 %v1492
        %v2092 = vunpack.c.l.b16 %v1493
        %v2093 = vunpack.c.l.b16 %v1494
        %v2094 = vunpack.c.l.b16 %v1495
        %v2095 = vunpack.c.l.b16 %v1496
        %v2096 = vunpack.c.l.b16 %v1497
        %v2097 = vunpack.c.l.b16 %v1498
        %v2098 = vunpack.c.l.b16 %v1499
        %v2099 = vunpack.c.l.b16 %v1500
        %v2100 = vunpack.c.l.b16 %v1501
        %v2101 = vunpack.c.l.b16 %v1502
        %v2102 = vunpack.c.l.b16 %v1503
        %v2103 = vunpack.c.l.b16 %v1504
        %v2104 = vunpack.c.l.b16 %v1505
        %v2105 = vunpack.c.l.b16 %v1506
        %v2106 = vunpack.c.l.b16 %v1507
        %v2107 = vunpack.c.l.b16 %v1508
        %v2108 = vunpack.c.l.b16 %v1509
        %v2109 = vunpack.c.l.b16 %v1510
        %v2110 = vunpack.c.l.b16 %v1511
        %v2111 = vunpack.c.l.b16 %v1512
        %v2112 = vunpack.c.l.b16 %v1513
        %v2113 = vunpack.c.l.b16 %v1514
        %v2114 = vunpack.c.l.b16 %v1515
        %v2115 = vunpack.c.l.b16 %v1516
        %v2116 = vunpack.c.l.b16 %v1517
        %v2117 = vunpack.c.l.b16 %v1518
        %v2118 = vunpack.c.l.b16 %v1519
        %v2119 = vunpack.c.l.b16 %v1520
        %v2120 = vunpack.c.l.b16 %v1521
        %v2121 = vunpack.c.l.b16 %v1522
        %v2122 = vunpack.c.l.b16 %v1523
        %v2123 = vunpack.c.l.b16 %v1524
        %v2124 = vunpack.c.l.b16 %v1525
        %v2125 = vunpack.c.l.b16 %v1526
        %v2126 = vunpack.c.l.b16 %v1527
        %v2127 = vunpack.c.l.b16 %v1528
        %v2128 = vunpack.c.l.b16 %v1529
        %v2129 = vunpack.c.l.b16 %v1530
        %v2130 = vunpack.c.l.b16 %v1531
        %v2131 = vunpack.c.l.b16 %v1532
        %v2132 = vunpack.c.l.b16 %v1533
        %v2133 = vunpack.c.l.b16 %v1534
        %v2134 = vunpack.c.l.b16 %v1535
        %v2135 = vunpack.c.l.b16 %v1536
        %v2136 = vunpack.c.l.b16 %v1537
        %v2137 = vunpack.c.l.b16 %v1538
        %v2138 = vunpack.c.l.b16 %v1539
        %v2139 = vunpack.c.l.b16 %v1540
        %v2140 = vunpack.c.l.b16 %v1541
        %v2141 = vunpack.c.l.b16 %v1542
        %v2142 = vunpack.c.l.b16 %v1543
        %v2143 = vunpack.c.l.b16 %v1544
        %v2144 = vunpack.c.l.b16 %v1545
        %v2145 = vunpack.c.l.b16 %v1546
        %v2146 = vunpack.c.l.b16 %v1547
        %v2147 = vunpack.c.l.b16 %v1548
        %v2148 = vunpack.c.l.b16 %v1549
        %v2149 = vunpack.c.l.b16 %v1550
        %v2150 = vunpack.c.l.b16 %v1551
        %v2151 = vunpack.c.l.b16 %v1552
        %v2152 = vunpack.c.l.b16 %v1553
        %v2153 = vunpack.c.l.b16 %v1554
        %v2154 = vunpack.c.l.b16 %v1555
        %v2155 = vunpack.c.l.b16 %v1556
        %v2156 = vunpack.c.l.b16 %v1557
        %v2157 = vunpack.c.l.b16 %v1558
        %v2158 = vunpack.c.l.b16 %v1559
        %v2159 = vunpack.c.l.b16 %v1560
        %v2160 = vunpack.c.l.b16 %v1561
        %v2161 = vunpack.c.l.b16 %v1562
        %v2162 = vunpack.c.l.b16 %v1563
        %v2163 = vunpack.c.l.b16 %v1564
        %v2164 = vunpack.c.l.b16 %v1565
        %v2165 = vunpack.c.l.b16 %v1566
        %v2166 = vunpack.c.l.b16 %v1567
        %v2167 = vunpack.c.l.b16 %v1568
        %v2168 = vunpack.c.l.b16 %v1569
        %v2169 = vunpack.c.l.b16 %v1570
        %v2170 = vunpack.c.l.b16 %v1571
        %v2171 = vunpack.c.l.b16 %v1572
        %v2172 = vunpack.c.l.b16 %v1573
        %v2173 = vunpack.c.l.b16 %v1574
        %v2174 = vunpack.c.l.b16 %v1575
        %v2175 = vunpack.c.l.b16 %v1576
        %v2176 = vunpack.c.l.b16 %v1577
        %v2177 = vunpack.c.l.b16 %v1578
        %v2178 = vunpack.c.l.b16 %v1579
        %v2179 = vunpack.c.l.b16 %v1580
        %v2180 = vunpack.c.l.b16 %v1581
        %v2181 = vunpack.c.l.b16 %v1582
        %v2182 = vunpack.c.l.b16 %v1583
        %v2183 = vunpack.c.l.b16 %v1584
        %v2184 = vunpack.c.l.b16 %v1585
        %v2185 = vunpack.c.l.b16 %v1586
        %v2186 = vunpack.c.l.b16 %v1587
        %v2187 = vunpack.c.l.b16 %v1588
        %v2188 = vunpack.c.l.b16 %v1589
        %v2189 = vunpack.c.l.b16 %v1590
        %v2190 = vunpack.c.l.b16 %v1591
        %v2191 = vunpack.c.l.b16 %v1592
        %v2192 = vunpack.c.l.b16 %v1593
        %v2193 = vunpack.c.l.b16 %v1594
        %v2194 = vunpack.c.l.b16 %v1595
        %v2195 = vunpack.c.l.b16 %v1596
        %v2196 = vunpack.c.l.b16 %v1597
        %v2197 = vunpack.c.l.b16 %v1598
        %v2198 = vunpack.c.l.b16 %v1599
        %v2199 = vunpack.c.l.b16 %v1600
        %v2200 = vunpack.c.l.b16 %v1601
        %v2201 = vunpack.c.l.b16 %v1602
        %v2202 = vunpack.c.l.b16 %v1603
        %v2203 = vunpack.c.l.b16 %v1604
        %v2204 = vunpack.c.l.b16 %v1605
        %v2205 = vunpack.c.l.b16 %v1606
        %v2206 = vunpack.c.l.b16 %v1607
        %v2207 = vunpack.c.l.b16 %v1608
        %v2208 = vunpack.c.l.b16 %v1609
        %v2209 = vunpack.c.l.b16 %v1610
        %v2210 = vunpack.c.l.b16 %v1611
        %v2211 = vunpack.c.l.b16 %v1612
        %v2212 = vunpack.c.l.b16 %v1613
        %v2213 = vunpack.c.l.b16 %v1614
        %v2214 = vunpack.c.l.b16 %v1615
        %v2215 = vunpack.c.l.b16 %v1616
        %v2216 = vunpack.c.l.b16 %v1617
        %v2217 = vunpack.c.l.b16 %v1618
        %v2218 = vunpack.c.l.b16 %v1619
        %v2219 = vunpack.c.l.b16 %v1620
        %v2220 = vunpack.c.l.b16 %v1621
        %v2221 = vunpack.c.l.b16 %v1622
        %v2222 = vunpack.c.l.b16 %v1623
        %v2223 = vunpack.c.l.b16 %v1624
        %v2224 = vunpack.c.l.b16 %v1625
        %v2225 = vunpack.c.l.b16 %v1626
        %v2226 = vunpack.c.l.b16 %v1627
        %v2227 = vunpack.c.l.b16 %v1628
        %v2228 = vunpack.c.l.b16 %v1629
        %v2229 = vunpack.c.l.b16 %v1630
        %v2230 = vunpack.c.l.b16 %v1631
        %v2231 = vunpack.c.l.b16 %v1632
        %v2232 = vunpack.c.l.b16 %v1633
        %v2233 = vunpack.c.l.b16 %v1634
        %v2234 = vunpack.c.l.b16 %v1635
        %v2235 = vunpack.c.l.b16 %v1636
        %v2236 = vunpack.c.l.b16 %v1637
        %v2237 = vunpack.c.l.b16 %v1638
        %v2238 = vunpack.c.l.b16 %v1639
        %v2239 = vunpack.c.l.b16 %v1640
        %v2240 = vunpack.c.l.b16 %v1641
        %v2241 = vunpack.c.l.b16 %v1642
        %v2242 = vunpack.c.l.b16 %v1643
        %v2243 = vunpack.c.l.b16 %v1644
        %v2244 = vunpack.c.l.b16 %v1645
        %v2245 = vunpack.c.l.b16 %v1646
        %v2246 = vunpack.c.l.b16 %v1647
        %v2247 = vunpack.c.l.b16 %v1648
        %v2248 = vunpack.c.l.b16 %v1649
        %v2249 = vunpack.c.l.b16 %v1650
        %v2250 = vunpack.c.l.b16 %v1651
        %v2251 = vunpack.c.l.b16 %v1652
        %v2252 = vunpack.c.l.b16 %v1653
        %v2253 = vunpack.c.l.b16 %v1654
        %v2254 = vunpack.c.l.b16 %v1655
        %v2255 = vunpack.c.l.b16 %v1656
        %v2256 = vunpack.c.l.b16 %v1657
        %v2257 = vunpack.c.l.b16 %v1658
        %v2258 = vunpack.c.l.b16 %v1659
        %v2259 = vunpack.c.l.b16 %v1660
        %v2260 = vunpack.c.l.b16 %v1661
        %v2261 = vunpack.c.l.b16 %v1662
        %v2262 = vunpack.c.l.b16 %v1663
        %v2263 = vunpack.c.l.b16 %v1664
        %v2264 = vunpack.c.l.b16 %v1665
        %v2265 = vunpack.c.l.b16 %v1666
        %v2266 = vunpack.c.l.b16 %v1667
        %v2267 = vunpack.c.l.b16 %v1668
        %v2268 = vunpack.c.l.b16 %v1669
        %v2269 = vunpack.c.l.b16 %v1670
        %v2270 = vunpack.c.l.b16 %v1671
        %v2271 = vunpack.c.l.b16 %v1672
        %v2272 = vunpack.c.l.b16 %v1673
        %v2273 = vunpack.c.l.b16 %v1674
        %v2274 = vunpack.c.l.b16 %v1675
        %v2275 = vunpack.c.l.b16 %v1676
        %v2276 = vunpack.c.l.b16 %v1677
        %v2277 = vunpack.c.l.b16 %v1678
        %v2278 = vunpack.c.l.b16 %v1679
        %v2279 = vunpack.c.l.b16 %v1680
        %v2280 = vunpack.c.l.b16 %v1681
        %v2281 = vunpack.c.l.b16 %v1682
        %v2282 = vunpack.c.l.b16 %v1683
        %v2283 = vunpack.c.l.b16 %v1684
        %v2284 = vunpack.c.l.b16 %v1685
        %v2285 = vunpack.c.l.b16 %v1686
        %v2286 = vunpack.c.l.b16 %v1687
        %v2287 = vunpack.c.l.b16 %v1688
        %v2288 = vunpack.c.l.b16 %v1689
        %v2289 = vunpack.c.l.b16 %v1690
        %v2290 = vunpack.c.l.b16 %v1691
        %v2291 = vunpack.c.l.b16 %v1692
        %v2292 = vpack.c.b16 %v2037, %v2036
        %v2293 = vpack.c.b16 %v2039, %v2038
        %v2294 = vpack.c.b16 %v2041, %v2040
        %v2295 = vpack.c.b16 %v2043, %v2042
        %v2296 = vpack.c.b16 %v2045, %v2044
        %v2297 = vpack.c.b16 %v2047, %v2046
        %v2298 = vpack.c.b16 %v2049, %v2048
        %v2299 = vpack.c.b16 %v2051, %v2050
        %v2300 = vpack.c.b16 %v2053, %v2052
        %v2301 = vpack.c.b16 %v2055, %v2054
        %v2302 = vpack.c.b16 %v2057, %v2056
        %v2303 = vpack.c.b16 %v2059, %v2058
        %v2304 = vpack.c.b16 %v2061, %v2060
        %v2305 = vpack.c.b16 %v2063, %v2062
        %v2306 = vpack.c.b16 %v2065, %v2064
        %v2307 = vpack.c.b16 %v2067, %v2066
        %v2308 = vpack.c.b16 %v2069, %v2068
        %v2309 = vpack.c.b16 %v2071, %v2070
        %v2310 = vpack.c.b16 %v2073, %v2072
        %v2311 = vpack.c.b16 %v2075, %v2074
        %v2312 = vpack.c.b16 %v2077, %v2076
        %v2313 = vpack.c.b16 %v2079, %v2078
        %v2314 = vpack.c.b16 %v2081, %v2080
        %v2315 = vpack.c.b16 %v2083, %v2082
        %v2316 = vpack.c.b16 %v2085, %v2084
        %v2317 = vpack.c.b16 %v2087, %v2086
        %v2318 = vpack.c.b16 %v2089, %v2088
        %v2319 = vpack.c.b16 %v2091, %v2090
        %v2320 = vpack.c.b16 %v2093, %v2092
        %v2321 = vpack.c.b16 %v2095, %v2094
        %v2322 = vpack.c.b16 %v2097, %v2096
        %v2323 = vpack.c.b16 %v2099, %v2098
        %v2324 = vpack.c.b16 %v2101, %v2100
        %v2325 = vpack.c.b16 %v2103, %v2102
        %v2326 = vpack.c.b16 %v2105, %v2104
        %v2327 = vpack.c.b16 %v2107, %v2106
        %v2328 = vpack.c.b16 %v2109, %v2108
        %v2329 = vpack.c.b16 %v2111, %v2110
        %v2330 = vpack.c.b16 %v2113, %v2112
        %v2331 = vpack.c.b16 %v2115, %v2114
        %v2332 = vpack.c.b16 %v2117, %v2116
        %v2333 = vpack.c.b16 %v2119, %v2118
        %v2334 = vpack.c.b16 %v2121, %v2120
        %v2335 = vpack.c.b16 %v2123, %v2122
        %v2336 = vpack.c.b16 %v2125, %v2124
        %v2337 = vpack.c.b16 %v2127, %v2126
        %v2338 = vpack.c.b16 %v2129, %v2128
        %v2339 = vpack.c.b16 %v2131, %v2130
        %v2340 = vpack.c.b16 %v2133, %v2132
        %v2341 = vpack.c.b16 %v2135, %v2134
        %v2342 = vpack.c.b16 %v2137, %v2136
        %v2343 = vpack.c.b16 %v2139, %v2138
        %v2344 = vpack.c.b16 %v2141, %v2140
        %v2345 = vpack.c.b16 %v2143, %v2142
        %v2346 = vpack.c.b16 %v2145, %v2144
        %v2347 = vpack.c.b16 %v2147, %v2146
        %v2348 = vpack.c.b16 %v2149, %v2148
        %v2349 = vpack.c.b16 %v2151, %v2150
        %v2350 = vpack.c.b16 %v2153, %v2152
        %v2351 = vpack.c.b16 %v2155, %v2154
        %v2352 = vpack.c.b16 %v2157, %v2156
        %v2353 = vpack.c.b16 %v2159, %v2158
        %v2354 = vpack.c.b16 %v2161, %v2160
        %v2355 = vpack.c.b16 %v2163, %v2162
        %v2356 = vpack.c.b16 %v2165, %v2164
        %v2357 = vpack.c.b16 %v2167, %v2166
        %v2358 = vpack.c.b16 %v2169, %v2168
        %v2359 = vpack.c.b16 %v2171, %v2170
        %v2360 = vpack.c.b16 %v2173, %v2172
        %v2361 = vpack.c.b16 %v2175, %v2174
        %v2362 = vpack.c.b16 %v2177, %v2176
        %v2363 = vpack.c.b16 %v2179, %v2178
        %v2364 = vpack.c.b16 %v2181, %v2180
        %v2365 = vpack.c.b16 %v2183, %v2182
        %v2366 = vpack.c.b16 %v2185, %v2184
        %v2367 = vpack.c.b16 %v2187, %v2186
        %v2368 = vpack.c.b16 %v2189, %v2188
        %v2369 = vpack.c.b16 %v2191, %v2190
        %v2370 = vpack.c.b16 %v2193, %v2192
        %v2371 = vpack.c.b16 %v2195, %v2194
        %v2372 = vpack.c.b16 %v2197, %v2196
        %v2373 = vpack.c.b16 %v2199, %v2198
        %v2374 = vpack.c.b16 %v2201, %v2200
        %v2375 = vpack.c.b16 %v2203, %v2202
        %v2376 = vpack.c.b16 %v2205, %v2204
        %v2377 = vpack.c.b16 %v2207, %v2206
        %v2378 = vpack.c.b16 %v2209, %v2208
        %v2379 = vpack.c.b16 %v2211, %v2210
        %v2380 = vpack.c.b16 %v2213, %v2212
        %v2381 = vpack.c.b16 %v2215, %v2214
        %v2382 = vpack.c.b16 %v2217, %v2216
        %v2383 = vpack.c.b16 %v2219, %v2218
        %v2384 = vpack.c.b16 %v2221, %v2220
        %v2385 = vpack.c.b16 %v2223, %v2222
        %v2386 = vpack.c.b16 %v2225, %v2224
        %v2387 = vpack.c.b16 %v2227, %v2226
        %v2388 = vpack.c.b16 %v2229, %v2228
        %v2389 = vpack.c.b16 %v2231, %v2230
        %v2390 = vpack.c.b16 %v2233, %v2232
        %v2391 = vpack.c.b16 %v2235, %v2234
        %v2392 = vpack.c.b16 %v2237, %v2236
        %v2393 = vpack.c.b16 %v2239, %v2238
        %v2394 = vpack.c.b16 %v2241, %v2240
        %v2395 = vpack.c.b16 %v2243, %v2242
        %v2396 = vpack.c.b16 %v2245, %v2244
        %v2397 = vpack.c.b16 %v2247, %v2246
        %v2398 = vpack.c.b16 %v2249, %v2248
        %v2399 = vpack.c.b16 %v2251, %v2250
        %v2400 = vpack.c.b16 %v2253, %v2252
        %v2401 = vpack.c.b16 %v2255, %v2254
        %v2402 = vpack.c.b16 %v2257, %v2256
        %v2403 = vpack.c.b16 %v2259, %v2258
        %v2404 = vpack.c.b16 %v2261, %v2260
        %v2405 = vpack.c.b16 %v2263, %v2262
        %v2406 = vpack.c.b16 %v2265, %v2264
        %v2407 = vpack.c.b16 %v2267, %v2266
        %v2408 = vpack.c.b16 %v2269, %v2268
        %v2409 = vpack.c.b16 %v2271, %v2270
        %v2410 = vpack.c.b16 %v2273, %v2272
        %v2411 = vpack.c.b16 %v2275, %v2274
        %v2412 = vpack.c.b16 %v2277, %v2276
        %v2413 = vpack.c.b16 %v2279, %v2278
        %v2414 = vpack.c.b16 %v2281, %v2280
        %v2415 = vpack.c.b16 %v2283, %v2282
        %v2416 = vpack.c.b16 %v2285, %v2284
        %v2417 = vpack.c.b16 %v2287, %v2286
        %v2418 = vpack.c.b16 %v2289, %v2288
        %v2419 = vpack.c.b16 %v2291, %v2290
        %2548 = vmatprep.subr.bf16.mxu0 0
        %2549 = vmatpush1.bf16.msra.mxu0 %v2299
        %2550 = vmatprep.subr.bf16.mxu0 0
        %2551 = vmatpush1.bf16.msra.mxu0 %v2298
        %2552 = vmatprep.subr.bf16.mxu0 0
        %2553 = vmatpush1.bf16.msra.mxu0 %v2297
        %2554 = vmatprep.subr.bf16.mxu0 0
        %2555 = vmatpush1.bf16.msra.mxu0 %v2296
        %2556 = vmatprep.subr.bf16.mxu0 0
        %2557 = vmatpush1.bf16.msra.mxu0 %v2295
        %2558 = vmatprep.subr.bf16.mxu0 0
        %2559 = vmatpush1.bf16.msra.mxu0 %v2294
        %2560 = vmatprep.subr.bf16.mxu0 0
        %2561 = vmatpush1.bf16.msra.mxu0 %v2293
        %2562 = vmatprep.subr.bf16.mxu0 0
        %2563 = vmatpush1.bf16.msra.mxu0 %v2292
        %2564 = vmatprep.subr.bf16.mxu0 0
        %2565 = vmatpush2.bf16.msra.mxu0 %v2307
        %2566 = vmatprep.subr.bf16.mxu0 0
        %2567 = vmatpush2.bf16.msra.mxu0 %v2306
        %2568 = vmatprep.subr.bf16.mxu0 0
        %2569 = vmatpush2.bf16.msra.mxu0 %v2305
        %2570 = vmatprep.subr.bf16.mxu0 0
        %2571 = vmatpush2.bf16.msra.mxu0 %v2304
        %2572 = vmatprep.subr.bf16.mxu0 0
        %2573 = vmatpush2.bf16.msra.mxu0 %v2303
        %2574 = vmatprep.subr.bf16.mxu0 0
        %2575 = vmatpush2.bf16.msra.mxu0 %v2302
        %2576 = vmatprep.subr.bf16.mxu0 0
        %2577 = vmatpush2.bf16.msra.mxu0 %v2301
        %2578 = vmatprep.subr.bf16.mxu0 0
        %2579 = vmatpush2.bf16.msra.mxu0 %v2300
        %2580 = vmatprep.mubr.bf16.mxu0 %v1749
        %2581 = vmatmul.mubr.bf16.gmra.mxu0 %v1748
        %v2582 = vpop.f32.mrf.mxu0
        %v2583 = vadd.f32 %v1698, %v2582
        %v2584 = vpop.f32.mrf.mxu0
        %v2585 = vpop.f32.mrf.mxu0
        %v2586 = vadd.f32 %v1698, %v2585
        %v2587 = vpop.f32.mrf.mxu0
        %2588 = vdwg.mxu0
        %2589 = vmatprep.subr.bf16.mxu0 0
        %2590 = vmatpush1.bf16.msra.mxu0 %v2315
        %2591 = vmatprep.subr.bf16.mxu0 0
        %2592 = vmatpush1.bf16.msra.mxu0 %v2314
        %2593 = vmatprep.subr.bf16.mxu0 0
        %2594 = vmatpush1.bf16.msra.mxu0 %v2313
        %2595 = vmatprep.subr.bf16.mxu0 0
        %2596 = vmatpush1.bf16.msra.mxu0 %v2312
        %2597 = vmatprep.subr.bf16.mxu0 0
        %2598 = vmatpush1.bf16.msra.mxu0 %v2311
        %2599 = vmatprep.subr.bf16.mxu0 0
        %2600 = vmatpush1.bf16.msra.mxu0 %v2310
        %2601 = vmatprep.subr.bf16.mxu0 0
        %2602 = vmatpush1.bf16.msra.mxu0 %v2309
        %2603 = vmatprep.subr.bf16.mxu0 0
        %2604 = vmatpush1.bf16.msra.mxu0 %v2308
        %2605 = vmatprep.subr.bf16.mxu0 0
        %2606 = vmatpush2.bf16.msra.mxu0 %v2323
        %2607 = vmatprep.subr.bf16.mxu0 0
        %2608 = vmatpush2.bf16.msra.mxu0 %v2322
        %2609 = vmatprep.subr.bf16.mxu0 0
        %2610 = vmatpush2.bf16.msra.mxu0 %v2321
        %2611 = vmatprep.subr.bf16.mxu0 0
        %2612 = vmatpush2.bf16.msra.mxu0 %v2320
        %2613 = vmatprep.subr.bf16.mxu0 0
        %2614 = vmatpush2.bf16.msra.mxu0 %v2319
        %2615 = vmatprep.subr.bf16.mxu0 0
        %2616 = vmatpush2.bf16.msra.mxu0 %v2318
        %2617 = vmatprep.subr.bf16.mxu0 0
        %2618 = vmatpush2.bf16.msra.mxu0 %v2317
        %2619 = vmatprep.subr.bf16.mxu0 0
        %2620 = vmatpush2.bf16.msra.mxu0 %v2316
        %2621 = vmatprep.mubr.bf16.mxu0 %v1751
        %2622 = vmatmul.mubr.bf16.gmra.mxu0 %v1750
        %v2623 = vpop.f32.mrf.mxu0
        %v2624 = vadd.f32 %v2583, %v2623
        %v2625 = vpop.f32.mrf.mxu0
        %v2626 = vpop.f32.mrf.mxu0
        %v2627 = vadd.f32 %v2586, %v2626
        %v2628 = vpop.f32.mrf.mxu0
        %2629 = vdwg.mxu0
        %2630 = vmatprep.subr.bf16.mxu0 0
        %2631 = vmatpush1.bf16.msra.mxu0 %v2331
        %2632 = vmatprep.subr.bf16.mxu0 0
        %2633 = vmatpush1.bf16.msra.mxu0 %v2330
        %2634 = vmatprep.subr.bf16.mxu0 0
        %2635 = vmatpush1.bf16.msra.mxu0 %v2329
        %2636 = vmatprep.subr.bf16.mxu0 0
        %2637 = vmatpush1.bf16.msra.mxu0 %v2328
        %2638 = vmatprep.subr.bf16.mxu0 0
        %2639 = vmatpush1.bf16.msra.mxu0 %v2327
        %2640 = vmatprep.subr.bf16.mxu0 0
        %2641 = vmatpush1.bf16.msra.mxu0 %v2326
        %2642 = vmatprep.subr.bf16.mxu0 0
        %2643 = vmatpush1.bf16.msra.mxu0 %v2325
        %2644 = vmatprep.subr.bf16.mxu0 0
        %2645 = vmatpush1.bf16.msra.mxu0 %v2324
        %2646 = vmatprep.subr.bf16.mxu0 0
        %2647 = vmatpush2.bf16.msra.mxu0 %v2339
        %2648 = vmatprep.subr.bf16.mxu0 0
        %2649 = vmatpush2.bf16.msra.mxu0 %v2338
        %2650 = vmatprep.subr.bf16.mxu0 0
        %2651 = vmatpush2.bf16.msra.mxu0 %v2337
        %2652 = vmatprep.subr.bf16.mxu0 0
        %2653 = vmatpush2.bf16.msra.mxu0 %v2336
        %2654 = vmatprep.subr.bf16.mxu0 0
        %2655 = vmatpush2.bf16.msra.mxu0 %v2335
        %2656 = vmatprep.subr.bf16.mxu0 0
        %2657 = vmatpush2.bf16.msra.mxu0 %v2334
        %2658 = vmatprep.subr.bf16.mxu0 0
        %2659 = vmatpush2.bf16.msra.mxu0 %v2333
        %2660 = vmatprep.subr.bf16.mxu0 0
        %2661 = vmatpush2.bf16.msra.mxu0 %v2332
        %2662 = vmatprep.mubr.bf16.mxu0 %v1753
        %2663 = vmatmul.mubr.bf16.gmra.mxu0 %v1752
        %v2664 = vpop.f32.mrf.mxu0
        %v2665 = vadd.f32 %v2624, %v2664
        %v2666 = vpop.f32.mrf.mxu0
        %v2667 = vpop.f32.mrf.mxu0
        %v2668 = vadd.f32 %v2627, %v2667
        %v2669 = vpop.f32.mrf.mxu0
        %2670 = vdwg.mxu0
        %2671 = vmatprep.subr.bf16.mxu0 0
        %2672 = vmatpush1.bf16.msra.mxu0 %v2347
        %2673 = vmatprep.subr.bf16.mxu0 0
        %2674 = vmatpush1.bf16.msra.mxu0 %v2346
        %2675 = vmatprep.subr.bf16.mxu0 0
        %2676 = vmatpush1.bf16.msra.mxu0 %v2345
        %2677 = vmatprep.subr.bf16.mxu0 0
        %2678 = vmatpush1.bf16.msra.mxu0 %v2344
        %2679 = vmatprep.subr.bf16.mxu0 0
        %2680 = vmatpush1.bf16.msra.mxu0 %v2343
        %2681 = vmatprep.subr.bf16.mxu0 0
        %2682 = vmatpush1.bf16.msra.mxu0 %v2342
        %2683 = vmatprep.subr.bf16.mxu0 0
        %2684 = vmatpush1.bf16.msra.mxu0 %v2341
        %2685 = vmatprep.subr.bf16.mxu0 0
        %2686 = vmatpush1.bf16.msra.mxu0 %v2340
        %2687 = vmatprep.subr.bf16.mxu0 0
        %2688 = vmatpush2.bf16.msra.mxu0 %v2355
        %2689 = vmatprep.subr.bf16.mxu0 0
        %2690 = vmatpush2.bf16.msra.mxu0 %v2354
        %2691 = vmatprep.subr.bf16.mxu0 0
        %2692 = vmatpush2.bf16.msra.mxu0 %v2353
        %2693 = vmatprep.subr.bf16.mxu0 0
        %2694 = vmatpush2.bf16.msra.mxu0 %v2352
        %2695 = vmatprep.subr.bf16.mxu0 0
        %2696 = vmatpush2.bf16.msra.mxu0 %v2351
        %2697 = vmatprep.subr.bf16.mxu0 0
        %2698 = vmatpush2.bf16.msra.mxu0 %v2350
        %2699 = vmatprep.subr.bf16.mxu0 0
        %2700 = vmatpush2.bf16.msra.mxu0 %v2349
        %2701 = vmatprep.subr.bf16.mxu0 0
        %2702 = vmatpush2.bf16.msra.mxu0 %v2348
        %2703 = vmatprep.mubr.bf16.mxu0 %v1755
        %2704 = vmatmul.mubr.bf16.gmra.mxu0 %v1754
        %v2705 = vpop.f32.mrf.mxu0
        %v2706 = vadd.f32 %v2665, %v2705
        %v2707 = vpop.f32.mrf.mxu0
        %v2708 = vpop.f32.mrf.mxu0
        %v2709 = vadd.f32 %v2668, %v2708
        %v2710 = vpop.f32.mrf.mxu0
        %2711 = vdwg.mxu0
        %2712 = vmatprep.subr.bf16.mxu0 0
        %2713 = vmatpush1.bf16.msra.mxu0 %v2363
        %2714 = vmatprep.subr.bf16.mxu0 0
        %2715 = vmatpush1.bf16.msra.mxu0 %v2362
        %2716 = vmatprep.subr.bf16.mxu0 0
        %2717 = vmatpush1.bf16.msra.mxu0 %v2361
        %2718 = vmatprep.subr.bf16.mxu0 0
        %2719 = vmatpush1.bf16.msra.mxu0 %v2360
        %2720 = vmatprep.subr.bf16.mxu0 0
        %2721 = vmatpush1.bf16.msra.mxu0 %v2359
        %2722 = vmatprep.subr.bf16.mxu0 0
        %2723 = vmatpush1.bf16.msra.mxu0 %v2358
        %2724 = vmatprep.subr.bf16.mxu0 0
        %2725 = vmatpush1.bf16.msra.mxu0 %v2357
        %2726 = vmatprep.subr.bf16.mxu0 0
        %2727 = vmatpush1.bf16.msra.mxu0 %v2356
        %2728 = vmatprep.subr.bf16.mxu0 0
        %2729 = vmatpush2.bf16.msra.mxu0 %v2371
        %2730 = vmatprep.subr.bf16.mxu0 0
        %2731 = vmatpush2.bf16.msra.mxu0 %v2370
        %2732 = vmatprep.subr.bf16.mxu0 0
        %2733 = vmatpush2.bf16.msra.mxu0 %v2369
        %2734 = vmatprep.subr.bf16.mxu0 0
        %2735 = vmatpush2.bf16.msra.mxu0 %v2368
        %2736 = vmatprep.subr.bf16.mxu0 0
        %2737 = vmatpush2.bf16.msra.mxu0 %v2367
        %2738 = vmatprep.subr.bf16.mxu0 0
        %2739 = vmatpush2.bf16.msra.mxu0 %v2366
        %2740 = vmatprep.subr.bf16.mxu0 0
        %2741 = vmatpush2.bf16.msra.mxu0 %v2365
        %2742 = vmatprep.subr.bf16.mxu0 0
        %2743 = vmatpush2.bf16.msra.mxu0 %v2364
        %2744 = vmatprep.mubr.bf16.mxu0 %v1757
        %2745 = vmatmul.mubr.bf16.gmra.mxu0 %v1756
        %v2746 = vpop.f32.mrf.mxu0
        %v2747 = vadd.f32 %v2706, %v2746
        %v2748 = vpop.f32.mrf.mxu0
        %v2749 = vpop.f32.mrf.mxu0
        %v2750 = vadd.f32 %v2709, %v2749
        %v2751 = vpop.f32.mrf.mxu0
        %2752 = vdwg.mxu0
        %2753 = vmatprep.subr.bf16.mxu0 0
        %2754 = vmatpush1.bf16.msra.mxu0 %v2379
        %2755 = vmatprep.subr.bf16.mxu0 0
        %2756 = vmatpush1.bf16.msra.mxu0 %v2378
        %2757 = vmatprep.subr.bf16.mxu0 0
        %2758 = vmatpush1.bf16.msra.mxu0 %v2377
        %2759 = vmatprep.subr.bf16.mxu0 0
        %2760 = vmatpush1.bf16.msra.mxu0 %v2376
        %2761 = vmatprep.subr.bf16.mxu0 0
        %2762 = vmatpush1.bf16.msra.mxu0 %v2375
        %2763 = vmatprep.subr.bf16.mxu0 0
        %2764 = vmatpush1.bf16.msra.mxu0 %v2374
        %2765 = vmatprep.subr.bf16.mxu0 0
        %2766 = vmatpush1.bf16.msra.mxu0 %v2373
        %2767 = vmatprep.subr.bf16.mxu0 0
        %2768 = vmatpush1.bf16.msra.mxu0 %v2372
        %2769 = vmatprep.subr.bf16.mxu0 0
        %2770 = vmatpush2.bf16.msra.mxu0 %v2387
        %2771 = vmatprep.subr.bf16.mxu0 0
        %2772 = vmatpush2.bf16.msra.mxu0 %v2386
        %2773 = vmatprep.subr.bf16.mxu0 0
        %2774 = vmatpush2.bf16.msra.mxu0 %v2385
        %2775 = vmatprep.subr.bf16.mxu0 0
        %2776 = vmatpush2.bf16.msra.mxu0 %v2384
        %2777 = vmatprep.subr.bf16.mxu0 0
        %2778 = vmatpush2.bf16.msra.mxu0 %v2383
        %2779 = vmatprep.subr.bf16.mxu0 0
        %2780 = vmatpush2.bf16.msra.mxu0 %v2382
        %2781 = vmatprep.subr.bf16.mxu0 0
        %2782 = vmatpush2.bf16.msra.mxu0 %v2381
        %2783 = vmatprep.subr.bf16.mxu0 0
        %2784 = vmatpush2.bf16.msra.mxu0 %v2380
        %2785 = vmatprep.mubr.bf16.mxu0 %v1759
        %2786 = vmatmul.mubr.bf16.gmra.mxu0 %v1758
        %v2787 = vpop.f32.mrf.mxu0
        %v2788 = vadd.f32 %v2747, %v2787
        %v2789 = vpop.f32.mrf.mxu0
        %v2790 = vpop.f32.mrf.mxu0
        %v2791 = vadd.f32 %v2750, %v2790
        %v2792 = vpop.f32.mrf.mxu0
        %2793 = vdwg.mxu0
        %2794 = vmatprep.subr.bf16.mxu0 0
        %2795 = vmatpush1.bf16.msra.mxu0 %v2395
        %2796 = vmatprep.subr.bf16.mxu0 0
        %2797 = vmatpush1.bf16.msra.mxu0 %v2394
        %2798 = vmatprep.subr.bf16.mxu0 0
        %2799 = vmatpush1.bf16.msra.mxu0 %v2393
        %2800 = vmatprep.subr.bf16.mxu0 0
        %2801 = vmatpush1.bf16.msra.mxu0 %v2392
        %2802 = vmatprep.subr.bf16.mxu0 0
        %2803 = vmatpush1.bf16.msra.mxu0 %v2391
        %2804 = vmatprep.subr.bf16.mxu0 0
        %2805 = vmatpush1.bf16.msra.mxu0 %v2390
        %2806 = vmatprep.subr.bf16.mxu0 0
        %2807 = vmatpush1.bf16.msra.mxu0 %v2389
        %2808 = vmatprep.subr.bf16.mxu0 0
        %2809 = vmatpush1.bf16.msra.mxu0 %v2388
        %2810 = vmatprep.subr.bf16.mxu0 0
        %2811 = vmatpush2.bf16.msra.mxu0 %v2403
        %2812 = vmatprep.subr.bf16.mxu0 0
        %2813 = vmatpush2.bf16.msra.mxu0 %v2402
        %2814 = vmatprep.subr.bf16.mxu0 0
        %2815 = vmatpush2.bf16.msra.mxu0 %v2401
        %2816 = vmatprep.subr.bf16.mxu0 0
        %2817 = vmatpush2.bf16.msra.mxu0 %v2400
        %2818 = vmatprep.subr.bf16.mxu0 0
        %2819 = vmatpush2.bf16.msra.mxu0 %v2399
        %2820 = vmatprep.subr.bf16.mxu0 0
        %2821 = vmatpush2.bf16.msra.mxu0 %v2398
        %2822 = vmatprep.subr.bf16.mxu0 0
        %2823 = vmatpush2.bf16.msra.mxu0 %v2397
        %2824 = vmatprep.subr.bf16.mxu0 0
        %2825 = vmatpush2.bf16.msra.mxu0 %v2396
        %2826 = vmatprep.mubr.bf16.mxu0 %v1761
        %2827 = vmatmul.mubr.bf16.gmra.mxu0 %v1760
        %v2828 = vpop.f32.mrf.mxu0
        %v2829 = vadd.f32 %v2788, %v2828
        %v2830 = vpop.f32.mrf.mxu0
        %v2831 = vpop.f32.mrf.mxu0
        %v2832 = vadd.f32 %v2791, %v2831
        %v2833 = vpop.f32.mrf.mxu0
        %2834 = vdwg.mxu0
        %2835 = vmatprep.subr.bf16.mxu0 0
        %2836 = vmatpush1.bf16.msra.mxu0 %v2411
        %2837 = vmatprep.subr.bf16.mxu0 0
        %2838 = vmatpush1.bf16.msra.mxu0 %v2410
        %2839 = vmatprep.subr.bf16.mxu0 0
        %2840 = vmatpush1.bf16.msra.mxu0 %v2409
        %2841 = vmatprep.subr.bf16.mxu0 0
        %2842 = vmatpush1.bf16.msra.mxu0 %v2408
        %2843 = vmatprep.subr.bf16.mxu0 0
        %2844 = vmatpush1.bf16.msra.mxu0 %v2407
        %2845 = vmatprep.subr.bf16.mxu0 0
        %2846 = vmatpush1.bf16.msra.mxu0 %v2406
        %2847 = vmatprep.subr.bf16.mxu0 0
        %2848 = vmatpush1.bf16.msra.mxu0 %v2405
        %2849 = vmatprep.subr.bf16.mxu0 0
        %2850 = vmatpush1.bf16.msra.mxu0 %v2404
        %2851 = vmatprep.subr.bf16.mxu0 0
        %2852 = vmatpush2.bf16.msra.mxu0 %v2419
        %2853 = vmatprep.subr.bf16.mxu0 0
        %2854 = vmatpush2.bf16.msra.mxu0 %v2418
        %2855 = vmatprep.subr.bf16.mxu0 0
        %2856 = vmatpush2.bf16.msra.mxu0 %v2417
        %2857 = vmatprep.subr.bf16.mxu0 0
        %2858 = vmatpush2.bf16.msra.mxu0 %v2416
        %2859 = vmatprep.subr.bf16.mxu0 0
        %2860 = vmatpush2.bf16.msra.mxu0 %v2415
        %2861 = vmatprep.subr.bf16.mxu0 0
        %2862 = vmatpush2.bf16.msra.mxu0 %v2414
        %2863 = vmatprep.subr.bf16.mxu0 0
        %2864 = vmatpush2.bf16.msra.mxu0 %v2413
        %2865 = vmatprep.subr.bf16.mxu0 0
        %2866 = vmatpush2.bf16.msra.mxu0 %v2412
        %2867 = vmatprep.mubr.bf16.mxu0 %v1763
        %2868 = vmatmul.mubr.bf16.gmra.mxu0 %v1762
        %v2869 = vpop.f32.mrf.mxu0
        %v2870 = vadd.f32 %v2829, %v2869
        %v2871 = vpop.f32.mrf.mxu0
        %v2872 = vpop.f32.mrf.mxu0
        %v2873 = vadd.f32 %v2832, %v2872
        %v2874 = vpop.f32.mrf.mxu0
        %2875 = vdwg.mxu0
        %v2876 = vpack.c.bf16 %v2873, %v2870
        %v2878 = vunpack.c.l.b16 %v2876
        %v2879 = vunpack.c.h.b16 %v2876
        %v2880 = vpack.c.b16 %v2878, %v2878
        %v2881 = vpack.c.b16 %v2879, %v2879
        %2884 = vst [vmem:[%s1356] sm:$0xf] %v2880
        %2885 = vst [vmem:[%s1356 + $0x4] sm:$0xf] %v2881
        %s2886 = smul.u32 %s23, 16
        %v2887 = vlaneseq
        %v2888 = vshrl.u32 %v2887, 7
        %v2889 = vadd.s32 %v2888, 8
        %v2890 = vstv %s2886
        %v2891 = vadd.s32 %v2890, %v2888
        %v2892 = vadd.s32 %v2890, %v2889
        %vm2893 = vcmp.lt.s32.totalorder %v2891, 8
        %vm2894 = vcmp.lt.s32.totalorder %v2892, 8
        %v2895 = vsel %vm2893, 1, 0
        %v2896 = vsel %vm2894, 1, 0
        %vm2897 = vcmp.eq.s32.totalorder %v2895, 1
        %vm2898 = vcmp.eq.s32.totalorder %v2896, 1
        %v2899 = vsel %vm2897, %v2870, 0.0
        %v2900 = vsel %vm2898, %v2873, 0.0
        %v2901 = vadd.f32 %v2899, %v2900
        %v2902 = vrot.slane %v2901, 4
        %v2903 = vadd.f32 %v2901, %v2902
        %v2904 = vrot.slane %v2903, 2
        %v2905 = vadd.f32 %v2903, %v2904
        %v2906 = vrot.slane %v2905, 1
        %v2907 = vadd.f32 %v2905, %v2906
        %2908 = vst [vmem:[%s1408] sm:$0x1] %v2907
        %v2909 = vmul.f32 %v2899, %v2899
        %v2910 = vmul.f32 %v2900, %v2900
        %v2911 = vadd.f32 %v2909, %v2910
        %v2912 = vrot.slane %v2911, 4
        %v2913 = vadd.f32 %v2911, %v2912
        %v2914 = vrot.slane %v2913, 2
        %v2915 = vadd.f32 %v2913, %v2914
        %v2916 = vrot.slane %v2915, 1
        %v2917 = vadd.f32 %v2915, %v2916
        %2918 = vst [vmem:[%s1419] sm:$0x1] %v2917
        %s2919 = sand.u32 %s130, 1
        %s2920 = sand.u32 %s130, 1
        %s2921 = smul.addr %s2920, 8
        %s2922 = scalar_lea.vmem [#allocation3], %s2921
        %p2923 = scmp.lt.s32.totalorder %s22, 0
        %s2924 = scalar_select %p2923, %s22, 0
        %p2925 = scmp.lt.s32.totalorder %s23, 0
        %s2926 = scalar_select %p2925, %s23, 0
        %p2927 = scmp.lt.s32.totalorder %s24, 1
        %s2928 = scalar_select %p2927, %s24, 1
        %s2929 = smul.addr %s2926, 2
        %s2930 = sadd.s32 %s2928, %s2929
        %s2931 = smul.addr %s2924, 2
        %s2932 = sadd.s32 %s2930, %s2931
        %s2933 = scalar_lea.vmem %s4, %s2932
        %p2934 = scmp.lt.s32.totalorder %s22, 0
        %s2935 = scalar_select %p2934, %s22, 0
        %p2936 = scmp.lt.s32.totalorder %s23, 0
        %s2937 = scalar_select %p2936, %s23, 0
        %p2938 = scmp.lt.s32.totalorder %s24, 1
        %s2939 = scalar_select %p2938, %s24, 1
        %s2940 = smul.addr %s2937, 2
        %s2941 = sadd.s32 %s2939, %s2940
        %s2942 = smul.addr %s2935, 2
        %s2943 = sadd.s32 %s2941, %s2942
        %s2944 = scalar_lea.vmem %s5, %s2943
        // Predicated region
        $region74: #{dfnet_forward.13} parent=68 // pred_check
          %p2945 = pneg %p140
        $region75: #{dfnet_forward.13} parent=68 // pred_check_branch
          %2947 = sbr.rel (%p2945) target = $region77
        $region76: #{dfnet_forward.13} parent=68 // pred_region
          %s2948 = smul.u32 2, %s23
          %s2949 = smul.addr %s2948, 2
          %s2950 = sadd.s32 %s24, %s2949
          %s2951 = smul.addr %s22, 4
          %s2952 = sadd.s32 %s2950, %s2951
          %s2953 = smul.addr %s2952, 4
          %s2954 = scalar_lea.vmem %s3, %s2953
          // Predicated region
          $region78: #{dfnet_forward.13} parent=76 // pred_check
            _
          $region79: #{dfnet_forward.13} parent=76 // pred_check_branch
            %2956 = sbr.rel (0) target = $region81
          $region80: #{dfnet_forward.13} parent=76 // pred_region
            // Predicated region
            $region82: #{dfnet_forward.13} parent=80 // pred_check
              _
            $region83: #{dfnet_forward.13} parent=80 // pred_check_branch
              %2958 = sbr.rel target = $region85
            $region84: #{dfnet_forward.13} parent=80 // pred_region
              // Predicated region
              $region97: #{dfnet_forward.13} parent=84 // pred_check
                _
              $region98: #{dfnet_forward.13} parent=84 // pred_check_branch
                %2976 = sbr.rel (0) target = $region100
              $region99: #{dfnet_forward.13} parent=84 // pred_region
                loop: start=0, step=1, limit=1
                $region101: #{dfnet_forward.13} parent=99 // loop_pre_header
                  _
                $region102: #{dfnet_forward.13} parent=99 // loop_header
                  %s2978 = sphi 0, %s2982
                  %p2979 = scmp.ge.s32.totalorder %s2978, 1
                  %s2983 = sphi %s2922, %s2922
                  %s2984 = sphi %s2954, %s2954
                $region103: #{dfnet_forward.13} parent=99 // loop_header_branch
                  %2981 = sbr.rel (%p2979) target = $region107
                $region104: #{dfnet_forward.13} parent=99 // loop_body
                  _
                $region105: #{dfnet_forward.13} parent=99 // loop_footer
                  %s2982 = sadd.s32 1, %s2978
                $region106: #{dfnet_forward.13} parent=99 // loop_footer_branch
                  %2977 = sbr.rel target = $region102
                $region107: #{dfnet_forward.13} parent=99 // loop_exit
                  _
                %s2986 = ssub.s32 16, 1
                loop: start=0, step=1, limit=1
                $region108: #{dfnet_forward.13} parent=99 // loop_pre_header
                  _
                $region109: #{dfnet_forward.13} parent=99 // loop_header
                  %s2988 = sphi 0, %s2992
                  %p2989 = scmp.ge.s32.totalorder %s2988, 1
                  %s2993 = sphi %s2922, %s2922
                  %s2994 = sphi %s2954, %s2954
                $region110: #{dfnet_forward.13} parent=99 // loop_header_branch
                  %2991 = sbr.rel (%p2989) target = $region114
                $region111: #{dfnet_forward.13} parent=99 // loop_body
                  %v2995 = vld [vmem:[%s2993] sm:%s2986]
                  %2996 = vst [vmem:[%s2994] sm:%s2986] %v2995
                  %v2997 = vld [vmem:[%s2993 + $0x4] sm:%s2986]
                  %2998 = vst [vmem:[%s2994 + $0x8] sm:%s2986] %v2997
                $region112: #{dfnet_forward.13} parent=99 // loop_footer
                  %s2992 = sadd.s32 1, %s2988
                $region113: #{dfnet_forward.13} parent=99 // loop_footer_branch
                  %2987 = sbr.rel target = $region109
                $region114: #{dfnet_forward.13} parent=99 // loop_exit
                  _
              $region100: #{dfnet_forward.13} parent=84 // pred_fallthru
                _
            $region85: #{dfnet_forward.13} parent=80 // pred_fallthru
              _
            // Predicated region
            $region86: #{dfnet_forward.13} parent=80 // pred_check
              _
            $region87: #{dfnet_forward.13} parent=80 // pred_check_branch
              %2960 = sbr.rel (0) target = $region89
            $region88: #{dfnet_forward.13} parent=80 // pred_region
              %s2962 = ssub.s32 16, 1
              loop: start=0, step=1, limit=1
              $region90: #{dfnet_forward.13} parent=88 // loop_pre_header
                _
              $region91: #{dfnet_forward.13} parent=88 // loop_header
                %s2964 = sphi 0, %s2968
                %p2965 = scmp.ge.s32.totalorder %s2964, 1
                %s2969 = sphi %s2922, %s2922
                %s2970 = sphi %s2954, %s2954
              $region92: #{dfnet_forward.13} parent=88 // loop_header_branch
                %2967 = sbr.rel (%p2965) target = $region96
              $region93: #{dfnet_forward.13} parent=88 // loop_body
                %v2971 = vld [vmem:[%s2969] sm:%s2962]
                %2972 = vst [vmem:[%s2970] sm:%s2962] %v2971
                %v2973 = vld [vmem:[%s2969 + $0x4] sm:%s2962]
                %2974 = vst [vmem:[%s2970 + $0x8] sm:%s2962] %v2973
              $region94: #{dfnet_forward.13} parent=88 // loop_footer
                %s2968 = sadd.s32 1, %s2964
              $region95: #{dfnet_forward.13} parent=88 // loop_footer_branch
                %2963 = sbr.rel target = $region91
              $region96: #{dfnet_forward.13} parent=88 // loop_exit
                _
            $region89: #{dfnet_forward.13} parent=80 // pred_fallthru
              _
          $region81: #{dfnet_forward.13} parent=76 // pred_fallthru
            _
          %2999 = vnop
        $region77: #{dfnet_forward.13} parent=68 // pred_fallthru
          _
        // Predicated region
        $region115: #{dfnet_forward.13} parent=68 // pred_check
          %p3000 = pneg %p170
        $region116: #{dfnet_forward.13} parent=68 // pred_check_branch
          %3002 = sbr.rel (%p3000) target = $region118
        $region117: #{dfnet_forward.13} parent=68 // pred_region
          _
        $region118: #{dfnet_forward.13} parent=68 // pred_fallthru
          _
        // Predicated region
        $region119: #{dfnet_forward.13} parent=68 // pred_check
          %p3003 = pneg %p200
        $region120: #{dfnet_forward.13} parent=68 // pred_check_branch
          %3005 = sbr.rel (%p3003) target = $region122
        $region121: #{dfnet_forward.13} parent=68 // pred_region
          _
        $region122: #{dfnet_forward.13} parent=68 // pred_fallthru
          _
      $region69: #{dfnet_forward.13} parent=5 // pred_fallthru
        _
      %p3006 = scmp.le.s32.totalorder 2, %s12
      // Predicated region
      $region123: #{dfnet_forward.13} parent=5 // pred_check
        %p3007 = pneg %p3006
      $region124: #{dfnet_forward.13} parent=5 // pred_check_branch
        %3009 = sbr.rel (%p3007) target = $region126
      $region125: #{dfnet_forward.13} parent=5 // pred_region
        %s3010 = ssub.s32 %s12, 2
        // Predicated region
        $region127: #{dfnet_forward.13} parent=125 // pred_check
          %p3011 = pneg %p146
        $region128: #{dfnet_forward.13} parent=125 // pred_check_branch
          %3013 = sbr.rel (%p3011) target = $region130
        $region129: #{dfnet_forward.13} parent=125 // pred_region
          %s3014 = sand.u32 %s131, 1
          %s3015 = sand.u32 %s131, 1
          %s3016 = smul.addr %s3015, 8
          %s3017 = scalar_lea.vmem [#allocation3], %s3016
        $region130: #{dfnet_forward.13} parent=125 // pred_fallthru
          _
        // Predicated region
        $region131: #{dfnet_forward.13} parent=125 // pred_check
          %p3018 = pneg %p176
        $region132: #{dfnet_forward.13} parent=125 // pred_check_branch
          %3020 = sbr.rel (%p3018) target = $region134
        $region133: #{dfnet_forward.13} parent=125 // pred_region
          %p3021 = scmp.lt.s32.totalorder %s25, 0
          %s3022 = scalar_select %p3021, %s25, 0
          %p3023 = scmp.lt.s32.totalorder %s26, 0
          %s3024 = scalar_select %p3023, %s26, 0
          %p3025 = scmp.lt.s32.totalorder %s27, 1
          %s3026 = scalar_select %p3025, %s27, 1
          %s3027 = smul.addr %s3024, 2
          %s3028 = sadd.s32 %s3026, %s3027
          %s3029 = smul.addr %s3022, 2
          %s3030 = sadd.s32 %s3028, %s3029
          %s3031 = scalar_lea.vmem %s4, %s3030
        $region134: #{dfnet_forward.13} parent=125 // pred_fallthru
          _
        // Predicated region
        $region135: #{dfnet_forward.13} parent=125 // pred_check
          %p3032 = pneg %p206
        $region136: #{dfnet_forward.13} parent=125 // pred_check_branch
          %3034 = sbr.rel (%p3032) target = $region138
        $region137: #{dfnet_forward.13} parent=125 // pred_region
          %p3035 = scmp.lt.s32.totalorder %s25, 0
          %s3036 = scalar_select %p3035, %s25, 0
          %p3037 = scmp.lt.s32.totalorder %s26, 0
          %s3038 = scalar_select %p3037, %s26, 0
          %p3039 = scmp.lt.s32.totalorder %s27, 1
          %s3040 = scalar_select %p3039, %s27, 1
          %s3041 = smul.addr %s3038, 2
          %s3042 = sadd.s32 %s3040, %s3041
          %s3043 = smul.addr %s3036, 2
          %s3044 = sadd.s32 %s3042, %s3043
          %s3045 = scalar_lea.vmem %s5, %s3044
        $region138: #{dfnet_forward.13} parent=125 // pred_fallthru
          _
      $region126: #{dfnet_forward.13} parent=5 // pred_fallthru
        _
    $region6: #{dfnet_forward.13} parent=1 // loop_footer
      %s16 = sadd.s32 1, %s12
    $region7: #{dfnet_forward.13} parent=1 // loop_footer_branch
      %11 = sbr.rel target = $region3
    $region8: #{dfnet_forward.13} parent=1 // loop_exit
      _

// kernel: dfnet_forward.17
$region0: #{dfnet_forward.17}
  #allocation0 [shape = 'u32[]', space=smem, size = 0x4, offset = 0x4, fixed_abs, tag = 'smem constant byte address 0x4 - core index']
  #allocation1 [shape = 'u32[144,128]{1,0:T(1,128)}', space=vmem, size = 0x12000, scoped, tag = 'internal scratch']
  %s0 = inlined_call_operand.vmem [shape: bf16[4,32,512], index: 0, kind: input, shape index: {}]
  %s1 = inlined_call_operand.vmem [shape: bf16[4,512,128], index: 1, kind: input, shape index: {}]
  %s2 = inlined_call_operand.vmem [shape: f32[1,128], index: 2, kind: input, shape index: {}]
  %s3 = inlined_call_operand.vmem [shape: bf16[4,32,128], index: 3, kind: output, shape index: {0}]
  %s4 = inlined_call_operand.vmem [shape: f32[4,1,1,128], index: 4, kind: output, shape index: {1}]
  %s5 = inlined_call_operand.vmem [shape: f32[4,1,1,128], index: 5, kind: output, shape index: {2}]
  %6 = xla_tuple %s3, %s4, %s5
  %s7 = sld [smem:[#allocation0]]
  $region61: #{dfnet_forward.17} parent=0
    _
  %s9 = ssub.s32 1, %s7
  %s10 = scalar_select 0, %s9, %s7
  loop: start=0, step=1, limit=6
  $region2: #{dfnet_forward.17} parent=0 // loop_pre_header
    _
  $region3: #{dfnet_forward.17} parent=0 // loop_header
    %s12 = sphi 0, %s16
    %p13 = scmp.ge.s32.totalorder %s12, 6
    %s19 = sphi 0, %s38
    %s20 = sphi 0, %s34
    %s21 = sphi 0, %s30
    %s22 = sphi 0, %s19
    %s23 = sphi 0, %s20
    %s24 = sphi 0, %s21
    %s25 = sphi 0, %s22
    %s26 = sphi 0, %s23
    %s27 = sphi 0, %s24
    %s43 = sphi 0, %s45
    %s46 = sphi 0, %s43
    %s47 = sphi 0, %s46
    %s63 = sphi 0, %s47
    %s71 = sphi 0, %s73
    %s74 = sphi 0, %s71
    %s75 = sphi 0, %s74
    %s91 = sphi 0, %s75
    %s97 = sphi 0, %s99
    %s100 = sphi 0, %s97
    %s101 = sphi 0, %s100
    %s117 = sphi 0, %s101
    %s127 = sphi 0, %s129
    %s130 = sphi 0, %s127
    %s131 = sphi 0, %s130
    %s147 = sphi 0, %s131
    %s157 = sphi 0, %s159
    %s160 = sphi 0, %s157
    %s161 = sphi 0, %s160
    %s177 = sphi 0, %s161
    %s187 = sphi 0, %s189
    %s190 = sphi 0, %s187
    %s191 = sphi 0, %s190
    %s207 = sphi 0, %s191
  $region4: #{dfnet_forward.17} parent=0 // loop_header_branch
    %15 = sbr.rel (%p13) target = $region8
  $region5: #{dfnet_forward.17} parent=0 // loop_body
    %s17 = ssub.s32 %s12, 1
    %s18 = ssub.s32 %s12, 2
    %s28 = sadd.s32 1, %s21
    %p29 = scmp.ge.s32.totalorder %s28, 1
    %s30 = scalar_select %p29, 0, %s28
    %s31 = sadd.s32 1, %s20
    %s32 = scalar_select %p29, %s31, %s20
    %p33 = scmp.ge.s32.totalorder %s32, 1
    %s34 = scalar_select %p33, 0, %s32
    %s35 = sadd.s32 1, %s19
    %s36 = scalar_select %p33, %s35, %s19
    %p37 = scmp.ge.s32.totalorder %s36, 4
    %s38 = scalar_select %p37, 0, %s36
    %s39 = ssub.s32 %s19, %s38
    %s40 = ssub.s32 %s20, %s34
    %s41 = sor.u32 %s39, %s40
    %p42 = scmp.eq.s32.totalorder %s41, 0
    %s44 = sadd.s32 %s43, 1
    %s45 = scalar_select %p42, %s43, %s44
    %p48 = pneg %p42
    %p49 = scmp.eq.s32.totalorder %s12, 3
    %p50 = por %p48, %p49
    %p51 = scmp.ne.s32.totalorder %s43, %s46
    %p52 = scmp.eq.s32.totalorder %s12, 0
    %p53 = por %p51, %p52
    %p54 = scmp.ne.s32.totalorder %s43, %s46
    %p55 = scmp.eq.s32.totalorder %s17, 3
    %p56 = por %p54, %p55
    %p57 = scmp.ne.s32.totalorder %s46, %s47
    %p58 = scmp.eq.s32.totalorder %s17, 0
    %p59 = por %p57, %p58
    %p60 = scmp.ne.s32.totalorder %s46, %s47
    %p61 = scmp.eq.s32.totalorder %s18, 3
    %p62 = por %p60, %p61
    %p64 = scmp.ne.s32.totalorder %s47, %s63
    %p65 = scmp.eq.s32.totalorder %s18, 0
    %p66 = por %p64, %p65
    %s67 = ssub.s32 %s19, %s38
    %s68 = ssub.s32 %s21, %s30
    %s69 = sor.u32 %s67, %s68
    %p70 = scmp.eq.s32.totalorder %s69, 0
    %s72 = sadd.s32 %s71, 1
    %s73 = scalar_select %p70, %s71, %s72
    %p76 = pneg %p70
    %p77 = scmp.eq.s32.totalorder %s12, 3
    %p78 = por %p76, %p77
    %p79 = scmp.ne.s32.totalorder %s71, %s74
    %p80 = scmp.eq.s32.totalorder %s12, 0
    %p81 = por %p79, %p80
    %p82 = scmp.ne.s32.totalorder %s71, %s74
    %p83 = scmp.eq.s32.totalorder %s17, 3
    %p84 = por %p82, %p83
    %p85 = scmp.ne.s32.totalorder %s74, %s75
    %p86 = scmp.eq.s32.totalorder %s17, 0
    %p87 = por %p85, %p86
    %p88 = scmp.ne.s32.totalorder %s74, %s75
    %p89 = scmp.eq.s32.totalorder %s18, 3
    %p90 = por %p88, %p89
    %p92 = scmp.ne.s32.totalorder %s75, %s91
    %p93 = scmp.eq.s32.totalorder %s18, 0
    %p94 = por %p92, %p93
    %s95 = ssub.s32 %s21, %s30
    %p96 = scmp.eq.s32.totalorder %s95, 0
    %s98 = sadd.s32 %s97, 1
    %s99 = scalar_select %p96, %s97, %s98
    %p102 = pneg %p96
    %p103 = scmp.eq.s32.totalorder %s12, 3
    %p104 = por %p102, %p103
    %p105 = scmp.ne.s32.totalorder %s97, %s100
    %p106 = scmp.eq.s32.totalorder %s12, 0
    %p107 = por %p105, %p106
    %p108 = scmp.ne.s32.totalorder %s97, %s100
    %p109 = scmp.eq.s32.totalorder %s17, 3
    %p110 = por %p108, %p109
    %p111 = scmp.ne.s32.totalorder %s100, %s101
    %p112 = scmp.eq.s32.totalorder %s17, 0
    %p113 = por %p111, %p112
    %p114 = scmp.ne.s32.totalorder %s100, %s101
    %p115 = scmp.eq.s32.totalorder %s18, 3
    %p116 = por %p114, %p115
    %p118 = scmp.ne.s32.totalorder %s101, %s117
    %p119 = scmp.eq.s32.totalorder %s18, 0
    %p120 = por %p118, %p119
    %s121 = ssub.s32 %s19, %s38
    %s122 = ssub.s32 %s20, %s34
    %s123 = sor.u32 %s121, %s122
    %s124 = ssub.s32 %s21, %s30
    %s125 = sor.u32 %s123, %s124
    %p126 = scmp.eq.s32.totalorder %s125, 0
    %s128 = sadd.s32 %s127, 1
    %s129 = scalar_select %p126, %s127, %s128
    %p132 = pneg %p126
    %p133 = scmp.eq.s32.totalorder %s12, 3
    %p134 = por %p132, %p133
    %p135 = scmp.ne.s32.totalorder %s127, %s130
    %p136 = scmp.eq.s32.totalorder %s12, 0
    %p137 = por %p135, %p136
    %p138 = scmp.ne.s32.totalorder %s127, %s130
    %p139 = scmp.eq.s32.totalorder %s17, 3
    %p140 = por %p138, %p139
    %p141 = scmp.ne.s32.totalorder %s130, %s131
    %p142 = scmp.eq.s32.totalorder %s17, 0
    %p143 = por %p141, %p142
    %p144 = scmp.ne.s32.totalorder %s130, %s131
    %p145 = scmp.eq.s32.totalorder %s18, 3
    %p146 = por %p144, %p145
    %p148 = scmp.ne.s32.totalorder %s131, %s147
    %p149 = scmp.eq.s32.totalorder %s18, 0
    %p150 = por %p148, %p149
    %s151 = ssub.s32 %s19, %s38
    %s152 = ssub.s32 %s20, %s34
    %s153 = sor.u32 %s151, %s152
    %s154 = ssub.s32 %s21, %s30
    %s155 = sor.u32 %s153, %s154
    %p156 = scmp.eq.s32.totalorder %s155, 0
    %s158 = sadd.s32 %s157, 1
    %s159 = scalar_select %p156, %s157, %s158
    %p162 = pneg %p156
    %p163 = scmp.eq.s32.totalorder %s12, 3
    %p164 = por %p162, %p163
    %p165 = scmp.ne.s32.totalorder %s157, %s160
    %p166 = scmp.eq.s32.totalorder %s12, 0
    %p167 = por %p165, %p166
    %p168 = scmp.ne.s32.totalorder %s157, %s160
    %p169 = scmp.eq.s32.totalorder %s17, 3
    %p170 = por %p168, %p169
    %p171 = scmp.ne.s32.totalorder %s160, %s161
    %p172 = scmp.eq.s32.totalorder %s17, 0
    %p173 = por %p171, %p172
    %p174 = scmp.ne.s32.totalorder %s160, %s161
    %p175 = scmp.eq.s32.totalorder %s18, 3
    %p176 = por %p174, %p175
    %p178 = scmp.ne.s32.totalorder %s161, %s177
    %p179 = scmp.eq.s32.totalorder %s18, 0
    %p180 = por %p178, %p179
    %s181 = ssub.s32 %s19, %s38
    %s182 = ssub.s32 %s20, %s34
    %s183 = sor.u32 %s181, %s182
    %s184 = ssub.s32 %s21, %s30
    %s185 = sor.u32 %s183, %s184
    %p186 = scmp.eq.s32.totalorder %s185, 0
    %s188 = sadd.s32 %s187, 1
    %s189 = scalar_select %p186, %s187, %s188
    %p192 = pneg %p186
    %p193 = scmp.eq.s32.totalorder %s12, 3
    %p194 = por %p192, %p193
    %p195 = scmp.ne.s32.totalorder %s187, %s190
    %p196 = scmp.eq.s32.totalorder %s12, 0
    %p197 = por %p195, %p196
    %p198 = scmp.ne.s32.totalorder %s187, %s190
    %p199 = scmp.eq.s32.totalorder %s17, 3
    %p200 = por %p198, %p199
    %p201 = scmp.ne.s32.totalorder %s190, %s191
    %p202 = scmp.eq.s32.totalorder %s17, 0
    %p203 = por %p201, %p202
    %p204 = scmp.ne.s32.totalorder %s190, %s191
    %p205 = scmp.eq.s32.totalorder %s18, 3
    %p206 = por %p204, %p205
    %p208 = scmp.ne.s32.totalorder %s191, %s207
    %p209 = scmp.eq.s32.totalorder %s18, 0
    %p210 = por %p208, %p209
    %p211 = scmp.le.s32.totalorder 1, %s12
    %p212 = scmp.lt.s32.totalorder %s12, 5
    %p213 = pnand %p211, %p212
    %p214 = pneg %p213
    // Predicated region
    $region9: #{dfnet_forward.17} parent=5 // pred_check
      _
    $region10: #{dfnet_forward.17} parent=5 // pred_check_branch
      %216 = sbr.rel (%p213) target = $region12
    $region11: #{dfnet_forward.17} parent=5 // pred_region
      %s217 = ssub.s32 %s12, 1
      // Predicated region
      $region13: #{dfnet_forward.17} parent=11 // pred_check
        %p218 = pneg %p113
      $region14: #{dfnet_forward.17} parent=11 // pred_check_branch
        %220 = sbr.rel (%p218) target = $region16
      $region15: #{dfnet_forward.17} parent=11 // pred_region
        %p221 = scmp.lt.s32.totalorder %s24, 0
        %s222 = scalar_select %p221, %s24, 0
        %s223 = scalar_lea.vmem %s2, %s222
      $region16: #{dfnet_forward.17} parent=11 // pred_fallthru
        _
    $region12: #{dfnet_forward.17} parent=5 // pred_fallthru
      _
    %p224 = scmp.lt.s32.totalorder %s12, 4
    // Predicated region
    $region17: #{dfnet_forward.17} parent=5 // pred_check
      %p225 = pneg %p224
    $region18: #{dfnet_forward.17} parent=5 // pred_check_branch
      %227 = sbr.rel (%p225) target = $region20
    $region19: #{dfnet_forward.17} parent=5 // pred_region
      // Predicated region
      $region21: #{dfnet_forward.17} parent=19 // pred_check
        %p228 = pneg %p53
      $region22: #{dfnet_forward.17} parent=19 // pred_check_branch
        %230 = sbr.rel (%p228) target = $region24
      $region23: #{dfnet_forward.17} parent=19 // pred_region
        %s231 = smul.u32 4, %s20
        %p232 = scmp.lt.s32.totalorder %s19, 3
        %s233 = scalar_select %p232, %s19, 3
        %p234 = scmp.lt.s32.totalorder %s231, 3
        %s235 = scalar_select %p234, %s231, 3
        %s236 = smul.addr %s235, 4
        %s237 = smul.addr %s233, 16
        %s238 = sadd.s32 %s236, %s237
        %s239 = smul.addr %s238, 4
        %s240 = scalar_lea.vmem %s0, %s239
        %s241 = smul.u32 4, %s20
      $region24: #{dfnet_forward.17} parent=19 // pred_fallthru
        _
      // Predicated region
      $region25: #{dfnet_forward.17} parent=19 // pred_check
        %p242 = pneg %p81
      $region26: #{dfnet_forward.17} parent=19 // pred_check_branch
        %244 = sbr.rel (%p242) target = $region28
      $region27: #{dfnet_forward.17} parent=19 // pred_region
        %p245 = scmp.lt.s32.totalorder %s19, 3
        %s246 = scalar_select %p245, %s19, 3
        %p247 = scmp.lt.s32.totalorder %s21, 0
        %s248 = scalar_select %p247, %s21, 0
        %s249 = smul.addr %s246, 64
        %s250 = sadd.s32 %s248, %s249
        %s251 = smul.addr %s250, 4
        %s252 = scalar_lea.vmem %s1, %s251
      $region28: #{dfnet_forward.17} parent=19 // pred_fallthru
        _
    $region20: #{dfnet_forward.17} parent=5 // pred_fallthru
      _
    %p253 = scmp.le.s32.totalorder 1, %s12
    %p254 = scmp.lt.s32.totalorder %s12, 5
    %p255 = pnand %p253, %p254
    %p256 = pneg %p255
    // Predicated region
    $region29: #{dfnet_forward.17} parent=5 // pred_check
      _
    $region30: #{dfnet_forward.17} parent=5 // pred_check_branch
      %258 = sbr.rel (%p255) target = $region32
    $region31: #{dfnet_forward.17} parent=5 // pred_region
      %s259 = ssub.s32 %s12, 1
      %s260 = smul.u32 4, %s23
      %p261 = scmp.lt.s32.totalorder %s22, 3
      %s262 = scalar_select %p261, %s22, 3
      %p263 = scmp.lt.s32.totalorder %s260, 3
      %s264 = scalar_select %p263, %s260, 3
      %s265 = smul.addr %s264, 4
      %s266 = smul.addr %s262, 16
      %s267 = sadd.s32 %s265, %s266
      %s268 = smul.addr %s267, 4
      %s269 = scalar_lea.vmem %s0, %s268
      %p270 = pneg %p59
      %p271 = pneg %p56
      %p272 = scmp.lt.s32.totalorder %s22, 3
      %s273 = scalar_select %p272, %s22, 3
      %p274 = scmp.lt.s32.totalorder %s24, 0
      %s275 = scalar_select %p274, %s24, 0
      %s276 = smul.addr %s273, 64
      %s277 = sadd.s32 %s275, %s276
      %s278 = smul.addr %s277, 4
      %s279 = scalar_lea.vmem %s1, %s278
      %p280 = pneg %p87
      %p281 = pneg %p84
      %p282 = scmp.lt.s32.totalorder %s24, 0
      %s283 = scalar_select %p282, %s24, 0
      %s284 = scalar_lea.vmem %s2, %s283
      %p285 = pneg %p113
      %p286 = pneg %p110
      %p287 = pneg %p143
      %p288 = pneg %p140
      %s289 = smul.u32 4, %s23
      %p290 = scmp.lt.s32.totalorder %s22, 3
      %s291 = scalar_select %p290, %s22, 3
      %p292 = scmp.lt.s32.totalorder %s289, 3
      %s293 = scalar_select %p292, %s289, 3
      %p294 = scmp.lt.s32.totalorder %s24, 0
      %s295 = scalar_select %p294, %s24, 0
      %s296 = sadd.s32 %s295, %s293
      %s297 = smul.addr %s291, 4
      %s298 = sadd.s32 %s296, %s297
      %s299 = smul.addr %s298, 4
      %s300 = scalar_lea.vmem %s3, %s299
      %p301 = pneg %p173
      %p302 = pneg %p170
      %p303 = scmp.lt.s32.totalorder %s22, 3
      %s304 = scalar_select %p303, %s22, 3
      %p305 = scmp.lt.s32.totalorder %s23, 0
      %s306 = scalar_select %p305, %s23, 0
      %p307 = scmp.lt.s32.totalorder %s24, 0
      %s308 = scalar_select %p307, %s24, 0
      %s309 = sadd.s32 %s308, %s306
      %s310 = sadd.s32 %s309, %s304
      %s311 = scalar_lea.vmem %s4, %s310
      %p312 = pneg %p203
      %p313 = pneg %p200
      %p314 = scmp.lt.s32.totalorder %s22, 3
      %s315 = scalar_select %p314, %s22, 3
      %p316 = scmp.lt.s32.totalorder %s23, 0
      %s317 = scalar_select %p316, %s23, 0
      %p318 = scmp.lt.s32.totalorder %s24, 0
      %s319 = scalar_select %p318, %s24, 0
      %s320 = sadd.s32 %s319, %s317
      %s321 = sadd.s32 %s320, %s315
      %s322 = scalar_lea.vmem %s5, %s321
      %s323 = smul.u32 4, %s23
      %p324 = scmp.lt.s32.totalorder %s22, 3
      %s325 = scalar_select %p324, %s22, 3
      %p326 = scmp.lt.s32.totalorder %s323, 3
      %s327 = scalar_select %p326, %s323, 3
      %s328 = smul.addr %s327, 4
      %s329 = smul.addr %s325, 16
      %s330 = sadd.s32 %s328, %s329
      %s331 = smul.addr %s330, 4
      %s332 = scalar_lea.vmem %s0, %s331
      %s333 = smul.u32 4, %s23
      %p334 = scmp.lt.s32.totalorder %s22, 3
      %s335 = scalar_select %p334, %s22, 3
      %p336 = scmp.lt.s32.totalorder %s24, 0
      %s337 = scalar_select %p336, %s24, 0
      %s338 = smul.addr %s335, 64
      %s339 = sadd.s32 %s337, %s338
      %s340 = smul.addr %s339, 4
      %s341 = scalar_lea.vmem %s1, %s340
      %p342 = scmp.lt.s32.totalorder %s24, 0
      %s343 = scalar_select %p342, %s24, 0
      %s344 = scalar_lea.vmem %s2, %s343
      %s345 = smul.u32 4, %s23
      %p346 = scmp.lt.s32.totalorder %s22, 3
      %s347 = scalar_select %p346, %s22, 3
      %p348 = scmp.lt.s32.totalorder %s345, 3
      %s349 = scalar_select %p348, %s345, 3
      %p350 = scmp.lt.s32.totalorder %s24, 0
      %s351 = scalar_select %p350, %s24, 0
      %s352 = sadd.s32 %s351, %s349
      %s353 = smul.addr %s347, 4
      %s354 = sadd.s32 %s352, %s353
      %s355 = smul.addr %s354, 4
      %s356 = scalar_lea.vmem %s3, %s355
      %s357 = smul.u32 4, %s23
      %p358 = scmp.lt.s32.totalorder %s22, 3
      %s359 = scalar_select %p358, %s22, 3
      %p360 = scmp.lt.s32.totalorder %s23, 0
      %s361 = scalar_select %p360, %s23, 0
      %p362 = scmp.lt.s32.totalorder %s24, 0
      %s363 = scalar_select %p362, %s24, 0
      %s364 = sadd.s32 %s363, %s361
      %s365 = sadd.s32 %s364, %s359
      %s366 = scalar_lea.vmem %s4, %s365
      %p367 = scmp.lt.s32.totalorder %s22, 3
      %s368 = scalar_select %p367, %s22, 3
      %p369 = scmp.lt.s32.totalorder %s23, 0
      %s370 = scalar_select %p369, %s23, 0
      %p371 = scmp.lt.s32.totalorder %s24, 0
      %s372 = scalar_select %p371, %s24, 0
      %s373 = sadd.s32 %s372, %s370
      %s374 = sadd.s32 %s373, %s368
      %s375 = scalar_lea.vmem %s5, %s374
      %v377 = vld [vmem:[%s332] sm:$0xff]
      %v378 = vld [vmem:[%s332 + $0x8] sm:$0xff]
      %v379 = vld [vmem:[%s332 + $0x10] sm:$0xff]
      %v380 = vld [vmem:[%s332 + $0x18] sm:$0xff]
      %v381 = vld [vmem:[%s332 + $0x20] sm:$0xff]
      %v382 = vld [vmem:[%s332 + $0x28] sm:$0xff]
      %v383 = vld [vmem:[%s332 + $0x30] sm:$0xff]
      %v384 = vld [vmem:[%s332 + $0x38] sm:$0xff]
      %v385 = vld [vmem:[%s341] sm:$0xf]
      %v386 = vld [vmem:[%s341 + $0x4] sm:$0xf]
      %v387 = vld [vmem:[%s341 + $0x8] sm:$0xf]
      %v388 = vld [vmem:[%s341 + $0xc] sm:$0xf]
      %v389 = vld [vmem:[%s341 + $0x10] sm:$0xf]
      %v390 = vld [vmem:[%s341 + $0x14] sm:$0xf]
      %v391 = vld [vmem:[%s341 + $0x18] sm:$0xf]
      %v392 = vld [vmem:[%s341 + $0x1c] sm:$0xf]
      %v393 = vld [vmem:[%s341 + $0x20] sm:$0xf]
      %v394 = vld [vmem:[%s341 + $0x24] sm:$0xf]
      %v395 = vld [vmem:[%s341 + $0x28] sm:$0xf]
      %v396 = vld [vmem:[%s341 + $0x2c] sm:$0xf]
      %v397 = vld [vmem:[%s341 + $0x30] sm:$0xf]
      %v398 = vld [vmem:[%s341 + $0x34] sm:$0xf]
      %v399 = vld [vmem:[%s341 + $0x38] sm:$0xf]
      %v400 = vld [vmem:[%s341 + $0x3c] sm:$0xf]
      %v401 = vld [vmem:[%s341 + $0x40] sm:$0xf]
      %v402 = vld [vmem:[%s341 + $0x44] sm:$0xf]
      %v403 = vld [vmem:[%s341 + $0x48] sm:$0xf]
      %v404 = vld [vmem:[%s341 + $0x4c] sm:$0xf]
      %v405 = vld [vmem:[%s341 + $0x50] sm:$0xf]
      %v406 = vld [vmem:[%s341 + $0x54] sm:$0xf]
      %v407 = vld [vmem:[%s341 + $0x58] sm:$0xf]
      %v408 = vld [vmem:[%s341 + $0x5c] sm:$0xf]
      %v409 = vld [vmem:[%s341 + $0x60] sm:$0xf]
      %v410 = vld [vmem:[%s341 + $0x64] sm:$0xf]
      %v411 = vld [vmem:[%s341 + $0x68] sm:$0xf]
      %v412 = vld [vmem:[%s341 + $0x6c] sm:$0xf]
      %v413 = vld [vmem:[%s341 + $0x70] sm:$0xf]
      %v414 = vld [vmem:[%s341 + $0x74] sm:$0xf]
      %v415 = vld [vmem:[%s341 + $0x78] sm:$0xf]
      %v416 = vld [vmem:[%s341 + $0x7c] sm:$0xf]
      %v417 = vld [vmem:[%s341 + $0x80] sm:$0xf]
      %v418 = vld [vmem:[%s341 + $0x84] sm:$0xf]
      %v419 = vld [vmem:[%s341 + $0x88] sm:$0xf]
      %v420 = vld [vmem:[%s341 + $0x8c] sm:$0xf]
      %v421 = vld [vmem:[%s341 + $0x90] sm:$0xf]
      %v422 = vld [vmem:[%s341 + $0x94] sm:$0xf]
      %v423 = vld [vmem:[%s341 + $0x98] sm:$0xf]
      %v424 = vld [vmem:[%s341 + $0x9c] sm:$0xf]
      %v425 = vld [vmem:[%s341 + $0xa0] sm:$0xf]
      %v426 = vld [vmem:[%s341 + $0xa4] sm:$0xf]
      %v427 = vld [vmem:[%s341 + $0xa8] sm:$0xf]
      %v428 = vld [vmem:[%s341 + $0xac] sm:$0xf]
      %v429 = vld [vmem:[%s341 + $0xb0] sm:$0xf]
      %v430 = vld [vmem:[%s341 + $0xb4] sm:$0xf]
      %v431 = vld [vmem:[%s341 + $0xb8] sm:$0xf]
      %v432 = vld [vmem:[%s341 + $0xbc] sm:$0xf]
      %v433 = vld [vmem:[%s341 + $0xc0] sm:$0xf]
      %v434 = vld [vmem:[%s341 + $0xc4] sm:$0xf]
      %v435 = vld [vmem:[%s341 + $0xc8] sm:$0xf]
      %v436 = vld [vmem:[%s341 + $0xcc] sm:$0xf]
      %v437 = vld [vmem:[%s341 + $0xd0] sm:$0xf]
      %v438 = vld [vmem:[%s341 + $0xd4] sm:$0xf]
      %v439 = vld [vmem:[%s341 + $0xd8] sm:$0xf]
      %v440 = vld [vmem:[%s341 + $0xdc] sm:$0xf]
      %v441 = vld [vmem:[%s341 + $0xe0] sm:$0xf]
      %v442 = vld [vmem:[%s341 + $0xe4] sm:$0xf]
      %v443 = vld [vmem:[%s341 + $0xe8] sm:$0xf]
      %v444 = vld [vmem:[%s341 + $0xec] sm:$0xf]
      %v445 = vld [vmem:[%s341 + $0xf0] sm:$0xf]
      %v446 = vld [vmem:[%s341 + $0xf4] sm:$0xf]
      %v447 = vld [vmem:[%s341 + $0xf8] sm:$0xf]
      %v448 = vld [vmem:[%s341 + $0xfc] sm:$0xf]
      %v449 = vld [vmem:[%s344] sm:$0x1]
      %v451 = vlaneseq
      %v452 = vshrl.u32 %v451, 7
      %v453 = vsub.s32 0, %v452
      %v454 = vrot.slane %v449, %v453
      %v464 = vunpack.c.l.b16 %v377
      %v465 = vunpack.c.h.b16 %v377
      %v466 = vunpack.c.l.b16 %v378
      %v467 = vunpack.c.h.b16 %v378
      %v468 = vunpack.c.l.b16 %v379
      %v469 = vunpack.c.h.b16 %v379
      %v470 = vunpack.c.l.b16 %v380
      %v471 = vunpack.c.h.b16 %v380
      %v472 = vunpack.c.l.b16 %v381
      %v473 = vunpack.c.h.b16 %v381
      %v474 = vunpack.c.l.b16 %v382
      %v475 = vunpack.c.h.b16 %v382
      %v476 = vunpack.c.l.b16 %v383
      %v477 = vunpack.c.h.b16 %v383
      %v478 = vunpack.c.l.b16 %v384
      %v479 = vunpack.c.h.b16 %v384
      %v480 = vpack.c.b16 %v468, %v464
      %v481 = vpack.c.b16 %v469, %v465
      %v482 = vpack.c.b16 %v470, %v466
      %v483 = vpack.c.b16 %v471, %v467
      %v484 = vpack.c.b16 %v476, %v472
      %v485 = vpack.c.b16 %v477, %v473
      %v486 = vpack.c.b16 %v478, %v474
      %v487 = vpack.c.b16 %v479, %v475
      %v560 = vunpack.c.l.b16 %v385
      %v561 = vunpack.c.l.b16 %v386
      %v562 = vunpack.c.l.b16 %v387
      %v563 = vunpack.c.l.b16 %v388
      %v564 = vunpack.c.l.b16 %v389
      %v565 = vunpack.c.l.b16 %v390
      %v566 = vunpack.c.l.b16 %v391
      %v567 = vunpack.c.l.b16 %v392
      %v568 = vunpack.c.l.b16 %v393
      %v569 = vunpack.c.l.b16 %v394
      %v570 = vunpack.c.l.b16 %v395
      %v571 = vunpack.c.l.b16 %v396
      %v572 = vunpack.c.l.b16 %v397
      %v573 = vunpack.c.l.b16 %v398
      %v574 = vunpack.c.l.b16 %v399
      %v575 = vunpack.c.l.b16 %v400
      %v576 = vunpack.c.l.b16 %v401
      %v577 = vunpack.c.l.b16 %v402
      %v578 = vunpack.c.l.b16 %v403
      %v579 = vunpack.c.l.b16 %v404
      %v580 = vunpack.c.l.b16 %v405
      %v581 = vunpack.c.l.b16 %v406
      %v582 = vunpack.c.l.b16 %v407
      %v583 = vunpack.c.l.b16 %v408
      %v584 = vunpack.c.l.b16 %v409
      %v585 = vunpack.c.l.b16 %v410
      %v586 = vunpack.c.l.b16 %v411
      %v587 = vunpack.c.l.b16 %v412
      %v588 = vunpack.c.l.b16 %v413
      %v589 = vunpack.c.l.b16 %v414
      %v590 = vunpack.c.l.b16 %v415
      %v591 = vunpack.c.l.b16 %v416
      %v592 = vunpack.c.l.b16 %v417
      %v593 = vunpack.c.l.b16 %v418
      %v594 = vunpack.c.l.b16 %v419
      %v595 = vunpack.c.l.b16 %v420
      %v596 = vunpack.c.l.b16 %v421
      %v597 = vunpack.c.l.b16 %v422
      %v598 = vunpack.c.l.b16 %v423
      %v599 = vunpack.c.l.b16 %v424
      %v600 = vunpack.c.l.b16 %v425
      %v601 = vunpack.c.l.b16 %v426
      %v602 = vunpack.c.l.b16 %v427
      %v603 = vunpack.c.l.b16 %v428
      %v604 = vunpack.c.l.b16 %v429
      %v605 = vunpack.c.l.b16 %v430
      %v606 = vunpack.c.l.b16 %v431
      %v607 = vunpack.c.l.b16 %v432
      %v608 = vunpack.c.l.b16 %v433
      %v609 = vunpack.c.l.b16 %v434
      %v610 = vunpack.c.l.b16 %v435
      %v611 = vunpack.c.l.b16 %v436
      %v612 = vunpack.c.l.b16 %v437
      %v613 = vunpack.c.l.b16 %v438
      %v614 = vunpack.c.l.b16 %v439
      %v615 = vunpack.c.l.b16 %v440
      %v616 = vunpack.c.l.b16 %v441
      %v617 = vunpack.c.l.b16 %v442
      %v618 = vunpack.c.l.b16 %v443
      %v619 = vunpack.c.l.b16 %v444
      %v620 = vunpack.c.l.b16 %v445
      %v621 = vunpack.c.l.b16 %v446
      %v622 = vunpack.c.l.b16 %v447
      %v623 = vunpack.c.l.b16 %v448
      %v624 = vpack.c.b16 %v561, %v560
      %v625 = vpack.c.b16 %v563, %v562
      %v626 = vpack.c.b16 %v565, %v564
      %v627 = vpack.c.b16 %v567, %v566
      %v628 = vpack.c.b16 %v569, %v568
      %v629 = vpack.c.b16 %v571, %v570
      %v630 = vpack.c.b16 %v573, %v572
      %v631 = vpack.c.b16 %v575, %v574
      %v632 = vpack.c.b16 %v577, %v576
      %v633 = vpack.c.b16 %v579, %v578
      %v634 = vpack.c.b16 %v581, %v580
      %v635 = vpack.c.b16 %v583, %v582
      %v636 = vpack.c.b16 %v585, %v584
      %v637 = vpack.c.b16 %v587, %v586
      %v638 = vpack.c.b16 %v589, %v588
      %v639 = vpack.c.b16 %v591, %v590
      %v640 = vpack.c.b16 %v593, %v592
      %v641 = vpack.c.b16 %v595, %v594
      %v642 = vpack.c.b16 %v597, %v596
      %v643 = vpack.c.b16 %v599, %v598
      %v644 = vpack.c.b16 %v601, %v600
      %v645 = vpack.c.b16 %v603, %v602
      %v646 = vpack.c.b16 %v605, %v604
      %v647 = vpack.c.b16 %v607, %v606
      %v648 = vpack.c.b16 %v609, %v608
      %v649 = vpack.c.b16 %v611, %v610
      %v650 = vpack.c.b16 %v613, %v612
      %v651 = vpack.c.b16 %v615, %v614
      %v652 = vpack.c.b16 %v617, %v616
      %v653 = vpack.c.b16 %v619, %v618
      %v654 = vpack.c.b16 %v621, %v620
      %v655 = vpack.c.b16 %v623, %v622
      %688 = vmatprep.subr.bf16.mxu0 0
      %689 = vmatpush1.bf16.msra.mxu0 %v631
      %690 = vmatprep.subr.bf16.mxu0 0
      %691 = vmatpush1.bf16.msra.mxu0 %v630
      %692 = vmatprep.subr.bf16.mxu0 0
      %693 = vmatpush1.bf16.msra.mxu0 %v629
      %694 = vmatprep.subr.bf16.mxu0 0
      %695 = vmatpush1.bf16.msra.mxu0 %v628
      %696 = vmatprep.subr.bf16.mxu0 0
      %697 = vmatpush1.bf16.msra.mxu0 %v627
      %698 = vmatprep.subr.bf16.mxu0 0
      %699 = vmatpush1.bf16.msra.mxu0 %v626
      %700 = vmatprep.subr.bf16.mxu0 0
      %701 = vmatpush1.bf16.msra.mxu0 %v625
      %702 = vmatprep.subr.bf16.mxu0 0
      %703 = vmatpush1.bf16.msra.mxu0 %v624
      %704 = vmatprep.subr.bf16.mxu0 0
      %705 = vmatpush2.bf16.msra.mxu0 %v639
      %706 = vmatprep.subr.bf16.mxu0 0
      %707 = vmatpush2.bf16.msra.mxu0 %v638
      %708 = vmatprep.subr.bf16.mxu0 0
      %709 = vmatpush2.bf16.msra.mxu0 %v637
      %710 = vmatprep.subr.bf16.mxu0 0
      %711 = vmatpush2.bf16.msra.mxu0 %v636
      %712 = vmatprep.subr.bf16.mxu0 0
      %713 = vmatpush2.bf16.msra.mxu0 %v635
      %714 = vmatprep.subr.bf16.mxu0 0
      %715 = vmatpush2.bf16.msra.mxu0 %v634
      %716 = vmatprep.subr.bf16.mxu0 0
      %717 = vmatpush2.bf16.msra.mxu0 %v633
      %718 = vmatprep.subr.bf16.mxu0 0
      %719 = vmatpush2.bf16.msra.mxu0 %v632
      %720 = vmatprep.mubr.bf16.mxu0 %v481
      %721 = vmatmul.mubr.bf16.gmra.mxu0 %v480
      %v722 = vpop.f32.mrf.mxu0
      %v723 = vadd.f32 %v454, %v722
      %v724 = vpop.f32.mrf.mxu0
      %v725 = vpop.f32.mrf.mxu0
      %v726 = vadd.f32 %v454, %v725
      %v727 = vpop.f32.mrf.mxu0
      %728 = vmatprep.mubr.bf16.mxu0 %v485
      %729 = vmatmul.mubr.bf16.gmra.mxu0 %v484
      %v730 = vpop.f32.mrf.mxu0
      %v731 = vadd.f32 %v454, %v730
      %v732 = vpop.f32.mrf.mxu0
      %v733 = vpop.f32.mrf.mxu0
      %v734 = vadd.f32 %v454, %v733
      %v735 = vpop.f32.mrf.mxu0
      %736 = vdwg.mxu0
      %737 = vmatprep.subr.bf16.mxu0 0
      %738 = vmatpush1.bf16.msra.mxu0 %v647
      %739 = vmatprep.subr.bf16.mxu0 0
      %740 = vmatpush1.bf16.msra.mxu0 %v646
      %741 = vmatprep.subr.bf16.mxu0 0
      %742 = vmatpush1.bf16.msra.mxu0 %v645
      %743 = vmatprep.subr.bf16.mxu0 0
      %744 = vmatpush1.bf16.msra.mxu0 %v644
      %745 = vmatprep.subr.bf16.mxu0 0
      %746 = vmatpush1.bf16.msra.mxu0 %v643
      %747 = vmatprep.subr.bf16.mxu0 0
      %748 = vmatpush1.bf16.msra.mxu0 %v642
      %749 = vmatprep.subr.bf16.mxu0 0
      %750 = vmatpush1.bf16.msra.mxu0 %v641
      %751 = vmatprep.subr.bf16.mxu0 0
      %752 = vmatpush1.bf16.msra.mxu0 %v640
      %753 = vmatprep.subr.bf16.mxu0 0
      %754 = vmatpush2.bf16.msra.mxu0 %v655
      %755 = vmatprep.subr.bf16.mxu0 0
      %756 = vmatpush2.bf16.msra.mxu0 %v654
      %757 = vmatprep.subr.bf16.mxu0 0
      %758 = vmatpush2.bf16.msra.mxu0 %v653
      %759 = vmatprep.subr.bf16.mxu0 0
      %760 = vmatpush2.bf16.msra.mxu0 %v652
      %761 = vmatprep.subr.bf16.mxu0 0
      %762 = vmatpush2.bf16.msra.mxu0 %v651
      %763 = vmatprep.subr.bf16.mxu0 0
      %764 = vmatpush2.bf16.msra.mxu0 %v650
      %765 = vmatprep.subr.bf16.mxu0 0
      %766 = vmatpush2.bf16.msra.mxu0 %v649
      %767 = vmatprep.subr.bf16.mxu0 0
      %768 = vmatpush2.bf16.msra.mxu0 %v648
      %769 = vmatprep.mubr.bf16.mxu0 %v483
      %770 = vmatmul.mubr.bf16.gmra.mxu0 %v482
      %v771 = vpop.f32.mrf.mxu0
      %v772 = vadd.f32 %v723, %v771
      %v773 = vpop.f32.mrf.mxu0
      %v774 = vpop.f32.mrf.mxu0
      %v775 = vadd.f32 %v726, %v774
      %v776 = vpop.f32.mrf.mxu0
      %777 = vmatprep.mubr.bf16.mxu0 %v487
      %778 = vmatmul.mubr.bf16.gmra.mxu0 %v486
      %v779 = vpop.f32.mrf.mxu0
      %v780 = vadd.f32 %v731, %v779
      %v781 = vpop.f32.mrf.mxu0
      %v782 = vpop.f32.mrf.mxu0
      %v783 = vadd.f32 %v734, %v782
      %v784 = vpop.f32.mrf.mxu0
      %785 = vdwg.mxu0
      %v786 = vpack.c.bf16 %v775, %v772
      %v787 = vpack.c.bf16 %v783, %v780
      %v790 = vunpack.c.l.b16 %v786
      %v791 = vunpack.c.h.b16 %v786
      %v792 = vunpack.c.l.b16 %v787
      %v793 = vunpack.c.h.b16 %v787
      %v794 = vpack.c.b16 %v790, %v790
      %v795 = vpack.c.b16 %v791, %v791
      %v796 = vpack.c.b16 %v792, %v792
      %v797 = vpack.c.b16 %v793, %v793
      %802 = vst [vmem:[%s356] sm:$0xf] %v794
      %803 = vst [vmem:[%s356 + $0x4] sm:$0xf] %v795
      %804 = vst [vmem:[%s356 + $0x8] sm:$0xf] %v796
      %805 = vst [vmem:[%s356 + $0xc] sm:$0xf] %v797
      %v806 = vadd.f32 %v772, %v775
      %v807 = vadd.f32 %v806, %v780
      %v808 = vadd.f32 %v807, %v783
      %v809 = vrot.slane %v808, 4
      %v810 = vadd.f32 %v808, %v809
      %v811 = vrot.slane %v810, 2
      %v812 = vadd.f32 %v810, %v811
      %v813 = vrot.slane %v812, 1
      %v814 = vadd.f32 %v812, %v813
      %815 = vst [vmem:[%s366] sm:$0x1] %v814
      %v816 = vmul.f32 %v772, %v772
      %v817 = vmul.f32 %v775, %v775
      %v818 = vmul.f32 %v780, %v780
      %v819 = vmul.f32 %v783, %v783
      %v820 = vadd.f32 %v816, %v817
      %v821 = vadd.f32 %v820, %v818
      %v822 = vadd.f32 %v821, %v819
      %v823 = vrot.slane %v822, 4
      %v824 = vadd.f32 %v822, %v823
      %v825 = vrot.slane %v824, 2
      %v826 = vadd.f32 %v824, %v825
      %v827 = vrot.slane %v826, 1
      %v828 = vadd.f32 %v826, %v827
      %829 = vst [vmem:[%s375] sm:$0x1] %v828
      %s830 = smul.u32 4, %s23
      %p831 = scmp.lt.s32.totalorder %s22, 3
      %s832 = scalar_select %p831, %s22, 3
      %p833 = scmp.lt.s32.totalorder %s830, 3
      %s834 = scalar_select %p833, %s830, 3
      %p835 = scmp.lt.s32.totalorder %s24, 0
      %s836 = scalar_select %p835, %s24, 0
      %s837 = sadd.s32 %s836, %s834
      %s838 = smul.addr %s832, 4
      %s839 = sadd.s32 %s837, %s838
      %s840 = smul.addr %s839, 4
      %s841 = scalar_lea.vmem %s3, %s840
      %p842 = scmp.lt.s32.totalorder %s22, 3
      %s843 = scalar_select %p842, %s22, 3
      %p844 = scmp.lt.s32.totalorder %s23, 0
      %s845 = scalar_select %p844, %s23, 0
      %p846 = scmp.lt.s32.totalorder %s24, 0
      %s847 = scalar_select %p846, %s24, 0
      %s848 = sadd.s32 %s847, %s845
      %s849 = sadd.s32 %s848, %s843
      %s850 = scalar_lea.vmem %s4, %s849
      %p851 = scmp.lt.s32.totalorder %s22, 3
      %s852 = scalar_select %p851, %s22, 3
      %p853 = scmp.lt.s32.totalorder %s23, 0
      %s854 = scalar_select %p853, %s23, 0
      %p855 = scmp.lt.s32.totalorder %s24, 0
      %s856 = scalar_select %p855, %s24, 0
      %s857 = sadd.s32 %s856, %s854
      %s858 = sadd.s32 %s857, %s852
      %s859 = scalar_lea.vmem %s5, %s858
      // Predicated region
      $region33: #{dfnet_forward.17} parent=31 // pred_check
        %p860 = pneg %p140
      $region34: #{dfnet_forward.17} parent=31 // pred_check_branch
        %862 = sbr.rel (%p860) target = $region36
      $region35: #{dfnet_forward.17} parent=31 // pred_region
        %s863 = smul.u32 4, %s23
      $region36: #{dfnet_forward.17} parent=31 // pred_fallthru
        _
      // Predicated region
      $region37: #{dfnet_forward.17} parent=31 // pred_check
        %p864 = pneg %p170
      $region38: #{dfnet_forward.17} parent=31 // pred_check_branch
        %866 = sbr.rel (%p864) target = $region40
      $region39: #{dfnet_forward.17} parent=31 // pred_region
        _
      $region40: #{dfnet_forward.17} parent=31 // pred_fallthru
        _
      // Predicated region
      $region41: #{dfnet_forward.17} parent=31 // pred_check
        %p867 = pneg %p200
      $region42: #{dfnet_forward.17} parent=31 // pred_check_branch
        %869 = sbr.rel (%p867) target = $region44
      $region43: #{dfnet_forward.17} parent=31 // pred_region
        _
      $region44: #{dfnet_forward.17} parent=31 // pred_fallthru
        _
    $region32: #{dfnet_forward.17} parent=5 // pred_fallthru
      _
    %p870 = scmp.le.s32.totalorder 2, %s12
    // Predicated region
    $region45: #{dfnet_forward.17} parent=5 // pred_check
      %p871 = pneg %p870
    $region46: #{dfnet_forward.17} parent=5 // pred_check_branch
      %873 = sbr.rel (%p871) target = $region48
    $region47: #{dfnet_forward.17} parent=5 // pred_region
      %s874 = ssub.s32 %s12, 2
      // Predicated region
      $region49: #{dfnet_forward.17} parent=47 // pred_check
        %p875 = pneg %p146
      $region50: #{dfnet_forward.17} parent=47 // pred_check_branch
        %877 = sbr.rel (%p875) target = $region52
      $region51: #{dfnet_forward.17} parent=47 // pred_region
        %s878 = smul.u32 4, %s26
        %p879 = scmp.lt.s32.totalorder %s25, 3
        %s880 = scalar_select %p879, %s25, 3
        %p881 = scmp.lt.s32.totalorder %s878, 3
        %s882 = scalar_select %p881, %s878, 3
        %p883 = scmp.lt.s32.totalorder %s27, 0
        %s884 = scalar_select %p883, %s27, 0
        %s885 = sadd.s32 %s884, %s882
        %s886 = smul.addr %s880, 4
        %s887 = sadd.s32 %s885, %s886
        %s888 = smul.addr %s887, 4
        %s889 = scalar_lea.vmem %s3, %s888
      $region52: #{dfnet_forward.17} parent=47 // pred_fallthru
        _
      // Predicated region
      $region53: #{dfnet_forward.17} parent=47 // pred_check
        %p890 = pneg %p176
      $region54: #{dfnet_forward.17} parent=47 // pred_check_branch
        %892 = sbr.rel (%p890) target = $region56
      $region55: #{dfnet_forward.17} parent=47 // pred_region
        %p893 = scmp.lt.s32.totalorder %s25, 3
        %s894 = scalar_select %p893, %s25, 3
        %p895 = scmp.lt.s32.totalorder %s26, 0
        %s896 = scalar_select %p895, %s26, 0
        %p897 = scmp.lt.s32.totalorder %s27, 0
        %s898 = scalar_select %p897, %s27, 0
        %s899 = sadd.s32 %s898, %s896
        %s900 = sadd.s32 %s899, %s894
        %s901 = scalar_lea.vmem %s4, %s900
      $region56: #{dfnet_forward.17} parent=47 // pred_fallthru
        _
      // Predicated region
      $region57: #{dfnet_forward.17} parent=47 // pred_check
        %p902 = pneg %p206
      $region58: #{dfnet_forward.17} parent=47 // pred_check_branch
        %904 = sbr.rel (%p902) target = $region60
      $region59: #{dfnet_forward.17} parent=47 // pred_region
        %p905 = scmp.lt.s32.totalorder %s25, 3
        %s906 = scalar_select %p905, %s25, 3
        %p907 = scmp.lt.s32.totalorder %s26, 0
        %s908 = scalar_select %p907, %s26, 0
        %p909 = scmp.lt.s32.totalorder %s27, 0
        %s910 = scalar_select %p909, %s27, 0
        %s911 = sadd.s32 %s910, %s908
        %s912 = sadd.s32 %s911, %s906
        %s913 = scalar_lea.vmem %s5, %s912
      $region60: #{dfnet_forward.17} parent=47 // pred_fallthru
        _
    $region48: #{dfnet_forward.17} parent=5 // pred_fallthru
      _
  $region6: #{dfnet_forward.17} parent=0 // loop_footer
    %s16 = sadd.s32 1, %s12
  $region7: #{dfnet_forward.17} parent=0 // loop_footer_branch
    %11 = sbr.rel target = $region3
  $region8: #{dfnet_forward.17} parent=0 // loop_exit
    _

// kernel: dfnet_forward.18
$region0: #{dfnet_forward.18}
  #allocation0 [shape = 'u32[]', space=smem, size = 0x4, offset = 0x4, fixed_abs, tag = 'smem constant byte address 0x4 - core index']
  #allocation1 [shape = 'u32[144,128]{1,0:T(1,128)}', space=vmem, size = 0x12000, scoped, tag = 'internal scratch']
  %s0 = inlined_call_operand.vmem [shape: bf16[128,128], index: 0, kind: input, shape index: {}]
  %s1 = inlined_call_operand.vmem [shape: f32[1,128], index: 1, kind: input, shape index: {}]
  %s2 = inlined_call_operand.vmem [shape: f32[1,128], index: 2, kind: input, shape index: {}]
  %s3 = inlined_call_operand.vmem [shape: bf16[128,128], index: 3, kind: output, shape index: {}]
  %s4 = sld [smem:[#allocation0]]
  $region22: #{dfnet_forward.18} parent=0
    _
  %s6 = ssub.s32 1, %s4
  %s7 = scalar_select 0, %s6, %s4
  // Predicated region
  $region2: #{dfnet_forward.18} parent=0 // pred_check
    _
  $region3: #{dfnet_forward.18} parent=0 // pred_check_branch
    %9 = sbr.rel (0) target = $region5
  $region4: #{dfnet_forward.18} parent=0 // pred_region
    _
  $region5: #{dfnet_forward.18} parent=0 // pred_fallthru
    _
  // Predicated region
  $region6: #{dfnet_forward.18} parent=0 // pred_check
    _
  $region7: #{dfnet_forward.18} parent=0 // pred_check_branch
    %11 = sbr.rel (0) target = $region9
  $region8: #{dfnet_forward.18} parent=0 // pred_region
    _
  $region9: #{dfnet_forward.18} parent=0 // pred_fallthru
    _
  // Predicated region
  $region10: #{dfnet_forward.18} parent=0 // pred_check
    _
  $region11: #{dfnet_forward.18} parent=0 // pred_check_branch
    %13 = sbr.rel (0) target = $region13
  $region12: #{dfnet_forward.18} parent=0 // pred_region
    _
  $region13: #{dfnet_forward.18} parent=0 // pred_fallthru
    _
  %v14 = vld [vmem:[%s0] sm:$0xf]
  %v15 = vld [vmem:[%s0 + $0x4] sm:$0xf]
  %v16 = vld [vmem:[%s0 + $0x8] sm:$0xf]
  %v17 = vld [vmem:[%s0 + $0xc] sm:$0xf]
  %v18 = vld [vmem:[%s0 + $0x10] sm:$0xf]
  %v19 = vld [vmem:[%s0 + $0x14] sm:$0xf]
  %v20 = vld [vmem:[%s0 + $0x18] sm:$0xf]
  %v21 = vld [vmem:[%s0 + $0x1c] sm:$0xf]
  %v22 = vld [vmem:[%s0 + $0x20] sm:$0xf]
  %v23 = vld [vmem:[%s0 + $0x24] sm:$0xf]
  %v24 = vld [vmem:[%s0 + $0x28] sm:$0xf]
  %v25 = vld [vmem:[%s0 + $0x2c] sm:$0xf]
  %v26 = vld [vmem:[%s0 + $0x30] sm:$0xf]
  %v27 = vld [vmem:[%s0 + $0x34] sm:$0xf]
  %v28 = vld [vmem:[%s0 + $0x38] sm:$0xf]
  %v29 = vld [vmem:[%s0 + $0x3c] sm:$0xf]
  %v30 = vunpack.c.l.bf16 %v14
  %v31 = vunpack.c.l.bf16 %v15
  %v32 = vunpack.c.l.bf16 %v16
  %v33 = vunpack.c.l.bf16 %v17
  %v34 = vunpack.c.l.bf16 %v18
  %v35 = vunpack.c.l.bf16 %v19
  %v36 = vunpack.c.l.bf16 %v20
  %v37 = vunpack.c.l.bf16 %v21
  %v38 = vunpack.c.l.bf16 %v22
  %v39 = vunpack.c.l.bf16 %v23
  %v40 = vunpack.c.l.bf16 %v24
  %v41 = vunpack.c.l.bf16 %v25
  %v42 = vunpack.c.l.bf16 %v26
  %v43 = vunpack.c.l.bf16 %v27
  %v44 = vunpack.c.l.bf16 %v28
  %v45 = vunpack.c.l.bf16 %v29
  %v46 = vld [vmem:[%s1] sm:$0x1]
  %v48 = vlaneseq
  %v49 = vshrl.u32 %v48, 7
  %v50 = vsub.s32 0, %v49
  %v51 = vrot.slane %v46, %v50
  %v53 = vmul.f32 %v30, %v51
  %v54 = vmul.f32 %v31, %v51
  %v55 = vmul.f32 %v32, %v51
  %v56 = vmul.f32 %v33, %v51
  %v57 = vmul.f32 %v34, %v51
  %v58 = vmul.f32 %v35, %v51
  %v59 = vmul.f32 %v36, %v51
  %v60 = vmul.f32 %v37, %v51
  %v61 = vmul.f32 %v38, %v51
  %v62 = vmul.f32 %v39, %v51
  %v63 = vmul.f32 %v40, %v51
  %v64 = vmul.f32 %v41, %v51
  %v65 = vmul.f32 %v42, %v51
  %v66 = vmul.f32 %v43, %v51
  %v67 = vmul.f32 %v44, %v51
  %v68 = vmul.f32 %v45, %v51
  %v69 = vld [vmem:[%s2] sm:$0x1]
  %v71 = vlaneseq
  %v72 = vshrl.u32 %v71, 7
  %v73 = vsub.s32 0, %v72
  %v74 = vrot.slane %v69, %v73
  %v76 = vadd.f32 %v53, %v74
  %v77 = vadd.f32 %v54, %v74
  %v78 = vadd.f32 %v55, %v74
  %v79 = vadd.f32 %v56, %v74
  %v80 = vadd.f32 %v57, %v74
  %v81 = vadd.f32 %v58, %v74
  %v82 = vadd.f32 %v59, %v74
  %v83 = vadd.f32 %v60, %v74
  %v84 = vadd.f32 %v61, %v74
  %v85 = vadd.f32 %v62, %v74
  %v86 = vadd.f32 %v63, %v74
  %v87 = vadd.f32 %v64, %v74
  %v88 = vadd.f32 %v65, %v74
  %v89 = vadd.f32 %v66, %v74
  %v90 = vadd.f32 %v67, %v74
  %v91 = vadd.f32 %v68, %v74
  %v92 = vmax.f32 %v76, 0.0
  %v93 = vmax.f32 %v77, 0.0
  %v94 = vmax.f32 %v78, 0.0
  %v95 = vmax.f32 %v79, 0.0
  %v96 = vmax.f32 %v80, 0.0
  %v97 = vmax.f32 %v81, 0.0
  %v98 = vmax.f32 %v82, 0.0
  %v99 = vmax.f32 %v83, 0.0
  %v100 = vmax.f32 %v84, 0.0
  %v101 = vmax.f32 %v85, 0.0
  %v102 = vmax.f32 %v86, 0.0
  %v103 = vmax.f32 %v87, 0.0
  %v104 = vmax.f32 %v88, 0.0
  %v105 = vmax.f32 %v89, 0.0
  %v106 = vmax.f32 %v90, 0.0
  %v107 = vmax.f32 %v91, 0.0
  %v108 = vpack.c.bf16 %v93, %v92
  %v109 = vpack.c.bf16 %v95, %v94
  %v110 = vpack.c.bf16 %v97, %v96
  %v111 = vpack.c.bf16 %v99, %v98
  %v112 = vpack.c.bf16 %v101, %v100
  %v113 = vpack.c.bf16 %v103, %v102
  %v114 = vpack.c.bf16 %v105, %v104
  %v115 = vpack.c.bf16 %v107, %v106
  %v124 = vunpack.c.l.b16 %v108
  %v125 = vunpack.c.h.b16 %v108
  %v126 = vunpack.c.l.b16 %v109
  %v127 = vunpack.c.h.b16 %v109
  %v128 = vunpack.c.l.b16 %v110
  %v129 = vunpack.c.h.b16 %v110
  %v130 = vunpack.c.l.b16 %v111
  %v131 = vunpack.c.h.b16 %v111
  %v132 = vunpack.c.l.b16 %v112
  %v133 = vunpack.c.h.b16 %v112
  %v134 = vunpack.c.l.b16 %v113
  %v135 = vunpack.c.h.b16 %v113
  %v136 = vunpack.c.l.b16 %v114
  %v137 = vunpack.c.h.b16 %v114
  %v138 = vunpack.c.l.b16 %v115
  %v139 = vunpack.c.h.b16 %v115
  %v140 = vpack.c.b16 %v124, %v124
  %v141 = vpack.c.b16 %v125, %v125
  %v142 = vpack.c.b16 %v126, %v126
  %v143 = vpack.c.b16 %v127, %v127
  %v144 = vpack.c.b16 %v128, %v128
  %v145 = vpack.c.b16 %v129, %v129
  %v146 = vpack.c.b16 %v130, %v130
  %v147 = vpack.c.b16 %v131, %v131
  %v148 = vpack.c.b16 %v132, %v132
  %v149 = vpack.c.b16 %v133, %v133
  %v150 = vpack.c.b16 %v134, %v134
  %v151 = vpack.c.b16 %v135, %v135
  %v152 = vpack.c.b16 %v136, %v136
  %v153 = vpack.c.b16 %v137, %v137
  %v154 = vpack.c.b16 %v138, %v138
  %v155 = vpack.c.b16 %v139, %v139
  %172 = vst [vmem:[%s3] sm:$0xf] %v140
  %173 = vst [vmem:[%s3 + $0x4] sm:$0xf] %v141
  %174 = vst [vmem:[%s3 + $0x8] sm:$0xf] %v142
  %175 = vst [vmem:[%s3 + $0xc] sm:$0xf] %v143
  %176 = vst [vmem:[%s3 + $0x10] sm:$0xf] %v144
  %177 = vst [vmem:[%s3 + $0x14] sm:$0xf] %v145
  %178 = vst [vmem:[%s3 + $0x18] sm:$0xf] %v146
  %179 = vst [vmem:[%s3 + $0x1c] sm:$0xf] %v147
  %180 = vst [vmem:[%s3 + $0x20] sm:$0xf] %v148
  %181 = vst [vmem:[%s3 + $0x24] sm:$0xf] %v149
  %182 = vst [vmem:[%s3 + $0x28] sm:$0xf] %v150
  %183 = vst [vmem:[%s3 + $0x2c] sm:$0xf] %v151
  %184 = vst [vmem:[%s3 + $0x30] sm:$0xf] %v152
  %185 = vst [vmem:[%s3 + $0x34] sm:$0xf] %v153
  %186 = vst [vmem:[%s3 + $0x38] sm:$0xf] %v154
  %187 = vst [vmem:[%s3 + $0x3c] sm:$0xf] %v155
  // Predicated region
  $region14: #{dfnet_forward.18} parent=0 // pred_check
    _
  $region15: #{dfnet_forward.18} parent=0 // pred_check_branch
    %189 = sbr.rel (0) target = $region17
  $region16: #{dfnet_forward.18} parent=0 // pred_region
    _
  $region17: #{dfnet_forward.18} parent=0 // pred_fallthru
    _
  // Predicated region
  $region18: #{dfnet_forward.18} parent=0 // pred_check
    _
  $region19: #{dfnet_forward.18} parent=0 // pred_check_branch
    %191 = sbr.rel (0) target = $region21
  $region20: #{dfnet_forward.18} parent=0 // pred_region
    _
  $region21: #{dfnet_forward.18} parent=0 // pred_fallthru
    _

// kernel: dfnet_forward.19
$region0: #{dfnet_forward.19}
  #allocation0 [shape = 'u32[]', space=smem, size = 0x4, offset = 0x4, fixed_abs, tag = 'smem constant byte address 0x4 - core index']
  #allocation1 [shape = 'u32[144,128]{1,0:T(1,128)}', space=vmem, size = 0x12000, scoped, tag = 'internal scratch']
  %s0 = inlined_call_operand.vmem [shape: bf16[4,128,256], index: 0, kind: input, shape index: {}]
  %s1 = inlined_call_operand.vmem [shape: bf16[4,256,128], index: 1, kind: input, shape index: {}]
  %s2 = inlined_call_operand.vmem [shape: f32[1,128], index: 2, kind: input, shape index: {}]
  %s3 = inlined_call_operand.vmem [shape: f32[4,128,128], index: 3, kind: output, shape index: {}]
  %s4 = sld [smem:[#allocation0]]
  $region45: #{dfnet_forward.19} parent=0
    _
  %s6 = ssub.s32 1, %s4
  %s7 = scalar_select 0, %s6, %s4
  loop: start=0, step=1, limit=6
  $region2: #{dfnet_forward.19} parent=0 // loop_pre_header
    _
  $region3: #{dfnet_forward.19} parent=0 // loop_header
    %s9 = sphi 0, %s13
    %p10 = scmp.ge.s32.totalorder %s9, 6
    %s16 = sphi 0, %s35
    %s17 = sphi 0, %s31
    %s18 = sphi 0, %s27
    %s19 = sphi 0, %s16
    %s20 = sphi 0, %s17
    %s21 = sphi 0, %s18
    %s22 = sphi 0, %s19
    %s23 = sphi 0, %s20
    %s24 = sphi 0, %s21
    %s40 = sphi 0, %s42
    %s43 = sphi 0, %s40
    %s44 = sphi 0, %s43
    %s60 = sphi 0, %s44
    %s68 = sphi 0, %s70
    %s71 = sphi 0, %s68
    %s72 = sphi 0, %s71
    %s88 = sphi 0, %s72
    %s94 = sphi 0, %s96
    %s97 = sphi 0, %s94
    %s98 = sphi 0, %s97
    %s114 = sphi 0, %s98
    %s124 = sphi 0, %s126
    %s127 = sphi 0, %s124
    %s128 = sphi 0, %s127
    %s144 = sphi 0, %s128
  $region4: #{dfnet_forward.19} parent=0 // loop_header_branch
    %12 = sbr.rel (%p10) target = $region8
  $region5: #{dfnet_forward.19} parent=0 // loop_body
    %s14 = ssub.s32 %s9, 1
    %s15 = ssub.s32 %s9, 2
    %s25 = sadd.s32 1, %s18
    %p26 = scmp.ge.s32.totalorder %s25, 1
    %s27 = scalar_select %p26, 0, %s25
    %s28 = sadd.s32 1, %s17
    %s29 = scalar_select %p26, %s28, %s17
    %p30 = scmp.ge.s32.totalorder %s29, 1
    %s31 = scalar_select %p30, 0, %s29
    %s32 = sadd.s32 1, %s16
    %s33 = scalar_select %p30, %s32, %s16
    %p34 = scmp.ge.s32.totalorder %s33, 4
    %s35 = scalar_select %p34, 0, %s33
    %s36 = ssub.s32 %s16, %s35
    %s37 = ssub.s32 %s17, %s31
    %s38 = sor.u32 %s36, %s37
    %p39 = scmp.eq.s32.totalorder %s38, 0
    %s41 = sadd.s32 %s40, 1
    %s42 = scalar_select %p39, %s40, %s41
    %p45 = pneg %p39
    %p46 = scmp.eq.s32.totalorder %s9, 3
    %p47 = por %p45, %p46
    %p48 = scmp.ne.s32.totalorder %s40, %s43
    %p49 = scmp.eq.s32.totalorder %s9, 0
    %p50 = por %p48, %p49
    %p51 = scmp.ne.s32.totalorder %s40, %s43
    %p52 = scmp.eq.s32.totalorder %s14, 3
    %p53 = por %p51, %p52
    %p54 = scmp.ne.s32.totalorder %s43, %s44
    %p55 = scmp.eq.s32.totalorder %s14, 0
    %p56 = por %p54, %p55
    %p57 = scmp.ne.s32.totalorder %s43, %s44
    %p58 = scmp.eq.s32.totalorder %s15, 3
    %p59 = por %p57, %p58
    %p61 = scmp.ne.s32.totalorder %s44, %s60
    %p62 = scmp.eq.s32.totalorder %s15, 0
    %p63 = por %p61, %p62
    %s64 = ssub.s32 %s16, %s35
    %s65 = ssub.s32 %s18, %s27
    %s66 = sor.u32 %s64, %s65
    %p67 = scmp.eq.s32.totalorder %s66, 0
    %s69 = sadd.s32 %s68, 1
    %s70 = scalar_select %p67, %s68, %s69
    %p73 = pneg %p67
    %p74 = scmp.eq.s32.totalorder %s9, 3
    %p75 = por %p73, %p74
    %p76 = scmp.ne.s32.totalorder %s68, %s71
    %p77 = scmp.eq.s32.totalorder %s9, 0
    %p78 = por %p76, %p77
    %p79 = scmp.ne.s32.totalorder %s68, %s71
    %p80 = scmp.eq.s32.totalorder %s14, 3
    %p81 = por %p79, %p80
    %p82 = scmp.ne.s32.totalorder %s71, %s72
    %p83 = scmp.eq.s32.totalorder %s14, 0
    %p84 = por %p82, %p83
    %p85 = scmp.ne.s32.totalorder %s71, %s72
    %p86 = scmp.eq.s32.totalorder %s15, 3
    %p87 = por %p85, %p86
    %p89 = scmp.ne.s32.totalorder %s72, %s88
    %p90 = scmp.eq.s32.totalorder %s15, 0
    %p91 = por %p89, %p90
    %s92 = ssub.s32 %s18, %s27
    %p93 = scmp.eq.s32.totalorder %s92, 0
    %s95 = sadd.s32 %s94, 1
    %s96 = scalar_select %p93, %s94, %s95
    %p99 = pneg %p93
    %p100 = scmp.eq.s32.totalorder %s9, 3
    %p101 = por %p99, %p100
    %p102 = scmp.ne.s32.totalorder %s94, %s97
    %p103 = scmp.eq.s32.totalorder %s9, 0
    %p104 = por %p102, %p103
    %p105 = scmp.ne.s32.totalorder %s94, %s97
    %p106 = scmp.eq.s32.totalorder %s14, 3
    %p107 = por %p105, %p106
    %p108 = scmp.ne.s32.totalorder %s97, %s98
    %p109 = scmp.eq.s32.totalorder %s14, 0
    %p110 = por %p108, %p109
    %p111 = scmp.ne.s32.totalorder %s97, %s98
    %p112 = scmp.eq.s32.totalorder %s15, 3
    %p113 = por %p111, %p112
    %p115 = scmp.ne.s32.totalorder %s98, %s114
    %p116 = scmp.eq.s32.totalorder %s15, 0
    %p117 = por %p115, %p116
    %s118 = ssub.s32 %s16, %s35
    %s119 = ssub.s32 %s17, %s31
    %s120 = sor.u32 %s118, %s119
    %s121 = ssub.s32 %s18, %s27
    %s122 = sor.u32 %s120, %s121
    %p123 = scmp.eq.s32.totalorder %s122, 0
    %s125 = sadd.s32 %s124, 1
    %s126 = scalar_select %p123, %s124, %s125
    %p129 = pneg %p123
    %p130 = scmp.eq.s32.totalorder %s9, 3
    %p131 = por %p129, %p130
    %p132 = scmp.ne.s32.totalorder %s124, %s127
    %p133 = scmp.eq.s32.totalorder %s9, 0
    %p134 = por %p132, %p133
    %p135 = scmp.ne.s32.totalorder %s124, %s127
    %p136 = scmp.eq.s32.totalorder %s14, 3
    %p137 = por %p135, %p136
    %p138 = scmp.ne.s32.totalorder %s127, %s128
    %p139 = scmp.eq.s32.totalorder %s14, 0
    %p140 = por %p138, %p139
    %p141 = scmp.ne.s32.totalorder %s127, %s128
    %p142 = scmp.eq.s32.totalorder %s15, 3
    %p143 = por %p141, %p142
    %p145 = scmp.ne.s32.totalorder %s128, %s144
    %p146 = scmp.eq.s32.totalorder %s15, 0
    %p147 = por %p145, %p146
    %p148 = scmp.le.s32.totalorder 1, %s9
    %p149 = scmp.lt.s32.totalorder %s9, 5
    %p150 = pnand %p148, %p149
    %p151 = pneg %p150
    // Predicated region
    $region9: #{dfnet_forward.19} parent=5 // pred_check
      _
    $region10: #{dfnet_forward.19} parent=5 // pred_check_branch
      %153 = sbr.rel (%p150) target = $region12
    $region11: #{dfnet_forward.19} parent=5 // pred_region
      %s154 = ssub.s32 %s9, 1
      // Predicated region
      $region13: #{dfnet_forward.19} parent=11 // pred_check
        %p155 = pneg %p110
      $region14: #{dfnet_forward.19} parent=11 // pred_check_branch
        %157 = sbr.rel (%p155) target = $region16
      $region15: #{dfnet_forward.19} parent=11 // pred_region
        %p158 = scmp.lt.s32.totalorder %s21, 0
        %s159 = scalar_select %p158, %s21, 0
        %s160 = scalar_lea.vmem %s2, %s159
      $region16: #{dfnet_forward.19} parent=11 // pred_fallthru
        _
    $region12: #{dfnet_forward.19} parent=5 // pred_fallthru
      _
    %p161 = scmp.lt.s32.totalorder %s9, 4
    // Predicated region
    $region17: #{dfnet_forward.19} parent=5 // pred_check
      %p162 = pneg %p161
    $region18: #{dfnet_forward.19} parent=5 // pred_check_branch
      %164 = sbr.rel (%p162) target = $region20
    $region19: #{dfnet_forward.19} parent=5 // pred_region
      // Predicated region
      $region21: #{dfnet_forward.19} parent=19 // pred_check
        %p165 = pneg %p50
      $region22: #{dfnet_forward.19} parent=19 // pred_check_branch
        %167 = sbr.rel (%p165) target = $region24
      $region23: #{dfnet_forward.19} parent=19 // pred_region
        %s168 = smul.u32 16, %s17
        %p169 = scmp.lt.s32.totalorder %s16, 3
        %s170 = scalar_select %p169, %s16, 3
        %p171 = scmp.lt.s32.totalorder %s168, 15
        %s172 = scalar_select %p171, %s168, 15
        %s173 = smul.addr %s172, 2
        %s174 = smul.addr %s170, 32
        %s175 = sadd.s32 %s173, %s174
        %s176 = smul.addr %s175, 4
        %s177 = scalar_lea.vmem %s0, %s176
        %s178 = smul.u32 16, %s17
      $region24: #{dfnet_forward.19} parent=19 // pred_fallthru
        _
      // Predicated region
      $region25: #{dfnet_forward.19} parent=19 // pred_check
        %p179 = pneg %p78
      $region26: #{dfnet_forward.19} parent=19 // pred_check_branch
        %181 = sbr.rel (%p179) target = $region28
      $region27: #{dfnet_forward.19} parent=19 // pred_region
        %p182 = scmp.lt.s32.totalorder %s16, 3
        %s183 = scalar_select %p182, %s16, 3
        %p184 = scmp.lt.s32.totalorder %s18, 0
        %s185 = scalar_select %p184, %s18, 0
        %s186 = smul.addr %s183, 32
        %s187 = sadd.s32 %s185, %s186
        %s188 = smul.addr %s187, 4
        %s189 = scalar_lea.vmem %s1, %s188
      $region28: #{dfnet_forward.19} parent=19 // pred_fallthru
        _
    $region20: #{dfnet_forward.19} parent=5 // pred_fallthru
      _
    %p190 = scmp.le.s32.totalorder 1, %s9
    %p191 = scmp.lt.s32.totalorder %s9, 5
    %p192 = pnand %p190, %p191
    %p193 = pneg %p192
    // Predicated region
    $region29: #{dfnet_forward.19} parent=5 // pred_check
      _
    $region30: #{dfnet_forward.19} parent=5 // pred_check_branch
      %195 = sbr.rel (%p192) target = $region32
    $region31: #{dfnet_forward.19} parent=5 // pred_region
      %s196 = ssub.s32 %s9, 1
      %s197 = smul.u32 16, %s20
      %p198 = scmp.lt.s32.totalorder %s19, 3
      %s199 = scalar_select %p198, %s19, 3
      %p200 = scmp.lt.s32.totalorder %s197, 15
      %s201 = scalar_select %p200, %s197, 15
      %s202 = smul.addr %s201, 2
      %s203 = smul.addr %s199, 32
      %s204 = sadd.s32 %s202, %s203
      %s205 = smul.addr %s204, 4
      %s206 = scalar_lea.vmem %s0, %s205
      %p207 = pneg %p56
      %p208 = pneg %p53
      %p209 = scmp.lt.s32.totalorder %s19, 3
      %s210 = scalar_select %p209, %s19, 3
      %p211 = scmp.lt.s32.totalorder %s21, 0
      %s212 = scalar_select %p211, %s21, 0
      %s213 = smul.addr %s210, 32
      %s214 = sadd.s32 %s212, %s213
      %s215 = smul.addr %s214, 4
      %s216 = scalar_lea.vmem %s1, %s215
      %p217 = pneg %p84
      %p218 = pneg %p81
      %p219 = scmp.lt.s32.totalorder %s21, 0
      %s220 = scalar_select %p219, %s21, 0
      %s221 = scalar_lea.vmem %s2, %s220
      %p222 = pneg %p110
      %p223 = pneg %p107
      %p224 = pneg %p140
      %p225 = pneg %p137
      %s226 = smul.u32 16, %s20
      %p227 = scmp.lt.s32.totalorder %s19, 3
      %s228 = scalar_select %p227, %s19, 3
      %p229 = scmp.lt.s32.totalorder %s226, 15
      %s230 = scalar_select %p229, %s226, 15
      %p231 = scmp.lt.s32.totalorder %s21, 0
      %s232 = scalar_select %p231, %s21, 0
      %s233 = sadd.s32 %s232, %s230
      %s234 = smul.addr %s228, 16
      %s235 = sadd.s32 %s233, %s234
      %s236 = smul.addr %s235, 8
      %s237 = scalar_lea.vmem %s3, %s236
      %s238 = smul.u32 16, %s20
      %p239 = scmp.lt.s32.totalorder %s19, 3
      %s240 = scalar_select %p239, %s19, 3
      %p241 = scmp.lt.s32.totalorder %s238, 15
      %s242 = scalar_select %p241, %s238, 15
      %s243 = smul.addr %s242, 2
      %s244 = smul.addr %s240, 32
      %s245 = sadd.s32 %s243, %s244
      %s246 = smul.addr %s245, 4
      %s247 = scalar_lea.vmem %s0, %s246
      %s248 = smul.u32 16, %s20
      %p249 = scmp.lt.s32.totalorder %s19, 3
      %s250 = scalar_select %p249, %s19, 3
      %p251 = scmp.lt.s32.totalorder %s21, 0
      %s252 = scalar_select %p251, %s21, 0
      %s253 = smul.addr %s250, 32
      %s254 = sadd.s32 %s252, %s253
      %s255 = smul.addr %s254, 4
      %s256 = scalar_lea.vmem %s1, %s255
      %p257 = scmp.lt.s32.totalorder %s21, 0
      %s258 = scalar_select %p257, %s21, 0
      %s259 = scalar_lea.vmem %s2, %s258
      %s260 = smul.u32 16, %s20
      %p261 = scmp.lt.s32.totalorder %s19, 3
      %s262 = scalar_select %p261, %s19, 3
      %p263 = scmp.lt.s32.totalorder %s260, 15
      %s264 = scalar_select %p263, %s260, 15
      %p265 = scmp.lt.s32.totalorder %s21, 0
      %s266 = scalar_select %p265, %s21, 0
      %s267 = sadd.s32 %s266, %s264
      %s268 = smul.addr %s262, 16
      %s269 = sadd.s32 %s267, %s268
      %s270 = smul.addr %s269, 8
      %s271 = scalar_lea.vmem %s3, %s270
      %s272 = smul.u32 16, %s20
      %v274 = vld [vmem:[%s247] sm:$0xff]
      %v275 = vld [vmem:[%s247 + $0x8] sm:$0xff]
      %v276 = vld [vmem:[%s247 + $0x10] sm:$0xff]
      %v277 = vld [vmem:[%s247 + $0x18] sm:$0xff]
      %v278 = vld [vmem:[%s247 + $0x20] sm:$0xff]
      %v279 = vld [vmem:[%s247 + $0x28] sm:$0xff]
      %v280 = vld [vmem:[%s247 + $0x30] sm:$0xff]
      %v281 = vld [vmem:[%s247 + $0x38] sm:$0xff]
      %v282 = vld [vmem:[%s247 + $0x40] sm:$0xff]
      %v283 = vld [vmem:[%s247 + $0x48] sm:$0xff]
      %v284 = vld [vmem:[%s247 + $0x50] sm:$0xff]
      %v285 = vld [vmem:[%s247 + $0x58] sm:$0xff]
      %v286 = vld [vmem:[%s247 + $0x60] sm:$0xff]
      %v287 = vld [vmem:[%s247 + $0x68] sm:$0xff]
      %v288 = vld [vmem:[%s247 + $0x70] sm:$0xff]
      %v289 = vld [vmem:[%s247 + $0x78] sm:$0xff]
      %v290 = vld [vmem:[%s256] sm:$0xf]
      %v291 = vld [vmem:[%s256 + $0x4] sm:$0xf]
      %v292 = vld [vmem:[%s256 + $0x8] sm:$0xf]
      %v293 = vld [vmem:[%s256 + $0xc] sm:$0xf]
      %v294 = vld [vmem:[%s256 + $0x10] sm:$0xf]
      %v295 = vld [vmem:[%s256 + $0x14] sm:$0xf]
      %v296 = vld [vmem:[%s256 + $0x18] sm:$0xf]
      %v297 = vld [vmem:[%s256 + $0x1c] sm:$0xf]
      %v298 = vld [vmem:[%s256 + $0x20] sm:$0xf]
      %v299 = vld [vmem:[%s256 + $0x24] sm:$0xf]
      %v300 = vld [vmem:[%s256 + $0x28] sm:$0xf]
      %v301 = vld [vmem:[%s256 + $0x2c] sm:$0xf]
      %v302 = vld [vmem:[%s256 + $0x30] sm:$0xf]
      %v303 = vld [vmem:[%s256 + $0x34] sm:$0xf]
      %v304 = vld [vmem:[%s256 + $0x38] sm:$0xf]
      %v305 = vld [vmem:[%s256 + $0x3c] sm:$0xf]
      %v306 = vld [vmem:[%s256 + $0x40] sm:$0xf]
      %v307 = vld [vmem:[%s256 + $0x44] sm:$0xf]
      %v308 = vld [vmem:[%s256 + $0x48] sm:$0xf]
      %v309 = vld [vmem:[%s256 + $0x4c] sm:$0xf]
      %v310 = vld [vmem:[%s256 + $0x50] sm:$0xf]
      %v311 = vld [vmem:[%s256 + $0x54] sm:$0xf]
      %v312 = vld [vmem:[%s256 + $0x58] sm:$0xf]
      %v313 = vld [vmem:[%s256 + $0x5c] sm:$0xf]
      %v314 = vld [vmem:[%s256 + $0x60] sm:$0xf]
      %v315 = vld [vmem:[%s256 + $0x64] sm:$0xf]
      %v316 = vld [vmem:[%s256 + $0x68] sm:$0xf]
      %v317 = vld [vmem:[%s256 + $0x6c] sm:$0xf]
      %v318 = vld [vmem:[%s256 + $0x70] sm:$0xf]
      %v319 = vld [vmem:[%s256 + $0x74] sm:$0xf]
      %v320 = vld [vmem:[%s256 + $0x78] sm:$0xf]
      %v321 = vld [vmem:[%s256 + $0x7c] sm:$0xf]
      %v322 = vld [vmem:[%s259] sm:$0x1]
      %v324 = vlaneseq
      %v325 = vshrl.u32 %v324, 7
      %v326 = vsub.s32 0, %v325
      %v327 = vrot.slane %v322, %v326
      %v345 = vunpack.c.l.b16 %v274
      %v346 = vunpack.c.h.b16 %v274
      %v347 = vunpack.c.l.b16 %v275
      %v348 = vunpack.c.h.b16 %v275
      %v349 = vunpack.c.l.b16 %v276
      %v350 = vunpack.c.h.b16 %v276
      %v351 = vunpack.c.l.b16 %v277
      %v352 = vunpack.c.h.b16 %v277
      %v353 = vunpack.c.l.b16 %v278
      %v354 = vunpack.c.h.b16 %v278
      %v355 = vunpack.c.l.b16 %v279
      %v356 = vunpack.c.h.b16 %v279
      %v357 = vunpack.c.l.b16 %v280
      %v358 = vunpack.c.h.b16 %v280
      %v359 = vunpack.c.l.b16 %v281
      %v360 = vunpack.c.h.b16 %v281
      %v361 = vunpack.c.l.b16 %v282
      %v362 = vunpack.c.h.b16 %v282
      %v363 = vunpack.c.l.b16 %v283
      %v364 = vunpack.c.h.b16 %v283
      %v365 = vunpack.c.l.b16 %v284
      %v366 = vunpack.c.h.b16 %v284
      %v367 = vunpack.c.l.b16 %v285
      %v368 = vunpack.c.h.b16 %v285
      %v369 = vunpack.c.l.b16 %v286
      %v370 = vunpack.c.h.b16 %v286
      %v371 = vunpack.c.l.b16 %v287
      %v372 = vunpack.c.h.b16 %v287
      %v373 = vunpack.c.l.b16 %v288
      %v374 = vunpack.c.h.b16 %v288
      %v375 = vunpack.c.l.b16 %v289
      %v376 = vunpack.c.h.b16 %v289
      %v377 = vpack.c.b16 %v347, %v345
      %v378 = vpack.c.b16 %v348, %v346
      %v379 = vpack.c.b16 %v351, %v349
      %v380 = vpack.c.b16 %v352, %v350
      %v381 = vpack.c.b16 %v355, %v353
      %v382 = vpack.c.b16 %v356, %v354
      %v383 = vpack.c.b16 %v359, %v357
      %v384 = vpack.c.b16 %v360, %v358
      %v385 = vpack.c.b16 %v363, %v361
      %v386 = vpack.c.b16 %v364, %v362
      %v387 = vpack.c.b16 %v367, %v365
      %v388 = vpack.c.b16 %v368, %v366
      %v389 = vpack.c.b16 %v371, %v369
      %v390 = vpack.c.b16 %v372, %v370
      %v391 = vpack.c.b16 %v375, %v373
      %v392 = vpack.c.b16 %v376, %v374
      %v441 = vunpack.c.l.b16 %v290
      %v442 = vunpack.c.l.b16 %v291
      %v443 = vunpack.c.l.b16 %v292
      %v444 = vunpack.c.l.b16 %v293
      %v445 = vunpack.c.l.b16 %v294
      %v446 = vunpack.c.l.b16 %v295
      %v447 = vunpack.c.l.b16 %v296
      %v448 = vunpack.c.l.b16 %v297
      %v449 = vunpack.c.l.b16 %v298
      %v450 = vunpack.c.l.b16 %v299
      %v451 = vunpack.c.l.b16 %v300
      %v452 = vunpack.c.l.b16 %v301
      %v453 = vunpack.c.l.b16 %v302
      %v454 = vunpack.c.l.b16 %v303
      %v455 = vunpack.c.l.b16 %v304
      %v456 = vunpack.c.l.b16 %v305
      %v457 = vunpack.c.l.b16 %v306
      %v458 = vunpack.c.l.b16 %v307
      %v459 = vunpack.c.l.b16 %v308
      %v460 = vunpack.c.l.b16 %v309
      %v461 = vunpack.c.l.b16 %v310
      %v462 = vunpack.c.l.b16 %v311
      %v463 = vunpack.c.l.b16 %v312
      %v464 = vunpack.c.l.b16 %v313
      %v465 = vunpack.c.l.b16 %v314
      %v466 = vunpack.c.l.b16 %v315
      %v467 = vunpack.c.l.b16 %v316
      %v468 = vunpack.c.l.b16 %v317
      %v469 = vunpack.c.l.b16 %v318
      %v470 = vunpack.c.l.b16 %v319
      %v471 = vunpack.c.l.b16 %v320
      %v472 = vunpack.c.l.b16 %v321
      %v473 = vpack.c.b16 %v442, %v441
      %v474 = vpack.c.b16 %v444, %v443
      %v475 = vpack.c.b16 %v446, %v445
      %v476 = vpack.c.b16 %v448, %v447
      %v477 = vpack.c.b16 %v450, %v449
      %v478 = vpack.c.b16 %v452, %v451
      %v479 = vpack.c.b16 %v454, %v453
      %v480 = vpack.c.b16 %v456, %v455
      %v481 = vpack.c.b16 %v458, %v457
      %v482 = vpack.c.b16 %v460, %v459
      %v483 = vpack.c.b16 %v462, %v461
      %v484 = vpack.c.b16 %v464, %v463
      %v485 = vpack.c.b16 %v466, %v465
      %v486 = vpack.c.b16 %v468, %v467
      %v487 = vpack.c.b16 %v470, %v469
      %v488 = vpack.c.b16 %v472, %v471
      %505 = vmatprep.subr.bf16.mxu0 0
      %506 = vmatpush1.bf16.msra.mxu0 %v480
      %507 = vmatprep.subr.bf16.mxu0 0
      %508 = vmatpush1.bf16.msra.mxu0 %v479
      %509 = vmatprep.subr.bf16.mxu0 0
      %510 = vmatpush1.bf16.msra.mxu0 %v478
      %511 = vmatprep.subr.bf16.mxu0 0
      %512 = vmatpush1.bf16.msra.mxu0 %v477
      %513 = vmatprep.subr.bf16.mxu0 0
      %514 = vmatpush1.bf16.msra.mxu0 %v476
      %515 = vmatprep.subr.bf16.mxu0 0
      %516 = vmatpush1.bf16.msra.mxu0 %v475
      %517 = vmatprep.subr.bf16.mxu0 0
      %518 = vmatpush1.bf16.msra.mxu0 %v474
      %519 = vmatprep.subr.bf16.mxu0 0
      %520 = vmatpush1.bf16.msra.mxu0 %v473
      %521 = vmatprep.subr.bf16.mxu0 0
      %522 = vmatpush2.bf16.msra.mxu0 %v488
      %523 = vmatprep.subr.bf16.mxu0 0
      %524 = vmatpush2.bf16.msra.mxu0 %v487
      %525 = vmatprep.subr.bf16.mxu0 0
      %526 = vmatpush2.bf16.msra.mxu0 %v486
      %527 = vmatprep.subr.bf16.mxu0 0
      %528 = vmatpush2.bf16.msra.mxu0 %v485
      %529 = vmatprep.subr.bf16.mxu0 0
      %530 = vmatpush2.bf16.msra.mxu0 %v484
      %531 = vmatprep.subr.bf16.mxu0 0
      %532 = vmatpush2.bf16.msra.mxu0 %v483
      %533 = vmatprep.subr.bf16.mxu0 0
      %534 = vmatpush2.bf16.msra.mxu0 %v482
      %535 = vmatprep.subr.bf16.mxu0 0
      %536 = vmatpush2.bf16.msra.mxu0 %v481
      %537 = vmatprep.mubr.bf16.mxu0 %v378
      %538 = vmatmul.mubr.bf16.gmra.mxu0 %v377
      %v539 = vpop.f32.mrf.mxu0
      %v540 = vadd.f32 %v327, %v539
      %v541 = vpop.f32.mrf.mxu0
      %v542 = vpop.f32.mrf.mxu0
      %v543 = vadd.f32 %v327, %v542
      %v544 = vpop.f32.mrf.mxu0
      %545 = vmatprep.mubr.bf16.mxu0 %v380
      %546 = vmatmul.mubr.bf16.gmra.mxu0 %v379
      %v547 = vpop.f32.mrf.mxu0
      %v548 = vadd.f32 %v327, %v547
      %v549 = vpop.f32.mrf.mxu0
      %v550 = vpop.f32.mrf.mxu0
      %v551 = vadd.f32 %v327, %v550
      %v552 = vpop.f32.mrf.mxu0
      %553 = vmatprep.mubr.bf16.mxu0 %v382
      %554 = vmatmul.mubr.bf16.gmra.mxu0 %v381
      %v555 = vpop.f32.mrf.mxu0
      %v556 = vadd.f32 %v327, %v555
      %v557 = vpop.f32.mrf.mxu0
      %v558 = vpop.f32.mrf.mxu0
      %v559 = vadd.f32 %v327, %v558
      %v560 = vpop.f32.mrf.mxu0
      %561 = vmatprep.mubr.bf16.mxu0 %v384
      %562 = vmatmul.mubr.bf16.gmra.mxu0 %v383
      %v563 = vpop.f32.mrf.mxu0
      %v564 = vadd.f32 %v327, %v563
      %v565 = vpop.f32.mrf.mxu0
      %v566 = vpop.f32.mrf.mxu0
      %v567 = vadd.f32 %v327, %v566
      %v568 = vpop.f32.mrf.mxu0
      %569 = vmatprep.mubr.bf16.mxu0 %v386
      %570 = vmatmul.mubr.bf16.gmra.mxu0 %v385
      %v571 = vpop.f32.mrf.mxu0
      %v572 = vadd.f32 %v327, %v571
      %v573 = vpop.f32.mrf.mxu0
      %v574 = vpop.f32.mrf.mxu0
      %v575 = vadd.f32 %v327, %v574
      %v576 = vpop.f32.mrf.mxu0
      %577 = vmatprep.mubr.bf16.mxu0 %v388
      %578 = vmatmul.mubr.bf16.gmra.mxu0 %v387
      %v579 = vpop.f32.mrf.mxu0
      %v580 = vadd.f32 %v327, %v579
      %v581 = vpop.f32.mrf.mxu0
      %v582 = vpop.f32.mrf.mxu0
      %v583 = vadd.f32 %v327, %v582
      %v584 = vpop.f32.mrf.mxu0
      %585 = vmatprep.mubr.bf16.mxu0 %v390
      %586 = vmatmul.mubr.bf16.gmra.mxu0 %v389
      %v587 = vpop.f32.mrf.mxu0
      %v588 = vadd.f32 %v327, %v587
      %v589 = vpop.f32.mrf.mxu0
      %v590 = vpop.f32.mrf.mxu0
      %v591 = vadd.f32 %v327, %v590
      %v592 = vpop.f32.mrf.mxu0
      %593 = vmatprep.mubr.bf16.mxu0 %v392
      %594 = vmatmul.mubr.bf16.gmra.mxu0 %v391
      %v595 = vpop.f32.mrf.mxu0
      %v596 = vadd.f32 %v327, %v595
      %v597 = vpop.f32.mrf.mxu0
      %v598 = vpop.f32.mrf.mxu0
      %v599 = vadd.f32 %v327, %v598
      %v600 = vpop.f32.mrf.mxu0
      %601 = vdwg.mxu0
      %v602 = vxor.u32 %v540, 2147483648
      %v603 = vxor.u32 %v543, 2147483648
      %v604 = vxor.u32 %v548, 2147483648
      %v605 = vxor.u32 %v551, 2147483648
      %v606 = vxor.u32 %v556, 2147483648
      %v607 = vxor.u32 %v559, 2147483648
      %v608 = vxor.u32 %v564, 2147483648
      %v609 = vxor.u32 %v567, 2147483648
      %v610 = vxor.u32 %v572, 2147483648
      %v611 = vxor.u32 %v575, 2147483648
      %v612 = vxor.u32 %v580, 2147483648
      %v613 = vxor.u32 %v583, 2147483648
      %v614 = vxor.u32 %v588, 2147483648
      %v615 = vxor.u32 %v591, 2147483648
      %v616 = vxor.u32 %v596, 2147483648
      %v617 = vxor.u32 %v599, 2147483648
      %v618 = vmul.f32 %v602, 1.442695
      %v619 = vpow.pop %v618
      %v620 = vmul.f32 %v603, 1.442695
      %v621 = vpow.pop %v620
      %v622 = vmul.f32 %v604, 1.442695
      %v623 = vpow.pop %v622
      %v624 = vmul.f32 %v605, 1.442695
      %v625 = vpow.pop %v624
      %v626 = vmul.f32 %v606, 1.442695
      %v627 = vpow.pop %v626
      %v628 = vmul.f32 %v607, 1.442695
      %v629 = vpow.pop %v628
      %v630 = vmul.f32 %v608, 1.442695
      %v631 = vpow.pop %v630
      %v632 = vmul.f32 %v609, 1.442695
      %v633 = vpow.pop %v632
      %v634 = vmul.f32 %v610, 1.442695
      %v635 = vpow.pop %v634
      %v636 = vmul.f32 %v611, 1.442695
      %v637 = vpow.pop %v636
      %v638 = vmul.f32 %v612, 1.442695
      %v639 = vpow.pop %v638
      %v640 = vmul.f32 %v613, 1.442695
      %v641 = vpow.pop %v640
      %v642 = vmul.f32 %v614, 1.442695
      %v643 = vpow.pop %v642
      %v644 = vmul.f32 %v615, 1.442695
      %v645 = vpow.pop %v644
      %v646 = vmul.f32 %v616, 1.442695
      %v647 = vpow.pop %v646
      %v648 = vmul.f32 %v617, 1.442695
      %v649 = vpow.pop %v648
      %v650 = vadd.f32 %v619, 1.0
      %v651 = vadd.f32 %v621, 1.0
      %v652 = vadd.f32 %v623, 1.0
      %v653 = vadd.f32 %v625, 1.0
      %v654 = vadd.f32 %v627, 1.0
      %v655 = vadd.f32 %v629, 1.0
      %v656 = vadd.f32 %v631, 1.0
      %v657 = vadd.f32 %v633, 1.0
      %v658 = vadd.f32 %v635, 1.0
      %v659 = vadd.f32 %v637, 1.0
      %v660 = vadd.f32 %v639, 1.0
      %v661 = vadd.f32 %v641, 1.0
      %v662 = vadd.f32 %v643, 1.0
      %v663 = vadd.f32 %v645, 1.0
      %v664 = vadd.f32 %v647, 1.0
      %v665 = vadd.f32 %v649, 1.0
      %v666 = vrcp.pop %v650
      %v667 = vmul.f32 1.0, %v666
      %v668 = vrcp.pop %v651
      %v669 = vmul.f32 1.0, %v668
      %v670 = vrcp.pop %v652
      %v671 = vmul.f32 1.0, %v670
      %v672 = vrcp.pop %v653
      %v673 = vmul.f32 1.0, %v672
      %v674 = vrcp.pop %v654
      %v675 = vmul.f32 1.0, %v674
      %v676 = vrcp.pop %v655
      %v677 = vmul.f32 1.0, %v676
      %v678 = vrcp.pop %v656
      %v679 = vmul.f32 1.0, %v678
      %v680 = vrcp.pop %v657
      %v681 = vmul.f32 1.0, %v680
      %v682 = vrcp.pop %v658
      %v683 = vmul.f32 1.0, %v682
      %v684 = vrcp.pop %v659
      %v685 = vmul.f32 1.0, %v684
      %v686 = vrcp.pop %v660
      %v687 = vmul.f32 1.0, %v686
      %v688 = vrcp.pop %v661
      %v689 = vmul.f32 1.0, %v688
      %v690 = vrcp.pop %v662
      %v691 = vmul.f32 1.0, %v690
      %v692 = vrcp.pop %v663
      %v693 = vmul.f32 1.0, %v692
      %v694 = vrcp.pop %v664
      %v695 = vmul.f32 1.0, %v694
      %v696 = vrcp.pop %v665
      %v697 = vmul.f32 1.0, %v696
      %698 = vst [vmem:[%s271] sm:$0xff] %v667
      %699 = vst [vmem:[%s271 + $0x8] sm:$0xff] %v669
      %700 = vst [vmem:[%s271 + $0x10] sm:$0xff] %v671
      %701 = vst [vmem:[%s271 + $0x18] sm:$0xff] %v673
      %702 = vst [vmem:[%s271 + $0x20] sm:$0xff] %v675
      %703 = vst [vmem:[%s271 + $0x28] sm:$0xff] %v677
      %704 = vst [vmem:[%s271 + $0x30] sm:$0xff] %v679
      %705 = vst [vmem:[%s271 + $0x38] sm:$0xff] %v681
      %706 = vst [vmem:[%s271 + $0x40] sm:$0xff] %v683
      %707 = vst [vmem:[%s271 + $0x48] sm:$0xff] %v685
      %708 = vst [vmem:[%s271 + $0x50] sm:$0xff] %v687
      %709 = vst [vmem:[%s271 + $0x58] sm:$0xff] %v689
      %710 = vst [vmem:[%s271 + $0x60] sm:$0xff] %v691
      %711 = vst [vmem:[%s271 + $0x68] sm:$0xff] %v693
      %712 = vst [vmem:[%s271 + $0x70] sm:$0xff] %v695
      %713 = vst [vmem:[%s271 + $0x78] sm:$0xff] %v697
      %s714 = smul.u32 16, %s20
      %p715 = scmp.lt.s32.totalorder %s19, 3
      %s716 = scalar_select %p715, %s19, 3
      %p717 = scmp.lt.s32.totalorder %s714, 15
      %s718 = scalar_select %p717, %s714, 15
      %p719 = scmp.lt.s32.totalorder %s21, 0
      %s720 = scalar_select %p719, %s21, 0
      %s721 = sadd.s32 %s720, %s718
      %s722 = smul.addr %s716, 16
      %s723 = sadd.s32 %s721, %s722
      %s724 = smul.addr %s723, 8
      %s725 = scalar_lea.vmem %s3, %s724
      // Predicated region
      $region33: #{dfnet_forward.19} parent=31 // pred_check
        %p726 = pneg %p137
      $region34: #{dfnet_forward.19} parent=31 // pred_check_branch
        %728 = sbr.rel (%p726) target = $region36
      $region35: #{dfnet_forward.19} parent=31 // pred_region
        %s729 = smul.u32 16, %s20
      $region36: #{dfnet_forward.19} parent=31 // pred_fallthru
        _
    $region32: #{dfnet_forward.19} parent=5 // pred_fallthru
      _
    %p730 = scmp.le.s32.totalorder 2, %s9
    // Predicated region
    $region37: #{dfnet_forward.19} parent=5 // pred_check
      %p731 = pneg %p730
    $region38: #{dfnet_forward.19} parent=5 // pred_check_branch
      %733 = sbr.rel (%p731) target = $region40
    $region39: #{dfnet_forward.19} parent=5 // pred_region
      %s734 = ssub.s32 %s9, 2
      // Predicated region
      $region41: #{dfnet_forward.19} parent=39 // pred_check
        %p735 = pneg %p143
      $region42: #{dfnet_forward.19} parent=39 // pred_check_branch
        %737 = sbr.rel (%p735) target = $region44
      $region43: #{dfnet_forward.19} parent=39 // pred_region
        %s738 = smul.u32 16, %s23
        %p739 = scmp.lt.s32.totalorder %s22, 3
        %s740 = scalar_select %p739, %s22, 3
        %p741 = scmp.lt.s32.totalorder %s738, 15
        %s742 = scalar_select %p741, %s738, 15
        %p743 = scmp.lt.s32.totalorder %s24, 0
        %s744 = scalar_select %p743, %s24, 0
        %s745 = sadd.s32 %s744, %s742
        %s746 = smul.addr %s740, 16
        %s747 = sadd.s32 %s745, %s746
        %s748 = smul.addr %s747, 8
        %s749 = scalar_lea.vmem %s3, %s748
      $region44: #{dfnet_forward.19} parent=39 // pred_fallthru
        _
    $region40: #{dfnet_forward.19} parent=5 // pred_fallthru
      _
  $region6: #{dfnet_forward.19} parent=0 // loop_footer
    %s13 = sadd.s32 1, %s9
  $region7: #{dfnet_forward.19} parent=0 // loop_footer_branch
    %8 = sbr.rel target = $region3
  $region8: #{dfnet_forward.19} parent=0 // loop_exit
    _

</llo_original>
